<compile_context>
chip_gen: v6e
topology: v6e:2x2x1
jax: 0.10.0
libtpu: 0.0.40
codegen_flags: <defaults>
</compile_context>

<pallas_src>
import functools

import jax
import jax.numpy as jnp
from jax.experimental import pallas as pl
from jax.experimental.pallas import tpu as pltpu


# ----------------------------- Pallas kernels -------------------------------

def _relu6(x):
    return jnp.minimum(jnp.maximum(x, 0.0), 6.0)


def _mm_kernel(x_ref, w_ref, b_ref, o_ref, *, act):
    acc = jnp.dot(x_ref[...], w_ref[...], preferred_element_type=jnp.float32)
    acc = acc + b_ref[...]
    if act:
        acc = _relu6(acc)
    o_ref[...] = acc.astype(o_ref.dtype)


def _mm_res_kernel(x_ref, w_ref, b_ref, r_ref, o_ref, *, act):
    acc = jnp.dot(x_ref[...], w_ref[...], preferred_element_type=jnp.float32)
    acc = acc + b_ref[...] + r_ref[...].astype(jnp.float32)
    if act:
        acc = _relu6(acc)
    o_ref[...] = acc.astype(o_ref.dtype)


def matmul_bias(x, w, b, *, act, res=None, tm=1024):
    """(M,K)@(K,Cout) + bias [+ residual], optional ReLU6.

    bf16 MXU inputs, f32 accumulation/epilogue.  Tiled over M ("parallel" axis):
    weight/bias blocks stay resident across the grid, activation/output tiles are
    software-pipelined.
    """
    M, K = x.shape
    Cout = w.shape[1]
    TM = min(tm, M)
    grid = (pl.cdiv(M, TM),)
    in_specs = [
        pl.BlockSpec((TM, K), lambda i: (i, 0)),
        pl.BlockSpec((K, Cout), lambda i: (0, 0)),      # resident weights
        pl.BlockSpec((1, Cout), lambda i: (0, 0)),      # resident bias
    ]
    args = [x, w, b.reshape(1, Cout)]
    if res is None:
        kern = functools.partial(_mm_kernel, act=act)
    else:
        in_specs.append(pl.BlockSpec((TM, Cout), lambda i: (i, 0)))
        args.append(res)
        kern = functools.partial(_mm_res_kernel, act=act)
    bytes_accessed = M * K * 2 + K * Cout * 2 + Cout * 4 + M * Cout * 2
    if res is not None:
        bytes_accessed += M * Cout * 2
    return pl.pallas_call(
        kern,
        out_shape=jax.ShapeDtypeStruct((M, Cout), jnp.bfloat16),
        grid=grid,
        in_specs=in_specs,
        out_specs=pl.BlockSpec((TM, Cout), lambda i: (i, 0)),
        compiler_params=pltpu.CompilerParams(dimension_semantics=("parallel",)),
        cost_estimate=pl.CostEstimate(flops=int(2 * M * K * Cout), transcendentals=0,
                                      bytes_accessed=int(bytes_accessed)),
    )(*args)


def _dw_s1_kernel(xp_ref, w_ref, b_ref, o_ref, *, act):
    # xp_ref: (1, H+2, W+2, C) zero-padded bf16; w_ref: (9, C) f32; b_ref: (1, C) f32
    _, H, W, C = o_ref.shape
    x = xp_ref[...].astype(jnp.float32)[0]               # (H+2, W+2, C)
    acc = jnp.zeros((H, W, C), jnp.float32)
    for dy in range(3):
        for dx in range(3):
            acc = acc + x[dy:dy + H, dx:dx + W, :] * w_ref[dy * 3 + dx, :]
    acc = acc + b_ref[...][0]
    if act:
        acc = _relu6(acc)
    o_ref[...] = acc.astype(o_ref.dtype)[None, :, :, :]


def _dw_s2_kernel(ph_ref, w_ref, b_ref, o_ref, *, act):
    # Stride-2 depthwise computed directly on the 2x2 phase decomposition of the
    # padded input: ph[py*2+px, i, j, c] == xp[2*i+py, 2*j+px, c].
    _, Ho, Wo, C = o_ref.shape
    ph = ph_ref[...].astype(jnp.float32)                  # (4, Ho+1, Wo+1, C)
    acc = jnp.zeros((Ho, Wo, C), jnp.float32)
    for dy in range(3):
        for dx in range(3):
            src = ph[(dy & 1) * 2 + (dx & 1)]
            tap = src[dy // 2:dy // 2 + Ho, dx // 2:dx // 2 + Wo, :]
            acc = acc + tap * w_ref[dy * 3 + dx, :]
    acc = acc + b_ref[...][0]
    if act:
        acc = _relu6(acc)
    o_ref[...] = acc.astype(o_ref.dtype)[None, :, :, :]


def dwconv3x3(x, w9, b, stride, act):
    """Depthwise 3x3, padding=1, stride 1 or 2.  VPU shifted-MAC kernel (f32 MACs)."""
    N, H, W, C = x.shape
    xp = jnp.pad(x, ((0, 0), (1, 1), (1, 1), (0, 0)))
    if stride == 2 and H % 2 == 0 and W % 2 == 0:
        Hh, Wh = (H + 2) // 2, (W + 2) // 2               # = Ho+1, Wo+1
        Ho, Wo = H // 2, W // 2
        # 2x2 phase split done once in XLA; kernel accesses are all unit-stride.
        ph = xp.reshape(N, Hh, 2, Wh, 2, C).transpose(0, 2, 4, 1, 3, 5)
        ph = ph.reshape(N * 4, Hh, Wh, C)
        bytes_accessed = N * 4 * Hh * Wh * C * 2 + 9 * C * 4 + C * 4 + N * Ho * Wo * C * 2
        return pl.pallas_call(
            functools.partial(_dw_s2_kernel, act=act),
            out_shape=jax.ShapeDtypeStruct((N, Ho, Wo, C), jnp.bfloat16),
            grid=(N,),
            in_specs=[pl.BlockSpec((4, Hh, Wh, C), lambda n: (n, 0, 0, 0)),
                      pl.BlockSpec((9, C), lambda n: (0, 0)),
                      pl.BlockSpec((1, C), lambda n: (0, 0))],
            out_specs=pl.BlockSpec((1, Ho, Wo, C), lambda n: (n, 0, 0, 0)),
            compiler_params=pltpu.CompilerParams(dimension_semantics=("parallel",)),
            cost_estimate=pl.CostEstimate(flops=int(2 * 9 * N * Ho * Wo * C),
                                          transcendentals=0,
                                          bytes_accessed=int(bytes_accessed)),
        )(ph, w9, b.reshape(1, C))

    # stride-1 path (also the exact fallback for odd-sized stride-2 inputs).
    bytes_accessed = N * (H + 2) * (W + 2) * C * 2 + 9 * C * 4 + C * 4 + N * H * W * C * 2
    out = pl.pallas_call(
        functools.partial(_dw_s1_kernel, act=act),
        out_shape=jax.ShapeDtypeStruct((N, H, W, C), jnp.bfloat16),
        grid=(N,),
        in_specs=[pl.BlockSpec((1, H + 2, W + 2, C), lambda n: (n, 0, 0, 0)),
                  pl.BlockSpec((9, C), lambda n: (0, 0)),
                  pl.BlockSpec((1, C), lambda n: (0, 0))],
        out_specs=pl.BlockSpec((1, H, W, C), lambda n: (n, 0, 0, 0)),
        compiler_params=pltpu.CompilerParams(dimension_semantics=("parallel",)),
        cost_estimate=pl.CostEstimate(flops=int(2 * 9 * N * H * W * C),
                                      transcendentals=0,
                                      bytes_accessed=int(bytes_accessed)),
    )(xp, w9, b.reshape(1, C))
    if stride == 2:   # only reached for odd H/W
        out = out[:, ::2, ::2, :]
    return out


def _l1_kernel(x_ref, y_ref, o_ref, acc_ref, *, inv_n):
    @pl.when(pl.program_id(0) == 0)
    def _():
        acc_ref[...] = jnp.zeros_like(acc_ref)
    d = x_ref[...].astype(jnp.float32) - y_ref[...].astype(jnp.float32)
    acc_ref[...] = acc_ref[...] + jnp.sum(jnp.abs(d))
    @pl.when(pl.program_id(0) == pl.num_programs(0) - 1)
    def _():
        o_ref[...] = acc_ref[...] * inv_n


def l1_loss(x, y, tm=1024):
    """mean(|x - y|) == torch.nn.L1Loss()(x, y); tiled accumulator reduction."""
    C = x.shape[-1]
    xf = x.reshape(-1, C)
    yf = y.reshape(-1, C)
    M = xf.shape[0]
    n_elem = M * C
    TM = min(tm, M)
    if M % TM:                     # zero-pad rows: |0-0| contributes 0 -> exact
        pad = TM - M % TM
        xf = jnp.pad(xf, ((0, pad), (0, 0)))
        yf = jnp.pad(yf, ((0, pad), (0, 0)))
        M = M + pad
    out = pl.pallas_call(
        functools.partial(_l1_kernel, inv_n=1.0 / float(n_elem)),
        out_shape=jax.ShapeDtypeStruct((1, 1), jnp.float32),
        grid=(M // TM,),
        in_specs=[pl.BlockSpec((TM, C), lambda i: (i, 0)),
                  pl.BlockSpec((TM, C), lambda i: (i, 0))],
        out_specs=pl.BlockSpec((1, 1), lambda i: (0, 0)),
        scratch_shapes=[pltpu.VMEM((1, 1), jnp.float32)],
        compiler_params=pltpu.CompilerParams(dimension_semantics=("arbitrary",)),
    )(xf, yf)
    return out[0, 0]


# --------------------------- conv wrappers (glue) ----------------------------

def conv1x1(x, w, b, act, res=None):
    N, H, W, C = x.shape
    res_flat = None if res is None else res.reshape(N * H * W, -1)
    out = matmul_bias(x.reshape(N * H * W, C), w, b, act=act, res=res_flat)
    return out.reshape(N, H, W, w.shape[1])


def conv3x3(x, w, b, stride, act):
    """Standard 3x3 conv (stem), padding=1: im2col (glue) + Pallas matmul."""
    N, H, W, Cin = x.shape
    Cout = w.shape[-1]
    xp = jnp.pad(x, ((0, 0), (1, 1), (1, 1), (0, 0)))
    Ho = (H - 1) // stride + 1
    Wo = (W - 1) // stride + 1
    cols = []
    for dy in range(3):
        for dx in range(3):
            cols.append(xp[:, dy:dy + stride * (Ho - 1) + 1:stride,
                           dx:dx + stride * (Wo - 1) + 1:stride, :])
    pat = jnp.concatenate(cols, axis=-1).reshape(N * Ho * Wo, 9 * Cin)
    out = matmul_bias(pat, w.reshape(9 * Cin, Cout), b, act=act)
    return out.reshape(N, Ho, Wo, Cout)


# ------------------------ MobileNetV2 features[0..7] -------------------------

IR_CONFIGS = [
    # (cin, cout, stride, expand_ratio) == mobilenet_v2.features[1..7]
    (32, 16, 1, 1),
    (16, 24, 2, 6),
    (24, 24, 1, 6),
    (24, 32, 2, 6),
    (32, 32, 1, 6),
    (32, 32, 1, 6),
    (32, 64, 2, 6),
]


def _fold_bn(key, w, cout):
    # eval-mode BatchNorm (running_mean=0, running_var=1) folded into the conv
    kg, kb = jax.random.split(key)
    gamma = jax.random.uniform(kg, (cout,), jnp.float32, 0.5, 1.5)
    beta = jax.random.normal(kb, (cout,), jnp.float32) * 0.05
    return w * gamma, beta


def init_params(key):
    # NOTE: synthetic deterministic weights stand in for the pretrained checkpoint.
    params = {}
    keys = jax.random.split(key, 64)
    ki = iter(range(64))
    w0 = jax.random.normal(keys[next(ki)], (3, 3, 3, 32), jnp.float32) * (9 * 3) ** -0.5
    w0, b0 = _fold_bn(keys[next(ki)], w0, 32)
    params[0] = {"w": w0.astype(jnp.bfloat16), "b": b0}
    for i, (cin, cout, stride, t) in enumerate(IR_CONFIGS, start=1):
        hidden = cin * t
        p = {}
        if t != 1:
            we = jax.random.normal(keys[next(ki)], (cin, hidden), jnp.float32) * cin ** -0.5
            we, be = _fold_bn(keys[next(ki)], we, hidden)
            p["exp_w"], p["exp_b"] = we.astype(jnp.bfloat16), be
        wd = jax.random.normal(keys[next(ki)], (9, hidden), jnp.float32) * 9 ** -0.5
        p["dw_w"], p["dw_b"] = _fold_bn(keys[next(ki)], wd, hidden)      # f32 (VPU MACs)
        wp = jax.random.normal(keys[next(ki)], (hidden, cout), jnp.float32) * hidden ** -0.5
        wp, bp = _fold_bn(keys[next(ki)], wp, cout)
        p["proj_w"], p["proj_b"] = wp.astype(jnp.bfloat16), bp
        params[i] = p
    return params


def inverted_residual(x, p, stride, t):
    cin = x.shape[-1]
    cout = p["proj_w"].shape[1]
    h = x
    if t != 1:
        h = conv1x1(h, p["exp_w"], p["exp_b"], act=True)       # expand + ReLU6
    h = dwconv3x3(h, p["dw_w"], p["dw_b"], stride, act=True)   # depthwise + ReLU6
    use_res = (stride == 1 and cin == cout)
    h = conv1x1(h, p["proj_w"], p["proj_b"], act=False,        # linear projection
                res=(x if use_res else None))                  # residual fused in-kernel
    return h


def mobilenet_perceptual_loss(params, x_nchw, y_nchw):
    layers = (2, 4, 7)
    N = x_nchw.shape[0]
    # x and y share every conv: run them as one batch, split only at the L1 taps.
    z = jnp.concatenate([x_nchw, y_nchw], axis=0)
    # NCHW (PyTorch) -> NHWC (kernel layout), bf16 activations on the wire.
    z = jnp.transpose(z, (0, 2, 3, 1)).astype(jnp.bfloat16)
    # features[0]: Conv3x3 s2 + BN + ReLU6
    z = conv3x3(z, params[0]["w"], params[0]["b"], stride=2, act=True)
    loss = jnp.float32(0.0)
    for i, (cin, cout, stride, t) in enumerate(IR_CONFIGS, start=1):
        z = inverted_residual(z, params[i], stride, t)
        if i in layers:
            loss = loss + l1_loss(z[:N], z[N:])
    # features[8:] never affect the loss (max tapped index is 7), so they are skipped.
    return loss / 3.0


if __name__ == "__main__":
    key = jax.random.PRNGKey(0)
    kx, ky, kp = jax.random.split(key, 3)
    # Same conventions as the PyTorch module: NCHW RGB images.
    x = jax.random.normal(kx, (2, 3, 16, 16), jnp.float32)
    y = jax.random.normal(ky, (2, 3, 16, 16), jnp.float32)
    params = init_params(kp)

    loss_fn = jax.jit(mobilenet_perceptual_loss)
    loss = loss_fn(params, x, y)
    jax.block_until_ready(loss)
    assert loss.shape == () and jnp.isfinite(loss)
    print("KERNEL_OK")
</pallas_src>

<mosaic_0001>
module attributes {stable_mosaic.version = 11 : i64} {
  func.func @_mm_kernel(%arg0: i32, %arg1: memref<256x27xbf16, #tpu.memory_space<vmem>>, %arg2: memref<27x32xbf16, #tpu.memory_space<vmem>>, %arg3: memref<1x32xf32, #tpu.memory_space<vmem>>, %arg4: memref<256x32xbf16, #tpu.memory_space<vmem>>) attributes {dimension_semantics = [#tpu.dimension_semantics<parallel>], iteration_bounds = array<i64: 1>, scalar_prefetch = 0 : i64, scratch_operands = 0 : i64, tpu.core_type = #tpu.core_type<tc>, window_params = [{transform_indices = @transform_0, window_bounds = array<i64: 256, 27>}, {pipeline_mode = #tpu.pipeline_mode<synchronous>, transform_indices = @transform_1, window_bounds = array<i64: 27, 32>}, {pipeline_mode = #tpu.pipeline_mode<synchronous>, transform_indices = @transform_2, window_bounds = array<i64: 1, 32>}, {transform_indices = @transform_3, window_bounds = array<i64: 256, 32>}]} {
    %c0 = arith.constant 0 : index
    %c0_0 = arith.constant 0 : index
    %0 = vector.load %arg1[%c0, %c0_0] : memref<256x27xbf16, #tpu.memory_space<vmem>>, vector<256x27xbf16>
    %c0_1 = arith.constant 0 : index
    %c0_2 = arith.constant 0 : index
    %1 = vector.load %arg2[%c0_1, %c0_2] : memref<27x32xbf16, #tpu.memory_space<vmem>>, vector<27x32xbf16>
    %cst = arith.constant dense<0.000000e+00> : vector<256x32xf32>
    %2 = tpu.matmul %0, %1, %cst {dimension_numbers = #tpu.dot_dimension_numbers<[1], [0], [0], [1], [0, 0, 1, 1], [], []>} : vector<256x27xbf16>, vector<27x32xbf16>, vector<256x32xf32> -> vector<256x32xf32>
    %c0_3 = arith.constant 0 : index
    %c0_4 = arith.constant 0 : index
    %3 = vector.load %arg3[%c0_3, %c0_4] : memref<1x32xf32, #tpu.memory_space<vmem>>, vector<1x32xf32>
    %4 = vector.broadcast %3 : vector<1x32xf32> to vector<256x32xf32>
    %5 = arith.addf %2, %4 : vector<256x32xf32>
    %cst_5 = arith.constant 0.000000e+00 : f32
    %6 = vector.broadcast %cst_5 : f32 to vector<256x32xf32>
    %7 = arith.maximumf %5, %6 : vector<256x32xf32>
    %cst_6 = arith.constant 6.000000e+00 : f32
    %8 = vector.broadcast %cst_6 : f32 to vector<256x32xf32>
    %9 = arith.minimumf %7, %8 : vector<256x32xf32>
    %10 = arith.truncf %9 : vector<256x32xf32> to vector<256x32xbf16>
    %c0_7 = arith.constant 0 : index
    %c0_8 = arith.constant 0 : index
    %11 = vector.load %arg4[%c0_7, %c0_8] : memref<256x32xbf16, #tpu.memory_space<vmem>>, vector<256x32xbf16>
    tpu.vector_store %arg4[%c0_7, %c0_8], %10 {strides = array<i32>} : memref<256x32xbf16, #tpu.memory_space<vmem>>, vector<256x32xbf16>,
    return
  }
  func.func @transform_0(%arg0: i32) -> (i32, i32) {
    %c0_i32 = arith.constant 0 : i32
    %c0_i32_0 = arith.constant 0 : i32
    return %arg0, %c0_i32 : i32, i32
  }
  func.func @transform_1(%arg0: i32) -> (i32, i32) {
    %c0_i32 = arith.constant 0 : i32
    %c0_i32_0 = arith.constant 0 : i32
    %c0_i32_1 = arith.constant 0 : i32
    return %c0_i32, %c0_i32_0 : i32, i32
  }
  func.func @transform_2(%arg0: i32) -> (i32, i32) {
    %c0_i32 = arith.constant 0 : i32
    %c0_i32_0 = arith.constant 0 : i32
    %c0_i32_1 = arith.constant 0 : i32
    return %c0_i32, %c0_i32_0 : i32, i32
  }
  func.func @transform_3(%arg0: i32) -> (i32, i32) {
    %c0_i32 = arith.constant 0 : i32
    %c0_i32_0 = arith.constant 0 : i32
    return %arg0, %c0_i32 : i32, i32
  }
}

module attributes {stable_mosaic.version = 11 : i64} {
  func.func @_dw_s1_kernel(%arg0: i32, %arg1: memref<1x10x10x32xbf16, #tpu.memory_space<vmem>>, %arg2: memref<9x32xf32, #tpu.memory_space<vmem>>, %arg3: memref<1x32xf32, #tpu.memory_space<vmem>>, %arg4: memref<1x8x8x32xbf16, #tpu.memory_space<vmem>>) attributes {dimension_semantics = [#tpu.dimension_semantics<parallel>], iteration_bounds = array<i64: 4>, scalar_prefetch = 0 : i64, scratch_operands = 0 : i64, tpu.core_type = #tpu.core_type<tc>, window_params = [{transform_indices = @transform_0, window_bounds = array<i64: 1, 10, 10, 32>}, {pipeline_mode = #tpu.pipeline_mode<synchronous>, transform_indices = @transform_1, window_bounds = array<i64: 9, 32>}, {pipeline_mode = #tpu.pipeline_mode<synchronous>, transform_indices = @transform_2, window_bounds = array<i64: 1, 32>}, {transform_indices = @transform_3, window_bounds = array<i64: 1, 8, 8, 32>}]} {
    %c0 = arith.constant 0 : index
    %c0_0 = arith.constant 0 : index
    %c0_1 = arith.constant 0 : index
    %c0_2 = arith.constant 0 : index
    %0 = vector.load %arg1[%c0, %c0_0, %c0_1, %c0_2] : memref<1x10x10x32xbf16, #tpu.memory_space<vmem>>, vector<1x10x10x32xbf16>
    %1 = arith.extf %0 : vector<1x10x10x32xbf16> to vector<1x10x10x32xf32>
    %2 = vector.shape_cast %1 : vector<1x10x10x32xf32> to vector<10x10x32xf32>
    %cst = arith.constant 0.000000e+00 : f32
    %3 = vector.broadcast %cst : f32 to vector<8x8x32xf32>
    %4 = vector.extract_strided_slice %2 {offsets = [0, 0, 0], sizes = [8, 8, 32], strides = [1, 1, 1]} : vector<10x10x32xf32> to vector<8x8x32xf32>
    %c0_3 = arith.constant 0 : index
    %c0_4 = arith.constant 0 : index
    %5 = vector.load %arg2[%c0_3, %c0_4] : memref<9x32xf32, #tpu.memory_space<vmem>>, vector<1x32xf32>
    %6 = vector.shape_cast %5 : vector<1x32xf32> to vector<32xf32>
    %7 = vector.shape_cast %6 : vector<32xf32> to vector<1x1x32xf32>
    %8 = vector.broadcast %7 : vector<1x1x32xf32> to vector<8x8x32xf32>
    %9 = arith.mulf %4, %8 : vector<8x8x32xf32>
    %10 = arith.addf %3, %9 : vector<8x8x32xf32>
    %11 = vector.extract_strided_slice %2 {offsets = [0, 1, 0], sizes = [8, 8, 32], strides = [1, 1, 1]} : vector<10x10x32xf32> to vector<8x8x32xf32>
    %c1 = arith.constant 1 : index
    %c0_5 = arith.constant 0 : index
    %12 = vector.load %arg2[%c1, %c0_5] : memref<9x32xf32, #tpu.memory_space<vmem>>, vector<1x32xf32>
    %13 = vector.shape_cast %12 : vector<1x32xf32> to vector<32xf32>
    %14 = vector.shape_cast %13 : vector<32xf32> to vector<1x1x32xf32>
    %15 = vector.broadcast %14 : vector<1x1x32xf32> to vector<8x8x32xf32>
    %16 = arith.mulf %11, %15 : vector<8x8x32xf32>
    %17 = arith.addf %10, %16 : vector<8x8x32xf32>
    %18 = vector.extract_strided_slice %2 {offsets = [0, 2, 0], sizes = [8, 8, 32], strides = [1, 1, 1]} : vector<10x10x32xf32> to vector<8x8x32xf32>
    %c2 = arith.constant 2 : index
    %c0_6 = arith.constant 0 : index
    %19 = vector.load %arg2[%c2, %c0_6] : memref<9x32xf32, #tpu.memory_space<vmem>>, vector<1x32xf32>
    %20 = vector.shape_cast %19 : vector<1x32xf32> to vector<32xf32>
    %21 = vector.shape_cast %20 : vector<32xf32> to vector<1x1x32xf32>
    %22 = vector.broadcast %21 : vector<1x1x32xf32> to vector<8x8x32xf32>
    %23 = arith.mulf %18, %22 : vector<8x8x32xf32>
    %24 = arith.addf %17, %23 : vector<8x8x32xf32>
    %25 = vector.extract_strided_slice %2 {offsets = [1, 0, 0], sizes = [8, 8, 32], strides = [1, 1, 1]} : vector<10x10x32xf32> to vector<8x8x32xf32>
    %c3 = arith.constant 3 : index
    %c0_7 = arith.constant 0 : index
    %26 = vector.load %arg2[%c3, %c0_7] : memref<9x32xf32, #tpu.memory_space<vmem>>, vector<1x32xf32>
    %27 = vector.shape_cast %26 : vector<1x32xf32> to vector<32xf32>
    %28 = vector.shape_cast %27 : vector<32xf32> to vector<1x1x32xf32>
    %29 = vector.broadcast %28 : vector<1x1x32xf32> to vector<8x8x32xf32>
    %30 = arith.mulf %25, %29 : vector<8x8x32xf32>
    %31 = arith.addf %24, %30 : vector<8x8x32xf32>
    %32 = vector.extract_strided_slice %2 {offsets = [1, 1, 0], sizes = [8, 8, 32], strides = [1, 1, 1]} : vector<10x10x32xf32> to vector<8x8x32xf32>
    %c4 = arith.constant 4 : index
    %c0_8 = arith.constant 0 : index
    %33 = vector.load %arg2[%c4, %c0_8] : memref<9x32xf32, #tpu.memory_space<vmem>>, vector<1x32xf32>
    %34 = vector.shape_cast %33 : vector<1x32xf32> to vector<32xf32>
    %35 = vector.shape_cast %34 : vector<32xf32> to vector<1x1x32xf32>
    %36 = vector.broadcast %35 : vector<1x1x32xf32> to vector<8x8x32xf32>
    %37 = arith.mulf %32, %36 : vector<8x8x32xf32>
    %38 = arith.addf %31, %37 : vector<8x8x32xf32>
    %39 = vector.extract_strided_slice %2 {offsets = [1, 2, 0], sizes = [8, 8, 32], strides = [1, 1, 1]} : vector<10x10x32xf32> to vector<8x8x32xf32>
    %c5 = arith.constant 5 : index
    %c0_9 = arith.constant 0 : index
    %40 = vector.load %arg2[%c5, %c0_9] : memref<9x32xf32, #tpu.memory_space<vmem>>, vector<1x32xf32>
    %41 = vector.shape_cast %40 : vector<1x32xf32> to vector<32xf32>
    %42 = vector.shape_cast %41 : vector<32xf32> to vector<1x1x32xf32>
    %43 = vector.broadcast %42 : vector<1x1x32xf32> to vector<8x8x32xf32>
    %44 = arith.mulf %39, %43 : vector<8x8x32xf32>
    %45 = arith.addf %38, %44 : vector<8x8x32xf32>
    %46 = vector.extract_strided_slice %2 {offsets = [2, 0, 0], sizes = [8, 8, 32], strides = [1, 1, 1]} : vector<10x10x32xf32> to vector<8x8x32xf32>
    %c6 = arith.constant 6 : index
    %c0_10 = arith.constant 0 : index
    %47 = vector.load %arg2[%c6, %c0_10] : memref<9x32xf32, #tpu.memory_space<vmem>>, vector<1x32xf32>
    %48 = vector.shape_cast %47 : vector<1x32xf32> to vector<32xf32>
    %49 = vector.shape_cast %48 : vector<32xf32> to vector<1x1x32xf32>
    %50 = vector.broadcast %49 : vector<1x1x32xf32> to vector<8x8x32xf32>
    %51 = arith.mulf %46, %50 : vector<8x8x32xf32>
    %52 = arith.addf %45, %51 : vector<8x8x32xf32>
    %53 = vector.extract_strided_slice %2 {offsets = [2, 1, 0], sizes = [8, 8, 32], strides = [1, 1, 1]} : vector<10x10x32xf32> to vector<8x8x32xf32>
    %c7 = arith.constant 7 : index
    %c0_11 = arith.constant 0 : index
    %54 = vector.load %arg2[%c7, %c0_11] : memref<9x32xf32, #tpu.memory_space<vmem>>, vector<1x32xf32>
    %55 = vector.shape_cast %54 : vector<1x32xf32> to vector<32xf32>
    %56 = vector.shape_cast %55 : vector<32xf32> to vector<1x1x32xf32>
    %57 = vector.broadcast %56 : vector<1x1x32xf32> to vector<8x8x32xf32>
    %58 = arith.mulf %53, %57 : vector<8x8x32xf32>
    %59 = arith.addf %52, %58 : vector<8x8x32xf32>
    %60 = vector.extract_strided_slice %2 {offsets = [2, 2, 0], sizes = [8, 8, 32], strides = [1, 1, 1]} : vector<10x10x32xf32> to vector<8x8x32xf32>
    %c8 = arith.constant 8 : index
    %c0_12 = arith.constant 0 : index
    %61 = vector.load %arg2[%c8, %c0_12] : memref<9x32xf32, #tpu.memory_space<vmem>>, vector<1x32xf32>
    %62 = vector.shape_cast %61 : vector<1x32xf32> to vector<32xf32>
    %63 = vector.shape_cast %62 : vector<32xf32> to vector<1x1x32xf32>
    %64 = vector.broadcast %63 : vector<1x1x32xf32> to vector<8x8x32xf32>
    %65 = arith.mulf %60, %64 : vector<8x8x32xf32>
    %66 = arith.addf %59, %65 : vector<8x8x32xf32>
    %c0_13 = arith.constant 0 : index
    %c0_14 = arith.constant 0 : index
    %67 = vector.load %arg3[%c0_13, %c0_14] : memref<1x32xf32, #tpu.memory_space<vmem>>, vector<1x32xf32>
    %68 = vector.shape_cast %67 : vector<1x32xf32> to vector<32xf32>
    %69 = vector.shape_cast %68 : vector<32xf32> to vector<1x1x32xf32>
    %70 = vector.broadcast %69 : vector<1x1x32xf32> to vector<8x8x32xf32>
    %71 = arith.addf %66, %70 : vector<8x8x32xf32>
    %cst_15 = arith.constant 0.000000e+00 : f32
    %72 = vector.broadcast %cst_15 : f32 to vector<8x8x32xf32>
    %73 = arith.maximumf %71, %72 : vector<8x8x32xf32>
    %cst_16 = arith.constant 6.000000e+00 : f32
    %74 = vector.broadcast %cst_16 : f32 to vector<8x8x32xf32>
    %75 = arith.minimumf %73, %74 : vector<8x8x32xf32>
    %76 = arith.truncf %75 : vector<8x8x32xf32> to vector<8x8x32xbf16>
    %77 = vector.shape_cast %76 : vector<8x8x32xbf16> to vector<1x8x8x32xbf16>
    %c0_17 = arith.constant 0 : index
    %c0_18 = arith.constant 0 : index
    %c0_19 = arith.constant 0 : index
    %c0_20 = arith.constant 0 : index
    %78 = vector.load %arg4[%c0_17, %c0_18, %c0_19, %c0_20] : memref<1x8x8x32xbf16, #tpu.memory_space<vmem>>, vector<1x8x8x32xbf16>
    tpu.vector_store %arg4[%c0_17, %c0_18, %c0_19, %c0_20], %77 {strides = array<i32>} : memref<1x8x8x32xbf16, #tpu.memory_space<vmem>>, vector<1x8x8x32xbf16>,
    return
  }
  func.func @transform_0(%arg0: i32) -> (i32, i32, i32, i32) {
    %c0_i32 = arith.constant 0 : i32
    %c0_i32_0 = arith.constant 0 : i32
    %c0_i32_1 = arith.constant 0 : i32
    %c0_i32_2 = arith.constant 0 : i32
    return %arg0, %c0_i32, %c0_i32_0, %c0_i32_1 : i32, i32, i32, i32
  }
  func.func @transform_1(%arg0: i32) -> (i32, i32) {
    %c0_i32 = arith.constant 0 : i32
    %c0_i32_0 = arith.constant 0 : i32
    %c0_i32_1 = arith.constant 0 : i32
    return %c0_i32, %c0_i32_0 : i32, i32
  }
  func.func @transform_2(%arg0: i32) -> (i32, i32) {
    %c0_i32 = arith.constant 0 : i32
    %c0_i32_0 = arith.constant 0 : i32
    %c0_i32_1 = arith.constant 0 : i32
    return %c0_i32, %c0_i32_0 : i32, i32
  }
  func.func @transform_3(%arg0: i32) -> (i32, i32, i32, i32) {
    %c0_i32 = arith.constant 0 : i32
    %c0_i32_0 = arith.constant 0 : i32
    %c0_i32_1 = arith.constant 0 : i32
    %c0_i32_2 = arith.constant 0 : i32
    return %arg0, %c0_i32, %c0_i32_0, %c0_i32_1 : i32, i32, i32, i32
  }
}

module attributes {stable_mosaic.version = 11 : i64} {
  func.func @_mm_kernel(%arg0: i32, %arg1: memref<256x32xbf16, #tpu.memory_space<vmem>>, %arg2: memref<32x16xbf16, #tpu.memory_space<vmem>>, %arg3: memref<1x16xf32, #tpu.memory_space<vmem>>, %arg4: memref<256x16xbf16, #tpu.memory_space<vmem>>) attributes {dimension_semantics = [#tpu.dimension_semantics<parallel>], iteration_bounds = array<i64: 1>, scalar_prefetch = 0 : i64, scratch_operands = 0 : i64, tpu.core_type = #tpu.core_type<tc>, window_params = [{transform_indices = @transform_0, window_bounds = array<i64: 256, 32>}, {pipeline_mode = #tpu.pipeline_mode<synchronous>, transform_indices = @transform_1, window_bounds = array<i64: 32, 16>}, {pipeline_mode = #tpu.pipeline_mode<synchronous>, transform_indices = @transform_2, window_bounds = array<i64: 1, 16>}, {transform_indices = @transform_3, window_bounds = array<i64: 256, 16>}]} {
    %c0 = arith.constant 0 : index
    %c0_0 = arith.constant 0 : index
    %0 = vector.load %arg1[%c0, %c0_0] : memref<256x32xbf16, #tpu.memory_space<vmem>>, vector<256x32xbf16>
    %c0_1 = arith.constant 0 : index
    %c0_2 = arith.constant 0 : index
    %1 = vector.load %arg2[%c0_1, %c0_2] : memref<32x16xbf16, #tpu.memory_space<vmem>>, vector<32x16xbf16>
    %cst = arith.constant dense<0.000000e+00> : vector<256x16xf32>
    %2 = tpu.matmul %0, %1, %cst {dimension_numbers = #tpu.dot_dimension_numbers<[1], [0], [0], [1], [0, 0, 1, 1], [], []>} : vector<256x32xbf16>, vector<32x16xbf16>, vector<256x16xf32> -> vector<256x16xf32>
    %c0_3 = arith.constant 0 : index
    %c0_4 = arith.constant 0 : index
    %3 = vector.load %arg3[%c0_3, %c0_4] : memref<1x16xf32, #tpu.memory_space<vmem>>, vector<1x16xf32>
    %4 = vector.broadcast %3 : vector<1x16xf32> to vector<256x16xf32>
    %5 = arith.addf %2, %4 : vector<256x16xf32>
    %6 = arith.truncf %5 : vector<256x16xf32> to vector<256x16xbf16>
    %c0_5 = arith.constant 0 : index
    %c0_6 = arith.constant 0 : index
    %7 = vector.load %arg4[%c0_5, %c0_6] : memref<256x16xbf16, #tpu.memory_space<vmem>>, vector<256x16xbf16>
    tpu.vector_store %arg4[%c0_5, %c0_6], %6 {strides = array<i32>} : memref<256x16xbf16, #tpu.memory_space<vmem>>, vector<256x16xbf16>,
    return
  }
  func.func @transform_0(%arg0: i32) -> (i32, i32) {
    %c0_i32 = arith.constant 0 : i32
    %c0_i32_0 = arith.constant 0 : i32
    return %arg0, %c0_i32 : i32, i32
  }
  func.func @transform_1(%arg0: i32) -> (i32, i32) {
    %c0_i32 = arith.constant 0 : i32
    %c0_i32_0 = arith.constant 0 : i32
    %c0_i32_1 = arith.constant 0 : i32
    return %c0_i32, %c0_i32_0 : i32, i32
  }
  func.func @transform_2(%arg0: i32) -> (i32, i32) {
    %c0_i32 = arith.constant 0 : i32
    %c0_i32_0 = arith.constant 0 : i32
    %c0_i32_1 = arith.constant 0 : i32
    return %c0_i32, %c0_i32_0 : i32, i32
  }
  func.func @transform_3(%arg0: i32) -> (i32, i32) {
    %c0_i32 = arith.constant 0 : i32
    %c0_i32_0 = arith.constant 0 : i32
    return %arg0, %c0_i32 : i32, i32
  }
}

module attributes {stable_mosaic.version = 11 : i64} {
  func.func @_mm_kernel(%arg0: i32, %arg1: memref<256x16xbf16, #tpu.memory_space<vmem>>, %arg2: memref<16x96xbf16, #tpu.memory_space<vmem>>, %arg3: memref<1x96xf32, #tpu.memory_space<vmem>>, %arg4: memref<256x96xbf16, #tpu.memory_space<vmem>>) attributes {dimension_semantics = [#tpu.dimension_semantics<parallel>], iteration_bounds = array<i64: 1>, scalar_prefetch = 0 : i64, scratch_operands = 0 : i64, tpu.core_type = #tpu.core_type<tc>, window_params = [{transform_indices = @transform_0, window_bounds = array<i64: 256, 16>}, {pipeline_mode = #tpu.pipeline_mode<synchronous>, transform_indices = @transform_1, window_bounds = array<i64: 16, 96>}, {pipeline_mode = #tpu.pipeline_mode<synchronous>, transform_indices = @transform_2, window_bounds = array<i64: 1, 96>}, {transform_indices = @transform_3, window_bounds = array<i64: 256, 96>}]} {
    %c0 = arith.constant 0 : index
    %c0_0 = arith.constant 0 : index
    %0 = vector.load %arg1[%c0, %c0_0] : memref<256x16xbf16, #tpu.memory_space<vmem>>, vector<256x16xbf16>
    %c0_1 = arith.constant 0 : index
    %c0_2 = arith.constant 0 : index
    %1 = vector.load %arg2[%c0_1, %c0_2] : memref<16x96xbf16, #tpu.memory_space<vmem>>, vector<16x96xbf16>
    %cst = arith.constant dense<0.000000e+00> : vector<256x96xf32>
    %2 = tpu.matmul %0, %1, %cst {dimension_numbers = #tpu.dot_dimension_numbers<[1], [0], [0], [1], [0, 0, 1, 1], [], []>} : vector<256x16xbf16>, vector<16x96xbf16>, vector<256x96xf32> -> vector<256x96xf32>
    %c0_3 = arith.constant 0 : index
    %c0_4 = arith.constant 0 : index
    %3 = vector.load %arg3[%c0_3, %c0_4] : memref<1x96xf32, #tpu.memory_space<vmem>>, vector<1x96xf32>
    %4 = vector.broadcast %3 : vector<1x96xf32> to vector<256x96xf32>
    %5 = arith.addf %2, %4 : vector<256x96xf32>
    %cst_5 = arith.constant 0.000000e+00 : f32
    %6 = vector.broadcast %cst_5 : f32 to vector<256x96xf32>
    %7 = arith.maximumf %5, %6 : vector<256x96xf32>
    %cst_6 = arith.constant 6.000000e+00 : f32
    %8 = vector.broadcast %cst_6 : f32 to vector<256x96xf32>
    %9 = arith.minimumf %7, %8 : vector<256x96xf32>
    %10 = arith.truncf %9 : vector<256x96xf32> to vector<256x96xbf16>
    %c0_7 = arith.constant 0 : index
    %c0_8 = arith.constant 0 : index
    %11 = vector.load %arg4[%c0_7, %c0_8] : memref<256x96xbf16, #tpu.memory_space<vmem>>, vector<256x96xbf16>
    tpu.vector_store %arg4[%c0_7, %c0_8], %10 {strides = array<i32>} : memref<256x96xbf16, #tpu.memory_space<vmem>>, vector<256x96xbf16>,
    return
  }
  func.func @transform_0(%arg0: i32) -> (i32, i32) {
    %c0_i32 = arith.constant 0 : i32
    %c0_i32_0 = arith.constant 0 : i32
    return %arg0, %c0_i32 : i32, i32
  }
  func.func @transform_1(%arg0: i32) -> (i32, i32) {
    %c0_i32 = arith.constant 0 : i32
    %c0_i32_0 = arith.constant 0 : i32
    %c0_i32_1 = arith.constant 0 : i32
    return %c0_i32, %c0_i32_0 : i32, i32
  }
  func.func @transform_2(%arg0: i32) -> (i32, i32) {
    %c0_i32 = arith.constant 0 : i32
    %c0_i32_0 = arith.constant 0 : i32
    %c0_i32_1 = arith.constant 0 : i32
    return %c0_i32, %c0_i32_0 : i32, i32
  }
  func.func @transform_3(%arg0: i32) -> (i32, i32) {
    %c0_i32 = arith.constant 0 : i32
    %c0_i32_0 = arith.constant 0 : i32
    return %arg0, %c0_i32 : i32, i32
  }
}

module attributes {stable_mosaic.version = 11 : i64} {
  func.func @_dw_s2_kernel(%arg0: i32, %arg1: memref<4x5x5x96xbf16, #tpu.memory_space<vmem>>, %arg2: memref<9x96xf32, #tpu.memory_space<vmem>>, %arg3: memref<1x96xf32, #tpu.memory_space<vmem>>, %arg4: memref<1x4x4x96xbf16, #tpu.memory_space<vmem>>) attributes {dimension_semantics = [#tpu.dimension_semantics<parallel>], iteration_bounds = array<i64: 4>, scalar_prefetch = 0 : i64, scratch_operands = 0 : i64, tpu.core_type = #tpu.core_type<tc>, window_params = [{transform_indices = @transform_0, window_bounds = array<i64: 4, 5, 5, 96>}, {pipeline_mode = #tpu.pipeline_mode<synchronous>, transform_indices = @transform_1, window_bounds = array<i64: 9, 96>}, {pipeline_mode = #tpu.pipeline_mode<synchronous>, transform_indices = @transform_2, window_bounds = array<i64: 1, 96>}, {transform_indices = @transform_3, window_bounds = array<i64: 1, 4, 4, 96>}]} {
    %c0 = arith.constant 0 : index
    %c0_0 = arith.constant 0 : index
    %c0_1 = arith.constant 0 : index
    %c0_2 = arith.constant 0 : index
    %0 = vector.load %arg1[%c0, %c0_0, %c0_1, %c0_2] : memref<4x5x5x96xbf16, #tpu.memory_space<vmem>>, vector<4x5x5x96xbf16>
    %1 = arith.extf %0 : vector<4x5x5x96xbf16> to vector<4x5x5x96xf32>
    %cst = arith.constant 0.000000e+00 : f32
    %2 = vector.broadcast %cst : f32 to vector<4x4x96xf32>
    %3 = vector.extract_strided_slice %1 {offsets = [0, 0, 0, 0], sizes = [1, 5, 5, 96], strides = [1, 1, 1, 1]} : vector<4x5x5x96xf32> to vector<1x5x5x96xf32>
    %4 = vector.shape_cast %3 : vector<1x5x5x96xf32> to vector<5x5x96xf32>
    %5 = vector.extract_strided_slice %4 {offsets = [0, 0, 0], sizes = [4, 4, 96], strides = [1, 1, 1]} : vector<5x5x96xf32> to vector<4x4x96xf32>
    %c0_3 = arith.constant 0 : index
    %c0_4 = arith.constant 0 : index
    %6 = vector.load %arg2[%c0_3, %c0_4] : memref<9x96xf32, #tpu.memory_space<vmem>>, vector<1x96xf32>
    %7 = vector.shape_cast %6 : vector<1x96xf32> to vector<96xf32>
    %8 = vector.shape_cast %7 : vector<96xf32> to vector<1x1x96xf32>
    %9 = vector.broadcast %8 : vector<1x1x96xf32> to vector<4x4x96xf32>
    %10 = arith.mulf %5, %9 : vector<4x4x96xf32>
    %11 = arith.addf %2, %10 : vector<4x4x96xf32>
    %12 = vector.extract_strided_slice %1 {offsets = [1, 0, 0, 0], sizes = [1, 5, 5, 96], strides = [1, 1, 1, 1]} : vector<4x5x5x96xf32> to vector<1x5x5x96xf32>
    %13 = vector.shape_cast %12 : vector<1x5x5x96xf32> to vector<5x5x96xf32>
    %14 = vector.extract_strided_slice %13 {offsets = [0, 0, 0], sizes = [4, 4, 96], strides = [1, 1, 1]} : vector<5x5x96xf32> to vector<4x4x96xf32>
    %c1 = arith.constant 1 : index
    %c0_5 = arith.constant 0 : index
    %15 = vector.load %arg2[%c1, %c0_5] : memref<9x96xf32, #tpu.memory_space<vmem>>, vector<1x96xf32>
    %16 = vector.shape_cast %15 : vector<1x96xf32> to vector<96xf32>
    %17 = vector.shape_cast %16 : vector<96xf32> to vector<1x1x96xf32>
    %18 = vector.broadcast %17 : vector<1x1x96xf32> to vector<4x4x96xf32>
    %19 = arith.mulf %14, %18 : vector<4x4x96xf32>
    %20 = arith.addf %11, %19 : vector<4x4x96xf32>
    %21 = vector.extract_strided_slice %1 {offsets = [0, 0, 0, 0], sizes = [1, 5, 5, 96], strides = [1, 1, 1, 1]} : vector<4x5x5x96xf32> to vector<1x5x5x96xf32>
    %22 = vector.shape_cast %21 : vector<1x5x5x96xf32> to vector<5x5x96xf32>
    %23 = vector.extract_strided_slice %22 {offsets = [0, 1, 0], sizes = [4, 4, 96], strides = [1, 1, 1]} : vector<5x5x96xf32> to vector<4x4x96xf32>
    %c2 = arith.constant 2 : index
    %c0_6 = arith.constant 0 : index
    %24 = vector.load %arg2[%c2, %c0_6] : memref<9x96xf32, #tpu.memory_space<vmem>>, vector<1x96xf32>
    %25 = vector.shape_cast %24 : vector<1x96xf32> to vector<96xf32>
    %26 = vector.shape_cast %25 : vector<96xf32> to vector<1x1x96xf32>
    %27 = vector.broadcast %26 : vector<1x1x96xf32> to vector<4x4x96xf32>
    %28 = arith.mulf %23, %27 : vector<4x4x96xf32>
    %29 = arith.addf %20, %28 : vector<4x4x96xf32>
    %30 = vector.extract_strided_slice %1 {offsets = [2, 0, 0, 0], sizes = [1, 5, 5, 96], strides = [1, 1, 1, 1]} : vector<4x5x5x96xf32> to vector<1x5x5x96xf32>
    %31 = vector.shape_cast %30 : vector<1x5x5x96xf32> to vector<5x5x96xf32>
    %32 = vector.extract_strided_slice %31 {offsets = [0, 0, 0], sizes = [4, 4, 96], strides = [1, 1, 1]} : vector<5x5x96xf32> to vector<4x4x96xf32>
    %c3 = arith.constant 3 : index
    %c0_7 = arith.constant 0 : index
    %33 = vector.load %arg2[%c3, %c0_7] : memref<9x96xf32, #tpu.memory_space<vmem>>, vector<1x96xf32>
    %34 = vector.shape_cast %33 : vector<1x96xf32> to vector<96xf32>
    %35 = vector.shape_cast %34 : vector<96xf32> to vector<1x1x96xf32>
    %36 = vector.broadcast %35 : vector<1x1x96xf32> to vector<4x4x96xf32>
    %37 = arith.mulf %32, %36 : vector<4x4x96xf32>
    %38 = arith.addf %29, %37 : vector<4x4x96xf32>
    %39 = vector.extract_strided_slice %1 {offsets = [3, 0, 0, 0], sizes = [1, 5, 5, 96], strides = [1, 1, 1, 1]} : vector<4x5x5x96xf32> to vector<1x5x5x96xf32>
    %40 = vector.shape_cast %39 : vector<1x5x5x96xf32> to vector<5x5x96xf32>
    %41 = vector.extract_strided_slice %40 {offsets = [0, 0, 0], sizes = [4, 4, 96], strides = [1, 1, 1]} : vector<5x5x96xf32> to vector<4x4x96xf32>
    %c4 = arith.constant 4 : index
    %c0_8 = arith.constant 0 : index
    %42 = vector.load %arg2[%c4, %c0_8] : memref<9x96xf32, #tpu.memory_space<vmem>>, vector<1x96xf32>
    %43 = vector.shape_cast %42 : vector<1x96xf32> to vector<96xf32>
    %44 = vector.shape_cast %43 : vector<96xf32> to vector<1x1x96xf32>
    %45 = vector.broadcast %44 : vector<1x1x96xf32> to vector<4x4x96xf32>
    %46 = arith.mulf %41, %45 : vector<4x4x96xf32>
    %47 = arith.addf %38, %46 : vector<4x4x96xf32>
    %48 = vector.extract_strided_slice %1 {offsets = [2, 0, 0, 0], sizes = [1, 5, 5, 96], strides = [1, 1, 1, 1]} : vector<4x5x5x96xf32> to vector<1x5x5x96xf32>
    %49 = vector.shape_cast %48 : vector<1x5x5x96xf32> to vector<5x5x96xf32>
    %50 = vector.extract_strided_slice %49 {offsets = [0, 1, 0], sizes = [4, 4, 96], strides = [1, 1, 1]} : vector<5x5x96xf32> to vector<4x4x96xf32>
    %c5 = arith.constant 5 : index
    %c0_9 = arith.constant 0 : index
    %51 = vector.load %arg2[%c5, %c0_9] : memref<9x96xf32, #tpu.memory_space<vmem>>, vector<1x96xf32>
    %52 = vector.shape_cast %51 : vector<1x96xf32> to vector<96xf32>
    %53 = vector.shape_cast %52 : vector<96xf32> to vector<1x1x96xf32>
    %54 = vector.broadcast %53 : vector<1x1x96xf32> to vector<4x4x96xf32>
    %55 = arith.mulf %50, %54 : vector<4x4x96xf32>
    %56 = arith.addf %47, %55 : vector<4x4x96xf32>
    %57 = vector.extract_strided_slice %1 {offsets = [0, 0, 0, 0], sizes = [1, 5, 5, 96], strides = [1, 1, 1, 1]} : vector<4x5x5x96xf32> to vector<1x5x5x96xf32>
    %58 = vector.shape_cast %57 : vector<1x5x5x96xf32> to vector<5x5x96xf32>
    %59 = vector.extract_strided_slice %58 {offsets = [1, 0, 0], sizes = [4, 4, 96], strides = [1, 1, 1]} : vector<5x5x96xf32> to vector<4x4x96xf32>
    %c6 = arith.constant 6 : index
    %c0_10 = arith.constant 0 : index
    %60 = vector.load %arg2[%c6, %c0_10] : memref<9x96xf32, #tpu.memory_space<vmem>>, vector<1x96xf32>
    %61 = vector.shape_cast %60 : vector<1x96xf32> to vector<96xf32>
    %62 = vector.shape_cast %61 : vector<96xf32> to vector<1x1x96xf32>
    %63 = vector.broadcast %62 : vector<1x1x96xf32> to vector<4x4x96xf32>
    %64 = arith.mulf %59, %63 : vector<4x4x96xf32>
    %65 = arith.addf %56, %64 : vector<4x4x96xf32>
    %66 = vector.extract_strided_slice %1 {offsets = [1, 0, 0, 0], sizes = [1, 5, 5, 96], strides = [1, 1, 1, 1]} : vector<4x5x5x96xf32> to vector<1x5x5x96xf32>
    %67 = vector.shape_cast %66 : vector<1x5x5x96xf32> to vector<5x5x96xf32>
    %68 = vector.extract_strided_slice %67 {offsets = [1, 0, 0], sizes = [4, 4, 96], strides = [1, 1, 1]} : vector<5x5x96xf32> to vector<4x4x96xf32>
    %c7 = arith.constant 7 : index
    %c0_11 = arith.constant 0 : index
    %69 = vector.load %arg2[%c7, %c0_11] : memref<9x96xf32, #tpu.memory_space<vmem>>, vector<1x96xf32>
    %70 = vector.shape_cast %69 : vector<1x96xf32> to vector<96xf32>
    %71 = vector.shape_cast %70 : vector<96xf32> to vector<1x1x96xf32>
    %72 = vector.broadcast %71 : vector<1x1x96xf32> to vector<4x4x96xf32>
    %73 = arith.mulf %68, %72 : vector<4x4x96xf32>
    %74 = arith.addf %65, %73 : vector<4x4x96xf32>
    %75 = vector.extract_strided_slice %1 {offsets = [0, 0, 0, 0], sizes = [1, 5, 5, 96], strides = [1, 1, 1, 1]} : vector<4x5x5x96xf32> to vector<1x5x5x96xf32>
    %76 = vector.shape_cast %75 : vector<1x5x5x96xf32> to vector<5x5x96xf32>
    %77 = vector.extract_strided_slice %76 {offsets = [1, 1, 0], sizes = [4, 4, 96], strides = [1, 1, 1]} : vector<5x5x96xf32> to vector<4x4x96xf32>
    %c8 = arith.constant 8 : index
    %c0_12 = arith.constant 0 : index
    %78 = vector.load %arg2[%c8, %c0_12] : memref<9x96xf32, #tpu.memory_space<vmem>>, vector<1x96xf32>
    %79 = vector.shape_cast %78 : vector<1x96xf32> to vector<96xf32>
    %80 = vector.shape_cast %79 : vector<96xf32> to vector<1x1x96xf32>
    %81 = vector.broadcast %80 : vector<1x1x96xf32> to vector<4x4x96xf32>
    %82 = arith.mulf %77, %81 : vector<4x4x96xf32>
    %83 = arith.addf %74, %82 : vector<4x4x96xf32>
    %c0_13 = arith.constant 0 : index
    %c0_14 = arith.constant 0 : index
    %84 = vector.load %arg3[%c0_13, %c0_14] : memref<1x96xf32, #tpu.memory_space<vmem>>, vector<1x96xf32>
    %85 = vector.shape_cast %84 : vector<1x96xf32> to vector<96xf32>
    %86 = vector.shape_cast %85 : vector<96xf32> to vector<1x1x96xf32>
    %87 = vector.broadcast %86 : vector<1x1x96xf32> to vector<4x4x96xf32>
    %88 = arith.addf %83, %87 : vector<4x4x96xf32>
    %cst_15 = arith.constant 0.000000e+00 : f32
    %89 = vector.broadcast %cst_15 : f32 to vector<4x4x96xf32>
    %90 = arith.maximumf %88, %89 : vector<4x4x96xf32>
    %cst_16 = arith.constant 6.000000e+00 : f32
    %91 = vector.broadcast %cst_16 : f32 to vector<4x4x96xf32>
    %92 = arith.minimumf %90, %91 : vector<4x4x96xf32>
    %93 = arith.truncf %92 : vector<4x4x96xf32> to vector<4x4x96xbf16>
    %94 = vector.shape_cast %93 : vector<4x4x96xbf16> to vector<1x4x4x96xbf16>
    %c0_17 = arith.constant 0 : index
    %c0_18 = arith.constant 0 : index
    %c0_19 = arith.constant 0 : index
    %c0_20 = arith.constant 0 : index
    %95 = vector.load %arg4[%c0_17, %c0_18, %c0_19, %c0_20] : memref<1x4x4x96xbf16, #tpu.memory_space<vmem>>, vector<1x4x4x96xbf16>
    tpu.vector_store %arg4[%c0_17, %c0_18, %c0_19, %c0_20], %94 {strides = array<i32>} : memref<1x4x4x96xbf16, #tpu.memory_space<vmem>>, vector<1x4x4x96xbf16>,
    return
  }
  func.func @transform_0(%arg0: i32) -> (i32, i32, i32, i32) {
    %c0_i32 = arith.constant 0 : i32
    %c0_i32_0 = arith.constant 0 : i32
    %c0_i32_1 = arith.constant 0 : i32
    %c0_i32_2 = arith.constant 0 : i32
    return %arg0, %c0_i32, %c0_i32_0, %c0_i32_1 : i32, i32, i32, i32
  }
  func.func @transform_1(%arg0: i32) -> (i32, i32) {
    %c0_i32 = arith.constant 0 : i32
    %c0_i32_0 = arith.constant 0 : i32
    %c0_i32_1 = arith.constant 0 : i32
    return %c0_i32, %c0_i32_0 : i32, i32
  }
  func.func @transform_2(%arg0: i32) -> (i32, i32) {
    %c0_i32 = arith.constant 0 : i32
    %c0_i32_0 = arith.constant 0 : i32
    %c0_i32_1 = arith.constant 0 : i32
    return %c0_i32, %c0_i32_0 : i32, i32
  }
  func.func @transform_3(%arg0: i32) -> (i32, i32, i32, i32) {
    %c0_i32 = arith.constant 0 : i32
    %c0_i32_0 = arith.constant 0 : i32
    %c0_i32_1 = arith.constant 0 : i32
    %c0_i32_2 = arith.constant 0 : i32
    return %arg0, %c0_i32, %c0_i32_0, %c0_i32_1 : i32, i32, i32, i32
  }
}

module attributes {stable_mosaic.version = 11 : i64} {
  func.func @_mm_kernel(%arg0: i32, %arg1: memref<64x96xbf16, #tpu.memory_space<vmem>>, %arg2: memref<96x24xbf16, #tpu.memory_space<vmem>>, %arg3: memref<1x24xf32, #tpu.memory_space<vmem>>, %arg4: memref<64x24xbf16, #tpu.memory_space<vmem>>) attributes {dimension_semantics = [#tpu.dimension_semantics<parallel>], iteration_bounds = array<i64: 1>, scalar_prefetch = 0 : i64, scratch_operands = 0 : i64, tpu.core_type = #tpu.core_type<tc>, window_params = [{transform_indices = @transform_0, window_bounds = array<i64: 64, 96>}, {pipeline_mode = #tpu.pipeline_mode<synchronous>, transform_indices = @transform_1, window_bounds = array<i64: 96, 24>}, {pipeline_mode = #tpu.pipeline_mode<synchronous>, transform_indices = @transform_2, window_bounds = array<i64: 1, 24>}, {transform_indices = @transform_3, window_bounds = array<i64: 64, 24>}]} {
    %c0 = arith.constant 0 : index
    %c0_0 = arith.constant 0 : index
    %0 = vector.load %arg1[%c0, %c0_0] : memref<64x96xbf16, #tpu.memory_space<vmem>>, vector<64x96xbf16>
    %c0_1 = arith.constant 0 : index
    %c0_2 = arith.constant 0 : index
    %1 = vector.load %arg2[%c0_1, %c0_2] : memref<96x24xbf16, #tpu.memory_space<vmem>>, vector<96x24xbf16>
    %cst = arith.constant dense<0.000000e+00> : vector<64x24xf32>
    %2 = tpu.matmul %0, %1, %cst {dimension_numbers = #tpu.dot_dimension_numbers<[1], [0], [0], [1], [0, 0, 1, 1], [], []>} : vector<64x96xbf16>, vector<96x24xbf16>, vector<64x24xf32> -> vector<64x24xf32>
    %c0_3 = arith.constant 0 : index
    %c0_4 = arith.constant 0 : index
    %3 = vector.load %arg3[%c0_3, %c0_4] : memref<1x24xf32, #tpu.memory_space<vmem>>, vector<1x24xf32>
    %4 = vector.broadcast %3 : vector<1x24xf32> to vector<64x24xf32>
    %5 = arith.addf %2, %4 : vector<64x24xf32>
    %6 = arith.truncf %5 : vector<64x24xf32> to vector<64x24xbf16>
    %c0_5 = arith.constant 0 : index
    %c0_6 = arith.constant 0 : index
    %7 = vector.load %arg4[%c0_5, %c0_6] : memref<64x24xbf16, #tpu.memory_space<vmem>>, vector<64x24xbf16>
    tpu.vector_store %arg4[%c0_5, %c0_6], %6 {strides = array<i32>} : memref<64x24xbf16, #tpu.memory_space<vmem>>, vector<64x24xbf16>,
    return
  }
  func.func @transform_0(%arg0: i32) -> (i32, i32) {
    %c0_i32 = arith.constant 0 : i32
    %c0_i32_0 = arith.constant 0 : i32
    return %arg0, %c0_i32 : i32, i32
  }
  func.func @transform_1(%arg0: i32) -> (i32, i32) {
    %c0_i32 = arith.constant 0 : i32
    %c0_i32_0 = arith.constant 0 : i32
    %c0_i32_1 = arith.constant 0 : i32
    return %c0_i32, %c0_i32_0 : i32, i32
  }
  func.func @transform_2(%arg0: i32) -> (i32, i32) {
    %c0_i32 = arith.constant 0 : i32
    %c0_i32_0 = arith.constant 0 : i32
    %c0_i32_1 = arith.constant 0 : i32
    return %c0_i32, %c0_i32_0 : i32, i32
  }
  func.func @transform_3(%arg0: i32) -> (i32, i32) {
    %c0_i32 = arith.constant 0 : i32
    %c0_i32_0 = arith.constant 0 : i32
    return %arg0, %c0_i32 : i32, i32
  }
}

module attributes {stable_mosaic.version = 11 : i64} {
  func.func @_mm_kernel(%arg0: i32, %arg1: memref<64x24xbf16, #tpu.memory_space<vmem>>, %arg2: memref<24x144xbf16, #tpu.memory_space<vmem>>, %arg3: memref<1x144xf32, #tpu.memory_space<vmem>>, %arg4: memref<64x144xbf16, #tpu.memory_space<vmem>>) attributes {dimension_semantics = [#tpu.dimension_semantics<parallel>], iteration_bounds = array<i64: 1>, scalar_prefetch = 0 : i64, scratch_operands = 0 : i64, tpu.core_type = #tpu.core_type<tc>, window_params = [{transform_indices = @transform_0, window_bounds = array<i64: 64, 24>}, {pipeline_mode = #tpu.pipeline_mode<synchronous>, transform_indices = @transform_1, window_bounds = array<i64: 24, 144>}, {pipeline_mode = #tpu.pipeline_mode<synchronous>, transform_indices = @transform_2, window_bounds = array<i64: 1, 144>}, {transform_indices = @transform_3, window_bounds = array<i64: 64, 144>}]} {
    %c0 = arith.constant 0 : index
    %c0_0 = arith.constant 0 : index
    %0 = vector.load %arg1[%c0, %c0_0] : memref<64x24xbf16, #tpu.memory_space<vmem>>, vector<64x24xbf16>
    %c0_1 = arith.constant 0 : index
    %c0_2 = arith.constant 0 : index
    %1 = vector.load %arg2[%c0_1, %c0_2] : memref<24x144xbf16, #tpu.memory_space<vmem>>, vector<24x144xbf16>
    %cst = arith.constant dense<0.000000e+00> : vector<64x144xf32>
    %2 = tpu.matmul %0, %1, %cst {dimension_numbers = #tpu.dot_dimension_numbers<[1], [0], [0], [1], [0, 0, 1, 1], [], []>} : vector<64x24xbf16>, vector<24x144xbf16>, vector<64x144xf32> -> vector<64x144xf32>
    %c0_3 = arith.constant 0 : index
    %c0_4 = arith.constant 0 : index
    %3 = vector.load %arg3[%c0_3, %c0_4] : memref<1x144xf32, #tpu.memory_space<vmem>>, vector<1x144xf32>
    %4 = vector.broadcast %3 : vector<1x144xf32> to vector<64x144xf32>
    %5 = arith.addf %2, %4 : vector<64x144xf32>
    %cst_5 = arith.constant 0.000000e+00 : f32
    %6 = vector.broadcast %cst_5 : f32 to vector<64x144xf32>
    %7 = arith.maximumf %5, %6 : vector<64x144xf32>
    %cst_6 = arith.constant 6.000000e+00 : f32
    %8 = vector.broadcast %cst_6 : f32 to vector<64x144xf32>
    %9 = arith.minimumf %7, %8 : vector<64x144xf32>
    %10 = arith.truncf %9 : vector<64x144xf32> to vector<64x144xbf16>
    %c0_7 = arith.constant 0 : index
    %c0_8 = arith.constant 0 : index
    %11 = vector.load %arg4[%c0_7, %c0_8] : memref<64x144xbf16, #tpu.memory_space<vmem>>, vector<64x144xbf16>
    tpu.vector_store %arg4[%c0_7, %c0_8], %10 {strides = array<i32>} : memref<64x144xbf16, #tpu.memory_space<vmem>>, vector<64x144xbf16>,
    return
  }
  func.func @transform_0(%arg0: i32) -> (i32, i32) {
    %c0_i32 = arith.constant 0 : i32
    %c0_i32_0 = arith.constant 0 : i32
    return %arg0, %c0_i32 : i32, i32
  }
  func.func @transform_1(%arg0: i32) -> (i32, i32) {
    %c0_i32 = arith.constant 0 : i32
    %c0_i32_0 = arith.constant 0 : i32
    %c0_i32_1 = arith.constant 0 : i32
    return %c0_i32, %c0_i32_0 : i32, i32
  }
  func.func @transform_2(%arg0: i32) -> (i32, i32) {
    %c0_i32 = arith.constant 0 : i32
    %c0_i32_0 = arith.constant 0 : i32
    %c0_i32_1 = arith.constant 0 : i32
    return %c0_i32, %c0_i32_0 : i32, i32
  }
  func.func @transform_3(%arg0: i32) -> (i32, i32) {
    %c0_i32 = arith.constant 0 : i32
    %c0_i32_0 = arith.constant 0 : i32
    return %arg0, %c0_i32 : i32, i32
  }
}

module attributes {stable_mosaic.version = 11 : i64} {
  func.func @_dw_s1_kernel(%arg0: i32, %arg1: memref<1x6x6x144xbf16, #tpu.memory_space<vmem>>, %arg2: memref<9x144xf32, #tpu.memory_space<vmem>>, %arg3: memref<1x144xf32, #tpu.memory_space<vmem>>, %arg4: memref<1x4x4x144xbf16, #tpu.memory_space<vmem>>) attributes {dimension_semantics = [#tpu.dimension_semantics<parallel>], iteration_bounds = array<i64: 4>, scalar_prefetch = 0 : i64, scratch_operands = 0 : i64, tpu.core_type = #tpu.core_type<tc>, window_params = [{transform_indices = @transform_0, window_bounds = array<i64: 1, 6, 6, 144>}, {pipeline_mode = #tpu.pipeline_mode<synchronous>, transform_indices = @transform_1, window_bounds = array<i64: 9, 144>}, {pipeline_mode = #tpu.pipeline_mode<synchronous>, transform_indices = @transform_2, window_bounds = array<i64: 1, 144>}, {transform_indices = @transform_3, window_bounds = array<i64: 1, 4, 4, 144>}]} {
    %c0 = arith.constant 0 : index
    %c0_0 = arith.constant 0 : index
    %c0_1 = arith.constant 0 : index
    %c0_2 = arith.constant 0 : index
    %0 = vector.load %arg1[%c0, %c0_0, %c0_1, %c0_2] : memref<1x6x6x144xbf16, #tpu.memory_space<vmem>>, vector<1x6x6x144xbf16>
    %1 = arith.extf %0 : vector<1x6x6x144xbf16> to vector<1x6x6x144xf32>
    %2 = vector.shape_cast %1 : vector<1x6x6x144xf32> to vector<6x6x144xf32>
    %cst = arith.constant 0.000000e+00 : f32
    %3 = vector.broadcast %cst : f32 to vector<4x4x144xf32>
    %4 = vector.extract_strided_slice %2 {offsets = [0, 0, 0], sizes = [4, 4, 144], strides = [1, 1, 1]} : vector<6x6x144xf32> to vector<4x4x144xf32>
    %c0_3 = arith.constant 0 : index
    %c0_4 = arith.constant 0 : index
    %5 = vector.load %arg2[%c0_3, %c0_4] : memref<9x144xf32, #tpu.memory_space<vmem>>, vector<1x144xf32>
    %6 = vector.shape_cast %5 : vector<1x144xf32> to vector<144xf32>
    %7 = vector.shape_cast %6 : vector<144xf32> to vector<1x1x144xf32>
    %8 = vector.broadcast %7 : vector<1x1x144xf32> to vector<4x4x144xf32>
    %9 = arith.mulf %4, %8 : vector<4x4x144xf32>
    %10 = arith.addf %3, %9 : vector<4x4x144xf32>
    %11 = vector.extract_strided_slice %2 {offsets = [0, 1, 0], sizes = [4, 4, 144], strides = [1, 1, 1]} : vector<6x6x144xf32> to vector<4x4x144xf32>
    %c1 = arith.constant 1 : index
    %c0_5 = arith.constant 0 : index
    %12 = vector.load %arg2[%c1, %c0_5] : memref<9x144xf32, #tpu.memory_space<vmem>>, vector<1x144xf32>
    %13 = vector.shape_cast %12 : vector<1x144xf32> to vector<144xf32>
    %14 = vector.shape_cast %13 : vector<144xf32> to vector<1x1x144xf32>
    %15 = vector.broadcast %14 : vector<1x1x144xf32> to vector<4x4x144xf32>
    %16 = arith.mulf %11, %15 : vector<4x4x144xf32>
    %17 = arith.addf %10, %16 : vector<4x4x144xf32>
    %18 = vector.extract_strided_slice %2 {offsets = [0, 2, 0], sizes = [4, 4, 144], strides = [1, 1, 1]} : vector<6x6x144xf32> to vector<4x4x144xf32>
    %c2 = arith.constant 2 : index
    %c0_6 = arith.constant 0 : index
    %19 = vector.load %arg2[%c2, %c0_6] : memref<9x144xf32, #tpu.memory_space<vmem>>, vector<1x144xf32>
    %20 = vector.shape_cast %19 : vector<1x144xf32> to vector<144xf32>
    %21 = vector.shape_cast %20 : vector<144xf32> to vector<1x1x144xf32>
    %22 = vector.broadcast %21 : vector<1x1x144xf32> to vector<4x4x144xf32>
    %23 = arith.mulf %18, %22 : vector<4x4x144xf32>
    %24 = arith.addf %17, %23 : vector<4x4x144xf32>
    %25 = vector.extract_strided_slice %2 {offsets = [1, 0, 0], sizes = [4, 4, 144], strides = [1, 1, 1]} : vector<6x6x144xf32> to vector<4x4x144xf32>
    %c3 = arith.constant 3 : index
    %c0_7 = arith.constant 0 : index
    %26 = vector.load %arg2[%c3, %c0_7] : memref<9x144xf32, #tpu.memory_space<vmem>>, vector<1x144xf32>
    %27 = vector.shape_cast %26 : vector<1x144xf32> to vector<144xf32>
    %28 = vector.shape_cast %27 : vector<144xf32> to vector<1x1x144xf32>
    %29 = vector.broadcast %28 : vector<1x1x144xf32> to vector<4x4x144xf32>
    %30 = arith.mulf %25, %29 : vector<4x4x144xf32>
    %31 = arith.addf %24, %30 : vector<4x4x144xf32>
    %32 = vector.extract_strided_slice %2 {offsets = [1, 1, 0], sizes = [4, 4, 144], strides = [1, 1, 1]} : vector<6x6x144xf32> to vector<4x4x144xf32>
    %c4 = arith.constant 4 : index
    %c0_8 = arith.constant 0 : index
    %33 = vector.load %arg2[%c4, %c0_8] : memref<9x144xf32, #tpu.memory_space<vmem>>, vector<1x144xf32>
    %34 = vector.shape_cast %33 : vector<1x144xf32> to vector<144xf32>
    %35 = vector.shape_cast %34 : vector<144xf32> to vector<1x1x144xf32>
    %36 = vector.broadcast %35 : vector<1x1x144xf32> to vector<4x4x144xf32>
    %37 = arith.mulf %32, %36 : vector<4x4x144xf32>
    %38 = arith.addf %31, %37 : vector<4x4x144xf32>
    %39 = vector.extract_strided_slice %2 {offsets = [1, 2, 0], sizes = [4, 4, 144], strides = [1, 1, 1]} : vector<6x6x144xf32> to vector<4x4x144xf32>
    %c5 = arith.constant 5 : index
    %c0_9 = arith.constant 0 : index
    %40 = vector.load %arg2[%c5, %c0_9] : memref<9x144xf32, #tpu.memory_space<vmem>>, vector<1x144xf32>
    %41 = vector.shape_cast %40 : vector<1x144xf32> to vector<144xf32>
    %42 = vector.shape_cast %41 : vector<144xf32> to vector<1x1x144xf32>
    %43 = vector.broadcast %42 : vector<1x1x144xf32> to vector<4x4x144xf32>
    %44 = arith.mulf %39, %43 : vector<4x4x144xf32>
    %45 = arith.addf %38, %44 : vector<4x4x144xf32>
    %46 = vector.extract_strided_slice %2 {offsets = [2, 0, 0], sizes = [4, 4, 144], strides = [1, 1, 1]} : vector<6x6x144xf32> to vector<4x4x144xf32>
    %c6 = arith.constant 6 : index
    %c0_10 = arith.constant 0 : index
    %47 = vector.load %arg2[%c6, %c0_10] : memref<9x144xf32, #tpu.memory_space<vmem>>, vector<1x144xf32>
    %48 = vector.shape_cast %47 : vector<1x144xf32> to vector<144xf32>
    %49 = vector.shape_cast %48 : vector<144xf32> to vector<1x1x144xf32>
    %50 = vector.broadcast %49 : vector<1x1x144xf32> to vector<4x4x144xf32>
    %51 = arith.mulf %46, %50 : vector<4x4x144xf32>
    %52 = arith.addf %45, %51 : vector<4x4x144xf32>
    %53 = vector.extract_strided_slice %2 {offsets = [2, 1, 0], sizes = [4, 4, 144], strides = [1, 1, 1]} : vector<6x6x144xf32> to vector<4x4x144xf32>
    %c7 = arith.constant 7 : index
    %c0_11 = arith.constant 0 : index
    %54 = vector.load %arg2[%c7, %c0_11] : memref<9x144xf32, #tpu.memory_space<vmem>>, vector<1x144xf32>
    %55 = vector.shape_cast %54 : vector<1x144xf32> to vector<144xf32>
    %56 = vector.shape_cast %55 : vector<144xf32> to vector<1x1x144xf32>
    %57 = vector.broadcast %56 : vector<1x1x144xf32> to vector<4x4x144xf32>
    %58 = arith.mulf %53, %57 : vector<4x4x144xf32>
    %59 = arith.addf %52, %58 : vector<4x4x144xf32>
    %60 = vector.extract_strided_slice %2 {offsets = [2, 2, 0], sizes = [4, 4, 144], strides = [1, 1, 1]} : vector<6x6x144xf32> to vector<4x4x144xf32>
    %c8 = arith.constant 8 : index
    %c0_12 = arith.constant 0 : index
    %61 = vector.load %arg2[%c8, %c0_12] : memref<9x144xf32, #tpu.memory_space<vmem>>, vector<1x144xf32>
    %62 = vector.shape_cast %61 : vector<1x144xf32> to vector<144xf32>
    %63 = vector.shape_cast %62 : vector<144xf32> to vector<1x1x144xf32>
    %64 = vector.broadcast %63 : vector<1x1x144xf32> to vector<4x4x144xf32>
    %65 = arith.mulf %60, %64 : vector<4x4x144xf32>
    %66 = arith.addf %59, %65 : vector<4x4x144xf32>
    %c0_13 = arith.constant 0 : index
    %c0_14 = arith.constant 0 : index
    %67 = vector.load %arg3[%c0_13, %c0_14] : memref<1x144xf32, #tpu.memory_space<vmem>>, vector<1x144xf32>
    %68 = vector.shape_cast %67 : vector<1x144xf32> to vector<144xf32>
    %69 = vector.shape_cast %68 : vector<144xf32> to vector<1x1x144xf32>
    %70 = vector.broadcast %69 : vector<1x1x144xf32> to vector<4x4x144xf32>
    %71 = arith.addf %66, %70 : vector<4x4x144xf32>
    %cst_15 = arith.constant 0.000000e+00 : f32
    %72 = vector.broadcast %cst_15 : f32 to vector<4x4x144xf32>
    %73 = arith.maximumf %71, %72 : vector<4x4x144xf32>
    %cst_16 = arith.constant 6.000000e+00 : f32
    %74 = vector.broadcast %cst_16 : f32 to vector<4x4x144xf32>
    %75 = arith.minimumf %73, %74 : vector<4x4x144xf32>
    %76 = arith.truncf %75 : vector<4x4x144xf32> to vector<4x4x144xbf16>
    %77 = vector.shape_cast %76 : vector<4x4x144xbf16> to vector<1x4x4x144xbf16>
    %c0_17 = arith.constant 0 : index
    %c0_18 = arith.constant 0 : index
    %c0_19 = arith.constant 0 : index
    %c0_20 = arith.constant 0 : index
    %78 = vector.load %arg4[%c0_17, %c0_18, %c0_19, %c0_20] : memref<1x4x4x144xbf16, #tpu.memory_space<vmem>>, vector<1x4x4x144xbf16>
    tpu.vector_store %arg4[%c0_17, %c0_18, %c0_19, %c0_20], %77 {strides = array<i32>} : memref<1x4x4x144xbf16, #tpu.memory_space<vmem>>, vector<1x4x4x144xbf16>,
    return
  }
  func.func @transform_0(%arg0: i32) -> (i32, i32, i32, i32) {
    %c0_i32 = arith.constant 0 : i32
    %c0_i32_0 = arith.constant 0 : i32
    %c0_i32_1 = arith.constant 0 : i32
    %c0_i32_2 = arith.constant 0 : i32
    return %arg0, %c0_i32, %c0_i32_0, %c0_i32_1 : i32, i32, i32, i32
  }
  func.func @transform_1(%arg0: i32) -> (i32, i32) {
    %c0_i32 = arith.constant 0 : i32
    %c0_i32_0 = arith.constant 0 : i32
    %c0_i32_1 = arith.constant 0 : i32
    return %c0_i32, %c0_i32_0 : i32, i32
  }
  func.func @transform_2(%arg0: i32) -> (i32, i32) {
    %c0_i32 = arith.constant 0 : i32
    %c0_i32_0 = arith.constant 0 : i32
    %c0_i32_1 = arith.constant 0 : i32
    return %c0_i32, %c0_i32_0 : i32, i32
  }
  func.func @transform_3(%arg0: i32) -> (i32, i32, i32, i32) {
    %c0_i32 = arith.constant 0 : i32
    %c0_i32_0 = arith.constant 0 : i32
    %c0_i32_1 = arith.constant 0 : i32
    %c0_i32_2 = arith.constant 0 : i32
    return %arg0, %c0_i32, %c0_i32_0, %c0_i32_1 : i32, i32, i32, i32
  }
}

module attributes {stable_mosaic.version = 11 : i64} {
  func.func @_mm_res_kernel(%arg0: i32, %arg1: memref<64x144xbf16, #tpu.memory_space<vmem>>, %arg2: memref<144x24xbf16, #tpu.memory_space<vmem>>, %arg3: memref<1x24xf32, #tpu.memory_space<vmem>>, %arg4: memref<64x24xbf16, #tpu.memory_space<vmem>>, %arg5: memref<64x24xbf16, #tpu.memory_space<vmem>>) attributes {dimension_semantics = [#tpu.dimension_semantics<parallel>], iteration_bounds = array<i64: 1>, scalar_prefetch = 0 : i64, scratch_operands = 0 : i64, tpu.core_type = #tpu.core_type<tc>, window_params = [{transform_indices = @transform_0, window_bounds = array<i64: 64, 144>}, {pipeline_mode = #tpu.pipeline_mode<synchronous>, transform_indices = @transform_1, window_bounds = array<i64: 144, 24>}, {pipeline_mode = #tpu.pipeline_mode<synchronous>, transform_indices = @transform_2, window_bounds = array<i64: 1, 24>}, {transform_indices = @transform_3, window_bounds = array<i64: 64, 24>}, {transform_indices = @transform_4, window_bounds = array<i64: 64, 24>}]} {
    %c0 = arith.constant 0 : index
    %c0_0 = arith.constant 0 : index
    %0 = vector.load %arg1[%c0, %c0_0] : memref<64x144xbf16, #tpu.memory_space<vmem>>, vector<64x144xbf16>
    %c0_1 = arith.constant 0 : index
    %c0_2 = arith.constant 0 : index
    %1 = vector.load %arg2[%c0_1, %c0_2] : memref<144x24xbf16, #tpu.memory_space<vmem>>, vector<144x24xbf16>
    %cst = arith.constant dense<0.000000e+00> : vector<64x24xf32>
    %2 = tpu.matmul %0, %1, %cst {dimension_numbers = #tpu.dot_dimension_numbers<[1], [0], [0], [1], [0, 0, 1, 1], [], []>} : vector<64x144xbf16>, vector<144x24xbf16>, vector<64x24xf32> -> vector<64x24xf32>
    %c0_3 = arith.constant 0 : index
    %c0_4 = arith.constant 0 : index
    %3 = vector.load %arg3[%c0_3, %c0_4] : memref<1x24xf32, #tpu.memory_space<vmem>>, vector<1x24xf32>
    %4 = vector.broadcast %3 : vector<1x24xf32> to vector<64x24xf32>
    %5 = arith.addf %2, %4 : vector<64x24xf32>
    %c0_5 = arith.constant 0 : index
    %c0_6 = arith.constant 0 : index
    %6 = vector.load %arg4[%c0_5, %c0_6] : memref<64x24xbf16, #tpu.memory_space<vmem>>, vector<64x24xbf16>
    %7 = arith.extf %6 : vector<64x24xbf16> to vector<64x24xf32>
    %8 = arith.addf %5, %7 : vector<64x24xf32>
    %9 = arith.truncf %8 : vector<64x24xf32> to vector<64x24xbf16>
    %c0_7 = arith.constant 0 : index
    %c0_8 = arith.constant 0 : index
    %10 = vector.load %arg5[%c0_7, %c0_8] : memref<64x24xbf16, #tpu.memory_space<vmem>>, vector<64x24xbf16>
    tpu.vector_store %arg5[%c0_7, %c0_8], %9 {strides = array<i32>} : memref<64x24xbf16, #tpu.memory_space<vmem>>, vector<64x24xbf16>,
    return
  }
  func.func @transform_0(%arg0: i32) -> (i32, i32) {
    %c0_i32 = arith.constant 0 : i32
    %c0_i32_0 = arith.constant 0 : i32
    return %arg0, %c0_i32 : i32, i32
  }
  func.func @transform_1(%arg0: i32) -> (i32, i32) {
    %c0_i32 = arith.constant 0 : i32
    %c0_i32_0 = arith.constant 0 : i32
    %c0_i32_1 = arith.constant 0 : i32
    return %c0_i32, %c0_i32_0 : i32, i32
  }
  func.func @transform_2(%arg0: i32) -> (i32, i32) {
    %c0_i32 = arith.constant 0 : i32
    %c0_i32_0 = arith.constant 0 : i32
    %c0_i32_1 = arith.constant 0 : i32
    return %c0_i32, %c0_i32_0 : i32, i32
  }
  func.func @transform_3(%arg0: i32) -> (i32, i32) {
    %c0_i32 = arith.constant 0 : i32
    %c0_i32_0 = arith.constant 0 : i32
    return %arg0, %c0_i32 : i32, i32
  }
  func.func @transform_4(%arg0: i32) -> (i32, i32) {
    %c0_i32 = arith.constant 0 : i32
    %c0_i32_0 = arith.constant 0 : i32
    return %arg0, %c0_i32 : i32, i32
  }
}

module attributes {stable_mosaic.version = 11 : i64} {
  func.func @_dw_s2_kernel(%arg0: i32, %arg1: memref<4x3x3x144xbf16, #tpu.memory_space<vmem>>, %arg2: memref<9x144xf32, #tpu.memory_space<vmem>>, %arg3: memref<1x144xf32, #tpu.memory_space<vmem>>, %arg4: memref<1x2x2x144xbf16, #tpu.memory_space<vmem>>) attributes {dimension_semantics = [#tpu.dimension_semantics<parallel>], iteration_bounds = array<i64: 4>, scalar_prefetch = 0 : i64, scratch_operands = 0 : i64, tpu.core_type = #tpu.core_type<tc>, window_params = [{transform_indices = @transform_0, window_bounds = array<i64: 4, 3, 3, 144>}, {pipeline_mode = #tpu.pipeline_mode<synchronous>, transform_indices = @transform_1, window_bounds = array<i64: 9, 144>}, {pipeline_mode = #tpu.pipeline_mode<synchronous>, transform_indices = @transform_2, window_bounds = array<i64: 1, 144>}, {transform_indices = @transform_3, window_bounds = array<i64: 1, 2, 2, 144>}]} {
    %c0 = arith.constant 0 : index
    %c0_0 = arith.constant 0 : index
    %c0_1 = arith.constant 0 : index
    %c0_2 = arith.constant 0 : index
    %0 = vector.load %arg1[%c0, %c0_0, %c0_1, %c0_2] : memref<4x3x3x144xbf16, #tpu.memory_space<vmem>>, vector<4x3x3x144xbf16>
    %1 = arith.extf %0 : vector<4x3x3x144xbf16> to vector<4x3x3x144xf32>
    %cst = arith.constant 0.000000e+00 : f32
    %2 = vector.broadcast %cst : f32 to vector<2x2x144xf32>
    %3 = vector.extract_strided_slice %1 {offsets = [0, 0, 0, 0], sizes = [1, 3, 3, 144], strides = [1, 1, 1, 1]} : vector<4x3x3x144xf32> to vector<1x3x3x144xf32>
    %4 = vector.shape_cast %3 : vector<1x3x3x144xf32> to vector<3x3x144xf32>
    %5 = vector.extract_strided_slice %4 {offsets = [0, 0, 0], sizes = [2, 2, 144], strides = [1, 1, 1]} : vector<3x3x144xf32> to vector<2x2x144xf32>
    %c0_3 = arith.constant 0 : index
    %c0_4 = arith.constant 0 : index
    %6 = vector.load %arg2[%c0_3, %c0_4] : memref<9x144xf32, #tpu.memory_space<vmem>>, vector<1x144xf32>
    %7 = vector.shape_cast %6 : vector<1x144xf32> to vector<144xf32>
    %8 = vector.shape_cast %7 : vector<144xf32> to vector<1x1x144xf32>
    %9 = vector.broadcast %8 : vector<1x1x144xf32> to vector<2x2x144xf32>
    %10 = arith.mulf %5, %9 : vector<2x2x144xf32>
    %11 = arith.addf %2, %10 : vector<2x2x144xf32>
    %12 = vector.extract_strided_slice %1 {offsets = [1, 0, 0, 0], sizes = [1, 3, 3, 144], strides = [1, 1, 1, 1]} : vector<4x3x3x144xf32> to vector<1x3x3x144xf32>
    %13 = vector.shape_cast %12 : vector<1x3x3x144xf32> to vector<3x3x144xf32>
    %14 = vector.extract_strided_slice %13 {offsets = [0, 0, 0], sizes = [2, 2, 144], strides = [1, 1, 1]} : vector<3x3x144xf32> to vector<2x2x144xf32>
    %c1 = arith.constant 1 : index
    %c0_5 = arith.constant 0 : index
    %15 = vector.load %arg2[%c1, %c0_5] : memref<9x144xf32, #tpu.memory_space<vmem>>, vector<1x144xf32>
    %16 = vector.shape_cast %15 : vector<1x144xf32> to vector<144xf32>
    %17 = vector.shape_cast %16 : vector<144xf32> to vector<1x1x144xf32>
    %18 = vector.broadcast %17 : vector<1x1x144xf32> to vector<2x2x144xf32>
    %19 = arith.mulf %14, %18 : vector<2x2x144xf32>
    %20 = arith.addf %11, %19 : vector<2x2x144xf32>
    %21 = vector.extract_strided_slice %1 {offsets = [0, 0, 0, 0], sizes = [1, 3, 3, 144], strides = [1, 1, 1, 1]} : vector<4x3x3x144xf32> to vector<1x3x3x144xf32>
    %22 = vector.shape_cast %21 : vector<1x3x3x144xf32> to vector<3x3x144xf32>
    %23 = vector.extract_strided_slice %22 {offsets = [0, 1, 0], sizes = [2, 2, 144], strides = [1, 1, 1]} : vector<3x3x144xf32> to vector<2x2x144xf32>
    %c2 = arith.constant 2 : index
    %c0_6 = arith.constant 0 : index
    %24 = vector.load %arg2[%c2, %c0_6] : memref<9x144xf32, #tpu.memory_space<vmem>>, vector<1x144xf32>
    %25 = vector.shape_cast %24 : vector<1x144xf32> to vector<144xf32>
    %26 = vector.shape_cast %25 : vector<144xf32> to vector<1x1x144xf32>
    %27 = vector.broadcast %26 : vector<1x1x144xf32> to vector<2x2x144xf32>
    %28 = arith.mulf %23, %27 : vector<2x2x144xf32>
    %29 = arith.addf %20, %28 : vector<2x2x144xf32>
    %30 = vector.extract_strided_slice %1 {offsets = [2, 0, 0, 0], sizes = [1, 3, 3, 144], strides = [1, 1, 1, 1]} : vector<4x3x3x144xf32> to vector<1x3x3x144xf32>
    %31 = vector.shape_cast %30 : vector<1x3x3x144xf32> to vector<3x3x144xf32>
    %32 = vector.extract_strided_slice %31 {offsets = [0, 0, 0], sizes = [2, 2, 144], strides = [1, 1, 1]} : vector<3x3x144xf32> to vector<2x2x144xf32>
    %c3 = arith.constant 3 : index
    %c0_7 = arith.constant 0 : index
    %33 = vector.load %arg2[%c3, %c0_7] : memref<9x144xf32, #tpu.memory_space<vmem>>, vector<1x144xf32>
    %34 = vector.shape_cast %33 : vector<1x144xf32> to vector<144xf32>
    %35 = vector.shape_cast %34 : vector<144xf32> to vector<1x1x144xf32>
    %36 = vector.broadcast %35 : vector<1x1x144xf32> to vector<2x2x144xf32>
    %37 = arith.mulf %32, %36 : vector<2x2x144xf32>
    %38 = arith.addf %29, %37 : vector<2x2x144xf32>
    %39 = vector.extract_strided_slice %1 {offsets = [3, 0, 0, 0], sizes = [1, 3, 3, 144], strides = [1, 1, 1, 1]} : vector<4x3x3x144xf32> to vector<1x3x3x144xf32>
    %40 = vector.shape_cast %39 : vector<1x3x3x144xf32> to vector<3x3x144xf32>
    %41 = vector.extract_strided_slice %40 {offsets = [0, 0, 0], sizes = [2, 2, 144], strides = [1, 1, 1]} : vector<3x3x144xf32> to vector<2x2x144xf32>
    %c4 = arith.constant 4 : index
    %c0_8 = arith.constant 0 : index
    %42 = vector.load %arg2[%c4, %c0_8] : memref<9x144xf32, #tpu.memory_space<vmem>>, vector<1x144xf32>
    %43 = vector.shape_cast %42 : vector<1x144xf32> to vector<144xf32>
    %44 = vector.shape_cast %43 : vector<144xf32> to vector<1x1x144xf32>
    %45 = vector.broadcast %44 : vector<1x1x144xf32> to vector<2x2x144xf32>
    %46 = arith.mulf %41, %45 : vector<2x2x144xf32>
    %47 = arith.addf %38, %46 : vector<2x2x144xf32>
    %48 = vector.extract_strided_slice %1 {offsets = [2, 0, 0, 0], sizes = [1, 3, 3, 144], strides = [1, 1, 1, 1]} : vector<4x3x3x144xf32> to vector<1x3x3x144xf32>
    %49 = vector.shape_cast %48 : vector<1x3x3x144xf32> to vector<3x3x144xf32>
    %50 = vector.extract_strided_slice %49 {offsets = [0, 1, 0], sizes = [2, 2, 144], strides = [1, 1, 1]} : vector<3x3x144xf32> to vector<2x2x144xf32>
    %c5 = arith.constant 5 : index
    %c0_9 = arith.constant 0 : index
    %51 = vector.load %arg2[%c5, %c0_9] : memref<9x144xf32, #tpu.memory_space<vmem>>, vector<1x144xf32>
    %52 = vector.shape_cast %51 : vector<1x144xf32> to vector<144xf32>
    %53 = vector.shape_cast %52 : vector<144xf32> to vector<1x1x144xf32>
    %54 = vector.broadcast %53 : vector<1x1x144xf32> to vector<2x2x144xf32>
    %55 = arith.mulf %50, %54 : vector<2x2x144xf32>
    %56 = arith.addf %47, %55 : vector<2x2x144xf32>
    %57 = vector.extract_strided_slice %1 {offsets = [0, 0, 0, 0], sizes = [1, 3, 3, 144], strides = [1, 1, 1, 1]} : vector<4x3x3x144xf32> to vector<1x3x3x144xf32>
    %58 = vector.shape_cast %57 : vector<1x3x3x144xf32> to vector<3x3x144xf32>
    %59 = vector.extract_strided_slice %58 {offsets = [1, 0, 0], sizes = [2, 2, 144], strides = [1, 1, 1]} : vector<3x3x144xf32> to vector<2x2x144xf32>
    %c6 = arith.constant 6 : index
    %c0_10 = arith.constant 0 : index
    %60 = vector.load %arg2[%c6, %c0_10] : memref<9x144xf32, #tpu.memory_space<vmem>>, vector<1x144xf32>
    %61 = vector.shape_cast %60 : vector<1x144xf32> to vector<144xf32>
    %62 = vector.shape_cast %61 : vector<144xf32> to vector<1x1x144xf32>
    %63 = vector.broadcast %62 : vector<1x1x144xf32> to vector<2x2x144xf32>
    %64 = arith.mulf %59, %63 : vector<2x2x144xf32>
    %65 = arith.addf %56, %64 : vector<2x2x144xf32>
    %66 = vector.extract_strided_slice %1 {offsets = [1, 0, 0, 0], sizes = [1, 3, 3, 144], strides = [1, 1, 1, 1]} : vector<4x3x3x144xf32> to vector<1x3x3x144xf32>
    %67 = vector.shape_cast %66 : vector<1x3x3x144xf32> to vector<3x3x144xf32>
    %68 = vector.extract_strided_slice %67 {offsets = [1, 0, 0], sizes = [2, 2, 144], strides = [1, 1, 1]} : vector<3x3x144xf32> to vector<2x2x144xf32>
    %c7 = arith.constant 7 : index
    %c0_11 = arith.constant 0 : index
    %69 = vector.load %arg2[%c7, %c0_11] : memref<9x144xf32, #tpu.memory_space<vmem>>, vector<1x144xf32>
    %70 = vector.shape_cast %69 : vector<1x144xf32> to vector<144xf32>
    %71 = vector.shape_cast %70 : vector<144xf32> to vector<1x1x144xf32>
    %72 = vector.broadcast %71 : vector<1x1x144xf32> to vector<2x2x144xf32>
    %73 = arith.mulf %68, %72 : vector<2x2x144xf32>
    %74 = arith.addf %65, %73 : vector<2x2x144xf32>
    %75 = vector.extract_strided_slice %1 {offsets = [0, 0, 0, 0], sizes = [1, 3, 3, 144], strides = [1, 1, 1, 1]} : vector<4x3x3x144xf32> to vector<1x3x3x144xf32>
    %76 = vector.shape_cast %75 : vector<1x3x3x144xf32> to vector<3x3x144xf32>
    %77 = vector.extract_strided_slice %76 {offsets = [1, 1, 0], sizes = [2, 2, 144], strides = [1, 1, 1]} : vector<3x3x144xf32> to vector<2x2x144xf32>
    %c8 = arith.constant 8 : index
    %c0_12 = arith.constant 0 : index
    %78 = vector.load %arg2[%c8, %c0_12] : memref<9x144xf32, #tpu.memory_space<vmem>>, vector<1x144xf32>
    %79 = vector.shape_cast %78 : vector<1x144xf32> to vector<144xf32>
    %80 = vector.shape_cast %79 : vector<144xf32> to vector<1x1x144xf32>
    %81 = vector.broadcast %80 : vector<1x1x144xf32> to vector<2x2x144xf32>
    %82 = arith.mulf %77, %81 : vector<2x2x144xf32>
    %83 = arith.addf %74, %82 : vector<2x2x144xf32>
    %c0_13 = arith.constant 0 : index
    %c0_14 = arith.constant 0 : index
    %84 = vector.load %arg3[%c0_13, %c0_14] : memref<1x144xf32, #tpu.memory_space<vmem>>, vector<1x144xf32>
    %85 = vector.shape_cast %84 : vector<1x144xf32> to vector<144xf32>
    %86 = vector.shape_cast %85 : vector<144xf32> to vector<1x1x144xf32>
    %87 = vector.broadcast %86 : vector<1x1x144xf32> to vector<2x2x144xf32>
    %88 = arith.addf %83, %87 : vector<2x2x144xf32>
    %cst_15 = arith.constant 0.000000e+00 : f32
    %89 = vector.broadcast %cst_15 : f32 to vector<2x2x144xf32>
    %90 = arith.maximumf %88, %89 : vector<2x2x144xf32>
    %cst_16 = arith.constant 6.000000e+00 : f32
    %91 = vector.broadcast %cst_16 : f32 to vector<2x2x144xf32>
    %92 = arith.minimumf %90, %91 : vector<2x2x144xf32>
    %93 = arith.truncf %92 : vector<2x2x144xf32> to vector<2x2x144xbf16>
    %94 = vector.shape_cast %93 : vector<2x2x144xbf16> to vector<1x2x2x144xbf16>
    %c0_17 = arith.constant 0 : index
    %c0_18 = arith.constant 0 : index
    %c0_19 = arith.constant 0 : index
    %c0_20 = arith.constant 0 : index
    %95 = vector.load %arg4[%c0_17, %c0_18, %c0_19, %c0_20] : memref<1x2x2x144xbf16, #tpu.memory_space<vmem>>, vector<1x2x2x144xbf16>
    tpu.vector_store %arg4[%c0_17, %c0_18, %c0_19, %c0_20], %94 {strides = array<i32>} : memref<1x2x2x144xbf16, #tpu.memory_space<vmem>>, vector<1x2x2x144xbf16>,
    return
  }
  func.func @transform_0(%arg0: i32) -> (i32, i32, i32, i32) {
    %c0_i32 = arith.constant 0 : i32
    %c0_i32_0 = arith.constant 0 : i32
    %c0_i32_1 = arith.constant 0 : i32
    %c0_i32_2 = arith.constant 0 : i32
    return %arg0, %c0_i32, %c0_i32_0, %c0_i32_1 : i32, i32, i32, i32
  }
  func.func @transform_1(%arg0: i32) -> (i32, i32) {
    %c0_i32 = arith.constant 0 : i32
    %c0_i32_0 = arith.constant 0 : i32
    %c0_i32_1 = arith.constant 0 : i32
    return %c0_i32, %c0_i32_0 : i32, i32
  }
  func.func @transform_2(%arg0: i32) -> (i32, i32) {
    %c0_i32 = arith.constant 0 : i32
    %c0_i32_0 = arith.constant 0 : i32
    %c0_i32_1 = arith.constant 0 : i32
    return %c0_i32, %c0_i32_0 : i32, i32
  }
  func.func @transform_3(%arg0: i32) -> (i32, i32, i32, i32) {
    %c0_i32 = arith.constant 0 : i32
    %c0_i32_0 = arith.constant 0 : i32
    %c0_i32_1 = arith.constant 0 : i32
    %c0_i32_2 = arith.constant 0 : i32
    return %arg0, %c0_i32, %c0_i32_0, %c0_i32_1 : i32, i32, i32, i32
  }
}

module attributes {stable_mosaic.version = 11 : i64} {
  func.func @_mm_kernel(%arg0: i32, %arg1: memref<16x144xbf16, #tpu.memory_space<vmem>>, %arg2: memref<144x32xbf16, #tpu.memory_space<vmem>>, %arg3: memref<1x32xf32, #tpu.memory_space<vmem>>, %arg4: memref<16x32xbf16, #tpu.memory_space<vmem>>) attributes {dimension_semantics = [#tpu.dimension_semantics<parallel>], iteration_bounds = array<i64: 1>, scalar_prefetch = 0 : i64, scratch_operands = 0 : i64, tpu.core_type = #tpu.core_type<tc>, window_params = [{transform_indices = @transform_0, window_bounds = array<i64: 16, 144>}, {pipeline_mode = #tpu.pipeline_mode<synchronous>, transform_indices = @transform_1, window_bounds = array<i64: 144, 32>}, {pipeline_mode = #tpu.pipeline_mode<synchronous>, transform_indices = @transform_2, window_bounds = array<i64: 1, 32>}, {transform_indices = @transform_3, window_bounds = array<i64: 16, 32>}]} {
    %c0 = arith.constant 0 : index
    %c0_0 = arith.constant 0 : index
    %0 = vector.load %arg1[%c0, %c0_0] : memref<16x144xbf16, #tpu.memory_space<vmem>>, vector<16x144xbf16>
    %c0_1 = arith.constant 0 : index
    %c0_2 = arith.constant 0 : index
    %1 = vector.load %arg2[%c0_1, %c0_2] : memref<144x32xbf16, #tpu.memory_space<vmem>>, vector<144x32xbf16>
    %cst = arith.constant dense<0.000000e+00> : vector<16x32xf32>
    %2 = tpu.matmul %0, %1, %cst {dimension_numbers = #tpu.dot_dimension_numbers<[1], [0], [0], [1], [0, 0, 1, 1], [], []>} : vector<16x144xbf16>, vector<144x32xbf16>, vector<16x32xf32> -> vector<16x32xf32>
    %c0_3 = arith.constant 0 : index
    %c0_4 = arith.constant 0 : index
    %3 = vector.load %arg3[%c0_3, %c0_4] : memref<1x32xf32, #tpu.memory_space<vmem>>, vector<1x32xf32>
    %4 = vector.broadcast %3 : vector<1x32xf32> to vector<16x32xf32>
    %5 = arith.addf %2, %4 : vector<16x32xf32>
    %6 = arith.truncf %5 : vector<16x32xf32> to vector<16x32xbf16>
    %c0_5 = arith.constant 0 : index
    %c0_6 = arith.constant 0 : index
    %7 = vector.load %arg4[%c0_5, %c0_6] : memref<16x32xbf16, #tpu.memory_space<vmem>>, vector<16x32xbf16>
    tpu.vector_store %arg4[%c0_5, %c0_6], %6 {strides = array<i32>} : memref<16x32xbf16, #tpu.memory_space<vmem>>, vector<16x32xbf16>,
    return
  }
  func.func @transform_0(%arg0: i32) -> (i32, i32) {
    %c0_i32 = arith.constant 0 : i32
    %c0_i32_0 = arith.constant 0 : i32
    return %arg0, %c0_i32 : i32, i32
  }
  func.func @transform_1(%arg0: i32) -> (i32, i32) {
    %c0_i32 = arith.constant 0 : i32
    %c0_i32_0 = arith.constant 0 : i32
    %c0_i32_1 = arith.constant 0 : i32
    return %c0_i32, %c0_i32_0 : i32, i32
  }
  func.func @transform_2(%arg0: i32) -> (i32, i32) {
    %c0_i32 = arith.constant 0 : i32
    %c0_i32_0 = arith.constant 0 : i32
    %c0_i32_1 = arith.constant 0 : i32
    return %c0_i32, %c0_i32_0 : i32, i32
  }
  func.func @transform_3(%arg0: i32) -> (i32, i32) {
    %c0_i32 = arith.constant 0 : i32
    %c0_i32_0 = arith.constant 0 : i32
    return %arg0, %c0_i32 : i32, i32
  }
}

module attributes {stable_mosaic.version = 11 : i64} {
  func.func @_mm_kernel(%arg0: i32, %arg1: memref<16x32xbf16, #tpu.memory_space<vmem>>, %arg2: memref<32x192xbf16, #tpu.memory_space<vmem>>, %arg3: memref<1x192xf32, #tpu.memory_space<vmem>>, %arg4: memref<16x192xbf16, #tpu.memory_space<vmem>>) attributes {dimension_semantics = [#tpu.dimension_semantics<parallel>], iteration_bounds = array<i64: 1>, scalar_prefetch = 0 : i64, scratch_operands = 0 : i64, tpu.core_type = #tpu.core_type<tc>, window_params = [{transform_indices = @transform_0, window_bounds = array<i64: 16, 32>}, {pipeline_mode = #tpu.pipeline_mode<synchronous>, transform_indices = @transform_1, window_bounds = array<i64: 32, 192>}, {pipeline_mode = #tpu.pipeline_mode<synchronous>, transform_indices = @transform_2, window_bounds = array<i64: 1, 192>}, {transform_indices = @transform_3, window_bounds = array<i64: 16, 192>}]} {
    %c0 = arith.constant 0 : index
    %c0_0 = arith.constant 0 : index
    %0 = vector.load %arg1[%c0, %c0_0] : memref<16x32xbf16, #tpu.memory_space<vmem>>, vector<16x32xbf16>
    %c0_1 = arith.constant 0 : index
    %c0_2 = arith.constant 0 : index
    %1 = vector.load %arg2[%c0_1, %c0_2] : memref<32x192xbf16, #tpu.memory_space<vmem>>, vector<32x192xbf16>
    %cst = arith.constant dense<0.000000e+00> : vector<16x192xf32>
    %2 = tpu.matmul %0, %1, %cst {dimension_numbers = #tpu.dot_dimension_numbers<[1], [0], [0], [1], [0, 0, 1, 1], [], []>} : vector<16x32xbf16>, vector<32x192xbf16>, vector<16x192xf32> -> vector<16x192xf32>
    %c0_3 = arith.constant 0 : index
    %c0_4 = arith.constant 0 : index
    %3 = vector.load %arg3[%c0_3, %c0_4] : memref<1x192xf32, #tpu.memory_space<vmem>>, vector<1x192xf32>
    %4 = vector.broadcast %3 : vector<1x192xf32> to vector<16x192xf32>
    %5 = arith.addf %2, %4 : vector<16x192xf32>
    %cst_5 = arith.constant 0.000000e+00 : f32
    %6 = vector.broadcast %cst_5 : f32 to vector<16x192xf32>
    %7 = arith.maximumf %5, %6 : vector<16x192xf32>
    %cst_6 = arith.constant 6.000000e+00 : f32
    %8 = vector.broadcast %cst_6 : f32 to vector<16x192xf32>
    %9 = arith.minimumf %7, %8 : vector<16x192xf32>
    %10 = arith.truncf %9 : vector<16x192xf32> to vector<16x192xbf16>
    %c0_7 = arith.constant 0 : index
    %c0_8 = arith.constant 0 : index
    %11 = vector.load %arg4[%c0_7, %c0_8] : memref<16x192xbf16, #tpu.memory_space<vmem>>, vector<16x192xbf16>
    tpu.vector_store %arg4[%c0_7, %c0_8], %10 {strides = array<i32>} : memref<16x192xbf16, #tpu.memory_space<vmem>>, vector<16x192xbf16>,
    return
  }
  func.func @transform_0(%arg0: i32) -> (i32, i32) {
    %c0_i32 = arith.constant 0 : i32
    %c0_i32_0 = arith.constant 0 : i32
    return %arg0, %c0_i32 : i32, i32
  }
  func.func @transform_1(%arg0: i32) -> (i32, i32) {
    %c0_i32 = arith.constant 0 : i32
    %c0_i32_0 = arith.constant 0 : i32
    %c0_i32_1 = arith.constant 0 : i32
    return %c0_i32, %c0_i32_0 : i32, i32
  }
  func.func @transform_2(%arg0: i32) -> (i32, i32) {
    %c0_i32 = arith.constant 0 : i32
    %c0_i32_0 = arith.constant 0 : i32
    %c0_i32_1 = arith.constant 0 : i32
    return %c0_i32, %c0_i32_0 : i32, i32
  }
  func.func @transform_3(%arg0: i32) -> (i32, i32) {
    %c0_i32 = arith.constant 0 : i32
    %c0_i32_0 = arith.constant 0 : i32
    return %arg0, %c0_i32 : i32, i32
  }
}

module attributes {stable_mosaic.version = 11 : i64} {
  func.func @_dw_s1_kernel(%arg0: i32, %arg1: memref<1x4x4x192xbf16, #tpu.memory_space<vmem>>, %arg2: memref<9x192xf32, #tpu.memory_space<vmem>>, %arg3: memref<1x192xf32, #tpu.memory_space<vmem>>, %arg4: memref<1x2x2x192xbf16, #tpu.memory_space<vmem>>) attributes {dimension_semantics = [#tpu.dimension_semantics<parallel>], iteration_bounds = array<i64: 4>, scalar_prefetch = 0 : i64, scratch_operands = 0 : i64, tpu.core_type = #tpu.core_type<tc>, window_params = [{transform_indices = @transform_0, window_bounds = array<i64: 1, 4, 4, 192>}, {pipeline_mode = #tpu.pipeline_mode<synchronous>, transform_indices = @transform_1, window_bounds = array<i64: 9, 192>}, {pipeline_mode = #tpu.pipeline_mode<synchronous>, transform_indices = @transform_2, window_bounds = array<i64: 1, 192>}, {transform_indices = @transform_3, window_bounds = array<i64: 1, 2, 2, 192>}]} {
    %c0 = arith.constant 0 : index
    %c0_0 = arith.constant 0 : index
    %c0_1 = arith.constant 0 : index
    %c0_2 = arith.constant 0 : index
    %0 = vector.load %arg1[%c0, %c0_0, %c0_1, %c0_2] : memref<1x4x4x192xbf16, #tpu.memory_space<vmem>>, vector<1x4x4x192xbf16>
    %1 = arith.extf %0 : vector<1x4x4x192xbf16> to vector<1x4x4x192xf32>
    %2 = vector.shape_cast %1 : vector<1x4x4x192xf32> to vector<4x4x192xf32>
    %cst = arith.constant 0.000000e+00 : f32
    %3 = vector.broadcast %cst : f32 to vector<2x2x192xf32>
    %4 = vector.extract_strided_slice %2 {offsets = [0, 0, 0], sizes = [2, 2, 192], strides = [1, 1, 1]} : vector<4x4x192xf32> to vector<2x2x192xf32>
    %c0_3 = arith.constant 0 : index
    %c0_4 = arith.constant 0 : index
    %5 = vector.load %arg2[%c0_3, %c0_4] : memref<9x192xf32, #tpu.memory_space<vmem>>, vector<1x192xf32>
    %6 = vector.shape_cast %5 : vector<1x192xf32> to vector<192xf32>
    %7 = vector.shape_cast %6 : vector<192xf32> to vector<1x1x192xf32>
    %8 = vector.broadcast %7 : vector<1x1x192xf32> to vector<2x2x192xf32>
    %9 = arith.mulf %4, %8 : vector<2x2x192xf32>
    %10 = arith.addf %3, %9 : vector<2x2x192xf32>
    %11 = vector.extract_strided_slice %2 {offsets = [0, 1, 0], sizes = [2, 2, 192], strides = [1, 1, 1]} : vector<4x4x192xf32> to vector<2x2x192xf32>
    %c1 = arith.constant 1 : index
    %c0_5 = arith.constant 0 : index
    %12 = vector.load %arg2[%c1, %c0_5] : memref<9x192xf32, #tpu.memory_space<vmem>>, vector<1x192xf32>
    %13 = vector.shape_cast %12 : vector<1x192xf32> to vector<192xf32>
    %14 = vector.shape_cast %13 : vector<192xf32> to vector<1x1x192xf32>
    %15 = vector.broadcast %14 : vector<1x1x192xf32> to vector<2x2x192xf32>
    %16 = arith.mulf %11, %15 : vector<2x2x192xf32>
    %17 = arith.addf %10, %16 : vector<2x2x192xf32>
    %18 = vector.extract_strided_slice %2 {offsets = [0, 2, 0], sizes = [2, 2, 192], strides = [1, 1, 1]} : vector<4x4x192xf32> to vector<2x2x192xf32>
    %c2 = arith.constant 2 : index
    %c0_6 = arith.constant 0 : index
    %19 = vector.load %arg2[%c2, %c0_6] : memref<9x192xf32, #tpu.memory_space<vmem>>, vector<1x192xf32>
    %20 = vector.shape_cast %19 : vector<1x192xf32> to vector<192xf32>
    %21 = vector.shape_cast %20 : vector<192xf32> to vector<1x1x192xf32>
    %22 = vector.broadcast %21 : vector<1x1x192xf32> to vector<2x2x192xf32>
    %23 = arith.mulf %18, %22 : vector<2x2x192xf32>
    %24 = arith.addf %17, %23 : vector<2x2x192xf32>
    %25 = vector.extract_strided_slice %2 {offsets = [1, 0, 0], sizes = [2, 2, 192], strides = [1, 1, 1]} : vector<4x4x192xf32> to vector<2x2x192xf32>
    %c3 = arith.constant 3 : index
    %c0_7 = arith.constant 0 : index
    %26 = vector.load %arg2[%c3, %c0_7] : memref<9x192xf32, #tpu.memory_space<vmem>>, vector<1x192xf32>
    %27 = vector.shape_cast %26 : vector<1x192xf32> to vector<192xf32>
    %28 = vector.shape_cast %27 : vector<192xf32> to vector<1x1x192xf32>
    %29 = vector.broadcast %28 : vector<1x1x192xf32> to vector<2x2x192xf32>
    %30 = arith.mulf %25, %29 : vector<2x2x192xf32>
    %31 = arith.addf %24, %30 : vector<2x2x192xf32>
    %32 = vector.extract_strided_slice %2 {offsets = [1, 1, 0], sizes = [2, 2, 192], strides = [1, 1, 1]} : vector<4x4x192xf32> to vector<2x2x192xf32>
    %c4 = arith.constant 4 : index
    %c0_8 = arith.constant 0 : index
    %33 = vector.load %arg2[%c4, %c0_8] : memref<9x192xf32, #tpu.memory_space<vmem>>, vector<1x192xf32>
    %34 = vector.shape_cast %33 : vector<1x192xf32> to vector<192xf32>
    %35 = vector.shape_cast %34 : vector<192xf32> to vector<1x1x192xf32>
    %36 = vector.broadcast %35 : vector<1x1x192xf32> to vector<2x2x192xf32>
    %37 = arith.mulf %32, %36 : vector<2x2x192xf32>
    %38 = arith.addf %31, %37 : vector<2x2x192xf32>
    %39 = vector.extract_strided_slice %2 {offsets = [1, 2, 0], sizes = [2, 2, 192], strides = [1, 1, 1]} : vector<4x4x192xf32> to vector<2x2x192xf32>
    %c5 = arith.constant 5 : index
    %c0_9 = arith.constant 0 : index
    %40 = vector.load %arg2[%c5, %c0_9] : memref<9x192xf32, #tpu.memory_space<vmem>>, vector<1x192xf32>
    %41 = vector.shape_cast %40 : vector<1x192xf32> to vector<192xf32>
    %42 = vector.shape_cast %41 : vector<192xf32> to vector<1x1x192xf32>
    %43 = vector.broadcast %42 : vector<1x1x192xf32> to vector<2x2x192xf32>
    %44 = arith.mulf %39, %43 : vector<2x2x192xf32>
    %45 = arith.addf %38, %44 : vector<2x2x192xf32>
    %46 = vector.extract_strided_slice %2 {offsets = [2, 0, 0], sizes = [2, 2, 192], strides = [1, 1, 1]} : vector<4x4x192xf32> to vector<2x2x192xf32>
    %c6 = arith.constant 6 : index
    %c0_10 = arith.constant 0 : index
    %47 = vector.load %arg2[%c6, %c0_10] : memref<9x192xf32, #tpu.memory_space<vmem>>, vector<1x192xf32>
    %48 = vector.shape_cast %47 : vector<1x192xf32> to vector<192xf32>
    %49 = vector.shape_cast %48 : vector<192xf32> to vector<1x1x192xf32>
    %50 = vector.broadcast %49 : vector<1x1x192xf32> to vector<2x2x192xf32>
    %51 = arith.mulf %46, %50 : vector<2x2x192xf32>
    %52 = arith.addf %45, %51 : vector<2x2x192xf32>
    %53 = vector.extract_strided_slice %2 {offsets = [2, 1, 0], sizes = [2, 2, 192], strides = [1, 1, 1]} : vector<4x4x192xf32> to vector<2x2x192xf32>
    %c7 = arith.constant 7 : index
    %c0_11 = arith.constant 0 : index
    %54 = vector.load %arg2[%c7, %c0_11] : memref<9x192xf32, #tpu.memory_space<vmem>>, vector<1x192xf32>
    %55 = vector.shape_cast %54 : vector<1x192xf32> to vector<192xf32>
    %56 = vector.shape_cast %55 : vector<192xf32> to vector<1x1x192xf32>
    %57 = vector.broadcast %56 : vector<1x1x192xf32> to vector<2x2x192xf32>
    %58 = arith.mulf %53, %57 : vector<2x2x192xf32>
    %59 = arith.addf %52, %58 : vector<2x2x192xf32>
    %60 = vector.extract_strided_slice %2 {offsets = [2, 2, 0], sizes = [2, 2, 192], strides = [1, 1, 1]} : vector<4x4x192xf32> to vector<2x2x192xf32>
    %c8 = arith.constant 8 : index
    %c0_12 = arith.constant 0 : index
    %61 = vector.load %arg2[%c8, %c0_12] : memref<9x192xf32, #tpu.memory_space<vmem>>, vector<1x192xf32>
    %62 = vector.shape_cast %61 : vector<1x192xf32> to vector<192xf32>
    %63 = vector.shape_cast %62 : vector<192xf32> to vector<1x1x192xf32>
    %64 = vector.broadcast %63 : vector<1x1x192xf32> to vector<2x2x192xf32>
    %65 = arith.mulf %60, %64 : vector<2x2x192xf32>
    %66 = arith.addf %59, %65 : vector<2x2x192xf32>
    %c0_13 = arith.constant 0 : index
    %c0_14 = arith.constant 0 : index
    %67 = vector.load %arg3[%c0_13, %c0_14] : memref<1x192xf32, #tpu.memory_space<vmem>>, vector<1x192xf32>
    %68 = vector.shape_cast %67 : vector<1x192xf32> to vector<192xf32>
    %69 = vector.shape_cast %68 : vector<192xf32> to vector<1x1x192xf32>
    %70 = vector.broadcast %69 : vector<1x1x192xf32> to vector<2x2x192xf32>
    %71 = arith.addf %66, %70 : vector<2x2x192xf32>
    %cst_15 = arith.constant 0.000000e+00 : f32
    %72 = vector.broadcast %cst_15 : f32 to vector<2x2x192xf32>
    %73 = arith.maximumf %71, %72 : vector<2x2x192xf32>
    %cst_16 = arith.constant 6.000000e+00 : f32
    %74 = vector.broadcast %cst_16 : f32 to vector<2x2x192xf32>
    %75 = arith.minimumf %73, %74 : vector<2x2x192xf32>
    %76 = arith.truncf %75 : vector<2x2x192xf32> to vector<2x2x192xbf16>
    %77 = vector.shape_cast %76 : vector<2x2x192xbf16> to vector<1x2x2x192xbf16>
    %c0_17 = arith.constant 0 : index
    %c0_18 = arith.constant 0 : index
    %c0_19 = arith.constant 0 : index
    %c0_20 = arith.constant 0 : index
    %78 = vector.load %arg4[%c0_17, %c0_18, %c0_19, %c0_20] : memref<1x2x2x192xbf16, #tpu.memory_space<vmem>>, vector<1x2x2x192xbf16>
    tpu.vector_store %arg4[%c0_17, %c0_18, %c0_19, %c0_20], %77 {strides = array<i32>} : memref<1x2x2x192xbf16, #tpu.memory_space<vmem>>, vector<1x2x2x192xbf16>,
    return
  }
  func.func @transform_0(%arg0: i32) -> (i32, i32, i32, i32) {
    %c0_i32 = arith.constant 0 : i32
    %c0_i32_0 = arith.constant 0 : i32
    %c0_i32_1 = arith.constant 0 : i32
    %c0_i32_2 = arith.constant 0 : i32
    return %arg0, %c0_i32, %c0_i32_0, %c0_i32_1 : i32, i32, i32, i32
  }
  func.func @transform_1(%arg0: i32) -> (i32, i32) {
    %c0_i32 = arith.constant 0 : i32
    %c0_i32_0 = arith.constant 0 : i32
    %c0_i32_1 = arith.constant 0 : i32
    return %c0_i32, %c0_i32_0 : i32, i32
  }
  func.func @transform_2(%arg0: i32) -> (i32, i32) {
    %c0_i32 = arith.constant 0 : i32
    %c0_i32_0 = arith.constant 0 : i32
    %c0_i32_1 = arith.constant 0 : i32
    return %c0_i32, %c0_i32_0 : i32, i32
  }
  func.func @transform_3(%arg0: i32) -> (i32, i32, i32, i32) {
    %c0_i32 = arith.constant 0 : i32
    %c0_i32_0 = arith.constant 0 : i32
    %c0_i32_1 = arith.constant 0 : i32
    %c0_i32_2 = arith.constant 0 : i32
    return %arg0, %c0_i32, %c0_i32_0, %c0_i32_1 : i32, i32, i32, i32
  }
}

module attributes {stable_mosaic.version = 11 : i64} {
  func.func @_mm_res_kernel(%arg0: i32, %arg1: memref<16x192xbf16, #tpu.memory_space<vmem>>, %arg2: memref<192x32xbf16, #tpu.memory_space<vmem>>, %arg3: memref<1x32xf32, #tpu.memory_space<vmem>>, %arg4: memref<16x32xbf16, #tpu.memory_space<vmem>>, %arg5: memref<16x32xbf16, #tpu.memory_space<vmem>>) attributes {dimension_semantics = [#tpu.dimension_semantics<parallel>], iteration_bounds = array<i64: 1>, scalar_prefetch = 0 : i64, scratch_operands = 0 : i64, tpu.core_type = #tpu.core_type<tc>, window_params = [{transform_indices = @transform_0, window_bounds = array<i64: 16, 192>}, {pipeline_mode = #tpu.pipeline_mode<synchronous>, transform_indices = @transform_1, window_bounds = array<i64: 192, 32>}, {pipeline_mode = #tpu.pipeline_mode<synchronous>, transform_indices = @transform_2, window_bounds = array<i64: 1, 32>}, {transform_indices = @transform_3, window_bounds = array<i64: 16, 32>}, {transform_indices = @transform_4, window_bounds = array<i64: 16, 32>}]} {
    %c0 = arith.constant 0 : index
    %c0_0 = arith.constant 0 : index
    %0 = vector.load %arg1[%c0, %c0_0] : memref<16x192xbf16, #tpu.memory_space<vmem>>, vector<16x192xbf16>
    %c0_1 = arith.constant 0 : index
    %c0_2 = arith.constant 0 : index
    %1 = vector.load %arg2[%c0_1, %c0_2] : memref<192x32xbf16, #tpu.memory_space<vmem>>, vector<192x32xbf16>
    %cst = arith.constant dense<0.000000e+00> : vector<16x32xf32>
    %2 = tpu.matmul %0, %1, %cst {dimension_numbers = #tpu.dot_dimension_numbers<[1], [0], [0], [1], [0, 0, 1, 1], [], []>} : vector<16x192xbf16>, vector<192x32xbf16>, vector<16x32xf32> -> vector<16x32xf32>
    %c0_3 = arith.constant 0 : index
    %c0_4 = arith.constant 0 : index
    %3 = vector.load %arg3[%c0_3, %c0_4] : memref<1x32xf32, #tpu.memory_space<vmem>>, vector<1x32xf32>
    %4 = vector.broadcast %3 : vector<1x32xf32> to vector<16x32xf32>
    %5 = arith.addf %2, %4 : vector<16x32xf32>
    %c0_5 = arith.constant 0 : index
    %c0_6 = arith.constant 0 : index
    %6 = vector.load %arg4[%c0_5, %c0_6] : memref<16x32xbf16, #tpu.memory_space<vmem>>, vector<16x32xbf16>
    %7 = arith.extf %6 : vector<16x32xbf16> to vector<16x32xf32>
    %8 = arith.addf %5, %7 : vector<16x32xf32>
    %9 = arith.truncf %8 : vector<16x32xf32> to vector<16x32xbf16>
    %c0_7 = arith.constant 0 : index
    %c0_8 = arith.constant 0 : index
    %10 = vector.load %arg5[%c0_7, %c0_8] : memref<16x32xbf16, #tpu.memory_space<vmem>>, vector<16x32xbf16>
    tpu.vector_store %arg5[%c0_7, %c0_8], %9 {strides = array<i32>} : memref<16x32xbf16, #tpu.memory_space<vmem>>, vector<16x32xbf16>,
    return
  }
  func.func @transform_0(%arg0: i32) -> (i32, i32) {
    %c0_i32 = arith.constant 0 : i32
    %c0_i32_0 = arith.constant 0 : i32
    return %arg0, %c0_i32 : i32, i32
  }
  func.func @transform_1(%arg0: i32) -> (i32, i32) {
    %c0_i32 = arith.constant 0 : i32
    %c0_i32_0 = arith.constant 0 : i32
    %c0_i32_1 = arith.constant 0 : i32
    return %c0_i32, %c0_i32_0 : i32, i32
  }
  func.func @transform_2(%arg0: i32) -> (i32, i32) {
    %c0_i32 = arith.constant 0 : i32
    %c0_i32_0 = arith.constant 0 : i32
    %c0_i32_1 = arith.constant 0 : i32
    return %c0_i32, %c0_i32_0 : i32, i32
  }
  func.func @transform_3(%arg0: i32) -> (i32, i32) {
    %c0_i32 = arith.constant 0 : i32
    %c0_i32_0 = arith.constant 0 : i32
    return %arg0, %c0_i32 : i32, i32
  }
  func.func @transform_4(%arg0: i32) -> (i32, i32) {
    %c0_i32 = arith.constant 0 : i32
    %c0_i32_0 = arith.constant 0 : i32
    return %arg0, %c0_i32 : i32, i32
  }
}

module attributes {stable_mosaic.version = 11 : i64} {
  func.func @_dw_s2_kernel(%arg0: i32, %arg1: memref<4x2x2x192xbf16, #tpu.memory_space<vmem>>, %arg2: memref<9x192xf32, #tpu.memory_space<vmem>>, %arg3: memref<1x192xf32, #tpu.memory_space<vmem>>, %arg4: memref<1x1x1x192xbf16, #tpu.memory_space<vmem>>) attributes {dimension_semantics = [#tpu.dimension_semantics<parallel>], iteration_bounds = array<i64: 4>, scalar_prefetch = 0 : i64, scratch_operands = 0 : i64, tpu.core_type = #tpu.core_type<tc>, window_params = [{transform_indices = @transform_0, window_bounds = array<i64: 4, 2, 2, 192>}, {pipeline_mode = #tpu.pipeline_mode<synchronous>, transform_indices = @transform_1, window_bounds = array<i64: 9, 192>}, {pipeline_mode = #tpu.pipeline_mode<synchronous>, transform_indices = @transform_2, window_bounds = array<i64: 1, 192>}, {transform_indices = @transform_3, window_bounds = array<i64: 1, 1, 1, 192>}]} {
    %c0 = arith.constant 0 : index
    %c0_0 = arith.constant 0 : index
    %c0_1 = arith.constant 0 : index
    %c0_2 = arith.constant 0 : index
    %0 = vector.load %arg1[%c0, %c0_0, %c0_1, %c0_2] : memref<4x2x2x192xbf16, #tpu.memory_space<vmem>>, vector<4x2x2x192xbf16>
    %1 = arith.extf %0 : vector<4x2x2x192xbf16> to vector<4x2x2x192xf32>
    %cst = arith.constant 0.000000e+00 : f32
    %2 = vector.broadcast %cst : f32 to vector<1x1x192xf32>
    %3 = vector.extract_strided_slice %1 {offsets = [0, 0, 0, 0], sizes = [1, 2, 2, 192], strides = [1, 1, 1, 1]} : vector<4x2x2x192xf32> to vector<1x2x2x192xf32>
    %4 = vector.shape_cast %3 : vector<1x2x2x192xf32> to vector<2x2x192xf32>
    %5 = vector.extract_strided_slice %4 {offsets = [0, 0, 0], sizes = [1, 1, 192], strides = [1, 1, 1]} : vector<2x2x192xf32> to vector<1x1x192xf32>
    %c0_3 = arith.constant 0 : index
    %c0_4 = arith.constant 0 : index
    %6 = vector.load %arg2[%c0_3, %c0_4] : memref<9x192xf32, #tpu.memory_space<vmem>>, vector<1x192xf32>
    %7 = vector.shape_cast %6 : vector<1x192xf32> to vector<192xf32>
    %8 = vector.shape_cast %7 : vector<192xf32> to vector<1x1x192xf32>
    %9 = arith.mulf %5, %8 : vector<1x1x192xf32>
    %10 = arith.addf %2, %9 : vector<1x1x192xf32>
    %11 = vector.extract_strided_slice %1 {offsets = [1, 0, 0, 0], sizes = [1, 2, 2, 192], strides = [1, 1, 1, 1]} : vector<4x2x2x192xf32> to vector<1x2x2x192xf32>
    %12 = vector.shape_cast %11 : vector<1x2x2x192xf32> to vector<2x2x192xf32>
    %13 = vector.extract_strided_slice %12 {offsets = [0, 0, 0], sizes = [1, 1, 192], strides = [1, 1, 1]} : vector<2x2x192xf32> to vector<1x1x192xf32>
    %c1 = arith.constant 1 : index
    %c0_5 = arith.constant 0 : index
    %14 = vector.load %arg2[%c1, %c0_5] : memref<9x192xf32, #tpu.memory_space<vmem>>, vector<1x192xf32>
    %15 = vector.shape_cast %14 : vector<1x192xf32> to vector<192xf32>
    %16 = vector.shape_cast %15 : vector<192xf32> to vector<1x1x192xf32>
    %17 = arith.mulf %13, %16 : vector<1x1x192xf32>
    %18 = arith.addf %10, %17 : vector<1x1x192xf32>
    %19 = vector.extract_strided_slice %1 {offsets = [0, 0, 0, 0], sizes = [1, 2, 2, 192], strides = [1, 1, 1, 1]} : vector<4x2x2x192xf32> to vector<1x2x2x192xf32>
    %20 = vector.shape_cast %19 : vector<1x2x2x192xf32> to vector<2x2x192xf32>
    %21 = vector.extract_strided_slice %20 {offsets = [0, 1, 0], sizes = [1, 1, 192], strides = [1, 1, 1]} : vector<2x2x192xf32> to vector<1x1x192xf32>
    %c2 = arith.constant 2 : index
    %c0_6 = arith.constant 0 : index
    %22 = vector.load %arg2[%c2, %c0_6] : memref<9x192xf32, #tpu.memory_space<vmem>>, vector<1x192xf32>
    %23 = vector.shape_cast %22 : vector<1x192xf32> to vector<192xf32>
    %24 = vector.shape_cast %23 : vector<192xf32> to vector<1x1x192xf32>
    %25 = arith.mulf %21, %24 : vector<1x1x192xf32>
    %26 = arith.addf %18, %25 : vector<1x1x192xf32>
    %27 = vector.extract_strided_slice %1 {offsets = [2, 0, 0, 0], sizes = [1, 2, 2, 192], strides = [1, 1, 1, 1]} : vector<4x2x2x192xf32> to vector<1x2x2x192xf32>
    %28 = vector.shape_cast %27 : vector<1x2x2x192xf32> to vector<2x2x192xf32>
    %29 = vector.extract_strided_slice %28 {offsets = [0, 0, 0], sizes = [1, 1, 192], strides = [1, 1, 1]} : vector<2x2x192xf32> to vector<1x1x192xf32>
    %c3 = arith.constant 3 : index
    %c0_7 = arith.constant 0 : index
    %30 = vector.load %arg2[%c3, %c0_7] : memref<9x192xf32, #tpu.memory_space<vmem>>, vector<1x192xf32>
    %31 = vector.shape_cast %30 : vector<1x192xf32> to vector<192xf32>
    %32 = vector.shape_cast %31 : vector<192xf32> to vector<1x1x192xf32>
    %33 = arith.mulf %29, %32 : vector<1x1x192xf32>
    %34 = arith.addf %26, %33 : vector<1x1x192xf32>
    %35 = vector.extract_strided_slice %1 {offsets = [3, 0, 0, 0], sizes = [1, 2, 2, 192], strides = [1, 1, 1, 1]} : vector<4x2x2x192xf32> to vector<1x2x2x192xf32>
    %36 = vector.shape_cast %35 : vector<1x2x2x192xf32> to vector<2x2x192xf32>
    %37 = vector.extract_strided_slice %36 {offsets = [0, 0, 0], sizes = [1, 1, 192], strides = [1, 1, 1]} : vector<2x2x192xf32> to vector<1x1x192xf32>
    %c4 = arith.constant 4 : index
    %c0_8 = arith.constant 0 : index
    %38 = vector.load %arg2[%c4, %c0_8] : memref<9x192xf32, #tpu.memory_space<vmem>>, vector<1x192xf32>
    %39 = vector.shape_cast %38 : vector<1x192xf32> to vector<192xf32>
    %40 = vector.shape_cast %39 : vector<192xf32> to vector<1x1x192xf32>
    %41 = arith.mulf %37, %40 : vector<1x1x192xf32>
    %42 = arith.addf %34, %41 : vector<1x1x192xf32>
    %43 = vector.extract_strided_slice %1 {offsets = [2, 0, 0, 0], sizes = [1, 2, 2, 192], strides = [1, 1, 1, 1]} : vector<4x2x2x192xf32> to vector<1x2x2x192xf32>
    %44 = vector.shape_cast %43 : vector<1x2x2x192xf32> to vector<2x2x192xf32>
    %45 = vector.extract_strided_slice %44 {offsets = [0, 1, 0], sizes = [1, 1, 192], strides = [1, 1, 1]} : vector<2x2x192xf32> to vector<1x1x192xf32>
    %c5 = arith.constant 5 : index
    %c0_9 = arith.constant 0 : index
    %46 = vector.load %arg2[%c5, %c0_9] : memref<9x192xf32, #tpu.memory_space<vmem>>, vector<1x192xf32>
    %47 = vector.shape_cast %46 : vector<1x192xf32> to vector<192xf32>
    %48 = vector.shape_cast %47 : vector<192xf32> to vector<1x1x192xf32>
    %49 = arith.mulf %45, %48 : vector<1x1x192xf32>
    %50 = arith.addf %42, %49 : vector<1x1x192xf32>
    %51 = vector.extract_strided_slice %1 {offsets = [0, 0, 0, 0], sizes = [1, 2, 2, 192], strides = [1, 1, 1, 1]} : vector<4x2x2x192xf32> to vector<1x2x2x192xf32>
    %52 = vector.shape_cast %51 : vector<1x2x2x192xf32> to vector<2x2x192xf32>
    %53 = vector.extract_strided_slice %52 {offsets = [1, 0, 0], sizes = [1, 1, 192], strides = [1, 1, 1]} : vector<2x2x192xf32> to vector<1x1x192xf32>
    %c6 = arith.constant 6 : index
    %c0_10 = arith.constant 0 : index
    %54 = vector.load %arg2[%c6, %c0_10] : memref<9x192xf32, #tpu.memory_space<vmem>>, vector<1x192xf32>
    %55 = vector.shape_cast %54 : vector<1x192xf32> to vector<192xf32>
    %56 = vector.shape_cast %55 : vector<192xf32> to vector<1x1x192xf32>
    %57 = arith.mulf %53, %56 : vector<1x1x192xf32>
    %58 = arith.addf %50, %57 : vector<1x1x192xf32>
    %59 = vector.extract_strided_slice %1 {offsets = [1, 0, 0, 0], sizes = [1, 2, 2, 192], strides = [1, 1, 1, 1]} : vector<4x2x2x192xf32> to vector<1x2x2x192xf32>
    %60 = vector.shape_cast %59 : vector<1x2x2x192xf32> to vector<2x2x192xf32>
    %61 = vector.extract_strided_slice %60 {offsets = [1, 0, 0], sizes = [1, 1, 192], strides = [1, 1, 1]} : vector<2x2x192xf32> to vector<1x1x192xf32>
    %c7 = arith.constant 7 : index
    %c0_11 = arith.constant 0 : index
    %62 = vector.load %arg2[%c7, %c0_11] : memref<9x192xf32, #tpu.memory_space<vmem>>, vector<1x192xf32>
    %63 = vector.shape_cast %62 : vector<1x192xf32> to vector<192xf32>
    %64 = vector.shape_cast %63 : vector<192xf32> to vector<1x1x192xf32>
    %65 = arith.mulf %61, %64 : vector<1x1x192xf32>
    %66 = arith.addf %58, %65 : vector<1x1x192xf32>
    %67 = vector.extract_strided_slice %1 {offsets = [0, 0, 0, 0], sizes = [1, 2, 2, 192], strides = [1, 1, 1, 1]} : vector<4x2x2x192xf32> to vector<1x2x2x192xf32>
    %68 = vector.shape_cast %67 : vector<1x2x2x192xf32> to vector<2x2x192xf32>
    %69 = vector.extract_strided_slice %68 {offsets = [1, 1, 0], sizes = [1, 1, 192], strides = [1, 1, 1]} : vector<2x2x192xf32> to vector<1x1x192xf32>
    %c8 = arith.constant 8 : index
    %c0_12 = arith.constant 0 : index
    %70 = vector.load %arg2[%c8, %c0_12] : memref<9x192xf32, #tpu.memory_space<vmem>>, vector<1x192xf32>
    %71 = vector.shape_cast %70 : vector<1x192xf32> to vector<192xf32>
    %72 = vector.shape_cast %71 : vector<192xf32> to vector<1x1x192xf32>
    %73 = arith.mulf %69, %72 : vector<1x1x192xf32>
    %74 = arith.addf %66, %73 : vector<1x1x192xf32>
    %c0_13 = arith.constant 0 : index
    %c0_14 = arith.constant 0 : index
    %75 = vector.load %arg3[%c0_13, %c0_14] : memref<1x192xf32, #tpu.memory_space<vmem>>, vector<1x192xf32>
    %76 = vector.shape_cast %75 : vector<1x192xf32> to vector<192xf32>
    %77 = vector.shape_cast %76 : vector<192xf32> to vector<1x1x192xf32>
    %78 = arith.addf %74, %77 : vector<1x1x192xf32>
    %cst_15 = arith.constant 0.000000e+00 : f32
    %79 = vector.broadcast %cst_15 : f32 to vector<1x1x192xf32>
    %80 = arith.maximumf %78, %79 : vector<1x1x192xf32>
    %cst_16 = arith.constant 6.000000e+00 : f32
    %81 = vector.broadcast %cst_16 : f32 to vector<1x1x192xf32>
    %82 = arith.minimumf %80, %81 : vector<1x1x192xf32>
    %83 = arith.truncf %82 : vector<1x1x192xf32> to vector<1x1x192xbf16>
    %84 = vector.shape_cast %83 : vector<1x1x192xbf16> to vector<1x1x1x192xbf16>
    %c0_17 = arith.constant 0 : index
    %c0_18 = arith.constant 0 : index
    %c0_19 = arith.constant 0 : index
    %c0_20 = arith.constant 0 : index
    %85 = vector.load %arg4[%c0_17, %c0_18, %c0_19, %c0_20] : memref<1x1x1x192xbf16, #tpu.memory_space<vmem>>, vector<1x1x1x192xbf16>
    tpu.vector_store %arg4[%c0_17, %c0_18, %c0_19, %c0_20], %84 {strides = array<i32>} : memref<1x1x1x192xbf16, #tpu.memory_space<vmem>>, vector<1x1x1x192xbf16>,
    return
  }
  func.func @transform_0(%arg0: i32) -> (i32, i32, i32, i32) {
    %c0_i32 = arith.constant 0 : i32
    %c0_i32_0 = arith.constant 0 : i32
    %c0_i32_1 = arith.constant 0 : i32
    %c0_i32_2 = arith.constant 0 : i32
    return %arg0, %c0_i32, %c0_i32_0, %c0_i32_1 : i32, i32, i32, i32
  }
  func.func @transform_1(%arg0: i32) -> (i32, i32) {
    %c0_i32 = arith.constant 0 : i32
    %c0_i32_0 = arith.constant 0 : i32
    %c0_i32_1 = arith.constant 0 : i32
    return %c0_i32, %c0_i32_0 : i32, i32
  }
  func.func @transform_2(%arg0: i32) -> (i32, i32) {
    %c0_i32 = arith.constant 0 : i32
    %c0_i32_0 = arith.constant 0 : i32
    %c0_i32_1 = arith.constant 0 : i32
    return %c0_i32, %c0_i32_0 : i32, i32
  }
  func.func @transform_3(%arg0: i32) -> (i32, i32, i32, i32) {
    %c0_i32 = arith.constant 0 : i32
    %c0_i32_0 = arith.constant 0 : i32
    %c0_i32_1 = arith.constant 0 : i32
    %c0_i32_2 = arith.constant 0 : i32
    return %arg0, %c0_i32, %c0_i32_0, %c0_i32_1 : i32, i32, i32, i32
  }
}

module attributes {stable_mosaic.version = 11 : i64} {
  func.func @_mm_kernel(%arg0: i32, %arg1: memref<4x192xbf16, #tpu.memory_space<vmem>>, %arg2: memref<192x64xbf16, #tpu.memory_space<vmem>>, %arg3: memref<1x64xf32, #tpu.memory_space<vmem>>, %arg4: memref<4x64xbf16, #tpu.memory_space<vmem>>) attributes {dimension_semantics = [#tpu.dimension_semantics<parallel>], iteration_bounds = array<i64: 1>, scalar_prefetch = 0 : i64, scratch_operands = 0 : i64, tpu.core_type = #tpu.core_type<tc>, window_params = [{transform_indices = @transform_0, window_bounds = array<i64: 4, 192>}, {pipeline_mode = #tpu.pipeline_mode<synchronous>, transform_indices = @transform_1, window_bounds = array<i64: 192, 64>}, {pipeline_mode = #tpu.pipeline_mode<synchronous>, transform_indices = @transform_2, window_bounds = array<i64: 1, 64>}, {transform_indices = @transform_3, window_bounds = array<i64: 4, 64>}]} {
    %c0 = arith.constant 0 : index
    %c0_0 = arith.constant 0 : index
    %0 = vector.load %arg1[%c0, %c0_0] : memref<4x192xbf16, #tpu.memory_space<vmem>>, vector<4x192xbf16>
    %c0_1 = arith.constant 0 : index
    %c0_2 = arith.constant 0 : index
    %1 = vector.load %arg2[%c0_1, %c0_2] : memref<192x64xbf16, #tpu.memory_space<vmem>>, vector<192x64xbf16>
    %cst = arith.constant dense<0.000000e+00> : vector<4x64xf32>
    %2 = tpu.matmul %0, %1, %cst {dimension_numbers = #tpu.dot_dimension_numbers<[1], [0], [0], [1], [0, 0, 1, 1], [], []>} : vector<4x192xbf16>, vector<192x64xbf16>, vector<4x64xf32> -> vector<4x64xf32>
    %c0_3 = arith.constant 0 : index
    %c0_4 = arith.constant 0 : index
    %3 = vector.load %arg3[%c0_3, %c0_4] : memref<1x64xf32, #tpu.memory_space<vmem>>, vector<1x64xf32>
    %4 = vector.broadcast %3 : vector<1x64xf32> to vector<4x64xf32>
    %5 = arith.addf %2, %4 : vector<4x64xf32>
    %6 = arith.truncf %5 : vector<4x64xf32> to vector<4x64xbf16>
    %c0_5 = arith.constant 0 : index
    %c0_6 = arith.constant 0 : index
    %7 = vector.load %arg4[%c0_5, %c0_6] : memref<4x64xbf16, #tpu.memory_space<vmem>>, vector<4x64xbf16>
    tpu.vector_store %arg4[%c0_5, %c0_6], %6 {strides = array<i32>} : memref<4x64xbf16, #tpu.memory_space<vmem>>, vector<4x64xbf16>,
    return
  }
  func.func @transform_0(%arg0: i32) -> (i32, i32) {
    %c0_i32 = arith.constant 0 : i32
    %c0_i32_0 = arith.constant 0 : i32
    return %arg0, %c0_i32 : i32, i32
  }
  func.func @transform_1(%arg0: i32) -> (i32, i32) {
    %c0_i32 = arith.constant 0 : i32
    %c0_i32_0 = arith.constant 0 : i32
    %c0_i32_1 = arith.constant 0 : i32
    return %c0_i32, %c0_i32_0 : i32, i32
  }
  func.func @transform_2(%arg0: i32) -> (i32, i32) {
    %c0_i32 = arith.constant 0 : i32
    %c0_i32_0 = arith.constant 0 : i32
    %c0_i32_1 = arith.constant 0 : i32
    return %c0_i32, %c0_i32_0 : i32, i32
  }
  func.func @transform_3(%arg0: i32) -> (i32, i32) {
    %c0_i32 = arith.constant 0 : i32
    %c0_i32_0 = arith.constant 0 : i32
    return %arg0, %c0_i32 : i32, i32
  }
}

module attributes {stable_mosaic.version = 11 : i64} {
  func.func @_l1_kernel(%arg0: i32, %arg1: memref<2x64xbf16, #tpu.memory_space<vmem>>, %arg2: memref<2x64xbf16, #tpu.memory_space<vmem>>, %arg3: memref<1x1xf32, #tpu.memory_space<vmem>>, %arg4: memref<1x1xf32, #tpu.memory_space<vmem>>) attributes {dimension_semantics = [#tpu.dimension_semantics<arbitrary>], iteration_bounds = array<i64: 1>, scalar_prefetch = 0 : i64, scratch_operands = 1 : i64, tpu.core_type = #tpu.core_type<tc>, window_params = [{transform_indices = @transform_0, window_bounds = array<i64: 2, 64>}, {transform_indices = @transform_1, window_bounds = array<i64: 2, 64>}, {pipeline_mode = #tpu.pipeline_mode<synchronous>, transform_indices = @transform_2, window_bounds = array<i64: 1, 1>}]} {
    %c0_i32 = arith.constant 0 : i32
    %0 = arith.cmpi eq, %arg0, %c0_i32 : i32
    %1 = arith.extui %0 : i1 to i32
    %c0_i32_0 = arith.constant 0 : i32
    %2 = arith.cmpi ne, %1, %c0_i32_0 : i32
    scf.if %2 {
      %cst_10 = arith.constant 0.000000e+00 : f32
      %20 = vector.broadcast %cst_10 : f32 to vector<1x1xf32>
      %c0_11 = arith.constant 0 : index
      %c0_12 = arith.constant 0 : index
      %21 = vector.load %arg4[%c0_11, %c0_12] : memref<1x1xf32, #tpu.memory_space<vmem>>, vector<1x1xf32>
      tpu.vector_store %arg4[%c0_11, %c0_12], %20 {strides = array<i32>} : memref<1x1xf32, #tpu.memory_space<vmem>>, vector<1x1xf32>,
    } else {
    }
    %c0 = arith.constant 0 : index
    %c0_1 = arith.constant 0 : index
    %3 = vector.load %arg1[%c0, %c0_1] : memref<2x64xbf16, #tpu.memory_space<vmem>>, vector<2x64xbf16>
    %4 = arith.extf %3 : vector<2x64xbf16> to vector<2x64xf32>
    %c0_2 = arith.constant 0 : index
    %c0_3 = arith.constant 0 : index
    %5 = vector.load %arg2[%c0_2, %c0_3] : memref<2x64xbf16, #tpu.memory_space<vmem>>, vector<2x64xbf16>
    %6 = arith.extf %5 : vector<2x64xbf16> to vector<2x64xf32>
    %7 = arith.subf %4, %6 : vector<2x64xf32>
    %c0_4 = arith.constant 0 : index
    %c0_5 = arith.constant 0 : index
    %8 = vector.load %arg4[%c0_4, %c0_5] : memref<1x1xf32, #tpu.memory_space<vmem>>, vector<1x1xf32>
    %9 = math.absf %7 : vector<2x64xf32>
    %10 = vector.shape_cast %9 : vector<2x64xf32> to vector<1x2x64xf32>
    %cst = arith.constant dense<0.000000e+00> : vector<1xf32>
    %11 = vector.multi_reduction <add>, %10, %cst [1, 2] : vector<1x2x64xf32> to vector<1xf32>
    %12 = vector.shape_cast %11 : vector<1xf32> to vector<1x1x1xf32>
    %13 = vector.extract %12[0, 0, 0] : f32 from vector<1x1x1xf32>
    %14 = vector.broadcast %13 : f32 to vector<1x1xf32>
    %15 = arith.addf %8, %14 : vector<1x1xf32>
    %c0_6 = arith.constant 0 : index
    %c0_7 = arith.constant 0 : index
    %16 = vector.load %arg4[%c0_6, %c0_7] : memref<1x1xf32, #tpu.memory_space<vmem>>, vector<1x1xf32>
    tpu.vector_store %arg4[%c0_6, %c0_7], %15 {strides = array<i32>} : memref<1x1xf32, #tpu.memory_space<vmem>>, vector<1x1xf32>,
    %c0_i32_8 = arith.constant 0 : i32
    %17 = arith.cmpi eq, %arg0, %c0_i32_8 : i32
    %18 = arith.extui %17 : i1 to i32
    %c0_i32_9 = arith.constant 0 : i32
    %19 = arith.cmpi ne, %18, %c0_i32_9 : i32
    scf.if %19 {
      %c0_10 = arith.constant 0 : index
      %c0_11 = arith.constant 0 : index
      %20 = vector.load %arg4[%c0_10, %c0_11] : memref<1x1xf32, #tpu.memory_space<vmem>>, vector<1x1xf32>
      %cst_12 = arith.constant 7.812500e-03 : f32
      %21 = vector.broadcast %cst_12 : f32 to vector<1x1xf32>
      %22 = arith.mulf %20, %21 : vector<1x1xf32>
      %c0_13 = arith.constant 0 : index
      %c0_14 = arith.constant 0 : index
      %23 = vector.load %arg3[%c0_13, %c0_14] : memref<1x1xf32, #tpu.memory_space<vmem>>, vector<1x1xf32>
      tpu.vector_store %arg3[%c0_13, %c0_14], %22 {strides = array<i32>} : memref<1x1xf32, #tpu.memory_space<vmem>>, vector<1x1xf32>,
    } else {
    }
    return
  }
  func.func @transform_0(%arg0: i32) -> (i32, i32) {
    %c0_i32 = arith.constant 0 : i32
    %c0_i32_0 = arith.constant 0 : i32
    return %arg0, %c0_i32 : i32, i32
  }
  func.func @transform_1(%arg0: i32) -> (i32, i32) {
    %c0_i32 = arith.constant 0 : i32
    %c0_i32_0 = arith.constant 0 : i32
    return %arg0, %c0_i32 : i32, i32
  }
  func.func @transform_2(%arg0: i32) -> (i32, i32) {
    %c0_i32 = arith.constant 0 : i32
    %c0_i32_0 = arith.constant 0 : i32
    %c0_i32_1 = arith.constant 0 : i32
    return %c0_i32, %c0_i32_0 : i32, i32
  }
}

module attributes {stable_mosaic.version = 11 : i64} {
  func.func @_l1_kernel(%arg0: i32, %arg1: memref<8x32xbf16, #tpu.memory_space<vmem>>, %arg2: memref<8x32xbf16, #tpu.memory_space<vmem>>, %arg3: memref<1x1xf32, #tpu.memory_space<vmem>>, %arg4: memref<1x1xf32, #tpu.memory_space<vmem>>) attributes {dimension_semantics = [#tpu.dimension_semantics<arbitrary>], iteration_bounds = array<i64: 1>, scalar_prefetch = 0 : i64, scratch_operands = 1 : i64, tpu.core_type = #tpu.core_type<tc>, window_params = [{transform_indices = @transform_0, window_bounds = array<i64: 8, 32>}, {transform_indices = @transform_1, window_bounds = array<i64: 8, 32>}, {pipeline_mode = #tpu.pipeline_mode<synchronous>, transform_indices = @transform_2, window_bounds = array<i64: 1, 1>}]} {
    %c0_i32 = arith.constant 0 : i32
    %0 = arith.cmpi eq, %arg0, %c0_i32 : i32
    %1 = arith.extui %0 : i1 to i32
    %c0_i32_0 = arith.constant 0 : i32
    %2 = arith.cmpi ne, %1, %c0_i32_0 : i32
    scf.if %2 {
      %cst_10 = arith.constant 0.000000e+00 : f32
      %20 = vector.broadcast %cst_10 : f32 to vector<1x1xf32>
      %c0_11 = arith.constant 0 : index
      %c0_12 = arith.constant 0 : index
      %21 = vector.load %arg4[%c0_11, %c0_12] : memref<1x1xf32, #tpu.memory_space<vmem>>, vector<1x1xf32>
      tpu.vector_store %arg4[%c0_11, %c0_12], %20 {strides = array<i32>} : memref<1x1xf32, #tpu.memory_space<vmem>>, vector<1x1xf32>,
    } else {
    }
    %c0 = arith.constant 0 : index
    %c0_1 = arith.constant 0 : index
    %3 = vector.load %arg1[%c0, %c0_1] : memref<8x32xbf16, #tpu.memory_space<vmem>>, vector<8x32xbf16>
    %4 = arith.extf %3 : vector<8x32xbf16> to vector<8x32xf32>
    %c0_2 = arith.constant 0 : index
    %c0_3 = arith.constant 0 : index
    %5 = vector.load %arg2[%c0_2, %c0_3] : memref<8x32xbf16, #tpu.memory_space<vmem>>, vector<8x32xbf16>
    %6 = arith.extf %5 : vector<8x32xbf16> to vector<8x32xf32>
    %7 = arith.subf %4, %6 : vector<8x32xf32>
    %c0_4 = arith.constant 0 : index
    %c0_5 = arith.constant 0 : index
    %8 = vector.load %arg4[%c0_4, %c0_5] : memref<1x1xf32, #tpu.memory_space<vmem>>, vector<1x1xf32>
    %9 = math.absf %7 : vector<8x32xf32>
    %10 = vector.shape_cast %9 : vector<8x32xf32> to vector<1x8x32xf32>
    %cst = arith.constant dense<0.000000e+00> : vector<1xf32>
    %11 = vector.multi_reduction <add>, %10, %cst [1, 2] : vector<1x8x32xf32> to vector<1xf32>
    %12 = vector.shape_cast %11 : vector<1xf32> to vector<1x1x1xf32>
    %13 = vector.extract %12[0, 0, 0] : f32 from vector<1x1x1xf32>
    %14 = vector.broadcast %13 : f32 to vector<1x1xf32>
    %15 = arith.addf %8, %14 : vector<1x1xf32>
    %c0_6 = arith.constant 0 : index
    %c0_7 = arith.constant 0 : index
    %16 = vector.load %arg4[%c0_6, %c0_7] : memref<1x1xf32, #tpu.memory_space<vmem>>, vector<1x1xf32>
    tpu.vector_store %arg4[%c0_6, %c0_7], %15 {strides = array<i32>} : memref<1x1xf32, #tpu.memory_space<vmem>>, vector<1x1xf32>,
    %c0_i32_8 = arith.constant 0 : i32
    %17 = arith.cmpi eq, %arg0, %c0_i32_8 : i32
    %18 = arith.extui %17 : i1 to i32
    %c0_i32_9 = arith.constant 0 : i32
    %19 = arith.cmpi ne, %18, %c0_i32_9 : i32
    scf.if %19 {
      %c0_10 = arith.constant 0 : index
      %c0_11 = arith.constant 0 : index
      %20 = vector.load %arg4[%c0_10, %c0_11] : memref<1x1xf32, #tpu.memory_space<vmem>>, vector<1x1xf32>
      %cst_12 = arith.constant 3.906250e-03 : f32
      %21 = vector.broadcast %cst_12 : f32 to vector<1x1xf32>
      %22 = arith.mulf %20, %21 : vector<1x1xf32>
      %c0_13 = arith.constant 0 : index
      %c0_14 = arith.constant 0 : index
      %23 = vector.load %arg3[%c0_13, %c0_14] : memref<1x1xf32, #tpu.memory_space<vmem>>, vector<1x1xf32>
      tpu.vector_store %arg3[%c0_13, %c0_14], %22 {strides = array<i32>} : memref<1x1xf32, #tpu.memory_space<vmem>>, vector<1x1xf32>,
    } else {
    }
    return
  }
  func.func @transform_0(%arg0: i32) -> (i32, i32) {
    %c0_i32 = arith.constant 0 : i32
    %c0_i32_0 = arith.constant 0 : i32
    return %arg0, %c0_i32 : i32, i32
  }
  func.func @transform_1(%arg0: i32) -> (i32, i32) {
    %c0_i32 = arith.constant 0 : i32
    %c0_i32_0 = arith.constant 0 : i32
    return %arg0, %c0_i32 : i32, i32
  }
  func.func @transform_2(%arg0: i32) -> (i32, i32) {
    %c0_i32 = arith.constant 0 : i32
    %c0_i32_0 = arith.constant 0 : i32
    %c0_i32_1 = arith.constant 0 : i32
    return %c0_i32, %c0_i32_0 : i32, i32
  }
}

module attributes {stable_mosaic.version = 11 : i64} {
  func.func @_l1_kernel(%arg0: i32, %arg1: memref<32x24xbf16, #tpu.memory_space<vmem>>, %arg2: memref<32x24xbf16, #tpu.memory_space<vmem>>, %arg3: memref<1x1xf32, #tpu.memory_space<vmem>>, %arg4: memref<1x1xf32, #tpu.memory_space<vmem>>) attributes {dimension_semantics = [#tpu.dimension_semantics<arbitrary>], iteration_bounds = array<i64: 1>, scalar_prefetch = 0 : i64, scratch_operands = 1 : i64, tpu.core_type = #tpu.core_type<tc>, window_params = [{transform_indices = @transform_0, window_bounds = array<i64: 32, 24>}, {transform_indices = @transform_1, window_bounds = array<i64: 32, 24>}, {pipeline_mode = #tpu.pipeline_mode<synchronous>, transform_indices = @transform_2, window_bounds = array<i64: 1, 1>}]} {
    %c0_i32 = arith.constant 0 : i32
    %0 = arith.cmpi eq, %arg0, %c0_i32 : i32
    %1 = arith.extui %0 : i1 to i32
    %c0_i32_0 = arith.constant 0 : i32
    %2 = arith.cmpi ne, %1, %c0_i32_0 : i32
    scf.if %2 {
      %cst_10 = arith.constant 0.000000e+00 : f32
      %20 = vector.broadcast %cst_10 : f32 to vector<1x1xf32>
      %c0_11 = arith.constant 0 : index
      %c0_12 = arith.constant 0 : index
      %21 = vector.load %arg4[%c0_11, %c0_12] : memref<1x1xf32, #tpu.memory_space<vmem>>, vector<1x1xf32>
      tpu.vector_store %arg4[%c0_11, %c0_12], %20 {strides = array<i32>} : memref<1x1xf32, #tpu.memory_space<vmem>>, vector<1x1xf32>,
    } else {
    }
    %c0 = arith.constant 0 : index
    %c0_1 = arith.constant 0 : index
    %3 = vector.load %arg1[%c0, %c0_1] : memref<32x24xbf16, #tpu.memory_space<vmem>>, vector<32x24xbf16>
    %4 = arith.extf %3 : vector<32x24xbf16> to vector<32x24xf32>
    %c0_2 = arith.constant 0 : index
    %c0_3 = arith.constant 0 : index
    %5 = vector.load %arg2[%c0_2, %c0_3] : memref<32x24xbf16, #tpu.memory_space<vmem>>, vector<32x24xbf16>
    %6 = arith.extf %5 : vector<32x24xbf16> to vector<32x24xf32>
    %7 = arith.subf %4, %6 : vector<32x24xf32>
    %c0_4 = arith.constant 0 : index
    %c0_5 = arith.constant 0 : index
    %8 = vector.load %arg4[%c0_4, %c0_5] : memref<1x1xf32, #tpu.memory_space<vmem>>, vector<1x1xf32>
    %9 = math.absf %7 : vector<32x24xf32>
    %10 = vector.shape_cast %9 : vector<32x24xf32> to vector<1x32x24xf32>
    %cst = arith.constant dense<0.000000e+00> : vector<1xf32>
    %11 = vector.multi_reduction <add>, %10, %cst [1, 2] : vector<1x32x24xf32> to vector<1xf32>
    %12 = vector.shape_cast %11 : vector<1xf32> to vector<1x1x1xf32>
    %13 = vector.extract %12[0, 0, 0] : f32 from vector<1x1x1xf32>
    %14 = vector.broadcast %13 : f32 to vector<1x1xf32>
    %15 = arith.addf %8, %14 : vector<1x1xf32>
    %c0_6 = arith.constant 0 : index
    %c0_7 = arith.constant 0 : index
    %16 = vector.load %arg4[%c0_6, %c0_7] : memref<1x1xf32, #tpu.memory_space<vmem>>, vector<1x1xf32>
    tpu.vector_store %arg4[%c0_6, %c0_7], %15 {strides = array<i32>} : memref<1x1xf32, #tpu.memory_space<vmem>>, vector<1x1xf32>,
    %c0_i32_8 = arith.constant 0 : i32
    %17 = arith.cmpi eq, %arg0, %c0_i32_8 : i32
    %18 = arith.extui %17 : i1 to i32
    %c0_i32_9 = arith.constant 0 : i32
    %19 = arith.cmpi ne, %18, %c0_i32_9 : i32
    scf.if %19 {
      %c0_10 = arith.constant 0 : index
      %c0_11 = arith.constant 0 : index
      %20 = vector.load %arg4[%c0_10, %c0_11] : memref<1x1xf32, #tpu.memory_space<vmem>>, vector<1x1xf32>
      %cst_12 = arith.constant 0.00130208337 : f32
      %21 = vector.broadcast %cst_12 : f32 to vector<1x1xf32>
      %22 = arith.mulf %20, %21 : vector<1x1xf32>
      %c0_13 = arith.constant 0 : index
      %c0_14 = arith.constant 0 : index
      %23 = vector.load %arg3[%c0_13, %c0_14] : memref<1x1xf32, #tpu.memory_space<vmem>>, vector<1x1xf32>
      tpu.vector_store %arg3[%c0_13, %c0_14], %22 {strides = array<i32>} : memref<1x1xf32, #tpu.memory_space<vmem>>, vector<1x1xf32>,
    } else {
    }
    return
  }
  func.func @transform_0(%arg0: i32) -> (i32, i32) {
    %c0_i32 = arith.constant 0 : i32
    %c0_i32_0 = arith.constant 0 : i32
    return %arg0, %c0_i32 : i32, i32
  }
  func.func @transform_1(%arg0: i32) -> (i32, i32) {
    %c0_i32 = arith.constant 0 : i32
    %c0_i32_0 = arith.constant 0 : i32
    return %arg0, %c0_i32 : i32, i32
  }
  func.func @transform_2(%arg0: i32) -> (i32, i32) {
    %c0_i32 = arith.constant 0 : i32
    %c0_i32_0 = arith.constant 0 : i32
    %c0_i32_1 = arith.constant 0 : i32
    return %c0_i32, %c0_i32_0 : i32, i32
  }
}

</mosaic_0001>

<llo_original>
// kernel: mobilenet_perceptual_loss.25
$region0: #{mobilenet_perceptual_loss.25}
  #allocation0 [shape = 'u32[]', space=smem, size = 0x4, offset = 0x4, fixed_abs, tag = 'smem constant byte address 0x4 - core index']
  #allocation1 [shape = 'u32[144,128]{1,0:T(1,128)}', space=vmem, size = 0x12000, scoped, tag = 'internal scratch']
  %s0 = inlined_call_operand.vmem [shape: bf16[4,10,10,32], index: 0, kind: input, shape index: {}]
  %s1 = inlined_call_operand.vmem [shape: f32[9,32], index: 1, kind: input, shape index: {}]
  %s2 = inlined_call_operand.vmem [shape: f32[1,32], index: 2, kind: input, shape index: {}]
  %s3 = inlined_call_operand.vmem [shape: bf16[4,8,8,32], index: 3, kind: output, shape index: {}]
  %s4 = sld [smem:[#allocation0]]
  $region45: #{mobilenet_perceptual_loss.25} parent=0
    _
  %s6 = ssub.s32 1, %s4
  %s7 = scalar_select 0, %s6, %s4
  loop: start=0, step=1, limit=6
  $region2: #{mobilenet_perceptual_loss.25} parent=0 // loop_pre_header
    _
  $region3: #{mobilenet_perceptual_loss.25} parent=0 // loop_header
    %s9 = sphi 0, %s13
    %p10 = scmp.ge.s32.totalorder %s9, 6
    %s19 = sphi 0, %s21
    %s22 = sphi 0, %s19
    %s23 = sphi 0, %s22
    %s39 = sphi 0, %s23
    %s43 = sphi 0, %s43
    %s45 = sphi 0, %s43
    %s46 = sphi 0, %s45
    %s60 = sphi 0, %s46
    %s64 = sphi 0, %s64
    %s66 = sphi 0, %s64
    %s67 = sphi 0, %s66
    %s81 = sphi 0, %s67
    %s87 = sphi 0, %s89
    %s90 = sphi 0, %s87
    %s91 = sphi 0, %s90
    %s107 = sphi 0, %s91
  $region4: #{mobilenet_perceptual_loss.25} parent=0 // loop_header_branch
    %12 = sbr.rel (%p10) target = $region8
  $region5: #{mobilenet_perceptual_loss.25} parent=0 // loop_body
    %s14 = ssub.s32 %s9, 1
    %s15 = ssub.s32 %s9, 2
    %s16 = sadd.s32 %s9, 1
    %s17 = ssub.s32 %s9, %s16
    %p18 = scmp.eq.s32.totalorder %s17, 0
    %s20 = sadd.s32 %s19, 1
    %s21 = scalar_select %p18, %s19, %s20
    %p24 = pneg %p18
    %p25 = scmp.eq.s32.totalorder %s9, 3
    %p26 = por %p24, %p25
    %p27 = scmp.ne.s32.totalorder %s19, %s22
    %p28 = scmp.eq.s32.totalorder %s9, 0
    %p29 = por %p27, %p28
    %p30 = scmp.ne.s32.totalorder %s19, %s22
    %p31 = scmp.eq.s32.totalorder %s14, 3
    %p32 = por %p30, %p31
    %p33 = scmp.ne.s32.totalorder %s22, %s23
    %p34 = scmp.eq.s32.totalorder %s14, 0
    %p35 = por %p33, %p34
    %p36 = scmp.ne.s32.totalorder %s22, %s23
    %p37 = scmp.eq.s32.totalorder %s15, 3
    %p38 = por %p36, %p37
    %p40 = scmp.ne.s32.totalorder %s23, %s39
    %p41 = scmp.eq.s32.totalorder %s15, 0
    %p42 = por %p40, %p41
    %s44 = sadd.s32 %s43, 1
    %p47 = scmp.eq.s32.totalorder %s9, 3
    %p48 = scmp.ne.s32.totalorder %s43, %s45
    %p49 = scmp.eq.s32.totalorder %s9, 0
    %p50 = por %p48, %p49
    %p51 = scmp.ne.s32.totalorder %s43, %s45
    %p52 = scmp.eq.s32.totalorder %s14, 3
    %p53 = por %p51, %p52
    %p54 = scmp.ne.s32.totalorder %s45, %s46
    %p55 = scmp.eq.s32.totalorder %s14, 0
    %p56 = por %p54, %p55
    %p57 = scmp.ne.s32.totalorder %s45, %s46
    %p58 = scmp.eq.s32.totalorder %s15, 3
    %p59 = por %p57, %p58
    %p61 = scmp.ne.s32.totalorder %s46, %s60
    %p62 = scmp.eq.s32.totalorder %s15, 0
    %p63 = por %p61, %p62
    %s65 = sadd.s32 %s64, 1
    %p68 = scmp.eq.s32.totalorder %s9, 3
    %p69 = scmp.ne.s32.totalorder %s64, %s66
    %p70 = scmp.eq.s32.totalorder %s9, 0
    %p71 = por %p69, %p70
    %p72 = scmp.ne.s32.totalorder %s64, %s66
    %p73 = scmp.eq.s32.totalorder %s14, 3
    %p74 = por %p72, %p73
    %p75 = scmp.ne.s32.totalorder %s66, %s67
    %p76 = scmp.eq.s32.totalorder %s14, 0
    %p77 = por %p75, %p76
    %p78 = scmp.ne.s32.totalorder %s66, %s67
    %p79 = scmp.eq.s32.totalorder %s15, 3
    %p80 = por %p78, %p79
    %p82 = scmp.ne.s32.totalorder %s67, %s81
    %p83 = scmp.eq.s32.totalorder %s15, 0
    %p84 = por %p82, %p83
    %s85 = ssub.s32 %s9, %s16
    %p86 = scmp.eq.s32.totalorder %s85, 0
    %s88 = sadd.s32 %s87, 1
    %s89 = scalar_select %p86, %s87, %s88
    %p92 = pneg %p86
    %p93 = scmp.eq.s32.totalorder %s9, 3
    %p94 = por %p92, %p93
    %p95 = scmp.ne.s32.totalorder %s87, %s90
    %p96 = scmp.eq.s32.totalorder %s9, 0
    %p97 = por %p95, %p96
    %p98 = scmp.ne.s32.totalorder %s87, %s90
    %p99 = scmp.eq.s32.totalorder %s14, 3
    %p100 = por %p98, %p99
    %p101 = scmp.ne.s32.totalorder %s90, %s91
    %p102 = scmp.eq.s32.totalorder %s14, 0
    %p103 = por %p101, %p102
    %p104 = scmp.ne.s32.totalorder %s90, %s91
    %p105 = scmp.eq.s32.totalorder %s15, 3
    %p106 = por %p104, %p105
    %p108 = scmp.ne.s32.totalorder %s91, %s107
    %p109 = scmp.eq.s32.totalorder %s15, 0
    %p110 = por %p108, %p109
    %p111 = scmp.le.s32.totalorder 1, %s9
    %p112 = scmp.lt.s32.totalorder %s9, 5
    %p113 = pnand %p111, %p112
    %p114 = pneg %p113
    // Predicated region
    $region9: #{mobilenet_perceptual_loss.25} parent=5 // pred_check
      _
    $region10: #{mobilenet_perceptual_loss.25} parent=5 // pred_check_branch
      %116 = sbr.rel (%p113) target = $region12
    $region11: #{mobilenet_perceptual_loss.25} parent=5 // pred_region
      %s117 = ssub.s32 %s9, 1
      // Predicated region
      $region13: #{mobilenet_perceptual_loss.25} parent=11 // pred_check
        %p118 = pneg %p56
      $region14: #{mobilenet_perceptual_loss.25} parent=11 // pred_check_branch
        %120 = sbr.rel (%p118) target = $region16
      $region15: #{mobilenet_perceptual_loss.25} parent=11 // pred_region
        _
      $region16: #{mobilenet_perceptual_loss.25} parent=11 // pred_fallthru
        _
      // Predicated region
      $region17: #{mobilenet_perceptual_loss.25} parent=11 // pred_check
        %p121 = pneg %p77
      $region18: #{mobilenet_perceptual_loss.25} parent=11 // pred_check_branch
        %123 = sbr.rel (%p121) target = $region20
      $region19: #{mobilenet_perceptual_loss.25} parent=11 // pred_region
        _
      $region20: #{mobilenet_perceptual_loss.25} parent=11 // pred_fallthru
        _
    $region12: #{mobilenet_perceptual_loss.25} parent=5 // pred_fallthru
      _
    %p124 = scmp.lt.s32.totalorder %s9, 4
    // Predicated region
    $region21: #{mobilenet_perceptual_loss.25} parent=5 // pred_check
      %p125 = pneg %p124
    $region22: #{mobilenet_perceptual_loss.25} parent=5 // pred_check_branch
      %127 = sbr.rel (%p125) target = $region24
    $region23: #{mobilenet_perceptual_loss.25} parent=5 // pred_region
      // Predicated region
      $region25: #{mobilenet_perceptual_loss.25} parent=23 // pred_check
        %p128 = pneg %p29
      $region26: #{mobilenet_perceptual_loss.25} parent=23 // pred_check_branch
        %130 = sbr.rel (%p128) target = $region28
      $region27: #{mobilenet_perceptual_loss.25} parent=23 // pred_region
        %p131 = scmp.lt.s32.totalorder %s9, 3
        %s132 = scalar_select %p131, %s9, 3
        %s133 = smul.addr %s132, 20
        %s134 = smul.addr %s133, 4
        %s135 = scalar_lea.vmem %s0, %s134
      $region28: #{mobilenet_perceptual_loss.25} parent=23 // pred_fallthru
        _
    $region24: #{mobilenet_perceptual_loss.25} parent=5 // pred_fallthru
      _
    %p136 = scmp.le.s32.totalorder 1, %s9
    %p137 = scmp.lt.s32.totalorder %s9, 5
    %p138 = pnand %p136, %p137
    %p139 = pneg %p138
    // Predicated region
    $region29: #{mobilenet_perceptual_loss.25} parent=5 // pred_check
      _
    $region30: #{mobilenet_perceptual_loss.25} parent=5 // pred_check_branch
      %141 = sbr.rel (%p138) target = $region32
    $region31: #{mobilenet_perceptual_loss.25} parent=5 // pred_region
      %s142 = ssub.s32 %s9, 1
      %p143 = scmp.lt.s32.totalorder %s14, 3
      %s144 = scalar_select %p143, %s14, 3
      %s145 = smul.addr %s144, 20
      %s146 = smul.addr %s145, 4
      %s147 = scalar_lea.vmem %s0, %s146
      %p148 = pneg %p35
      %p149 = pneg %p32
      %p150 = pneg %p56
      %p151 = pneg %p53
      %p152 = pneg %p77
      %p153 = pneg %p74
      %p154 = pneg %p103
      %p155 = pneg %p100
      %p156 = scmp.lt.s32.totalorder %s14, 3
      %s157 = scalar_select %p156, %s14, 3
      %s158 = smul.addr %s157, 8
      %s159 = smul.addr %s158, 4
      %s160 = scalar_lea.vmem %s3, %s159
      %p161 = scmp.lt.s32.totalorder %s14, 3
      %s162 = scalar_select %p161, %s14, 3
      %s163 = smul.addr %s162, 20
      %s164 = smul.addr %s163, 4
      %s165 = scalar_lea.vmem %s0, %s164
      %p166 = scmp.lt.s32.totalorder %s14, 3
      %s167 = scalar_select %p166, %s14, 3
      %s168 = smul.addr %s167, 8
      %s169 = smul.addr %s168, 4
      %s170 = scalar_lea.vmem %s3, %s169
      %v171 = vld [vmem:[%s165] sm:$0xf]
      %v172 = vld [vmem:[%s165 + $0x4] sm:$0x1]
      %v173 = vld [vmem:[%s165 + $0x8] sm:$0xf]
      %v174 = vld [vmem:[%s165 + $0xc] sm:$0x1]
      %v175 = vld [vmem:[%s165 + $0x10] sm:$0xf]
      %v176 = vld [vmem:[%s165 + $0x14] sm:$0x1]
      %v177 = vld [vmem:[%s165 + $0x18] sm:$0xf]
      %v178 = vld [vmem:[%s165 + $0x1c] sm:$0x1]
      %v179 = vld [vmem:[%s165 + $0x20] sm:$0xf]
      %v180 = vld [vmem:[%s165 + $0x24] sm:$0x1]
      %v181 = vld [vmem:[%s165 + $0x28] sm:$0xf]
      %v182 = vld [vmem:[%s165 + $0x2c] sm:$0x1]
      %v183 = vld [vmem:[%s165 + $0x30] sm:$0xf]
      %v184 = vld [vmem:[%s165 + $0x34] sm:$0x1]
      %v185 = vld [vmem:[%s165 + $0x38] sm:$0xf]
      %v186 = vld [vmem:[%s165 + $0x3c] sm:$0x1]
      %v187 = vld [vmem:[%s165 + $0x40] sm:$0xf]
      %v188 = vld [vmem:[%s165 + $0x44] sm:$0x1]
      %v189 = vld [vmem:[%s165 + $0x48] sm:$0xf]
      %v190 = vld [vmem:[%s165 + $0x4c] sm:$0x1]
      %v191 = vunpack.c.l.bf16 %v171
      %v192 = vunpack.c.l.bf16 %v172
      %v193 = vunpack.c.l.bf16 %v173
      %v194 = vunpack.c.l.bf16 %v174
      %v195 = vunpack.c.l.bf16 %v175
      %v196 = vunpack.c.l.bf16 %v176
      %v197 = vunpack.c.l.bf16 %v177
      %v198 = vunpack.c.l.bf16 %v178
      %v199 = vunpack.c.l.bf16 %v179
      %v200 = vunpack.c.l.bf16 %v180
      %v201 = vunpack.c.l.bf16 %v181
      %v202 = vunpack.c.l.bf16 %v182
      %v203 = vunpack.c.l.bf16 %v183
      %v204 = vunpack.c.l.bf16 %v184
      %v205 = vunpack.c.l.bf16 %v185
      %v206 = vunpack.c.l.bf16 %v186
      %v207 = vunpack.c.l.bf16 %v187
      %v208 = vunpack.c.l.bf16 %v188
      %v209 = vunpack.c.l.bf16 %v189
      %v210 = vunpack.c.l.bf16 %v190
      %v211 = vld [vmem:[%s1] sm:$0x1]
      %v212 = vlaneseq
      %v213 = vshrl.u32 %v212, 7
      %v214 = vsub.s32 0, %v213
      %v215 = vrot.slane %v211, %v214
      %v216 = vmul.f32 %v191, %v215
      %v217 = vmul.f32 %v193, %v215
      %v218 = vmul.f32 %v195, %v215
      %v219 = vmul.f32 %v197, %v215
      %v220 = vmul.f32 %v199, %v215
      %v221 = vmul.f32 %v201, %v215
      %v222 = vmul.f32 %v203, %v215
      %v223 = vmul.f32 %v205, %v215
      %v224 = vadd.f32 %v216, 0.0
      %v225 = vadd.f32 %v217, 0.0
      %v226 = vadd.f32 %v218, 0.0
      %v227 = vadd.f32 %v219, 0.0
      %v228 = vadd.f32 %v220, 0.0
      %v229 = vadd.f32 %v221, 0.0
      %v230 = vadd.f32 %v222, 0.0
      %v231 = vadd.f32 %v223, 0.0
      %v232 = vld [vmem:[%s1 + $0x1] sm:$0x1]
      %v233 = vlaneseq
      %v234 = vshrl.u32 %v233, 7
      %v235 = vsub.s32 0, %v234
      %v236 = vrot.slane %v232, %v235
      %v237 = vmul.f32 %v191, %v236
      %v238 = vmul.f32 %v192, %v236
      %v239 = vmul.f32 %v193, %v236
      %v240 = vmul.f32 %v194, %v236
      %v241 = vmul.f32 %v195, %v236
      %v242 = vmul.f32 %v196, %v236
      %v243 = vmul.f32 %v197, %v236
      %v244 = vmul.f32 %v198, %v236
      %v245 = vmul.f32 %v199, %v236
      %v246 = vmul.f32 %v200, %v236
      %v247 = vmul.f32 %v201, %v236
      %v248 = vmul.f32 %v202, %v236
      %v249 = vmul.f32 %v203, %v236
      %v250 = vmul.f32 %v204, %v236
      %v251 = vmul.f32 %v205, %v236
      %v252 = vmul.f32 %v206, %v236
      %vm269 = vcmask 1046528
      %v270 = vrot.slane %v237, 1
      %v271 = vrot.slane %v238, 1
      %v272 = vsel %vm269, %v270, %v271
      %v273 = vrot.slane %v239, 1
      %v274 = vrot.slane %v240, 1
      %v275 = vsel %vm269, %v273, %v274
      %v276 = vrot.slane %v241, 1
      %v277 = vrot.slane %v242, 1
      %v278 = vsel %vm269, %v276, %v277
      %v279 = vrot.slane %v243, 1
      %v280 = vrot.slane %v244, 1
      %v281 = vsel %vm269, %v279, %v280
      %v282 = vrot.slane %v245, 1
      %v283 = vrot.slane %v246, 1
      %v284 = vsel %vm269, %v282, %v283
      %v285 = vrot.slane %v247, 1
      %v286 = vrot.slane %v248, 1
      %v287 = vsel %vm269, %v285, %v286
      %v288 = vrot.slane %v249, 1
      %v289 = vrot.slane %v250, 1
      %v290 = vsel %vm269, %v288, %v289
      %v291 = vrot.slane %v251, 1
      %v292 = vrot.slane %v252, 1
      %v293 = vsel %vm269, %v291, %v292
      %v302 = vadd.f32 %v224, %v272
      %v303 = vadd.f32 %v225, %v275
      %v304 = vadd.f32 %v226, %v278
      %v305 = vadd.f32 %v227, %v281
      %v306 = vadd.f32 %v228, %v284
      %v307 = vadd.f32 %v229, %v287
      %v308 = vadd.f32 %v230, %v290
      %v309 = vadd.f32 %v231, %v293
      %v310 = vld [vmem:[%s1 + $0x2] sm:$0x1]
      %v311 = vlaneseq
      %v312 = vshrl.u32 %v311, 7
      %v313 = vsub.s32 0, %v312
      %v314 = vrot.slane %v310, %v313
      %v315 = vmul.f32 %v191, %v314
      %v316 = vmul.f32 %v192, %v314
      %v317 = vmul.f32 %v193, %v314
      %v318 = vmul.f32 %v194, %v314
      %v319 = vmul.f32 %v195, %v314
      %v320 = vmul.f32 %v196, %v314
      %v321 = vmul.f32 %v197, %v314
      %v322 = vmul.f32 %v198, %v314
      %v323 = vmul.f32 %v199, %v314
      %v324 = vmul.f32 %v200, %v314
      %v325 = vmul.f32 %v201, %v314
      %v326 = vmul.f32 %v202, %v314
      %v327 = vmul.f32 %v203, %v314
      %v328 = vmul.f32 %v204, %v314
      %v329 = vmul.f32 %v205, %v314
      %v330 = vmul.f32 %v206, %v314
      %vm347 = vcmask 1045504
      %v348 = vrot.slane %v315, 2
      %v349 = vrot.slane %v316, 2
      %v350 = vsel %vm347, %v348, %v349
      %v351 = vrot.slane %v317, 2
      %v352 = vrot.slane %v318, 2
      %v353 = vsel %vm347, %v351, %v352
      %v354 = vrot.slane %v319, 2
      %v355 = vrot.slane %v320, 2
      %v356 = vsel %vm347, %v354, %v355
      %v357 = vrot.slane %v321, 2
      %v358 = vrot.slane %v322, 2
      %v359 = vsel %vm347, %v357, %v358
      %v360 = vrot.slane %v323, 2
      %v361 = vrot.slane %v324, 2
      %v362 = vsel %vm347, %v360, %v361
      %v363 = vrot.slane %v325, 2
      %v364 = vrot.slane %v326, 2
      %v365 = vsel %vm347, %v363, %v364
      %v366 = vrot.slane %v327, 2
      %v367 = vrot.slane %v328, 2
      %v368 = vsel %vm347, %v366, %v367
      %v369 = vrot.slane %v329, 2
      %v370 = vrot.slane %v330, 2
      %v371 = vsel %vm347, %v369, %v370
      %v380 = vadd.f32 %v302, %v350
      %v381 = vadd.f32 %v303, %v353
      %v382 = vadd.f32 %v304, %v356
      %v383 = vadd.f32 %v305, %v359
      %v384 = vadd.f32 %v306, %v362
      %v385 = vadd.f32 %v307, %v365
      %v386 = vadd.f32 %v308, %v368
      %v387 = vadd.f32 %v309, %v371
      %v388 = vld [vmem:[%s1 + $0x3] sm:$0x1]
      %v389 = vlaneseq
      %v390 = vshrl.u32 %v389, 7
      %v391 = vsub.s32 0, %v390
      %v392 = vrot.slane %v388, %v391
      %v393 = vmul.f32 %v193, %v392
      %v394 = vmul.f32 %v195, %v392
      %v395 = vmul.f32 %v197, %v392
      %v396 = vmul.f32 %v199, %v392
      %v397 = vmul.f32 %v201, %v392
      %v398 = vmul.f32 %v203, %v392
      %v399 = vmul.f32 %v205, %v392
      %v400 = vmul.f32 %v207, %v392
      %v401 = vadd.f32 %v380, %v393
      %v402 = vadd.f32 %v381, %v394
      %v403 = vadd.f32 %v382, %v395
      %v404 = vadd.f32 %v383, %v396
      %v405 = vadd.f32 %v384, %v397
      %v406 = vadd.f32 %v385, %v398
      %v407 = vadd.f32 %v386, %v399
      %v408 = vadd.f32 %v387, %v400
      %v409 = vld [vmem:[%s1 + $0x4] sm:$0x1]
      %v410 = vlaneseq
      %v411 = vshrl.u32 %v410, 7
      %v412 = vsub.s32 0, %v411
      %v413 = vrot.slane %v409, %v412
      %v414 = vmul.f32 %v193, %v413
      %v415 = vmul.f32 %v194, %v413
      %v416 = vmul.f32 %v195, %v413
      %v417 = vmul.f32 %v196, %v413
      %v418 = vmul.f32 %v197, %v413
      %v419 = vmul.f32 %v198, %v413
      %v420 = vmul.f32 %v199, %v413
      %v421 = vmul.f32 %v200, %v413
      %v422 = vmul.f32 %v201, %v413
      %v423 = vmul.f32 %v202, %v413
      %v424 = vmul.f32 %v203, %v413
      %v425 = vmul.f32 %v204, %v413
      %v426 = vmul.f32 %v205, %v413
      %v427 = vmul.f32 %v206, %v413
      %v428 = vmul.f32 %v207, %v413
      %v429 = vmul.f32 %v208, %v413
      %v446 = vrot.slane %v414, 1
      %v447 = vrot.slane %v415, 1
      %v448 = vsel %vm269, %v446, %v447
      %v449 = vrot.slane %v416, 1
      %v450 = vrot.slane %v417, 1
      %v451 = vsel %vm269, %v449, %v450
      %v452 = vrot.slane %v418, 1
      %v453 = vrot.slane %v419, 1
      %v454 = vsel %vm269, %v452, %v453
      %v455 = vrot.slane %v420, 1
      %v456 = vrot.slane %v421, 1
      %v457 = vsel %vm269, %v455, %v456
      %v458 = vrot.slane %v422, 1
      %v459 = vrot.slane %v423, 1
      %v460 = vsel %vm269, %v458, %v459
      %v461 = vrot.slane %v424, 1
      %v462 = vrot.slane %v425, 1
      %v463 = vsel %vm269, %v461, %v462
      %v464 = vrot.slane %v426, 1
      %v465 = vrot.slane %v427, 1
      %v466 = vsel %vm269, %v464, %v465
      %v467 = vrot.slane %v428, 1
      %v468 = vrot.slane %v429, 1
      %v469 = vsel %vm269, %v467, %v468
      %v478 = vadd.f32 %v401, %v448
      %v479 = vadd.f32 %v402, %v451
      %v480 = vadd.f32 %v403, %v454
      %v481 = vadd.f32 %v404, %v457
      %v482 = vadd.f32 %v405, %v460
      %v483 = vadd.f32 %v406, %v463
      %v484 = vadd.f32 %v407, %v466
      %v485 = vadd.f32 %v408, %v469
      %v486 = vld [vmem:[%s1 + $0x5] sm:$0x1]
      %v487 = vlaneseq
      %v488 = vshrl.u32 %v487, 7
      %v489 = vsub.s32 0, %v488
      %v490 = vrot.slane %v486, %v489
      %v491 = vmul.f32 %v193, %v490
      %v492 = vmul.f32 %v194, %v490
      %v493 = vmul.f32 %v195, %v490
      %v494 = vmul.f32 %v196, %v490
      %v495 = vmul.f32 %v197, %v490
      %v496 = vmul.f32 %v198, %v490
      %v497 = vmul.f32 %v199, %v490
      %v498 = vmul.f32 %v200, %v490
      %v499 = vmul.f32 %v201, %v490
      %v500 = vmul.f32 %v202, %v490
      %v501 = vmul.f32 %v203, %v490
      %v502 = vmul.f32 %v204, %v490
      %v503 = vmul.f32 %v205, %v490
      %v504 = vmul.f32 %v206, %v490
      %v505 = vmul.f32 %v207, %v490
      %v506 = vmul.f32 %v208, %v490
      %v523 = vrot.slane %v491, 2
      %v524 = vrot.slane %v492, 2
      %v525 = vsel %vm347, %v523, %v524
      %v526 = vrot.slane %v493, 2
      %v527 = vrot.slane %v494, 2
      %v528 = vsel %vm347, %v526, %v527
      %v529 = vrot.slane %v495, 2
      %v530 = vrot.slane %v496, 2
      %v531 = vsel %vm347, %v529, %v530
      %v532 = vrot.slane %v497, 2
      %v533 = vrot.slane %v498, 2
      %v534 = vsel %vm347, %v532, %v533
      %v535 = vrot.slane %v499, 2
      %v536 = vrot.slane %v500, 2
      %v537 = vsel %vm347, %v535, %v536
      %v538 = vrot.slane %v501, 2
      %v539 = vrot.slane %v502, 2
      %v540 = vsel %vm347, %v538, %v539
      %v541 = vrot.slane %v503, 2
      %v542 = vrot.slane %v504, 2
      %v543 = vsel %vm347, %v541, %v542
      %v544 = vrot.slane %v505, 2
      %v545 = vrot.slane %v506, 2
      %v546 = vsel %vm347, %v544, %v545
      %v555 = vadd.f32 %v478, %v525
      %v556 = vadd.f32 %v479, %v528
      %v557 = vadd.f32 %v480, %v531
      %v558 = vadd.f32 %v481, %v534
      %v559 = vadd.f32 %v482, %v537
      %v560 = vadd.f32 %v483, %v540
      %v561 = vadd.f32 %v484, %v543
      %v562 = vadd.f32 %v485, %v546
      %v563 = vld [vmem:[%s1 + $0x6] sm:$0x1]
      %v564 = vlaneseq
      %v565 = vshrl.u32 %v564, 7
      %v566 = vsub.s32 0, %v565
      %v567 = vrot.slane %v563, %v566
      %v568 = vmul.f32 %v195, %v567
      %v569 = vmul.f32 %v197, %v567
      %v570 = vmul.f32 %v199, %v567
      %v571 = vmul.f32 %v201, %v567
      %v572 = vmul.f32 %v203, %v567
      %v573 = vmul.f32 %v205, %v567
      %v574 = vmul.f32 %v207, %v567
      %v575 = vmul.f32 %v209, %v567
      %v576 = vadd.f32 %v555, %v568
      %v577 = vadd.f32 %v556, %v569
      %v578 = vadd.f32 %v557, %v570
      %v579 = vadd.f32 %v558, %v571
      %v580 = vadd.f32 %v559, %v572
      %v581 = vadd.f32 %v560, %v573
      %v582 = vadd.f32 %v561, %v574
      %v583 = vadd.f32 %v562, %v575
      %v584 = vld [vmem:[%s1 + $0x7] sm:$0x1]
      %v585 = vlaneseq
      %v586 = vshrl.u32 %v585, 7
      %v587 = vsub.s32 0, %v586
      %v588 = vrot.slane %v584, %v587
      %v589 = vmul.f32 %v195, %v588
      %v590 = vmul.f32 %v196, %v588
      %v591 = vmul.f32 %v197, %v588
      %v592 = vmul.f32 %v198, %v588
      %v593 = vmul.f32 %v199, %v588
      %v594 = vmul.f32 %v200, %v588
      %v595 = vmul.f32 %v201, %v588
      %v596 = vmul.f32 %v202, %v588
      %v597 = vmul.f32 %v203, %v588
      %v598 = vmul.f32 %v204, %v588
      %v599 = vmul.f32 %v205, %v588
      %v600 = vmul.f32 %v206, %v588
      %v601 = vmul.f32 %v207, %v588
      %v602 = vmul.f32 %v208, %v588
      %v603 = vmul.f32 %v209, %v588
      %v604 = vmul.f32 %v210, %v588
      %v621 = vrot.slane %v589, 1
      %v622 = vrot.slane %v590, 1
      %v623 = vsel %vm269, %v621, %v622
      %v624 = vrot.slane %v591, 1
      %v625 = vrot.slane %v592, 1
      %v626 = vsel %vm269, %v624, %v625
      %v627 = vrot.slane %v593, 1
      %v628 = vrot.slane %v594, 1
      %v629 = vsel %vm269, %v627, %v628
      %v630 = vrot.slane %v595, 1
      %v631 = vrot.slane %v596, 1
      %v632 = vsel %vm269, %v630, %v631
      %v633 = vrot.slane %v597, 1
      %v634 = vrot.slane %v598, 1
      %v635 = vsel %vm269, %v633, %v634
      %v636 = vrot.slane %v599, 1
      %v637 = vrot.slane %v600, 1
      %v638 = vsel %vm269, %v636, %v637
      %v639 = vrot.slane %v601, 1
      %v640 = vrot.slane %v602, 1
      %v641 = vsel %vm269, %v639, %v640
      %v642 = vrot.slane %v603, 1
      %v643 = vrot.slane %v604, 1
      %v644 = vsel %vm269, %v642, %v643
      %v653 = vadd.f32 %v576, %v623
      %v654 = vadd.f32 %v577, %v626
      %v655 = vadd.f32 %v578, %v629
      %v656 = vadd.f32 %v579, %v632
      %v657 = vadd.f32 %v580, %v635
      %v658 = vadd.f32 %v581, %v638
      %v659 = vadd.f32 %v582, %v641
      %v660 = vadd.f32 %v583, %v644
      %v661 = vld [vmem:[%s1 + $0x8] sm:$0x1]
      %v662 = vlaneseq
      %v663 = vshrl.u32 %v662, 7
      %v664 = vsub.s32 0, %v663
      %v665 = vrot.slane %v661, %v664
      %v666 = vmul.f32 %v195, %v665
      %v667 = vmul.f32 %v196, %v665
      %v668 = vmul.f32 %v197, %v665
      %v669 = vmul.f32 %v198, %v665
      %v670 = vmul.f32 %v199, %v665
      %v671 = vmul.f32 %v200, %v665
      %v672 = vmul.f32 %v201, %v665
      %v673 = vmul.f32 %v202, %v665
      %v674 = vmul.f32 %v203, %v665
      %v675 = vmul.f32 %v204, %v665
      %v676 = vmul.f32 %v205, %v665
      %v677 = vmul.f32 %v206, %v665
      %v678 = vmul.f32 %v207, %v665
      %v679 = vmul.f32 %v208, %v665
      %v680 = vmul.f32 %v209, %v665
      %v681 = vmul.f32 %v210, %v665
      %v698 = vrot.slane %v666, 2
      %v699 = vrot.slane %v667, 2
      %v700 = vsel %vm347, %v698, %v699
      %v701 = vrot.slane %v668, 2
      %v702 = vrot.slane %v669, 2
      %v703 = vsel %vm347, %v701, %v702
      %v704 = vrot.slane %v670, 2
      %v705 = vrot.slane %v671, 2
      %v706 = vsel %vm347, %v704, %v705
      %v707 = vrot.slane %v672, 2
      %v708 = vrot.slane %v673, 2
      %v709 = vsel %vm347, %v707, %v708
      %v710 = vrot.slane %v674, 2
      %v711 = vrot.slane %v675, 2
      %v712 = vsel %vm347, %v710, %v711
      %v713 = vrot.slane %v676, 2
      %v714 = vrot.slane %v677, 2
      %v715 = vsel %vm347, %v713, %v714
      %v716 = vrot.slane %v678, 2
      %v717 = vrot.slane %v679, 2
      %v718 = vsel %vm347, %v716, %v717
      %v719 = vrot.slane %v680, 2
      %v720 = vrot.slane %v681, 2
      %v721 = vsel %vm347, %v719, %v720
      %v730 = vadd.f32 %v653, %v700
      %v731 = vadd.f32 %v654, %v703
      %v732 = vadd.f32 %v655, %v706
      %v733 = vadd.f32 %v656, %v709
      %v734 = vadd.f32 %v657, %v712
      %v735 = vadd.f32 %v658, %v715
      %v736 = vadd.f32 %v659, %v718
      %v737 = vadd.f32 %v660, %v721
      %v738 = vld [vmem:[%s2] sm:$0x1]
      %v740 = vlaneseq
      %v741 = vshrl.u32 %v740, 7
      %v742 = vsub.s32 0, %v741
      %v743 = vrot.slane %v738, %v742
      %v745 = vadd.f32 %v730, %v743
      %v746 = vadd.f32 %v731, %v743
      %v747 = vadd.f32 %v732, %v743
      %v748 = vadd.f32 %v733, %v743
      %v749 = vadd.f32 %v734, %v743
      %v750 = vadd.f32 %v735, %v743
      %v751 = vadd.f32 %v736, %v743
      %v752 = vadd.f32 %v737, %v743
      %v753 = vmax.f32 %v745, 0.0
      %v754 = vmax.f32 %v746, 0.0
      %v755 = vmax.f32 %v747, 0.0
      %v756 = vmax.f32 %v748, 0.0
      %v757 = vmax.f32 %v749, 0.0
      %v758 = vmax.f32 %v750, 0.0
      %v759 = vmax.f32 %v751, 0.0
      %v760 = vmax.f32 %v752, 0.0
      %v761 = vmin.f32 %v753, 6.0
      %v762 = vmin.f32 %v754, 6.0
      %v763 = vmin.f32 %v755, 6.0
      %v764 = vmin.f32 %v756, 6.0
      %v765 = vmin.f32 %v757, 6.0
      %v766 = vmin.f32 %v758, 6.0
      %v767 = vmin.f32 %v759, 6.0
      %v768 = vmin.f32 %v760, 6.0
      %v769 = vpack.c.bf16 %v761, %v761
      %v770 = vpack.c.bf16 %v762, %v762
      %v771 = vpack.c.bf16 %v763, %v763
      %v772 = vpack.c.bf16 %v764, %v764
      %v773 = vpack.c.bf16 %v765, %v765
      %v774 = vpack.c.bf16 %v766, %v766
      %v775 = vpack.c.bf16 %v767, %v767
      %v776 = vpack.c.bf16 %v768, %v768
      %vm777 = vcmask 257024
      %778 = vst.msk [vmem:[%s170] sm:$0xf] %vm777, %v769
      %779 = vst.msk [vmem:[%s170 + $0x4] sm:$0xf] %vm777, %v770
      %780 = vst.msk [vmem:[%s170 + $0x8] sm:$0xf] %vm777, %v771
      %781 = vst.msk [vmem:[%s170 + $0xc] sm:$0xf] %vm777, %v772
      %782 = vst.msk [vmem:[%s170 + $0x10] sm:$0xf] %vm777, %v773
      %783 = vst.msk [vmem:[%s170 + $0x14] sm:$0xf] %vm777, %v774
      %784 = vst.msk [vmem:[%s170 + $0x18] sm:$0xf] %vm777, %v775
      %785 = vst.msk [vmem:[%s170 + $0x1c] sm:$0xf] %vm777, %v776
      %p786 = scmp.lt.s32.totalorder %s14, 3
      %s787 = scalar_select %p786, %s14, 3
      %s788 = smul.addr %s787, 8
      %s789 = smul.addr %s788, 4
      %s790 = scalar_lea.vmem %s3, %s789
      // Predicated region
      $region33: #{mobilenet_perceptual_loss.25} parent=31 // pred_check
        %p791 = pneg %p100
      $region34: #{mobilenet_perceptual_loss.25} parent=31 // pred_check_branch
        %793 = sbr.rel (%p791) target = $region36
      $region35: #{mobilenet_perceptual_loss.25} parent=31 // pred_region
        _
      $region36: #{mobilenet_perceptual_loss.25} parent=31 // pred_fallthru
        _
    $region32: #{mobilenet_perceptual_loss.25} parent=5 // pred_fallthru
      _
    %p794 = scmp.le.s32.totalorder 2, %s9
    // Predicated region
    $region37: #{mobilenet_perceptual_loss.25} parent=5 // pred_check
      %p795 = pneg %p794
    $region38: #{mobilenet_perceptual_loss.25} parent=5 // pred_check_branch
      %797 = sbr.rel (%p795) target = $region40
    $region39: #{mobilenet_perceptual_loss.25} parent=5 // pred_region
      %s798 = ssub.s32 %s9, 2
      // Predicated region
      $region41: #{mobilenet_perceptual_loss.25} parent=39 // pred_check
        %p799 = pneg %p106
      $region42: #{mobilenet_perceptual_loss.25} parent=39 // pred_check_branch
        %801 = sbr.rel (%p799) target = $region44
      $region43: #{mobilenet_perceptual_loss.25} parent=39 // pred_region
        %p802 = scmp.lt.s32.totalorder %s15, 3
        %s803 = scalar_select %p802, %s15, 3
        %s804 = smul.addr %s803, 8
        %s805 = smul.addr %s804, 4
        %s806 = scalar_lea.vmem %s3, %s805
      $region44: #{mobilenet_perceptual_loss.25} parent=39 // pred_fallthru
        _
    $region40: #{mobilenet_perceptual_loss.25} parent=5 // pred_fallthru
      _
  $region6: #{mobilenet_perceptual_loss.25} parent=0 // loop_footer
    %s13 = sadd.s32 1, %s9
  $region7: #{mobilenet_perceptual_loss.25} parent=0 // loop_footer_branch
    %8 = sbr.rel target = $region3
  $region8: #{mobilenet_perceptual_loss.25} parent=0 // loop_exit
    _

// kernel: mobilenet_perceptual_loss.26
$region0: #{mobilenet_perceptual_loss.26}
  #allocation0 [shape = 'u32[]', space=smem, size = 0x4, offset = 0x4, fixed_abs, tag = 'smem constant byte address 0x4 - core index']
  #allocation1 [shape = 'u32[144,128]{1,0:T(1,128)}', space=vmem, size = 0x12000, scoped, tag = 'internal scratch']
  %s0 = inlined_call_operand.vmem [shape: bf16[256,32], index: 0, kind: input, shape index: {}]
  %s1 = inlined_call_operand.vmem [shape: bf16[32,16], index: 1, kind: input, shape index: {}]
  %s2 = inlined_call_operand.vmem [shape: f32[1,16], index: 2, kind: input, shape index: {}]
  %s3 = inlined_call_operand.vmem [shape: bf16[256,16], index: 3, kind: output, shape index: {}]
  %s4 = sld [smem:[#allocation0]]
  $region22: #{mobilenet_perceptual_loss.26} parent=0
    _
  %s6 = ssub.s32 1, %s4
  %s7 = scalar_select 0, %s6, %s4
  // Predicated region
  $region2: #{mobilenet_perceptual_loss.26} parent=0 // pred_check
    _
  $region3: #{mobilenet_perceptual_loss.26} parent=0 // pred_check_branch
    %9 = sbr.rel (0) target = $region5
  $region4: #{mobilenet_perceptual_loss.26} parent=0 // pred_region
    _
  $region5: #{mobilenet_perceptual_loss.26} parent=0 // pred_fallthru
    _
  // Predicated region
  $region6: #{mobilenet_perceptual_loss.26} parent=0 // pred_check
    _
  $region7: #{mobilenet_perceptual_loss.26} parent=0 // pred_check_branch
    %11 = sbr.rel (0) target = $region9
  $region8: #{mobilenet_perceptual_loss.26} parent=0 // pred_region
    _
  $region9: #{mobilenet_perceptual_loss.26} parent=0 // pred_fallthru
    _
  // Predicated region
  $region10: #{mobilenet_perceptual_loss.26} parent=0 // pred_check
    _
  $region11: #{mobilenet_perceptual_loss.26} parent=0 // pred_check_branch
    %13 = sbr.rel (0) target = $region13
  $region12: #{mobilenet_perceptual_loss.26} parent=0 // pred_region
    _
  $region13: #{mobilenet_perceptual_loss.26} parent=0 // pred_fallthru
    _
  %v15 = vld [vmem:[%s0] sm:$0xf]
  %v16 = vld [vmem:[%s0 + $0x4] sm:$0xf]
  %v17 = vld [vmem:[%s0 + $0x8] sm:$0xf]
  %v18 = vld [vmem:[%s0 + $0xc] sm:$0xf]
  %v19 = vld [vmem:[%s0 + $0x10] sm:$0xf]
  %v20 = vld [vmem:[%s0 + $0x14] sm:$0xf]
  %v21 = vld [vmem:[%s0 + $0x18] sm:$0xf]
  %v22 = vld [vmem:[%s0 + $0x1c] sm:$0xf]
  %v23 = vld [vmem:[%s0 + $0x20] sm:$0xf]
  %v24 = vld [vmem:[%s0 + $0x24] sm:$0xf]
  %v25 = vld [vmem:[%s0 + $0x28] sm:$0xf]
  %v26 = vld [vmem:[%s0 + $0x2c] sm:$0xf]
  %v27 = vld [vmem:[%s0 + $0x30] sm:$0xf]
  %v28 = vld [vmem:[%s0 + $0x34] sm:$0xf]
  %v29 = vld [vmem:[%s0 + $0x38] sm:$0xf]
  %v30 = vld [vmem:[%s0 + $0x3c] sm:$0xf]
  %v31 = vld [vmem:[%s0 + $0x40] sm:$0xf]
  %v32 = vld [vmem:[%s0 + $0x44] sm:$0xf]
  %v33 = vld [vmem:[%s0 + $0x48] sm:$0xf]
  %v34 = vld [vmem:[%s0 + $0x4c] sm:$0xf]
  %v35 = vld [vmem:[%s0 + $0x50] sm:$0xf]
  %v36 = vld [vmem:[%s0 + $0x54] sm:$0xf]
  %v37 = vld [vmem:[%s0 + $0x58] sm:$0xf]
  %v38 = vld [vmem:[%s0 + $0x5c] sm:$0xf]
  %v39 = vld [vmem:[%s0 + $0x60] sm:$0xf]
  %v40 = vld [vmem:[%s0 + $0x64] sm:$0xf]
  %v41 = vld [vmem:[%s0 + $0x68] sm:$0xf]
  %v42 = vld [vmem:[%s0 + $0x6c] sm:$0xf]
  %v43 = vld [vmem:[%s0 + $0x70] sm:$0xf]
  %v44 = vld [vmem:[%s0 + $0x74] sm:$0xf]
  %v45 = vld [vmem:[%s0 + $0x78] sm:$0xf]
  %v46 = vld [vmem:[%s0 + $0x7c] sm:$0xf]
  %v47 = vld [vmem:[%s1] sm:$0xf]
  %v48 = vld [vmem:[%s1 + $0x4] sm:$0xf]
  %v49 = vld [vmem:[%s1 + $0x8] sm:$0xf]
  %v50 = vld [vmem:[%s1 + $0xc] sm:$0xf]
  %v51 = vld [vmem:[%s2] sm:$0x1]
  %v53 = vlaneseq
  %v54 = vshrl.u32 %v53, 7
  %v55 = vsub.s32 0, %v54
  %v56 = vrot.slane %v51, %v55
  %v90 = vunpack.c.l.b16 %v15
  %v91 = vunpack.c.l.b16 %v16
  %v92 = vunpack.c.l.b16 %v17
  %v93 = vunpack.c.l.b16 %v18
  %v94 = vunpack.c.l.b16 %v19
  %v95 = vunpack.c.l.b16 %v20
  %v96 = vunpack.c.l.b16 %v21
  %v97 = vunpack.c.l.b16 %v22
  %v98 = vunpack.c.l.b16 %v23
  %v99 = vunpack.c.l.b16 %v24
  %v100 = vunpack.c.l.b16 %v25
  %v101 = vunpack.c.l.b16 %v26
  %v102 = vunpack.c.l.b16 %v27
  %v103 = vunpack.c.l.b16 %v28
  %v104 = vunpack.c.l.b16 %v29
  %v105 = vunpack.c.l.b16 %v30
  %v106 = vunpack.c.l.b16 %v31
  %v107 = vunpack.c.l.b16 %v32
  %v108 = vunpack.c.l.b16 %v33
  %v109 = vunpack.c.l.b16 %v34
  %v110 = vunpack.c.l.b16 %v35
  %v111 = vunpack.c.l.b16 %v36
  %v112 = vunpack.c.l.b16 %v37
  %v113 = vunpack.c.l.b16 %v38
  %v114 = vunpack.c.l.b16 %v39
  %v115 = vunpack.c.l.b16 %v40
  %v116 = vunpack.c.l.b16 %v41
  %v117 = vunpack.c.l.b16 %v42
  %v118 = vunpack.c.l.b16 %v43
  %v119 = vunpack.c.l.b16 %v44
  %v120 = vunpack.c.l.b16 %v45
  %v121 = vunpack.c.l.b16 %v46
  %v122 = vpack.c.b16 %v91, %v90
  %v123 = vpack.c.b16 %v93, %v92
  %v124 = vpack.c.b16 %v95, %v94
  %v125 = vpack.c.b16 %v97, %v96
  %v126 = vpack.c.b16 %v99, %v98
  %v127 = vpack.c.b16 %v101, %v100
  %v128 = vpack.c.b16 %v103, %v102
  %v129 = vpack.c.b16 %v105, %v104
  %v130 = vpack.c.b16 %v107, %v106
  %v131 = vpack.c.b16 %v109, %v108
  %v132 = vpack.c.b16 %v111, %v110
  %v133 = vpack.c.b16 %v113, %v112
  %v134 = vpack.c.b16 %v115, %v114
  %v135 = vpack.c.b16 %v117, %v116
  %v136 = vpack.c.b16 %v119, %v118
  %v137 = vpack.c.b16 %v121, %v120
  %v142 = vunpack.c.l.b16 %v47
  %v143 = vunpack.c.l.b16 %v48
  %v144 = vunpack.c.l.b16 %v49
  %v145 = vunpack.c.l.b16 %v50
  %v146 = vpack.c.b16 %v143, %v142
  %v147 = vpack.c.b16 %v145, %v144
  %vm150 = vcmask 261120
  %v152 = vsel %vm150, %v122, 0
  %v155 = vsel %vm150, %v123, 0
  %v158 = vsel %vm150, %v124, 0
  %v161 = vsel %vm150, %v125, 0
  %v164 = vsel %vm150, %v126, 0
  %v167 = vsel %vm150, %v127, 0
  %v170 = vsel %vm150, %v128, 0
  %v173 = vsel %vm150, %v129, 0
  %v176 = vsel %vm150, %v130, 0
  %v179 = vsel %vm150, %v131, 0
  %v182 = vsel %vm150, %v132, 0
  %v185 = vsel %vm150, %v133, 0
  %v188 = vsel %vm150, %v134, 0
  %v191 = vsel %vm150, %v135, 0
  %v194 = vsel %vm150, %v136, 0
  %v197 = vsel %vm150, %v137, 0
  %199 = vmatprep.subr.bf16.mxu0 0
  %200 = vmatpush1.bf16.msra.mxu0 0
  %201 = vmatprep.subr.bf16.mxu0 0
  %202 = vmatpush1.bf16.msra.mxu0 0
  %203 = vmatprep.subr.bf16.mxu0 0
  %204 = vmatpush1.bf16.msra.mxu0 0
  %205 = vmatprep.subr.bf16.mxu0 0
  %206 = vmatpush1.bf16.msra.mxu0 0
  %207 = vmatprep.subr.bf16.mxu0 0
  %208 = vmatpush1.bf16.msra.mxu0 0
  %209 = vmatprep.subr.bf16.mxu0 0
  %210 = vmatpush1.bf16.msra.mxu0 0
  %211 = vmatprep.subr.bf16.mxu0 0
  %212 = vmatpush1.bf16.msra.mxu0 %v147
  %213 = vmatprep.subr.bf16.mxu0 0
  %214 = vmatpush1.bf16.msra.mxu0 %v146
  %215 = vmatprep.subr.bf16.mxu0 0
  %216 = vmatpush2.bf16.msra.mxu0 0
  %217 = vmatprep.subr.bf16.mxu0 0
  %218 = vmatpush2.bf16.msra.mxu0 0
  %219 = vmatprep.subr.bf16.mxu0 0
  %220 = vmatpush2.bf16.msra.mxu0 0
  %221 = vmatprep.subr.bf16.mxu0 0
  %222 = vmatpush2.bf16.msra.mxu0 0
  %223 = vmatprep.subr.bf16.mxu0 0
  %224 = vmatpush2.bf16.msra.mxu0 0
  %225 = vmatprep.subr.bf16.mxu0 0
  %226 = vmatpush2.bf16.msra.mxu0 0
  %227 = vmatprep.subr.bf16.mxu0 0
  %228 = vmatpush2.bf16.msra.mxu0 0
  %229 = vmatprep.subr.bf16.mxu0 0
  %230 = vmatpush2.bf16.msra.mxu0 0
  %231 = vmatprep.mubr.bf16.mxu0 0
  %232 = vmatmul.mubr.bf16.gmra.mxu0 %v152
  %v233 = vpop.f32.mrf.mxu0
  %v234 = vadd.f32 %v56, %v233
  %v235 = vpop.f32.mrf.mxu0
  %v236 = vpop.f32.mrf.mxu0
  %v237 = vadd.f32 %v56, %v236
  %v238 = vpop.f32.mrf.mxu0
  %239 = vmatprep.mubr.bf16.mxu0 0
  %240 = vmatmul.mubr.bf16.gmra.mxu0 %v155
  %v241 = vpop.f32.mrf.mxu0
  %v242 = vadd.f32 %v56, %v241
  %v243 = vpop.f32.mrf.mxu0
  %v244 = vpop.f32.mrf.mxu0
  %v245 = vadd.f32 %v56, %v244
  %v246 = vpop.f32.mrf.mxu0
  %247 = vmatprep.mubr.bf16.mxu0 0
  %248 = vmatmul.mubr.bf16.gmra.mxu0 %v158
  %v249 = vpop.f32.mrf.mxu0
  %v250 = vadd.f32 %v56, %v249
  %v251 = vpop.f32.mrf.mxu0
  %v252 = vpop.f32.mrf.mxu0
  %v253 = vadd.f32 %v56, %v252
  %v254 = vpop.f32.mrf.mxu0
  %255 = vmatprep.mubr.bf16.mxu0 0
  %256 = vmatmul.mubr.bf16.gmra.mxu0 %v161
  %v257 = vpop.f32.mrf.mxu0
  %v258 = vadd.f32 %v56, %v257
  %v259 = vpop.f32.mrf.mxu0
  %v260 = vpop.f32.mrf.mxu0
  %v261 = vadd.f32 %v56, %v260
  %v262 = vpop.f32.mrf.mxu0
  %263 = vmatprep.mubr.bf16.mxu0 0
  %264 = vmatmul.mubr.bf16.gmra.mxu0 %v164
  %v265 = vpop.f32.mrf.mxu0
  %v266 = vadd.f32 %v56, %v265
  %v267 = vpop.f32.mrf.mxu0
  %v268 = vpop.f32.mrf.mxu0
  %v269 = vadd.f32 %v56, %v268
  %v270 = vpop.f32.mrf.mxu0
  %271 = vmatprep.mubr.bf16.mxu0 0
  %272 = vmatmul.mubr.bf16.gmra.mxu0 %v167
  %v273 = vpop.f32.mrf.mxu0
  %v274 = vadd.f32 %v56, %v273
  %v275 = vpop.f32.mrf.mxu0
  %v276 = vpop.f32.mrf.mxu0
  %v277 = vadd.f32 %v56, %v276
  %v278 = vpop.f32.mrf.mxu0
  %279 = vmatprep.mubr.bf16.mxu0 0
  %280 = vmatmul.mubr.bf16.gmra.mxu0 %v170
  %v281 = vpop.f32.mrf.mxu0
  %v282 = vadd.f32 %v56, %v281
  %v283 = vpop.f32.mrf.mxu0
  %v284 = vpop.f32.mrf.mxu0
  %v285 = vadd.f32 %v56, %v284
  %v286 = vpop.f32.mrf.mxu0
  %287 = vmatprep.mubr.bf16.mxu0 0
  %288 = vmatmul.mubr.bf16.gmra.mxu0 %v173
  %v289 = vpop.f32.mrf.mxu0
  %v290 = vadd.f32 %v56, %v289
  %v291 = vpop.f32.mrf.mxu0
  %v292 = vpop.f32.mrf.mxu0
  %v293 = vadd.f32 %v56, %v292
  %v294 = vpop.f32.mrf.mxu0
  %295 = vmatprep.mubr.bf16.mxu0 0
  %296 = vmatmul.mubr.bf16.gmra.mxu0 %v176
  %v297 = vpop.f32.mrf.mxu0
  %v298 = vadd.f32 %v56, %v297
  %v299 = vpop.f32.mrf.mxu0
  %v300 = vpop.f32.mrf.mxu0
  %v301 = vadd.f32 %v56, %v300
  %v302 = vpop.f32.mrf.mxu0
  %303 = vmatprep.mubr.bf16.mxu0 0
  %304 = vmatmul.mubr.bf16.gmra.mxu0 %v179
  %v305 = vpop.f32.mrf.mxu0
  %v306 = vadd.f32 %v56, %v305
  %v307 = vpop.f32.mrf.mxu0
  %v308 = vpop.f32.mrf.mxu0
  %v309 = vadd.f32 %v56, %v308
  %v310 = vpop.f32.mrf.mxu0
  %311 = vmatprep.mubr.bf16.mxu0 0
  %312 = vmatmul.mubr.bf16.gmra.mxu0 %v182
  %v313 = vpop.f32.mrf.mxu0
  %v314 = vadd.f32 %v56, %v313
  %v315 = vpop.f32.mrf.mxu0
  %v316 = vpop.f32.mrf.mxu0
  %v317 = vadd.f32 %v56, %v316
  %v318 = vpop.f32.mrf.mxu0
  %319 = vmatprep.mubr.bf16.mxu0 0
  %320 = vmatmul.mubr.bf16.gmra.mxu0 %v185
  %v321 = vpop.f32.mrf.mxu0
  %v322 = vadd.f32 %v56, %v321
  %v323 = vpop.f32.mrf.mxu0
  %v324 = vpop.f32.mrf.mxu0
  %v325 = vadd.f32 %v56, %v324
  %v326 = vpop.f32.mrf.mxu0
  %327 = vmatprep.mubr.bf16.mxu0 0
  %328 = vmatmul.mubr.bf16.gmra.mxu0 %v188
  %v329 = vpop.f32.mrf.mxu0
  %v330 = vadd.f32 %v56, %v329
  %v331 = vpop.f32.mrf.mxu0
  %v332 = vpop.f32.mrf.mxu0
  %v333 = vadd.f32 %v56, %v332
  %v334 = vpop.f32.mrf.mxu0
  %335 = vmatprep.mubr.bf16.mxu0 0
  %336 = vmatmul.mubr.bf16.gmra.mxu0 %v191
  %v337 = vpop.f32.mrf.mxu0
  %v338 = vadd.f32 %v56, %v337
  %v339 = vpop.f32.mrf.mxu0
  %v340 = vpop.f32.mrf.mxu0
  %v341 = vadd.f32 %v56, %v340
  %v342 = vpop.f32.mrf.mxu0
  %343 = vmatprep.mubr.bf16.mxu0 0
  %344 = vmatmul.mubr.bf16.gmra.mxu0 %v194
  %v345 = vpop.f32.mrf.mxu0
  %v346 = vadd.f32 %v56, %v345
  %v347 = vpop.f32.mrf.mxu0
  %v348 = vpop.f32.mrf.mxu0
  %v349 = vadd.f32 %v56, %v348
  %v350 = vpop.f32.mrf.mxu0
  %351 = vmatprep.mubr.bf16.mxu0 0
  %352 = vmatmul.mubr.bf16.gmra.mxu0 %v197
  %v353 = vpop.f32.mrf.mxu0
  %v354 = vadd.f32 %v56, %v353
  %v355 = vpop.f32.mrf.mxu0
  %v356 = vpop.f32.mrf.mxu0
  %v357 = vadd.f32 %v56, %v356
  %v358 = vpop.f32.mrf.mxu0
  %359 = vdwg.mxu0
  %v360 = vpack.c.bf16 %v237, %v234
  %v361 = vpack.c.bf16 %v245, %v242
  %v362 = vpack.c.bf16 %v253, %v250
  %v363 = vpack.c.bf16 %v261, %v258
  %v364 = vpack.c.bf16 %v269, %v266
  %v365 = vpack.c.bf16 %v277, %v274
  %v366 = vpack.c.bf16 %v285, %v282
  %v367 = vpack.c.bf16 %v293, %v290
  %v368 = vpack.c.bf16 %v301, %v298
  %v369 = vpack.c.bf16 %v309, %v306
  %v370 = vpack.c.bf16 %v317, %v314
  %v371 = vpack.c.bf16 %v325, %v322
  %v372 = vpack.c.bf16 %v333, %v330
  %v373 = vpack.c.bf16 %v341, %v338
  %v374 = vpack.c.bf16 %v349, %v346
  %v375 = vpack.c.bf16 %v357, %v354
  %v392 = vunpack.c.l.b16 %v360
  %v393 = vunpack.c.h.b16 %v360
  %v394 = vunpack.c.l.b16 %v361
  %v395 = vunpack.c.h.b16 %v361
  %v396 = vunpack.c.l.b16 %v362
  %v397 = vunpack.c.h.b16 %v362
  %v398 = vunpack.c.l.b16 %v363
  %v399 = vunpack.c.h.b16 %v363
  %v400 = vunpack.c.l.b16 %v364
  %v401 = vunpack.c.h.b16 %v364
  %v402 = vunpack.c.l.b16 %v365
  %v403 = vunpack.c.h.b16 %v365
  %v404 = vunpack.c.l.b16 %v366
  %v405 = vunpack.c.h.b16 %v366
  %v406 = vunpack.c.l.b16 %v367
  %v407 = vunpack.c.h.b16 %v367
  %v408 = vunpack.c.l.b16 %v368
  %v409 = vunpack.c.h.b16 %v368
  %v410 = vunpack.c.l.b16 %v369
  %v411 = vunpack.c.h.b16 %v369
  %v412 = vunpack.c.l.b16 %v370
  %v413 = vunpack.c.h.b16 %v370
  %v414 = vunpack.c.l.b16 %v371
  %v415 = vunpack.c.h.b16 %v371
  %v416 = vunpack.c.l.b16 %v372
  %v417 = vunpack.c.h.b16 %v372
  %v418 = vunpack.c.l.b16 %v373
  %v419 = vunpack.c.h.b16 %v373
  %v420 = vunpack.c.l.b16 %v374
  %v421 = vunpack.c.h.b16 %v374
  %v422 = vunpack.c.l.b16 %v375
  %v423 = vunpack.c.h.b16 %v375
  %v424 = vpack.c.b16 %v392, %v392
  %v425 = vpack.c.b16 %v393, %v393
  %v426 = vpack.c.b16 %v394, %v394
  %v427 = vpack.c.b16 %v395, %v395
  %v428 = vpack.c.b16 %v396, %v396
  %v429 = vpack.c.b16 %v397, %v397
  %v430 = vpack.c.b16 %v398, %v398
  %v431 = vpack.c.b16 %v399, %v399
  %v432 = vpack.c.b16 %v400, %v400
  %v433 = vpack.c.b16 %v401, %v401
  %v434 = vpack.c.b16 %v402, %v402
  %v435 = vpack.c.b16 %v403, %v403
  %v436 = vpack.c.b16 %v404, %v404
  %v437 = vpack.c.b16 %v405, %v405
  %v438 = vpack.c.b16 %v406, %v406
  %v439 = vpack.c.b16 %v407, %v407
  %v440 = vpack.c.b16 %v408, %v408
  %v441 = vpack.c.b16 %v409, %v409
  %v442 = vpack.c.b16 %v410, %v410
  %v443 = vpack.c.b16 %v411, %v411
  %v444 = vpack.c.b16 %v412, %v412
  %v445 = vpack.c.b16 %v413, %v413
  %v446 = vpack.c.b16 %v414, %v414
  %v447 = vpack.c.b16 %v415, %v415
  %v448 = vpack.c.b16 %v416, %v416
  %v449 = vpack.c.b16 %v417, %v417
  %v450 = vpack.c.b16 %v418, %v418
  %v451 = vpack.c.b16 %v419, %v419
  %v452 = vpack.c.b16 %v420, %v420
  %v453 = vpack.c.b16 %v421, %v421
  %v454 = vpack.c.b16 %v422, %v422
  %v455 = vpack.c.b16 %v423, %v423
  %vm488 = vcmask 125952
  %489 = vst.msk [vmem:[%s3] sm:$0xf] %vm488, %v424
  %490 = vst.msk [vmem:[%s3 + $0x4] sm:$0xf] %vm488, %v425
  %491 = vst.msk [vmem:[%s3 + $0x8] sm:$0xf] %vm488, %v426
  %492 = vst.msk [vmem:[%s3 + $0xc] sm:$0xf] %vm488, %v427
  %493 = vst.msk [vmem:[%s3 + $0x10] sm:$0xf] %vm488, %v428
  %494 = vst.msk [vmem:[%s3 + $0x14] sm:$0xf] %vm488, %v429
  %495 = vst.msk [vmem:[%s3 + $0x18] sm:$0xf] %vm488, %v430
  %496 = vst.msk [vmem:[%s3 + $0x1c] sm:$0xf] %vm488, %v431
  %497 = vst.msk [vmem:[%s3 + $0x20] sm:$0xf] %vm488, %v432
  %498 = vst.msk [vmem:[%s3 + $0x24] sm:$0xf] %vm488, %v433
  %499 = vst.msk [vmem:[%s3 + $0x28] sm:$0xf] %vm488, %v434
  %500 = vst.msk [vmem:[%s3 + $0x2c] sm:$0xf] %vm488, %v435
  %501 = vst.msk [vmem:[%s3 + $0x30] sm:$0xf] %vm488, %v436
  %502 = vst.msk [vmem:[%s3 + $0x34] sm:$0xf] %vm488, %v437
  %503 = vst.msk [vmem:[%s3 + $0x38] sm:$0xf] %vm488, %v438
  %504 = vst.msk [vmem:[%s3 + $0x3c] sm:$0xf] %vm488, %v439
  %505 = vst.msk [vmem:[%s3 + $0x40] sm:$0xf] %vm488, %v440
  %506 = vst.msk [vmem:[%s3 + $0x44] sm:$0xf] %vm488, %v441
  %507 = vst.msk [vmem:[%s3 + $0x48] sm:$0xf] %vm488, %v442
  %508 = vst.msk [vmem:[%s3 + $0x4c] sm:$0xf] %vm488, %v443
  %509 = vst.msk [vmem:[%s3 + $0x50] sm:$0xf] %vm488, %v444
  %510 = vst.msk [vmem:[%s3 + $0x54] sm:$0xf] %vm488, %v445
  %511 = vst.msk [vmem:[%s3 + $0x58] sm:$0xf] %vm488, %v446
  %512 = vst.msk [vmem:[%s3 + $0x5c] sm:$0xf] %vm488, %v447
  %513 = vst.msk [vmem:[%s3 + $0x60] sm:$0xf] %vm488, %v448
  %514 = vst.msk [vmem:[%s3 + $0x64] sm:$0xf] %vm488, %v449
  %515 = vst.msk [vmem:[%s3 + $0x68] sm:$0xf] %vm488, %v450
  %516 = vst.msk [vmem:[%s3 + $0x6c] sm:$0xf] %vm488, %v451
  %517 = vst.msk [vmem:[%s3 + $0x70] sm:$0xf] %vm488, %v452
  %518 = vst.msk [vmem:[%s3 + $0x74] sm:$0xf] %vm488, %v453
  %519 = vst.msk [vmem:[%s3 + $0x78] sm:$0xf] %vm488, %v454
  %520 = vst.msk [vmem:[%s3 + $0x7c] sm:$0xf] %vm488, %v455
  // Predicated region
  $region14: #{mobilenet_perceptual_loss.26} parent=0 // pred_check
    _
  $region15: #{mobilenet_perceptual_loss.26} parent=0 // pred_check_branch
    %522 = sbr.rel (0) target = $region17
  $region16: #{mobilenet_perceptual_loss.26} parent=0 // pred_region
    _
  $region17: #{mobilenet_perceptual_loss.26} parent=0 // pred_fallthru
    _
  // Predicated region
  $region18: #{mobilenet_perceptual_loss.26} parent=0 // pred_check
    _
  $region19: #{mobilenet_perceptual_loss.26} parent=0 // pred_check_branch
    %524 = sbr.rel (0) target = $region21
  $region20: #{mobilenet_perceptual_loss.26} parent=0 // pred_region
    _
  $region21: #{mobilenet_perceptual_loss.26} parent=0 // pred_fallthru
    _

// kernel: mobilenet_perceptual_loss.24
$region0: #{mobilenet_perceptual_loss.24}
  #allocation0 [shape = 'u32[]', space=smem, size = 0x4, offset = 0x4, fixed_abs, tag = 'smem constant byte address 0x4 - core index']
  #allocation1 [shape = 'u32[144,128]{1,0:T(1,128)}', space=vmem, size = 0x12000, scoped, tag = 'internal scratch']
  %s0 = inlined_call_operand.vmem [shape: bf16[256,27], index: 0, kind: input, shape index: {}]
  %s1 = inlined_call_operand.vmem [shape: bf16[27,32], index: 1, kind: input, shape index: {}]
  %s2 = inlined_call_operand.vmem [shape: f32[1,32], index: 2, kind: input, shape index: {}]
  %s3 = inlined_call_operand.vmem [shape: bf16[256,32], index: 3, kind: output, shape index: {}]
  %s4 = sld [smem:[#allocation0]]
  $region22: #{mobilenet_perceptual_loss.24} parent=0
    _
  %s6 = ssub.s32 1, %s4
  %s7 = scalar_select 0, %s6, %s4
  // Predicated region
  $region2: #{mobilenet_perceptual_loss.24} parent=0 // pred_check
    _
  $region3: #{mobilenet_perceptual_loss.24} parent=0 // pred_check_branch
    %9 = sbr.rel (0) target = $region5
  $region4: #{mobilenet_perceptual_loss.24} parent=0 // pred_region
    _
  $region5: #{mobilenet_perceptual_loss.24} parent=0 // pred_fallthru
    _
  // Predicated region
  $region6: #{mobilenet_perceptual_loss.24} parent=0 // pred_check
    _
  $region7: #{mobilenet_perceptual_loss.24} parent=0 // pred_check_branch
    %11 = sbr.rel (0) target = $region9
  $region8: #{mobilenet_perceptual_loss.24} parent=0 // pred_region
    _
  $region9: #{mobilenet_perceptual_loss.24} parent=0 // pred_fallthru
    _
  // Predicated region
  $region10: #{mobilenet_perceptual_loss.24} parent=0 // pred_check
    _
  $region11: #{mobilenet_perceptual_loss.24} parent=0 // pred_check_branch
    %13 = sbr.rel (0) target = $region13
  $region12: #{mobilenet_perceptual_loss.24} parent=0 // pred_region
    _
  $region13: #{mobilenet_perceptual_loss.24} parent=0 // pred_fallthru
    _
  %v15 = vld [vmem:[%s0] sm:$0xf]
  %v16 = vld [vmem:[%s0 + $0x4] sm:$0xf]
  %v17 = vld [vmem:[%s0 + $0x8] sm:$0xf]
  %v18 = vld [vmem:[%s0 + $0xc] sm:$0xf]
  %v19 = vld [vmem:[%s0 + $0x10] sm:$0xf]
  %v20 = vld [vmem:[%s0 + $0x14] sm:$0xf]
  %v21 = vld [vmem:[%s0 + $0x18] sm:$0xf]
  %v22 = vld [vmem:[%s0 + $0x1c] sm:$0xf]
  %v23 = vld [vmem:[%s0 + $0x20] sm:$0xf]
  %v24 = vld [vmem:[%s0 + $0x24] sm:$0xf]
  %v25 = vld [vmem:[%s0 + $0x28] sm:$0xf]
  %v26 = vld [vmem:[%s0 + $0x2c] sm:$0xf]
  %v27 = vld [vmem:[%s0 + $0x30] sm:$0xf]
  %v28 = vld [vmem:[%s0 + $0x34] sm:$0xf]
  %v29 = vld [vmem:[%s0 + $0x38] sm:$0xf]
  %v30 = vld [vmem:[%s0 + $0x3c] sm:$0xf]
  %v31 = vld [vmem:[%s0 + $0x40] sm:$0xf]
  %v32 = vld [vmem:[%s0 + $0x44] sm:$0xf]
  %v33 = vld [vmem:[%s0 + $0x48] sm:$0xf]
  %v34 = vld [vmem:[%s0 + $0x4c] sm:$0xf]
  %v35 = vld [vmem:[%s0 + $0x50] sm:$0xf]
  %v36 = vld [vmem:[%s0 + $0x54] sm:$0xf]
  %v37 = vld [vmem:[%s0 + $0x58] sm:$0xf]
  %v38 = vld [vmem:[%s0 + $0x5c] sm:$0xf]
  %v39 = vld [vmem:[%s0 + $0x60] sm:$0xf]
  %v40 = vld [vmem:[%s0 + $0x64] sm:$0xf]
  %v41 = vld [vmem:[%s0 + $0x68] sm:$0xf]
  %v42 = vld [vmem:[%s0 + $0x6c] sm:$0xf]
  %v43 = vld [vmem:[%s0 + $0x70] sm:$0xf]
  %v44 = vld [vmem:[%s0 + $0x74] sm:$0xf]
  %v45 = vld [vmem:[%s0 + $0x78] sm:$0xf]
  %v46 = vld [vmem:[%s0 + $0x7c] sm:$0xf]
  %v47 = vld [vmem:[%s1] sm:$0xf]
  %v48 = vld [vmem:[%s1 + $0x4] sm:$0xf]
  %v49 = vld [vmem:[%s1 + $0x8] sm:$0xf]
  %v50 = vld [vmem:[%s1 + $0xc] sm:$0x3]
  %v51 = vld [vmem:[%s2] sm:$0x1]
  %v53 = vlaneseq
  %v54 = vshrl.u32 %v53, 7
  %v55 = vsub.s32 0, %v54
  %v56 = vrot.slane %v51, %v55
  %v90 = vunpack.c.l.b16 %v15
  %v91 = vunpack.c.l.b16 %v16
  %v92 = vunpack.c.l.b16 %v17
  %v93 = vunpack.c.l.b16 %v18
  %v94 = vunpack.c.l.b16 %v19
  %v95 = vunpack.c.l.b16 %v20
  %v96 = vunpack.c.l.b16 %v21
  %v97 = vunpack.c.l.b16 %v22
  %v98 = vunpack.c.l.b16 %v23
  %v99 = vunpack.c.l.b16 %v24
  %v100 = vunpack.c.l.b16 %v25
  %v101 = vunpack.c.l.b16 %v26
  %v102 = vunpack.c.l.b16 %v27
  %v103 = vunpack.c.l.b16 %v28
  %v104 = vunpack.c.l.b16 %v29
  %v105 = vunpack.c.l.b16 %v30
  %v106 = vunpack.c.l.b16 %v31
  %v107 = vunpack.c.l.b16 %v32
  %v108 = vunpack.c.l.b16 %v33
  %v109 = vunpack.c.l.b16 %v34
  %v110 = vunpack.c.l.b16 %v35
  %v111 = vunpack.c.l.b16 %v36
  %v112 = vunpack.c.l.b16 %v37
  %v113 = vunpack.c.l.b16 %v38
  %v114 = vunpack.c.l.b16 %v39
  %v115 = vunpack.c.l.b16 %v40
  %v116 = vunpack.c.l.b16 %v41
  %v117 = vunpack.c.l.b16 %v42
  %v118 = vunpack.c.l.b16 %v43
  %v119 = vunpack.c.l.b16 %v44
  %v120 = vunpack.c.l.b16 %v45
  %v121 = vunpack.c.l.b16 %v46
  %v122 = vpack.c.b16 %v91, %v90
  %v123 = vpack.c.b16 %v93, %v92
  %v124 = vpack.c.b16 %v95, %v94
  %v125 = vpack.c.b16 %v97, %v96
  %v126 = vpack.c.b16 %v99, %v98
  %v127 = vpack.c.b16 %v101, %v100
  %v128 = vpack.c.b16 %v103, %v102
  %v129 = vpack.c.b16 %v105, %v104
  %v130 = vpack.c.b16 %v107, %v106
  %v131 = vpack.c.b16 %v109, %v108
  %v132 = vpack.c.b16 %v111, %v110
  %v133 = vpack.c.b16 %v113, %v112
  %v134 = vpack.c.b16 %v115, %v114
  %v135 = vpack.c.b16 %v117, %v116
  %v136 = vpack.c.b16 %v119, %v118
  %v137 = vpack.c.b16 %v121, %v120
  %v142 = vunpack.c.l.b16 %v47
  %v143 = vunpack.c.l.b16 %v48
  %v144 = vunpack.c.l.b16 %v49
  %v145 = vunpack.c.l.b16 %v50
  %v146 = vpack.c.b16 %v143, %v142
  %v147 = vpack.c.b16 %v145, %v144
  %vm149 = vcmask 220160
  %v151 = vsel %vm149, %v122, 0
  %v154 = vsel %vm149, %v123, 0
  %v157 = vsel %vm149, %v124, 0
  %v160 = vsel %vm149, %v125, 0
  %v163 = vsel %vm149, %v126, 0
  %v166 = vsel %vm149, %v127, 0
  %v169 = vsel %vm149, %v128, 0
  %v172 = vsel %vm149, %v129, 0
  %v175 = vsel %vm149, %v130, 0
  %v178 = vsel %vm149, %v131, 0
  %v181 = vsel %vm149, %v132, 0
  %v184 = vsel %vm149, %v133, 0
  %v187 = vsel %vm149, %v134, 0
  %v190 = vsel %vm149, %v135, 0
  %v193 = vsel %vm149, %v136, 0
  %v196 = vsel %vm149, %v137, 0
  %vm198 = vcmask 1044480
  %vm199 = vcmask 1045504
  %v200 = vsel %vm198, 4294967295, 65535
  %v201 = vsel %vm199, %v200, 0
  %v203 = vand.u32 %v147, %v201
  %205 = vmatprep.subr.bf16.mxu0 0
  %206 = vmatpush1.bf16.msra.mxu0 0
  %207 = vmatprep.subr.bf16.mxu0 0
  %208 = vmatpush1.bf16.msra.mxu0 0
  %209 = vmatprep.subr.bf16.mxu0 0
  %210 = vmatpush1.bf16.msra.mxu0 0
  %211 = vmatprep.subr.bf16.mxu0 0
  %212 = vmatpush1.bf16.msra.mxu0 0
  %213 = vmatprep.subr.bf16.mxu0 0
  %214 = vmatpush1.bf16.msra.mxu0 0
  %215 = vmatprep.subr.bf16.mxu0 0
  %216 = vmatpush1.bf16.msra.mxu0 0
  %217 = vmatprep.subr.bf16.mxu0 0
  %218 = vmatpush1.bf16.msra.mxu0 %v203
  %219 = vmatprep.subr.bf16.mxu0 0
  %220 = vmatpush1.bf16.msra.mxu0 %v146
  %221 = vmatprep.subr.bf16.mxu0 0
  %222 = vmatpush2.bf16.msra.mxu0 0
  %223 = vmatprep.subr.bf16.mxu0 0
  %224 = vmatpush2.bf16.msra.mxu0 0
  %225 = vmatprep.subr.bf16.mxu0 0
  %226 = vmatpush2.bf16.msra.mxu0 0
  %227 = vmatprep.subr.bf16.mxu0 0
  %228 = vmatpush2.bf16.msra.mxu0 0
  %229 = vmatprep.subr.bf16.mxu0 0
  %230 = vmatpush2.bf16.msra.mxu0 0
  %231 = vmatprep.subr.bf16.mxu0 0
  %232 = vmatpush2.bf16.msra.mxu0 0
  %233 = vmatprep.subr.bf16.mxu0 0
  %234 = vmatpush2.bf16.msra.mxu0 0
  %235 = vmatprep.subr.bf16.mxu0 0
  %236 = vmatpush2.bf16.msra.mxu0 0
  %237 = vmatprep.mubr.bf16.mxu0 0
  %238 = vmatmul.mubr.bf16.gmra.mxu0 %v151
  %v239 = vpop.f32.mrf.mxu0
  %v240 = vadd.f32 %v56, %v239
  %v241 = vpop.f32.mrf.mxu0
  %v242 = vpop.f32.mrf.mxu0
  %v243 = vadd.f32 %v56, %v242
  %v244 = vpop.f32.mrf.mxu0
  %245 = vmatprep.mubr.bf16.mxu0 0
  %246 = vmatmul.mubr.bf16.gmra.mxu0 %v154
  %v247 = vpop.f32.mrf.mxu0
  %v248 = vadd.f32 %v56, %v247
  %v249 = vpop.f32.mrf.mxu0
  %v250 = vpop.f32.mrf.mxu0
  %v251 = vadd.f32 %v56, %v250
  %v252 = vpop.f32.mrf.mxu0
  %253 = vmatprep.mubr.bf16.mxu0 0
  %254 = vmatmul.mubr.bf16.gmra.mxu0 %v157
  %v255 = vpop.f32.mrf.mxu0
  %v256 = vadd.f32 %v56, %v255
  %v257 = vpop.f32.mrf.mxu0
  %v258 = vpop.f32.mrf.mxu0
  %v259 = vadd.f32 %v56, %v258
  %v260 = vpop.f32.mrf.mxu0
  %261 = vmatprep.mubr.bf16.mxu0 0
  %262 = vmatmul.mubr.bf16.gmra.mxu0 %v160
  %v263 = vpop.f32.mrf.mxu0
  %v264 = vadd.f32 %v56, %v263
  %v265 = vpop.f32.mrf.mxu0
  %v266 = vpop.f32.mrf.mxu0
  %v267 = vadd.f32 %v56, %v266
  %v268 = vpop.f32.mrf.mxu0
  %269 = vmatprep.mubr.bf16.mxu0 0
  %270 = vmatmul.mubr.bf16.gmra.mxu0 %v163
  %v271 = vpop.f32.mrf.mxu0
  %v272 = vadd.f32 %v56, %v271
  %v273 = vpop.f32.mrf.mxu0
  %v274 = vpop.f32.mrf.mxu0
  %v275 = vadd.f32 %v56, %v274
  %v276 = vpop.f32.mrf.mxu0
  %277 = vmatprep.mubr.bf16.mxu0 0
  %278 = vmatmul.mubr.bf16.gmra.mxu0 %v166
  %v279 = vpop.f32.mrf.mxu0
  %v280 = vadd.f32 %v56, %v279
  %v281 = vpop.f32.mrf.mxu0
  %v282 = vpop.f32.mrf.mxu0
  %v283 = vadd.f32 %v56, %v282
  %v284 = vpop.f32.mrf.mxu0
  %285 = vmatprep.mubr.bf16.mxu0 0
  %286 = vmatmul.mubr.bf16.gmra.mxu0 %v169
  %v287 = vpop.f32.mrf.mxu0
  %v288 = vadd.f32 %v56, %v287
  %v289 = vpop.f32.mrf.mxu0
  %v290 = vpop.f32.mrf.mxu0
  %v291 = vadd.f32 %v56, %v290
  %v292 = vpop.f32.mrf.mxu0
  %293 = vmatprep.mubr.bf16.mxu0 0
  %294 = vmatmul.mubr.bf16.gmra.mxu0 %v172
  %v295 = vpop.f32.mrf.mxu0
  %v296 = vadd.f32 %v56, %v295
  %v297 = vpop.f32.mrf.mxu0
  %v298 = vpop.f32.mrf.mxu0
  %v299 = vadd.f32 %v56, %v298
  %v300 = vpop.f32.mrf.mxu0
  %301 = vmatprep.mubr.bf16.mxu0 0
  %302 = vmatmul.mubr.bf16.gmra.mxu0 %v175
  %v303 = vpop.f32.mrf.mxu0
  %v304 = vadd.f32 %v56, %v303
  %v305 = vpop.f32.mrf.mxu0
  %v306 = vpop.f32.mrf.mxu0
  %v307 = vadd.f32 %v56, %v306
  %v308 = vpop.f32.mrf.mxu0
  %309 = vmatprep.mubr.bf16.mxu0 0
  %310 = vmatmul.mubr.bf16.gmra.mxu0 %v178
  %v311 = vpop.f32.mrf.mxu0
  %v312 = vadd.f32 %v56, %v311
  %v313 = vpop.f32.mrf.mxu0
  %v314 = vpop.f32.mrf.mxu0
  %v315 = vadd.f32 %v56, %v314
  %v316 = vpop.f32.mrf.mxu0
  %317 = vmatprep.mubr.bf16.mxu0 0
  %318 = vmatmul.mubr.bf16.gmra.mxu0 %v181
  %v319 = vpop.f32.mrf.mxu0
  %v320 = vadd.f32 %v56, %v319
  %v321 = vpop.f32.mrf.mxu0
  %v322 = vpop.f32.mrf.mxu0
  %v323 = vadd.f32 %v56, %v322
  %v324 = vpop.f32.mrf.mxu0
  %325 = vmatprep.mubr.bf16.mxu0 0
  %326 = vmatmul.mubr.bf16.gmra.mxu0 %v184
  %v327 = vpop.f32.mrf.mxu0
  %v328 = vadd.f32 %v56, %v327
  %v329 = vpop.f32.mrf.mxu0
  %v330 = vpop.f32.mrf.mxu0
  %v331 = vadd.f32 %v56, %v330
  %v332 = vpop.f32.mrf.mxu0
  %333 = vmatprep.mubr.bf16.mxu0 0
  %334 = vmatmul.mubr.bf16.gmra.mxu0 %v187
  %v335 = vpop.f32.mrf.mxu0
  %v336 = vadd.f32 %v56, %v335
  %v337 = vpop.f32.mrf.mxu0
  %v338 = vpop.f32.mrf.mxu0
  %v339 = vadd.f32 %v56, %v338
  %v340 = vpop.f32.mrf.mxu0
  %341 = vmatprep.mubr.bf16.mxu0 0
  %342 = vmatmul.mubr.bf16.gmra.mxu0 %v190
  %v343 = vpop.f32.mrf.mxu0
  %v344 = vadd.f32 %v56, %v343
  %v345 = vpop.f32.mrf.mxu0
  %v346 = vpop.f32.mrf.mxu0
  %v347 = vadd.f32 %v56, %v346
  %v348 = vpop.f32.mrf.mxu0
  %349 = vmatprep.mubr.bf16.mxu0 0
  %350 = vmatmul.mubr.bf16.gmra.mxu0 %v193
  %v351 = vpop.f32.mrf.mxu0
  %v352 = vadd.f32 %v56, %v351
  %v353 = vpop.f32.mrf.mxu0
  %v354 = vpop.f32.mrf.mxu0
  %v355 = vadd.f32 %v56, %v354
  %v356 = vpop.f32.mrf.mxu0
  %357 = vmatprep.mubr.bf16.mxu0 0
  %358 = vmatmul.mubr.bf16.gmra.mxu0 %v196
  %v359 = vpop.f32.mrf.mxu0
  %v360 = vadd.f32 %v56, %v359
  %v361 = vpop.f32.mrf.mxu0
  %v362 = vpop.f32.mrf.mxu0
  %v363 = vadd.f32 %v56, %v362
  %v364 = vpop.f32.mrf.mxu0
  %365 = vdwg.mxu0
  %v366 = vmax.f32 %v240, 0.0
  %v367 = vmax.f32 %v243, 0.0
  %v368 = vmax.f32 %v248, 0.0
  %v369 = vmax.f32 %v251, 0.0
  %v370 = vmax.f32 %v256, 0.0
  %v371 = vmax.f32 %v259, 0.0
  %v372 = vmax.f32 %v264, 0.0
  %v373 = vmax.f32 %v267, 0.0
  %v374 = vmax.f32 %v272, 0.0
  %v375 = vmax.f32 %v275, 0.0
  %v376 = vmax.f32 %v280, 0.0
  %v377 = vmax.f32 %v283, 0.0
  %v378 = vmax.f32 %v288, 0.0
  %v379 = vmax.f32 %v291, 0.0
  %v380 = vmax.f32 %v296, 0.0
  %v381 = vmax.f32 %v299, 0.0
  %v382 = vmax.f32 %v304, 0.0
  %v383 = vmax.f32 %v307, 0.0
  %v384 = vmax.f32 %v312, 0.0
  %v385 = vmax.f32 %v315, 0.0
  %v386 = vmax.f32 %v320, 0.0
  %v387 = vmax.f32 %v323, 0.0
  %v388 = vmax.f32 %v328, 0.0
  %v389 = vmax.f32 %v331, 0.0
  %v390 = vmax.f32 %v336, 0.0
  %v391 = vmax.f32 %v339, 0.0
  %v392 = vmax.f32 %v344, 0.0
  %v393 = vmax.f32 %v347, 0.0
  %v394 = vmax.f32 %v352, 0.0
  %v395 = vmax.f32 %v355, 0.0
  %v396 = vmax.f32 %v360, 0.0
  %v397 = vmax.f32 %v363, 0.0
  %v398 = vmin.f32 %v366, 6.0
  %v399 = vmin.f32 %v367, 6.0
  %v400 = vmin.f32 %v368, 6.0
  %v401 = vmin.f32 %v369, 6.0
  %v402 = vmin.f32 %v370, 6.0
  %v403 = vmin.f32 %v371, 6.0
  %v404 = vmin.f32 %v372, 6.0
  %v405 = vmin.f32 %v373, 6.0
  %v406 = vmin.f32 %v374, 6.0
  %v407 = vmin.f32 %v375, 6.0
  %v408 = vmin.f32 %v376, 6.0
  %v409 = vmin.f32 %v377, 6.0
  %v410 = vmin.f32 %v378, 6.0
  %v411 = vmin.f32 %v379, 6.0
  %v412 = vmin.f32 %v380, 6.0
  %v413 = vmin.f32 %v381, 6.0
  %v414 = vmin.f32 %v382, 6.0
  %v415 = vmin.f32 %v383, 6.0
  %v416 = vmin.f32 %v384, 6.0
  %v417 = vmin.f32 %v385, 6.0
  %v418 = vmin.f32 %v386, 6.0
  %v419 = vmin.f32 %v387, 6.0
  %v420 = vmin.f32 %v388, 6.0
  %v421 = vmin.f32 %v389, 6.0
  %v422 = vmin.f32 %v390, 6.0
  %v423 = vmin.f32 %v391, 6.0
  %v424 = vmin.f32 %v392, 6.0
  %v425 = vmin.f32 %v393, 6.0
  %v426 = vmin.f32 %v394, 6.0
  %v427 = vmin.f32 %v395, 6.0
  %v428 = vmin.f32 %v396, 6.0
  %v429 = vmin.f32 %v397, 6.0
  %v430 = vpack.c.bf16 %v399, %v398
  %v431 = vpack.c.bf16 %v401, %v400
  %v432 = vpack.c.bf16 %v403, %v402
  %v433 = vpack.c.bf16 %v405, %v404
  %v434 = vpack.c.bf16 %v407, %v406
  %v435 = vpack.c.bf16 %v409, %v408
  %v436 = vpack.c.bf16 %v411, %v410
  %v437 = vpack.c.bf16 %v413, %v412
  %v438 = vpack.c.bf16 %v415, %v414
  %v439 = vpack.c.bf16 %v417, %v416
  %v440 = vpack.c.bf16 %v419, %v418
  %v441 = vpack.c.bf16 %v421, %v420
  %v442 = vpack.c.bf16 %v423, %v422
  %v443 = vpack.c.bf16 %v425, %v424
  %v444 = vpack.c.bf16 %v427, %v426
  %v445 = vpack.c.bf16 %v429, %v428
  %v462 = vunpack.c.l.b16 %v430
  %v463 = vunpack.c.h.b16 %v430
  %v464 = vunpack.c.l.b16 %v431
  %v465 = vunpack.c.h.b16 %v431
  %v466 = vunpack.c.l.b16 %v432
  %v467 = vunpack.c.h.b16 %v432
  %v468 = vunpack.c.l.b16 %v433
  %v469 = vunpack.c.h.b16 %v433
  %v470 = vunpack.c.l.b16 %v434
  %v471 = vunpack.c.h.b16 %v434
  %v472 = vunpack.c.l.b16 %v435
  %v473 = vunpack.c.h.b16 %v435
  %v474 = vunpack.c.l.b16 %v436
  %v475 = vunpack.c.h.b16 %v436
  %v476 = vunpack.c.l.b16 %v437
  %v477 = vunpack.c.h.b16 %v437
  %v478 = vunpack.c.l.b16 %v438
  %v479 = vunpack.c.h.b16 %v438
  %v480 = vunpack.c.l.b16 %v439
  %v481 = vunpack.c.h.b16 %v439
  %v482 = vunpack.c.l.b16 %v440
  %v483 = vunpack.c.h.b16 %v440
  %v484 = vunpack.c.l.b16 %v441
  %v485 = vunpack.c.h.b16 %v441
  %v486 = vunpack.c.l.b16 %v442
  %v487 = vunpack.c.h.b16 %v442
  %v488 = vunpack.c.l.b16 %v443
  %v489 = vunpack.c.h.b16 %v443
  %v490 = vunpack.c.l.b16 %v444
  %v491 = vunpack.c.h.b16 %v444
  %v492 = vunpack.c.l.b16 %v445
  %v493 = vunpack.c.h.b16 %v445
  %v494 = vpack.c.b16 %v462, %v462
  %v495 = vpack.c.b16 %v463, %v463
  %v496 = vpack.c.b16 %v464, %v464
  %v497 = vpack.c.b16 %v465, %v465
  %v498 = vpack.c.b16 %v466, %v466
  %v499 = vpack.c.b16 %v467, %v467
  %v500 = vpack.c.b16 %v468, %v468
  %v501 = vpack.c.b16 %v469, %v469
  %v502 = vpack.c.b16 %v470, %v470
  %v503 = vpack.c.b16 %v471, %v471
  %v504 = vpack.c.b16 %v472, %v472
  %v505 = vpack.c.b16 %v473, %v473
  %v506 = vpack.c.b16 %v474, %v474
  %v507 = vpack.c.b16 %v475, %v475
  %v508 = vpack.c.b16 %v476, %v476
  %v509 = vpack.c.b16 %v477, %v477
  %v510 = vpack.c.b16 %v478, %v478
  %v511 = vpack.c.b16 %v479, %v479
  %v512 = vpack.c.b16 %v480, %v480
  %v513 = vpack.c.b16 %v481, %v481
  %v514 = vpack.c.b16 %v482, %v482
  %v515 = vpack.c.b16 %v483, %v483
  %v516 = vpack.c.b16 %v484, %v484
  %v517 = vpack.c.b16 %v485, %v485
  %v518 = vpack.c.b16 %v486, %v486
  %v519 = vpack.c.b16 %v487, %v487
  %v520 = vpack.c.b16 %v488, %v488
  %v521 = vpack.c.b16 %v489, %v489
  %v522 = vpack.c.b16 %v490, %v490
  %v523 = vpack.c.b16 %v491, %v491
  %v524 = vpack.c.b16 %v492, %v492
  %v525 = vpack.c.b16 %v493, %v493
  %vm558 = vcmask 257024
  %559 = vst.msk [vmem:[%s3] sm:$0xf] %vm558, %v494
  %560 = vst.msk [vmem:[%s3 + $0x4] sm:$0xf] %vm558, %v495
  %561 = vst.msk [vmem:[%s3 + $0x8] sm:$0xf] %vm558, %v496
  %562 = vst.msk [vmem:[%s3 + $0xc] sm:$0xf] %vm558, %v497
  %563 = vst.msk [vmem:[%s3 + $0x10] sm:$0xf] %vm558, %v498
  %564 = vst.msk [vmem:[%s3 + $0x14] sm:$0xf] %vm558, %v499
  %565 = vst.msk [vmem:[%s3 + $0x18] sm:$0xf] %vm558, %v500
  %566 = vst.msk [vmem:[%s3 + $0x1c] sm:$0xf] %vm558, %v501
  %567 = vst.msk [vmem:[%s3 + $0x20] sm:$0xf] %vm558, %v502
  %568 = vst.msk [vmem:[%s3 + $0x24] sm:$0xf] %vm558, %v503
  %569 = vst.msk [vmem:[%s3 + $0x28] sm:$0xf] %vm558, %v504
  %570 = vst.msk [vmem:[%s3 + $0x2c] sm:$0xf] %vm558, %v505
  %571 = vst.msk [vmem:[%s3 + $0x30] sm:$0xf] %vm558, %v506
  %572 = vst.msk [vmem:[%s3 + $0x34] sm:$0xf] %vm558, %v507
  %573 = vst.msk [vmem:[%s3 + $0x38] sm:$0xf] %vm558, %v508
  %574 = vst.msk [vmem:[%s3 + $0x3c] sm:$0xf] %vm558, %v509
  %575 = vst.msk [vmem:[%s3 + $0x40] sm:$0xf] %vm558, %v510
  %576 = vst.msk [vmem:[%s3 + $0x44] sm:$0xf] %vm558, %v511
  %577 = vst.msk [vmem:[%s3 + $0x48] sm:$0xf] %vm558, %v512
  %578 = vst.msk [vmem:[%s3 + $0x4c] sm:$0xf] %vm558, %v513
  %579 = vst.msk [vmem:[%s3 + $0x50] sm:$0xf] %vm558, %v514
  %580 = vst.msk [vmem:[%s3 + $0x54] sm:$0xf] %vm558, %v515
  %581 = vst.msk [vmem:[%s3 + $0x58] sm:$0xf] %vm558, %v516
  %582 = vst.msk [vmem:[%s3 + $0x5c] sm:$0xf] %vm558, %v517
  %583 = vst.msk [vmem:[%s3 + $0x60] sm:$0xf] %vm558, %v518
  %584 = vst.msk [vmem:[%s3 + $0x64] sm:$0xf] %vm558, %v519
  %585 = vst.msk [vmem:[%s3 + $0x68] sm:$0xf] %vm558, %v520
  %586 = vst.msk [vmem:[%s3 + $0x6c] sm:$0xf] %vm558, %v521
  %587 = vst.msk [vmem:[%s3 + $0x70] sm:$0xf] %vm558, %v522
  %588 = vst.msk [vmem:[%s3 + $0x74] sm:$0xf] %vm558, %v523
  %589 = vst.msk [vmem:[%s3 + $0x78] sm:$0xf] %vm558, %v524
  %590 = vst.msk [vmem:[%s3 + $0x7c] sm:$0xf] %vm558, %v525
  // Predicated region
  $region14: #{mobilenet_perceptual_loss.24} parent=0 // pred_check
    _
  $region15: #{mobilenet_perceptual_loss.24} parent=0 // pred_check_branch
    %592 = sbr.rel (0) target = $region17
  $region16: #{mobilenet_perceptual_loss.24} parent=0 // pred_region
    _
  $region17: #{mobilenet_perceptual_loss.24} parent=0 // pred_fallthru
    _
  // Predicated region
  $region18: #{mobilenet_perceptual_loss.24} parent=0 // pred_check
    _
  $region19: #{mobilenet_perceptual_loss.24} parent=0 // pred_check_branch
    %594 = sbr.rel (0) target = $region21
  $region20: #{mobilenet_perceptual_loss.24} parent=0 // pred_region
    _
  $region21: #{mobilenet_perceptual_loss.24} parent=0 // pred_fallthru
    _

// kernel: mobilenet_perceptual_loss.27
$region0: #{mobilenet_perceptual_loss.27}
  #allocation0 [shape = 'u32[]', space=smem, size = 0x4, offset = 0x4, fixed_abs, tag = 'smem constant byte address 0x4 - core index']
  #allocation1 [shape = 'u32[144,128]{1,0:T(1,128)}', space=vmem, size = 0x12000, scoped, tag = 'internal scratch']
  %s0 = inlined_call_operand.vmem [shape: bf16[256,16], index: 0, kind: input, shape index: {}]
  %s1 = inlined_call_operand.vmem [shape: bf16[16,96], index: 1, kind: input, shape index: {}]
  %s2 = inlined_call_operand.vmem [shape: f32[1,96], index: 2, kind: input, shape index: {}]
  %s3 = inlined_call_operand.vmem [shape: bf16[256,96], index: 3, kind: output, shape index: {}]
  %s4 = sld [smem:[#allocation0]]
  $region22: #{mobilenet_perceptual_loss.27} parent=0
    _
  %s6 = ssub.s32 1, %s4
  %s7 = scalar_select 0, %s6, %s4
  // Predicated region
  $region2: #{mobilenet_perceptual_loss.27} parent=0 // pred_check
    _
  $region3: #{mobilenet_perceptual_loss.27} parent=0 // pred_check_branch
    %9 = sbr.rel (0) target = $region5
  $region4: #{mobilenet_perceptual_loss.27} parent=0 // pred_region
    _
  $region5: #{mobilenet_perceptual_loss.27} parent=0 // pred_fallthru
    _
  // Predicated region
  $region6: #{mobilenet_perceptual_loss.27} parent=0 // pred_check
    _
  $region7: #{mobilenet_perceptual_loss.27} parent=0 // pred_check_branch
    %11 = sbr.rel (0) target = $region9
  $region8: #{mobilenet_perceptual_loss.27} parent=0 // pred_region
    _
  $region9: #{mobilenet_perceptual_loss.27} parent=0 // pred_fallthru
    _
  // Predicated region
  $region10: #{mobilenet_perceptual_loss.27} parent=0 // pred_check
    _
  $region11: #{mobilenet_perceptual_loss.27} parent=0 // pred_check_branch
    %13 = sbr.rel (0) target = $region13
  $region12: #{mobilenet_perceptual_loss.27} parent=0 // pred_region
    _
  $region13: #{mobilenet_perceptual_loss.27} parent=0 // pred_fallthru
    _
  %v15 = vld [vmem:[%s0] sm:$0xf]
  %v16 = vld [vmem:[%s0 + $0x4] sm:$0xf]
  %v17 = vld [vmem:[%s0 + $0x8] sm:$0xf]
  %v18 = vld [vmem:[%s0 + $0xc] sm:$0xf]
  %v19 = vld [vmem:[%s0 + $0x10] sm:$0xf]
  %v20 = vld [vmem:[%s0 + $0x14] sm:$0xf]
  %v21 = vld [vmem:[%s0 + $0x18] sm:$0xf]
  %v22 = vld [vmem:[%s0 + $0x1c] sm:$0xf]
  %v23 = vld [vmem:[%s0 + $0x20] sm:$0xf]
  %v24 = vld [vmem:[%s0 + $0x24] sm:$0xf]
  %v25 = vld [vmem:[%s0 + $0x28] sm:$0xf]
  %v26 = vld [vmem:[%s0 + $0x2c] sm:$0xf]
  %v27 = vld [vmem:[%s0 + $0x30] sm:$0xf]
  %v28 = vld [vmem:[%s0 + $0x34] sm:$0xf]
  %v29 = vld [vmem:[%s0 + $0x38] sm:$0xf]
  %v30 = vld [vmem:[%s0 + $0x3c] sm:$0xf]
  %v31 = vld [vmem:[%s0 + $0x40] sm:$0xf]
  %v32 = vld [vmem:[%s0 + $0x44] sm:$0xf]
  %v33 = vld [vmem:[%s0 + $0x48] sm:$0xf]
  %v34 = vld [vmem:[%s0 + $0x4c] sm:$0xf]
  %v35 = vld [vmem:[%s0 + $0x50] sm:$0xf]
  %v36 = vld [vmem:[%s0 + $0x54] sm:$0xf]
  %v37 = vld [vmem:[%s0 + $0x58] sm:$0xf]
  %v38 = vld [vmem:[%s0 + $0x5c] sm:$0xf]
  %v39 = vld [vmem:[%s0 + $0x60] sm:$0xf]
  %v40 = vld [vmem:[%s0 + $0x64] sm:$0xf]
  %v41 = vld [vmem:[%s0 + $0x68] sm:$0xf]
  %v42 = vld [vmem:[%s0 + $0x6c] sm:$0xf]
  %v43 = vld [vmem:[%s0 + $0x70] sm:$0xf]
  %v44 = vld [vmem:[%s0 + $0x74] sm:$0xf]
  %v45 = vld [vmem:[%s0 + $0x78] sm:$0xf]
  %v46 = vld [vmem:[%s0 + $0x7c] sm:$0xf]
  %v47 = vld [vmem:[%s1] sm:$0xf]
  %v48 = vld [vmem:[%s1 + $0x4] sm:$0xf]
  %v49 = vld [vmem:[%s2] sm:$0x1]
  %v51 = vlaneseq
  %v52 = vshrl.u32 %v51, 7
  %v53 = vsub.s32 0, %v52
  %v54 = vrot.slane %v49, %v53
  %v88 = vunpack.c.l.b16 %v15
  %v89 = vunpack.c.l.b16 %v16
  %v90 = vunpack.c.l.b16 %v17
  %v91 = vunpack.c.l.b16 %v18
  %v92 = vunpack.c.l.b16 %v19
  %v93 = vunpack.c.l.b16 %v20
  %v94 = vunpack.c.l.b16 %v21
  %v95 = vunpack.c.l.b16 %v22
  %v96 = vunpack.c.l.b16 %v23
  %v97 = vunpack.c.l.b16 %v24
  %v98 = vunpack.c.l.b16 %v25
  %v99 = vunpack.c.l.b16 %v26
  %v100 = vunpack.c.l.b16 %v27
  %v101 = vunpack.c.l.b16 %v28
  %v102 = vunpack.c.l.b16 %v29
  %v103 = vunpack.c.l.b16 %v30
  %v104 = vunpack.c.l.b16 %v31
  %v105 = vunpack.c.l.b16 %v32
  %v106 = vunpack.c.l.b16 %v33
  %v107 = vunpack.c.l.b16 %v34
  %v108 = vunpack.c.l.b16 %v35
  %v109 = vunpack.c.l.b16 %v36
  %v110 = vunpack.c.l.b16 %v37
  %v111 = vunpack.c.l.b16 %v38
  %v112 = vunpack.c.l.b16 %v39
  %v113 = vunpack.c.l.b16 %v40
  %v114 = vunpack.c.l.b16 %v41
  %v115 = vunpack.c.l.b16 %v42
  %v116 = vunpack.c.l.b16 %v43
  %v117 = vunpack.c.l.b16 %v44
  %v118 = vunpack.c.l.b16 %v45
  %v119 = vunpack.c.l.b16 %v46
  %v120 = vpack.c.b16 %v89, %v88
  %v121 = vpack.c.b16 %v91, %v90
  %v122 = vpack.c.b16 %v93, %v92
  %v123 = vpack.c.b16 %v95, %v94
  %v124 = vpack.c.b16 %v97, %v96
  %v125 = vpack.c.b16 %v99, %v98
  %v126 = vpack.c.b16 %v101, %v100
  %v127 = vpack.c.b16 %v103, %v102
  %v128 = vpack.c.b16 %v105, %v104
  %v129 = vpack.c.b16 %v107, %v106
  %v130 = vpack.c.b16 %v109, %v108
  %v131 = vpack.c.b16 %v111, %v110
  %v132 = vpack.c.b16 %v113, %v112
  %v133 = vpack.c.b16 %v115, %v114
  %v134 = vpack.c.b16 %v117, %v116
  %v135 = vpack.c.b16 %v119, %v118
  %v138 = vunpack.c.l.b16 %v47
  %v139 = vunpack.c.l.b16 %v48
  %v140 = vpack.c.b16 %v139, %v138
  %vm142 = vcmask 130048
  %v144 = vsel %vm142, %v120, 0
  %v147 = vsel %vm142, %v121, 0
  %v150 = vsel %vm142, %v122, 0
  %v153 = vsel %vm142, %v123, 0
  %v156 = vsel %vm142, %v124, 0
  %v159 = vsel %vm142, %v125, 0
  %v162 = vsel %vm142, %v126, 0
  %v165 = vsel %vm142, %v127, 0
  %v168 = vsel %vm142, %v128, 0
  %v171 = vsel %vm142, %v129, 0
  %v174 = vsel %vm142, %v130, 0
  %v177 = vsel %vm142, %v131, 0
  %v180 = vsel %vm142, %v132, 0
  %v183 = vsel %vm142, %v133, 0
  %v186 = vsel %vm142, %v134, 0
  %v189 = vsel %vm142, %v135, 0
  %191 = vmatprep.subr.bf16.mxu0 0
  %192 = vmatpush1.bf16.msra.mxu0 0
  %193 = vmatprep.subr.bf16.mxu0 0
  %194 = vmatpush1.bf16.msra.mxu0 0
  %195 = vmatprep.subr.bf16.mxu0 0
  %196 = vmatpush1.bf16.msra.mxu0 0
  %197 = vmatprep.subr.bf16.mxu0 0
  %198 = vmatpush1.bf16.msra.mxu0 0
  %199 = vmatprep.subr.bf16.mxu0 0
  %200 = vmatpush1.bf16.msra.mxu0 0
  %201 = vmatprep.subr.bf16.mxu0 0
  %202 = vmatpush1.bf16.msra.mxu0 0
  %203 = vmatprep.subr.bf16.mxu0 0
  %204 = vmatpush1.bf16.msra.mxu0 0
  %205 = vmatprep.subr.bf16.mxu0 0
  %206 = vmatpush1.bf16.msra.mxu0 %v140
  %207 = vmatprep.subr.bf16.mxu0 0
  %208 = vmatpush2.bf16.msra.mxu0 0
  %209 = vmatprep.subr.bf16.mxu0 0
  %210 = vmatpush2.bf16.msra.mxu0 0
  %211 = vmatprep.subr.bf16.mxu0 0
  %212 = vmatpush2.bf16.msra.mxu0 0
  %213 = vmatprep.subr.bf16.mxu0 0
  %214 = vmatpush2.bf16.msra.mxu0 0
  %215 = vmatprep.subr.bf16.mxu0 0
  %216 = vmatpush2.bf16.msra.mxu0 0
  %217 = vmatprep.subr.bf16.mxu0 0
  %218 = vmatpush2.bf16.msra.mxu0 0
  %219 = vmatprep.subr.bf16.mxu0 0
  %220 = vmatpush2.bf16.msra.mxu0 0
  %221 = vmatprep.subr.bf16.mxu0 0
  %222 = vmatpush2.bf16.msra.mxu0 0
  %223 = vmatprep.mubr.bf16.mxu0 0
  %224 = vmatmul.mubr.bf16.gmra.mxu0 %v144
  %v225 = vpop.f32.mrf.mxu0
  %v226 = vadd.f32 %v54, %v225
  %v227 = vpop.f32.mrf.mxu0
  %v228 = vpop.f32.mrf.mxu0
  %v229 = vadd.f32 %v54, %v228
  %v230 = vpop.f32.mrf.mxu0
  %231 = vmatprep.mubr.bf16.mxu0 0
  %232 = vmatmul.mubr.bf16.gmra.mxu0 %v147
  %v233 = vpop.f32.mrf.mxu0
  %v234 = vadd.f32 %v54, %v233
  %v235 = vpop.f32.mrf.mxu0
  %v236 = vpop.f32.mrf.mxu0
  %v237 = vadd.f32 %v54, %v236
  %v238 = vpop.f32.mrf.mxu0
  %239 = vmatprep.mubr.bf16.mxu0 0
  %240 = vmatmul.mubr.bf16.gmra.mxu0 %v150
  %v241 = vpop.f32.mrf.mxu0
  %v242 = vadd.f32 %v54, %v241
  %v243 = vpop.f32.mrf.mxu0
  %v244 = vpop.f32.mrf.mxu0
  %v245 = vadd.f32 %v54, %v244
  %v246 = vpop.f32.mrf.mxu0
  %247 = vmatprep.mubr.bf16.mxu0 0
  %248 = vmatmul.mubr.bf16.gmra.mxu0 %v153
  %v249 = vpop.f32.mrf.mxu0
  %v250 = vadd.f32 %v54, %v249
  %v251 = vpop.f32.mrf.mxu0
  %v252 = vpop.f32.mrf.mxu0
  %v253 = vadd.f32 %v54, %v252
  %v254 = vpop.f32.mrf.mxu0
  %255 = vmatprep.mubr.bf16.mxu0 0
  %256 = vmatmul.mubr.bf16.gmra.mxu0 %v156
  %v257 = vpop.f32.mrf.mxu0
  %v258 = vadd.f32 %v54, %v257
  %v259 = vpop.f32.mrf.mxu0
  %v260 = vpop.f32.mrf.mxu0
  %v261 = vadd.f32 %v54, %v260
  %v262 = vpop.f32.mrf.mxu0
  %263 = vmatprep.mubr.bf16.mxu0 0
  %264 = vmatmul.mubr.bf16.gmra.mxu0 %v159
  %v265 = vpop.f32.mrf.mxu0
  %v266 = vadd.f32 %v54, %v265
  %v267 = vpop.f32.mrf.mxu0
  %v268 = vpop.f32.mrf.mxu0
  %v269 = vadd.f32 %v54, %v268
  %v270 = vpop.f32.mrf.mxu0
  %271 = vmatprep.mubr.bf16.mxu0 0
  %272 = vmatmul.mubr.bf16.gmra.mxu0 %v162
  %v273 = vpop.f32.mrf.mxu0
  %v274 = vadd.f32 %v54, %v273
  %v275 = vpop.f32.mrf.mxu0
  %v276 = vpop.f32.mrf.mxu0
  %v277 = vadd.f32 %v54, %v276
  %v278 = vpop.f32.mrf.mxu0
  %279 = vmatprep.mubr.bf16.mxu0 0
  %280 = vmatmul.mubr.bf16.gmra.mxu0 %v165
  %v281 = vpop.f32.mrf.mxu0
  %v282 = vadd.f32 %v54, %v281
  %v283 = vpop.f32.mrf.mxu0
  %v284 = vpop.f32.mrf.mxu0
  %v285 = vadd.f32 %v54, %v284
  %v286 = vpop.f32.mrf.mxu0
  %287 = vmatprep.mubr.bf16.mxu0 0
  %288 = vmatmul.mubr.bf16.gmra.mxu0 %v168
  %v289 = vpop.f32.mrf.mxu0
  %v290 = vadd.f32 %v54, %v289
  %v291 = vpop.f32.mrf.mxu0
  %v292 = vpop.f32.mrf.mxu0
  %v293 = vadd.f32 %v54, %v292
  %v294 = vpop.f32.mrf.mxu0
  %295 = vmatprep.mubr.bf16.mxu0 0
  %296 = vmatmul.mubr.bf16.gmra.mxu0 %v171
  %v297 = vpop.f32.mrf.mxu0
  %v298 = vadd.f32 %v54, %v297
  %v299 = vpop.f32.mrf.mxu0
  %v300 = vpop.f32.mrf.mxu0
  %v301 = vadd.f32 %v54, %v300
  %v302 = vpop.f32.mrf.mxu0
  %303 = vmatprep.mubr.bf16.mxu0 0
  %304 = vmatmul.mubr.bf16.gmra.mxu0 %v174
  %v305 = vpop.f32.mrf.mxu0
  %v306 = vadd.f32 %v54, %v305
  %v307 = vpop.f32.mrf.mxu0
  %v308 = vpop.f32.mrf.mxu0
  %v309 = vadd.f32 %v54, %v308
  %v310 = vpop.f32.mrf.mxu0
  %311 = vmatprep.mubr.bf16.mxu0 0
  %312 = vmatmul.mubr.bf16.gmra.mxu0 %v177
  %v313 = vpop.f32.mrf.mxu0
  %v314 = vadd.f32 %v54, %v313
  %v315 = vpop.f32.mrf.mxu0
  %v316 = vpop.f32.mrf.mxu0
  %v317 = vadd.f32 %v54, %v316
  %v318 = vpop.f32.mrf.mxu0
  %319 = vmatprep.mubr.bf16.mxu0 0
  %320 = vmatmul.mubr.bf16.gmra.mxu0 %v180
  %v321 = vpop.f32.mrf.mxu0
  %v322 = vadd.f32 %v54, %v321
  %v323 = vpop.f32.mrf.mxu0
  %v324 = vpop.f32.mrf.mxu0
  %v325 = vadd.f32 %v54, %v324
  %v326 = vpop.f32.mrf.mxu0
  %327 = vmatprep.mubr.bf16.mxu0 0
  %328 = vmatmul.mubr.bf16.gmra.mxu0 %v183
  %v329 = vpop.f32.mrf.mxu0
  %v330 = vadd.f32 %v54, %v329
  %v331 = vpop.f32.mrf.mxu0
  %v332 = vpop.f32.mrf.mxu0
  %v333 = vadd.f32 %v54, %v332
  %v334 = vpop.f32.mrf.mxu0
  %335 = vmatprep.mubr.bf16.mxu0 0
  %336 = vmatmul.mubr.bf16.gmra.mxu0 %v186
  %v337 = vpop.f32.mrf.mxu0
  %v338 = vadd.f32 %v54, %v337
  %v339 = vpop.f32.mrf.mxu0
  %v340 = vpop.f32.mrf.mxu0
  %v341 = vadd.f32 %v54, %v340
  %v342 = vpop.f32.mrf.mxu0
  %343 = vmatprep.mubr.bf16.mxu0 0
  %344 = vmatmul.mubr.bf16.gmra.mxu0 %v189
  %v345 = vpop.f32.mrf.mxu0
  %v346 = vadd.f32 %v54, %v345
  %v347 = vpop.f32.mrf.mxu0
  %v348 = vpop.f32.mrf.mxu0
  %v349 = vadd.f32 %v54, %v348
  %v350 = vpop.f32.mrf.mxu0
  %351 = vdwg.mxu0
  %v352 = vmax.f32 %v226, 0.0
  %v353 = vmax.f32 %v229, 0.0
  %v354 = vmax.f32 %v234, 0.0
  %v355 = vmax.f32 %v237, 0.0
  %v356 = vmax.f32 %v242, 0.0
  %v357 = vmax.f32 %v245, 0.0
  %v358 = vmax.f32 %v250, 0.0
  %v359 = vmax.f32 %v253, 0.0
  %v360 = vmax.f32 %v258, 0.0
  %v361 = vmax.f32 %v261, 0.0
  %v362 = vmax.f32 %v266, 0.0
  %v363 = vmax.f32 %v269, 0.0
  %v364 = vmax.f32 %v274, 0.0
  %v365 = vmax.f32 %v277, 0.0
  %v366 = vmax.f32 %v282, 0.0
  %v367 = vmax.f32 %v285, 0.0
  %v368 = vmax.f32 %v290, 0.0
  %v369 = vmax.f32 %v293, 0.0
  %v370 = vmax.f32 %v298, 0.0
  %v371 = vmax.f32 %v301, 0.0
  %v372 = vmax.f32 %v306, 0.0
  %v373 = vmax.f32 %v309, 0.0
  %v374 = vmax.f32 %v314, 0.0
  %v375 = vmax.f32 %v317, 0.0
  %v376 = vmax.f32 %v322, 0.0
  %v377 = vmax.f32 %v325, 0.0
  %v378 = vmax.f32 %v330, 0.0
  %v379 = vmax.f32 %v333, 0.0
  %v380 = vmax.f32 %v338, 0.0
  %v381 = vmax.f32 %v341, 0.0
  %v382 = vmax.f32 %v346, 0.0
  %v383 = vmax.f32 %v349, 0.0
  %v384 = vmin.f32 %v352, 6.0
  %v385 = vmin.f32 %v353, 6.0
  %v386 = vmin.f32 %v354, 6.0
  %v387 = vmin.f32 %v355, 6.0
  %v388 = vmin.f32 %v356, 6.0
  %v389 = vmin.f32 %v357, 6.0
  %v390 = vmin.f32 %v358, 6.0
  %v391 = vmin.f32 %v359, 6.0
  %v392 = vmin.f32 %v360, 6.0
  %v393 = vmin.f32 %v361, 6.0
  %v394 = vmin.f32 %v362, 6.0
  %v395 = vmin.f32 %v363, 6.0
  %v396 = vmin.f32 %v364, 6.0
  %v397 = vmin.f32 %v365, 6.0
  %v398 = vmin.f32 %v366, 6.0
  %v399 = vmin.f32 %v367, 6.0
  %v400 = vmin.f32 %v368, 6.0
  %v401 = vmin.f32 %v369, 6.0
  %v402 = vmin.f32 %v370, 6.0
  %v403 = vmin.f32 %v371, 6.0
  %v404 = vmin.f32 %v372, 6.0
  %v405 = vmin.f32 %v373, 6.0
  %v406 = vmin.f32 %v374, 6.0
  %v407 = vmin.f32 %v375, 6.0
  %v408 = vmin.f32 %v376, 6.0
  %v409 = vmin.f32 %v377, 6.0
  %v410 = vmin.f32 %v378, 6.0
  %v411 = vmin.f32 %v379, 6.0
  %v412 = vmin.f32 %v380, 6.0
  %v413 = vmin.f32 %v381, 6.0
  %v414 = vmin.f32 %v382, 6.0
  %v415 = vmin.f32 %v383, 6.0
  %v416 = vpack.c.bf16 %v385, %v384
  %v417 = vpack.c.bf16 %v387, %v386
  %v418 = vpack.c.bf16 %v389, %v388
  %v419 = vpack.c.bf16 %v391, %v390
  %v420 = vpack.c.bf16 %v393, %v392
  %v421 = vpack.c.bf16 %v395, %v394
  %v422 = vpack.c.bf16 %v397, %v396
  %v423 = vpack.c.bf16 %v399, %v398
  %v424 = vpack.c.bf16 %v401, %v400
  %v425 = vpack.c.bf16 %v403, %v402
  %v426 = vpack.c.bf16 %v405, %v404
  %v427 = vpack.c.bf16 %v407, %v406
  %v428 = vpack.c.bf16 %v409, %v408
  %v429 = vpack.c.bf16 %v411, %v410
  %v430 = vpack.c.bf16 %v413, %v412
  %v431 = vpack.c.bf16 %v415, %v414
  %v448 = vunpack.c.l.b16 %v416
  %v449 = vunpack.c.h.b16 %v416
  %v450 = vunpack.c.l.b16 %v417
  %v451 = vunpack.c.h.b16 %v417
  %v452 = vunpack.c.l.b16 %v418
  %v453 = vunpack.c.h.b16 %v418
  %v454 = vunpack.c.l.b16 %v419
  %v455 = vunpack.c.h.b16 %v419
  %v456 = vunpack.c.l.b16 %v420
  %v457 = vunpack.c.h.b16 %v420
  %v458 = vunpack.c.l.b16 %v421
  %v459 = vunpack.c.h.b16 %v421
  %v460 = vunpack.c.l.b16 %v422
  %v461 = vunpack.c.h.b16 %v422
  %v462 = vunpack.c.l.b16 %v423
  %v463 = vunpack.c.h.b16 %v423
  %v464 = vunpack.c.l.b16 %v424
  %v465 = vunpack.c.h.b16 %v424
  %v466 = vunpack.c.l.b16 %v425
  %v467 = vunpack.c.h.b16 %v425
  %v468 = vunpack.c.l.b16 %v426
  %v469 = vunpack.c.h.b16 %v426
  %v470 = vunpack.c.l.b16 %v427
  %v471 = vunpack.c.h.b16 %v427
  %v472 = vunpack.c.l.b16 %v428
  %v473 = vunpack.c.h.b16 %v428
  %v474 = vunpack.c.l.b16 %v429
  %v475 = vunpack.c.h.b16 %v429
  %v476 = vunpack.c.l.b16 %v430
  %v477 = vunpack.c.h.b16 %v430
  %v478 = vunpack.c.l.b16 %v431
  %v479 = vunpack.c.h.b16 %v431
  %v480 = vpack.c.b16 %v448, %v448
  %v481 = vpack.c.b16 %v449, %v449
  %v482 = vpack.c.b16 %v450, %v450
  %v483 = vpack.c.b16 %v451, %v451
  %v484 = vpack.c.b16 %v452, %v452
  %v485 = vpack.c.b16 %v453, %v453
  %v486 = vpack.c.b16 %v454, %v454
  %v487 = vpack.c.b16 %v455, %v455
  %v488 = vpack.c.b16 %v456, %v456
  %v489 = vpack.c.b16 %v457, %v457
  %v490 = vpack.c.b16 %v458, %v458
  %v491 = vpack.c.b16 %v459, %v459
  %v492 = vpack.c.b16 %v460, %v460
  %v493 = vpack.c.b16 %v461, %v461
  %v494 = vpack.c.b16 %v462, %v462
  %v495 = vpack.c.b16 %v463, %v463
  %v496 = vpack.c.b16 %v464, %v464
  %v497 = vpack.c.b16 %v465, %v465
  %v498 = vpack.c.b16 %v466, %v466
  %v499 = vpack.c.b16 %v467, %v467
  %v500 = vpack.c.b16 %v468, %v468
  %v501 = vpack.c.b16 %v469, %v469
  %v502 = vpack.c.b16 %v470, %v470
  %v503 = vpack.c.b16 %v471, %v471
  %v504 = vpack.c.b16 %v472, %v472
  %v505 = vpack.c.b16 %v473, %v473
  %v506 = vpack.c.b16 %v474, %v474
  %v507 = vpack.c.b16 %v475, %v475
  %v508 = vpack.c.b16 %v476, %v476
  %v509 = vpack.c.b16 %v477, %v477
  %v510 = vpack.c.b16 %v478, %v478
  %v511 = vpack.c.b16 %v479, %v479
  %vm544 = vcmask 781312
  %545 = vst.msk [vmem:[%s3] sm:$0xf] %vm544, %v480
  %546 = vst.msk [vmem:[%s3 + $0x4] sm:$0xf] %vm544, %v481
  %547 = vst.msk [vmem:[%s3 + $0x8] sm:$0xf] %vm544, %v482
  %548 = vst.msk [vmem:[%s3 + $0xc] sm:$0xf] %vm544, %v483
  %549 = vst.msk [vmem:[%s3 + $0x10] sm:$0xf] %vm544, %v484
  %550 = vst.msk [vmem:[%s3 + $0x14] sm:$0xf] %vm544, %v485
  %551 = vst.msk [vmem:[%s3 + $0x18] sm:$0xf] %vm544, %v486
  %552 = vst.msk [vmem:[%s3 + $0x1c] sm:$0xf] %vm544, %v487
  %553 = vst.msk [vmem:[%s3 + $0x20] sm:$0xf] %vm544, %v488
  %554 = vst.msk [vmem:[%s3 + $0x24] sm:$0xf] %vm544, %v489
  %555 = vst.msk [vmem:[%s3 + $0x28] sm:$0xf] %vm544, %v490
  %556 = vst.msk [vmem:[%s3 + $0x2c] sm:$0xf] %vm544, %v491
  %557 = vst.msk [vmem:[%s3 + $0x30] sm:$0xf] %vm544, %v492
  %558 = vst.msk [vmem:[%s3 + $0x34] sm:$0xf] %vm544, %v493
  %559 = vst.msk [vmem:[%s3 + $0x38] sm:$0xf] %vm544, %v494
  %560 = vst.msk [vmem:[%s3 + $0x3c] sm:$0xf] %vm544, %v495
  %561 = vst.msk [vmem:[%s3 + $0x40] sm:$0xf] %vm544, %v496
  %562 = vst.msk [vmem:[%s3 + $0x44] sm:$0xf] %vm544, %v497
  %563 = vst.msk [vmem:[%s3 + $0x48] sm:$0xf] %vm544, %v498
  %564 = vst.msk [vmem:[%s3 + $0x4c] sm:$0xf] %vm544, %v499
  %565 = vst.msk [vmem:[%s3 + $0x50] sm:$0xf] %vm544, %v500
  %566 = vst.msk [vmem:[%s3 + $0x54] sm:$0xf] %vm544, %v501
  %567 = vst.msk [vmem:[%s3 + $0x58] sm:$0xf] %vm544, %v502
  %568 = vst.msk [vmem:[%s3 + $0x5c] sm:$0xf] %vm544, %v503
  %569 = vst.msk [vmem:[%s3 + $0x60] sm:$0xf] %vm544, %v504
  %570 = vst.msk [vmem:[%s3 + $0x64] sm:$0xf] %vm544, %v505
  %571 = vst.msk [vmem:[%s3 + $0x68] sm:$0xf] %vm544, %v506
  %572 = vst.msk [vmem:[%s3 + $0x6c] sm:$0xf] %vm544, %v507
  %573 = vst.msk [vmem:[%s3 + $0x70] sm:$0xf] %vm544, %v508
  %574 = vst.msk [vmem:[%s3 + $0x74] sm:$0xf] %vm544, %v509
  %575 = vst.msk [vmem:[%s3 + $0x78] sm:$0xf] %vm544, %v510
  %576 = vst.msk [vmem:[%s3 + $0x7c] sm:$0xf] %vm544, %v511
  // Predicated region
  $region14: #{mobilenet_perceptual_loss.27} parent=0 // pred_check
    _
  $region15: #{mobilenet_perceptual_loss.27} parent=0 // pred_check_branch
    %578 = sbr.rel (0) target = $region17
  $region16: #{mobilenet_perceptual_loss.27} parent=0 // pred_region
    _
  $region17: #{mobilenet_perceptual_loss.27} parent=0 // pred_fallthru
    _
  // Predicated region
  $region18: #{mobilenet_perceptual_loss.27} parent=0 // pred_check
    _
  $region19: #{mobilenet_perceptual_loss.27} parent=0 // pred_check_branch
    %580 = sbr.rel (0) target = $region21
  $region20: #{mobilenet_perceptual_loss.27} parent=0 // pred_region
    _
  $region21: #{mobilenet_perceptual_loss.27} parent=0 // pred_fallthru
    _

// kernel: mobilenet_perceptual_loss.29
$region0: #{mobilenet_perceptual_loss.29}
  #allocation0 [shape = 'u32[]', space=smem, size = 0x4, offset = 0x4, fixed_abs, tag = 'smem constant byte address 0x4 - core index']
  #allocation1 [shape = 'u32[144,128]{1,0:T(1,128)}', space=vmem, size = 0x12000, scoped, tag = 'internal scratch']
  %s0 = inlined_call_operand.vmem [shape: bf16[64,96], index: 0, kind: input, shape index: {}]
  %s1 = inlined_call_operand.vmem [shape: bf16[96,24], index: 1, kind: input, shape index: {}]
  %s2 = inlined_call_operand.vmem [shape: f32[1,24], index: 2, kind: input, shape index: {}]
  %s3 = inlined_call_operand.vmem [shape: bf16[64,24], index: 3, kind: output, shape index: {}]
  %s4 = sld [smem:[#allocation0]]
  $region22: #{mobilenet_perceptual_loss.29} parent=0
    _
  %s6 = ssub.s32 1, %s4
  %s7 = scalar_select 0, %s6, %s4
  // Predicated region
  $region2: #{mobilenet_perceptual_loss.29} parent=0 // pred_check
    _
  $region3: #{mobilenet_perceptual_loss.29} parent=0 // pred_check_branch
    %9 = sbr.rel (0) target = $region5
  $region4: #{mobilenet_perceptual_loss.29} parent=0 // pred_region
    _
  $region5: #{mobilenet_perceptual_loss.29} parent=0 // pred_fallthru
    _
  // Predicated region
  $region6: #{mobilenet_perceptual_loss.29} parent=0 // pred_check
    _
  $region7: #{mobilenet_perceptual_loss.29} parent=0 // pred_check_branch
    %11 = sbr.rel (0) target = $region9
  $region8: #{mobilenet_perceptual_loss.29} parent=0 // pred_region
    _
  $region9: #{mobilenet_perceptual_loss.29} parent=0 // pred_fallthru
    _
  // Predicated region
  $region10: #{mobilenet_perceptual_loss.29} parent=0 // pred_check
    _
  $region11: #{mobilenet_perceptual_loss.29} parent=0 // pred_check_branch
    %13 = sbr.rel (0) target = $region13
  $region12: #{mobilenet_perceptual_loss.29} parent=0 // pred_region
    _
  $region13: #{mobilenet_perceptual_loss.29} parent=0 // pred_fallthru
    _
  %v15 = vld [vmem:[%s0] sm:$0xf]
  %v16 = vld [vmem:[%s0 + $0x4] sm:$0xf]
  %v17 = vld [vmem:[%s0 + $0x8] sm:$0xf]
  %v18 = vld [vmem:[%s0 + $0xc] sm:$0xf]
  %v19 = vld [vmem:[%s0 + $0x10] sm:$0xf]
  %v20 = vld [vmem:[%s0 + $0x14] sm:$0xf]
  %v21 = vld [vmem:[%s0 + $0x18] sm:$0xf]
  %v22 = vld [vmem:[%s0 + $0x1c] sm:$0xf]
  %v23 = vld [vmem:[%s1] sm:$0xf]
  %v24 = vld [vmem:[%s1 + $0x4] sm:$0xf]
  %v25 = vld [vmem:[%s1 + $0x8] sm:$0xf]
  %v26 = vld [vmem:[%s1 + $0xc] sm:$0xf]
  %v27 = vld [vmem:[%s1 + $0x10] sm:$0xf]
  %v28 = vld [vmem:[%s1 + $0x14] sm:$0xf]
  %v29 = vld [vmem:[%s1 + $0x18] sm:$0xf]
  %v30 = vld [vmem:[%s1 + $0x1c] sm:$0xf]
  %v31 = vld [vmem:[%s1 + $0x20] sm:$0xf]
  %v32 = vld [vmem:[%s1 + $0x24] sm:$0xf]
  %v33 = vld [vmem:[%s1 + $0x28] sm:$0xf]
  %v34 = vld [vmem:[%s1 + $0x2c] sm:$0xf]
  %v35 = vld [vmem:[%s2] sm:$0x1]
  %v37 = vlaneseq
  %v38 = vshrl.u32 %v37, 7
  %v39 = vsub.s32 0, %v38
  %v40 = vrot.slane %v35, %v39
  %v50 = vunpack.c.l.b16 %v15
  %v51 = vunpack.c.l.b16 %v16
  %v52 = vunpack.c.l.b16 %v17
  %v53 = vunpack.c.l.b16 %v18
  %v54 = vunpack.c.l.b16 %v19
  %v55 = vunpack.c.l.b16 %v20
  %v56 = vunpack.c.l.b16 %v21
  %v57 = vunpack.c.l.b16 %v22
  %v58 = vpack.c.b16 %v51, %v50
  %v59 = vpack.c.b16 %v53, %v52
  %v60 = vpack.c.b16 %v55, %v54
  %v61 = vpack.c.b16 %v57, %v56
  %v74 = vunpack.c.l.b16 %v23
  %v75 = vunpack.c.l.b16 %v24
  %v76 = vunpack.c.l.b16 %v25
  %v77 = vunpack.c.l.b16 %v26
  %v78 = vunpack.c.l.b16 %v27
  %v79 = vunpack.c.l.b16 %v28
  %v80 = vunpack.c.l.b16 %v29
  %v81 = vunpack.c.l.b16 %v30
  %v82 = vunpack.c.l.b16 %v31
  %v83 = vunpack.c.l.b16 %v32
  %v84 = vunpack.c.l.b16 %v33
  %v85 = vunpack.c.l.b16 %v34
  %v86 = vpack.c.b16 %v75, %v74
  %v87 = vpack.c.b16 %v77, %v76
  %v88 = vpack.c.b16 %v79, %v78
  %v89 = vpack.c.b16 %v81, %v80
  %v90 = vpack.c.b16 %v83, %v82
  %v91 = vpack.c.b16 %v85, %v84
  %vm98 = vcmask 785408
  %v100 = vsel %vm98, %v58, 0
  %v103 = vsel %vm98, %v59, 0
  %v106 = vsel %vm98, %v60, 0
  %v109 = vsel %vm98, %v61, 0
  %111 = vmatprep.subr.bf16.mxu0 0
  %112 = vmatpush1.bf16.msra.mxu0 0
  %113 = vmatprep.subr.bf16.mxu0 0
  %114 = vmatpush1.bf16.msra.mxu0 0
  %115 = vmatprep.subr.bf16.mxu0 0
  %116 = vmatpush1.bf16.msra.mxu0 %v91
  %117 = vmatprep.subr.bf16.mxu0 0
  %118 = vmatpush1.bf16.msra.mxu0 %v90
  %119 = vmatprep.subr.bf16.mxu0 0
  %120 = vmatpush1.bf16.msra.mxu0 %v89
  %121 = vmatprep.subr.bf16.mxu0 0
  %122 = vmatpush1.bf16.msra.mxu0 %v88
  %123 = vmatprep.subr.bf16.mxu0 0
  %124 = vmatpush1.bf16.msra.mxu0 %v87
  %125 = vmatprep.subr.bf16.mxu0 0
  %126 = vmatpush1.bf16.msra.mxu0 %v86
  %127 = vmatprep.subr.bf16.mxu0 0
  %128 = vmatpush2.bf16.msra.mxu0 0
  %129 = vmatprep.subr.bf16.mxu0 0
  %130 = vmatpush2.bf16.msra.mxu0 0
  %131 = vmatprep.subr.bf16.mxu0 0
  %132 = vmatpush2.bf16.msra.mxu0 0
  %133 = vmatprep.subr.bf16.mxu0 0
  %134 = vmatpush2.bf16.msra.mxu0 0
  %135 = vmatprep.subr.bf16.mxu0 0
  %136 = vmatpush2.bf16.msra.mxu0 0
  %137 = vmatprep.subr.bf16.mxu0 0
  %138 = vmatpush2.bf16.msra.mxu0 0
  %139 = vmatprep.subr.bf16.mxu0 0
  %140 = vmatpush2.bf16.msra.mxu0 0
  %141 = vmatprep.subr.bf16.mxu0 0
  %142 = vmatpush2.bf16.msra.mxu0 0
  %143 = vmatprep.mubr.bf16.mxu0 0
  %144 = vmatmul.mubr.bf16.gmra.mxu0 %v100
  %v145 = vpop.f32.mrf.mxu0
  %v146 = vadd.f32 %v40, %v145
  %v147 = vpop.f32.mrf.mxu0
  %v148 = vpop.f32.mrf.mxu0
  %v149 = vadd.f32 %v40, %v148
  %v150 = vpop.f32.mrf.mxu0
  %151 = vmatprep.mubr.bf16.mxu0 0
  %152 = vmatmul.mubr.bf16.gmra.mxu0 %v103
  %v153 = vpop.f32.mrf.mxu0
  %v154 = vadd.f32 %v40, %v153
  %v155 = vpop.f32.mrf.mxu0
  %v156 = vpop.f32.mrf.mxu0
  %v157 = vadd.f32 %v40, %v156
  %v158 = vpop.f32.mrf.mxu0
  %159 = vmatprep.mubr.bf16.mxu0 0
  %160 = vmatmul.mubr.bf16.gmra.mxu0 %v106
  %v161 = vpop.f32.mrf.mxu0
  %v162 = vadd.f32 %v40, %v161
  %v163 = vpop.f32.mrf.mxu0
  %v164 = vpop.f32.mrf.mxu0
  %v165 = vadd.f32 %v40, %v164
  %v166 = vpop.f32.mrf.mxu0
  %167 = vmatprep.mubr.bf16.mxu0 0
  %168 = vmatmul.mubr.bf16.gmra.mxu0 %v109
  %v169 = vpop.f32.mrf.mxu0
  %v170 = vadd.f32 %v40, %v169
  %v171 = vpop.f32.mrf.mxu0
  %v172 = vpop.f32.mrf.mxu0
  %v173 = vadd.f32 %v40, %v172
  %v174 = vpop.f32.mrf.mxu0
  %175 = vdwg.mxu0
  %v176 = vpack.c.bf16 %v149, %v146
  %v177 = vpack.c.bf16 %v157, %v154
  %v178 = vpack.c.bf16 %v165, %v162
  %v179 = vpack.c.bf16 %v173, %v170
  %v184 = vunpack.c.l.b16 %v176
  %v185 = vunpack.c.h.b16 %v176
  %v186 = vunpack.c.l.b16 %v177
  %v187 = vunpack.c.h.b16 %v177
  %v188 = vunpack.c.l.b16 %v178
  %v189 = vunpack.c.h.b16 %v178
  %v190 = vunpack.c.l.b16 %v179
  %v191 = vunpack.c.h.b16 %v179
  %v192 = vpack.c.b16 %v184, %v184
  %v193 = vpack.c.b16 %v185, %v185
  %v194 = vpack.c.b16 %v186, %v186
  %v195 = vpack.c.b16 %v187, %v187
  %v196 = vpack.c.b16 %v188, %v188
  %v197 = vpack.c.b16 %v189, %v189
  %v198 = vpack.c.b16 %v190, %v190
  %v199 = vpack.c.b16 %v191, %v191
  %vm208 = vcmask 191488
  %209 = vst.msk [vmem:[%s3] sm:$0xf] %vm208, %v192
  %210 = vst.msk [vmem:[%s3 + $0x4] sm:$0xf] %vm208, %v193
  %211 = vst.msk [vmem:[%s3 + $0x8] sm:$0xf] %vm208, %v194
  %212 = vst.msk [vmem:[%s3 + $0xc] sm:$0xf] %vm208, %v195
  %213 = vst.msk [vmem:[%s3 + $0x10] sm:$0xf] %vm208, %v196
  %214 = vst.msk [vmem:[%s3 + $0x14] sm:$0xf] %vm208, %v197
  %215 = vst.msk [vmem:[%s3 + $0x18] sm:$0xf] %vm208, %v198
  %216 = vst.msk [vmem:[%s3 + $0x1c] sm:$0xf] %vm208, %v199
  // Predicated region
  $region14: #{mobilenet_perceptual_loss.29} parent=0 // pred_check
    _
  $region15: #{mobilenet_perceptual_loss.29} parent=0 // pred_check_branch
    %218 = sbr.rel (0) target = $region17
  $region16: #{mobilenet_perceptual_loss.29} parent=0 // pred_region
    _
  $region17: #{mobilenet_perceptual_loss.29} parent=0 // pred_fallthru
    _
  // Predicated region
  $region18: #{mobilenet_perceptual_loss.29} parent=0 // pred_check
    _
  $region19: #{mobilenet_perceptual_loss.29} parent=0 // pred_check_branch
    %220 = sbr.rel (0) target = $region21
  $region20: #{mobilenet_perceptual_loss.29} parent=0 // pred_region
    _
  $region21: #{mobilenet_perceptual_loss.29} parent=0 // pred_fallthru
    _

// kernel: mobilenet_perceptual_loss.28
$region0: #{mobilenet_perceptual_loss.28}
  #allocation0 [shape = 'u32[]', space=smem, size = 0x4, offset = 0x4, fixed_abs, tag = 'smem constant byte address 0x4 - core index']
  #allocation1 [shape = 'u32[144,128]{1,0:T(1,128)}', space=vmem, size = 0x12000, scoped, tag = 'internal scratch']
  %s0 = inlined_call_operand.vmem [shape: bf16[16,5,5,96], index: 0, kind: input, shape index: {}]
  %s1 = inlined_call_operand.vmem [shape: f32[9,96], index: 1, kind: input, shape index: {}]
  %s2 = inlined_call_operand.vmem [shape: f32[1,96], index: 2, kind: input, shape index: {}]
  %s3 = inlined_call_operand.vmem [shape: bf16[4,4,4,96], index: 3, kind: output, shape index: {}]
  %s4 = sld [smem:[#allocation0]]
  $region45: #{mobilenet_perceptual_loss.28} parent=0
    _
  %s6 = ssub.s32 1, %s4
  %s7 = scalar_select 0, %s6, %s4
  loop: start=0, step=1, limit=6
  $region2: #{mobilenet_perceptual_loss.28} parent=0 // loop_pre_header
    _
  $region3: #{mobilenet_perceptual_loss.28} parent=0 // loop_header
    %s9 = sphi 0, %s13
    %p10 = scmp.ge.s32.totalorder %s9, 6
    %s19 = sphi 0, %s21
    %s22 = sphi 0, %s19
    %s23 = sphi 0, %s22
    %s39 = sphi 0, %s23
    %s43 = sphi 0, %s43
    %s45 = sphi 0, %s43
    %s46 = sphi 0, %s45
    %s60 = sphi 0, %s46
    %s64 = sphi 0, %s64
    %s66 = sphi 0, %s64
    %s67 = sphi 0, %s66
    %s81 = sphi 0, %s67
    %s87 = sphi 0, %s89
    %s90 = sphi 0, %s87
    %s91 = sphi 0, %s90
    %s107 = sphi 0, %s91
  $region4: #{mobilenet_perceptual_loss.28} parent=0 // loop_header_branch
    %12 = sbr.rel (%p10) target = $region8
  $region5: #{mobilenet_perceptual_loss.28} parent=0 // loop_body
    %s14 = ssub.s32 %s9, 1
    %s15 = ssub.s32 %s9, 2
    %s16 = sadd.s32 %s9, 1
    %s17 = ssub.s32 %s9, %s16
    %p18 = scmp.eq.s32.totalorder %s17, 0
    %s20 = sadd.s32 %s19, 1
    %s21 = scalar_select %p18, %s19, %s20
    %p24 = pneg %p18
    %p25 = scmp.eq.s32.totalorder %s9, 3
    %p26 = por %p24, %p25
    %p27 = scmp.ne.s32.totalorder %s19, %s22
    %p28 = scmp.eq.s32.totalorder %s9, 0
    %p29 = por %p27, %p28
    %p30 = scmp.ne.s32.totalorder %s19, %s22
    %p31 = scmp.eq.s32.totalorder %s14, 3
    %p32 = por %p30, %p31
    %p33 = scmp.ne.s32.totalorder %s22, %s23
    %p34 = scmp.eq.s32.totalorder %s14, 0
    %p35 = por %p33, %p34
    %p36 = scmp.ne.s32.totalorder %s22, %s23
    %p37 = scmp.eq.s32.totalorder %s15, 3
    %p38 = por %p36, %p37
    %p40 = scmp.ne.s32.totalorder %s23, %s39
    %p41 = scmp.eq.s32.totalorder %s15, 0
    %p42 = por %p40, %p41
    %s44 = sadd.s32 %s43, 1
    %p47 = scmp.eq.s32.totalorder %s9, 3
    %p48 = scmp.ne.s32.totalorder %s43, %s45
    %p49 = scmp.eq.s32.totalorder %s9, 0
    %p50 = por %p48, %p49
    %p51 = scmp.ne.s32.totalorder %s43, %s45
    %p52 = scmp.eq.s32.totalorder %s14, 3
    %p53 = por %p51, %p52
    %p54 = scmp.ne.s32.totalorder %s45, %s46
    %p55 = scmp.eq.s32.totalorder %s14, 0
    %p56 = por %p54, %p55
    %p57 = scmp.ne.s32.totalorder %s45, %s46
    %p58 = scmp.eq.s32.totalorder %s15, 3
    %p59 = por %p57, %p58
    %p61 = scmp.ne.s32.totalorder %s46, %s60
    %p62 = scmp.eq.s32.totalorder %s15, 0
    %p63 = por %p61, %p62
    %s65 = sadd.s32 %s64, 1
    %p68 = scmp.eq.s32.totalorder %s9, 3
    %p69 = scmp.ne.s32.totalorder %s64, %s66
    %p70 = scmp.eq.s32.totalorder %s9, 0
    %p71 = por %p69, %p70
    %p72 = scmp.ne.s32.totalorder %s64, %s66
    %p73 = scmp.eq.s32.totalorder %s14, 3
    %p74 = por %p72, %p73
    %p75 = scmp.ne.s32.totalorder %s66, %s67
    %p76 = scmp.eq.s32.totalorder %s14, 0
    %p77 = por %p75, %p76
    %p78 = scmp.ne.s32.totalorder %s66, %s67
    %p79 = scmp.eq.s32.totalorder %s15, 3
    %p80 = por %p78, %p79
    %p82 = scmp.ne.s32.totalorder %s67, %s81
    %p83 = scmp.eq.s32.totalorder %s15, 0
    %p84 = por %p82, %p83
    %s85 = ssub.s32 %s9, %s16
    %p86 = scmp.eq.s32.totalorder %s85, 0
    %s88 = sadd.s32 %s87, 1
    %s89 = scalar_select %p86, %s87, %s88
    %p92 = pneg %p86
    %p93 = scmp.eq.s32.totalorder %s9, 3
    %p94 = por %p92, %p93
    %p95 = scmp.ne.s32.totalorder %s87, %s90
    %p96 = scmp.eq.s32.totalorder %s9, 0
    %p97 = por %p95, %p96
    %p98 = scmp.ne.s32.totalorder %s87, %s90
    %p99 = scmp.eq.s32.totalorder %s14, 3
    %p100 = por %p98, %p99
    %p101 = scmp.ne.s32.totalorder %s90, %s91
    %p102 = scmp.eq.s32.totalorder %s14, 0
    %p103 = por %p101, %p102
    %p104 = scmp.ne.s32.totalorder %s90, %s91
    %p105 = scmp.eq.s32.totalorder %s15, 3
    %p106 = por %p104, %p105
    %p108 = scmp.ne.s32.totalorder %s91, %s107
    %p109 = scmp.eq.s32.totalorder %s15, 0
    %p110 = por %p108, %p109
    %p111 = scmp.le.s32.totalorder 1, %s9
    %p112 = scmp.lt.s32.totalorder %s9, 5
    %p113 = pnand %p111, %p112
    %p114 = pneg %p113
    // Predicated region
    $region9: #{mobilenet_perceptual_loss.28} parent=5 // pred_check
      _
    $region10: #{mobilenet_perceptual_loss.28} parent=5 // pred_check_branch
      %116 = sbr.rel (%p113) target = $region12
    $region11: #{mobilenet_perceptual_loss.28} parent=5 // pred_region
      %s117 = ssub.s32 %s9, 1
      // Predicated region
      $region13: #{mobilenet_perceptual_loss.28} parent=11 // pred_check
        %p118 = pneg %p56
      $region14: #{mobilenet_perceptual_loss.28} parent=11 // pred_check_branch
        %120 = sbr.rel (%p118) target = $region16
      $region15: #{mobilenet_perceptual_loss.28} parent=11 // pred_region
        _
      $region16: #{mobilenet_perceptual_loss.28} parent=11 // pred_fallthru
        _
      // Predicated region
      $region17: #{mobilenet_perceptual_loss.28} parent=11 // pred_check
        %p121 = pneg %p77
      $region18: #{mobilenet_perceptual_loss.28} parent=11 // pred_check_branch
        %123 = sbr.rel (%p121) target = $region20
      $region19: #{mobilenet_perceptual_loss.28} parent=11 // pred_region
        _
      $region20: #{mobilenet_perceptual_loss.28} parent=11 // pred_fallthru
        _
    $region12: #{mobilenet_perceptual_loss.28} parent=5 // pred_fallthru
      _
    %p124 = scmp.lt.s32.totalorder %s9, 4
    // Predicated region
    $region21: #{mobilenet_perceptual_loss.28} parent=5 // pred_check
      %p125 = pneg %p124
    $region22: #{mobilenet_perceptual_loss.28} parent=5 // pred_check_branch
      %127 = sbr.rel (%p125) target = $region24
    $region23: #{mobilenet_perceptual_loss.28} parent=5 // pred_region
      // Predicated region
      $region25: #{mobilenet_perceptual_loss.28} parent=23 // pred_check
        %p128 = pneg %p29
      $region26: #{mobilenet_perceptual_loss.28} parent=23 // pred_check_branch
        %130 = sbr.rel (%p128) target = $region28
      $region27: #{mobilenet_perceptual_loss.28} parent=23 // pred_region
        %s131 = smul.u32 4, %s9
        %p132 = scmp.lt.s32.totalorder %s131, 15
        %s133 = scalar_select %p132, %s131, 15
        %s134 = smul.addr %s133, 5
        %s135 = smul.addr %s134, 4
        %s136 = scalar_lea.vmem %s0, %s135
        %s137 = smul.u32 4, %s9
      $region28: #{mobilenet_perceptual_loss.28} parent=23 // pred_fallthru
        _
    $region24: #{mobilenet_perceptual_loss.28} parent=5 // pred_fallthru
      _
    %p138 = scmp.le.s32.totalorder 1, %s9
    %p139 = scmp.lt.s32.totalorder %s9, 5
    %p140 = pnand %p138, %p139
    %p141 = pneg %p140
    // Predicated region
    $region29: #{mobilenet_perceptual_loss.28} parent=5 // pred_check
      _
    $region30: #{mobilenet_perceptual_loss.28} parent=5 // pred_check_branch
      %143 = sbr.rel (%p140) target = $region32
    $region31: #{mobilenet_perceptual_loss.28} parent=5 // pred_region
      %s144 = ssub.s32 %s9, 1
      %s145 = smul.u32 4, %s14
      %p146 = scmp.lt.s32.totalorder %s145, 15
      %s147 = scalar_select %p146, %s145, 15
      %s148 = smul.addr %s147, 5
      %s149 = smul.addr %s148, 4
      %s150 = scalar_lea.vmem %s0, %s149
      %p151 = pneg %p35
      %p152 = pneg %p32
      %p153 = pneg %p56
      %p154 = pneg %p53
      %p155 = pneg %p77
      %p156 = pneg %p74
      %p157 = pneg %p103
      %p158 = pneg %p100
      %p159 = scmp.lt.s32.totalorder %s14, 3
      %s160 = scalar_select %p159, %s14, 3
      %s161 = smul.addr %s160, 4
      %s162 = smul.addr %s161, 2
      %s163 = scalar_lea.vmem %s3, %s162
      %s164 = smul.u32 4, %s14
      %p165 = scmp.lt.s32.totalorder %s164, 15
      %s166 = scalar_select %p165, %s164, 15
      %s167 = smul.addr %s166, 5
      %s168 = smul.addr %s167, 4
      %s169 = scalar_lea.vmem %s0, %s168
      %s170 = smul.u32 4, %s14
      %p171 = scmp.lt.s32.totalorder %s14, 3
      %s172 = scalar_select %p171, %s14, 3
      %s173 = smul.addr %s172, 4
      %s174 = smul.addr %s173, 2
      %s175 = scalar_lea.vmem %s3, %s174
      %v176 = vld [vmem:[%s169] sm:$0x7]
      %v177 = vld [vmem:[%s169 + $0x4] sm:$0x7]
      %v178 = vld [vmem:[%s169 + $0x8] sm:$0x7]
      %v179 = vld [vmem:[%s169 + $0xc] sm:$0x7]
      %v180 = vld [vmem:[%s169 + $0x10] sm:$0x7]
      %v181 = vld [vmem:[%s169 + $0x14] sm:$0x7]
      %v182 = vld [vmem:[%s169 + $0x18] sm:$0x7]
      %v183 = vld [vmem:[%s169 + $0x1c] sm:$0x7]
      %v184 = vld [vmem:[%s169 + $0x20] sm:$0x7]
      %v185 = vld [vmem:[%s169 + $0x24] sm:$0x7]
      %v186 = vld [vmem:[%s169 + $0x28] sm:$0x7]
      %v187 = vld [vmem:[%s169 + $0x2c] sm:$0x7]
      %v188 = vld [vmem:[%s169 + $0x30] sm:$0x7]
      %v189 = vld [vmem:[%s169 + $0x34] sm:$0x7]
      %v190 = vld [vmem:[%s169 + $0x3c] sm:$0x7]
      %v191 = vld [vmem:[%s169 + $0x40] sm:$0x7]
      %v192 = vld [vmem:[%s169 + $0x44] sm:$0x7]
      %v193 = vld [vmem:[%s169 + $0x48] sm:$0x7]
      %v194 = vunpack.c.l.bf16 %v176
      %v195 = vunpack.c.l.bf16 %v177
      %v196 = vunpack.c.l.bf16 %v178
      %v197 = vunpack.c.l.bf16 %v179
      %v198 = vunpack.c.l.bf16 %v180
      %v199 = vunpack.c.l.bf16 %v181
      %v200 = vunpack.c.l.bf16 %v182
      %v201 = vunpack.c.l.bf16 %v183
      %v202 = vunpack.c.l.bf16 %v184
      %v203 = vunpack.c.l.bf16 %v185
      %v204 = vunpack.c.l.bf16 %v186
      %v205 = vunpack.c.l.bf16 %v187
      %v206 = vunpack.c.l.bf16 %v188
      %v207 = vunpack.c.l.bf16 %v189
      %v208 = vunpack.c.l.bf16 %v190
      %v209 = vunpack.c.l.bf16 %v191
      %v210 = vunpack.c.l.bf16 %v192
      %v211 = vunpack.c.l.bf16 %v193
      %v212 = vld [vmem:[%s1] sm:$0x1]
      %v213 = vlaneseq
      %v214 = vshrl.u32 %v213, 7
      %v215 = vsub.s32 0, %v214
      %v216 = vrot.slane %v212, %v215
      %v217 = vmul.f32 %v194, %v216
      %v218 = vmul.f32 %v195, %v216
      %v219 = vmul.f32 %v196, %v216
      %v220 = vmul.f32 %v197, %v216
      %v221 = vadd.f32 %v217, 0.0
      %v222 = vadd.f32 %v218, 0.0
      %v223 = vadd.f32 %v219, 0.0
      %v224 = vadd.f32 %v220, 0.0
      %v225 = vld [vmem:[%s1 + $0x1] sm:$0x1]
      %v226 = vlaneseq
      %v227 = vshrl.u32 %v226, 7
      %v228 = vsub.s32 0, %v227
      %v229 = vrot.slane %v225, %v228
      %v230 = vmul.f32 %v199, %v229
      %v231 = vmul.f32 %v200, %v229
      %v232 = vmul.f32 %v201, %v229
      %v233 = vmul.f32 %v202, %v229
      %v234 = vadd.f32 %v221, %v230
      %v235 = vadd.f32 %v222, %v231
      %v236 = vadd.f32 %v223, %v232
      %v237 = vadd.f32 %v224, %v233
      %v238 = vld [vmem:[%s1 + $0x2] sm:$0x1]
      %v239 = vlaneseq
      %v240 = vshrl.u32 %v239, 7
      %v241 = vsub.s32 0, %v240
      %v242 = vrot.slane %v238, %v241
      %v243 = vmul.f32 %v194, %v242
      %v244 = vmul.f32 %v195, %v242
      %v245 = vmul.f32 %v196, %v242
      %v246 = vmul.f32 %v197, %v242
      %v251 = vrot.slane %v243, 1
      %v252 = vrot.slane %v244, 1
      %v253 = vrot.slane %v245, 1
      %v254 = vrot.slane %v246, 1
      %v259 = vadd.f32 %v234, %v251
      %v260 = vadd.f32 %v235, %v252
      %v261 = vadd.f32 %v236, %v253
      %v262 = vadd.f32 %v237, %v254
      %v263 = vld [vmem:[%s1 + $0x3] sm:$0x1]
      %v264 = vlaneseq
      %v265 = vshrl.u32 %v264, 7
      %v266 = vsub.s32 0, %v265
      %v267 = vrot.slane %v263, %v266
      %v268 = vmul.f32 %v204, %v267
      %v269 = vmul.f32 %v205, %v267
      %v270 = vmul.f32 %v206, %v267
      %v271 = vmul.f32 %v207, %v267
      %v272 = vadd.f32 %v259, %v268
      %v273 = vadd.f32 %v260, %v269
      %v274 = vadd.f32 %v261, %v270
      %v275 = vadd.f32 %v262, %v271
      %v276 = vld [vmem:[%s1 + $0x4] sm:$0x1]
      %v277 = vlaneseq
      %v278 = vshrl.u32 %v277, 7
      %v279 = vsub.s32 0, %v278
      %v280 = vrot.slane %v276, %v279
      %v281 = vmul.f32 %v208, %v280
      %v282 = vmul.f32 %v209, %v280
      %v283 = vmul.f32 %v210, %v280
      %v284 = vmul.f32 %v211, %v280
      %v285 = vadd.f32 %v272, %v281
      %v286 = vadd.f32 %v273, %v282
      %v287 = vadd.f32 %v274, %v283
      %v288 = vadd.f32 %v275, %v284
      %v289 = vld [vmem:[%s1 + $0x5] sm:$0x1]
      %v290 = vlaneseq
      %v291 = vshrl.u32 %v290, 7
      %v292 = vsub.s32 0, %v291
      %v293 = vrot.slane %v289, %v292
      %v294 = vmul.f32 %v204, %v293
      %v295 = vmul.f32 %v205, %v293
      %v296 = vmul.f32 %v206, %v293
      %v297 = vmul.f32 %v207, %v293
      %v302 = vrot.slane %v294, 1
      %v303 = vrot.slane %v295, 1
      %v304 = vrot.slane %v296, 1
      %v305 = vrot.slane %v297, 1
      %v310 = vadd.f32 %v285, %v302
      %v311 = vadd.f32 %v286, %v303
      %v312 = vadd.f32 %v287, %v304
      %v313 = vadd.f32 %v288, %v305
      %v314 = vld [vmem:[%s1 + $0x6] sm:$0x1]
      %v315 = vlaneseq
      %v316 = vshrl.u32 %v315, 7
      %v317 = vsub.s32 0, %v316
      %v318 = vrot.slane %v314, %v317
      %v319 = vmul.f32 %v195, %v318
      %v320 = vmul.f32 %v196, %v318
      %v321 = vmul.f32 %v197, %v318
      %v322 = vmul.f32 %v198, %v318
      %v323 = vadd.f32 %v310, %v319
      %v324 = vadd.f32 %v311, %v320
      %v325 = vadd.f32 %v312, %v321
      %v326 = vadd.f32 %v313, %v322
      %v327 = vld [vmem:[%s1 + $0x7] sm:$0x1]
      %v328 = vlaneseq
      %v329 = vshrl.u32 %v328, 7
      %v330 = vsub.s32 0, %v329
      %v331 = vrot.slane %v327, %v330
      %v332 = vmul.f32 %v200, %v331
      %v333 = vmul.f32 %v201, %v331
      %v334 = vmul.f32 %v202, %v331
      %v335 = vmul.f32 %v203, %v331
      %v336 = vadd.f32 %v323, %v332
      %v337 = vadd.f32 %v324, %v333
      %v338 = vadd.f32 %v325, %v334
      %v339 = vadd.f32 %v326, %v335
      %v340 = vld [vmem:[%s1 + $0x8] sm:$0x1]
      %v341 = vlaneseq
      %v342 = vshrl.u32 %v341, 7
      %v343 = vsub.s32 0, %v342
      %v344 = vrot.slane %v340, %v343
      %v345 = vmul.f32 %v195, %v344
      %v346 = vmul.f32 %v196, %v344
      %v347 = vmul.f32 %v197, %v344
      %v348 = vmul.f32 %v198, %v344
      %v353 = vrot.slane %v345, 1
      %v354 = vrot.slane %v346, 1
      %v355 = vrot.slane %v347, 1
      %v356 = vrot.slane %v348, 1
      %v361 = vadd.f32 %v336, %v353
      %v362 = vadd.f32 %v337, %v354
      %v363 = vadd.f32 %v338, %v355
      %v364 = vadd.f32 %v339, %v356
      %v365 = vld [vmem:[%s2] sm:$0x1]
      %v367 = vlaneseq
      %v368 = vshrl.u32 %v367, 7
      %v369 = vsub.s32 0, %v368
      %v370 = vrot.slane %v365, %v369
      %v372 = vadd.f32 %v361, %v370
      %v373 = vadd.f32 %v362, %v370
      %v374 = vadd.f32 %v363, %v370
      %v375 = vadd.f32 %v364, %v370
      %v376 = vmax.f32 %v372, 0.0
      %v377 = vmax.f32 %v373, 0.0
      %v378 = vmax.f32 %v374, 0.0
      %v379 = vmax.f32 %v375, 0.0
      %v380 = vmin.f32 %v376, 6.0
      %v381 = vmin.f32 %v377, 6.0
      %v382 = vmin.f32 %v378, 6.0
      %v383 = vmin.f32 %v379, 6.0
      %v384 = vpack.c.bf16 %v380, %v380
      %v385 = vpack.c.bf16 %v381, %v381
      %v386 = vpack.c.bf16 %v382, %v382
      %v387 = vpack.c.bf16 %v383, %v383
      %vm388 = vcmask 779264
      %389 = vst.msk [vmem:[%s175] sm:$0x3] %vm388, %v384
      %390 = vst.msk [vmem:[%s175 + $0x2] sm:$0x3] %vm388, %v385
      %391 = vst.msk [vmem:[%s175 + $0x4] sm:$0x3] %vm388, %v386
      %392 = vst.msk [vmem:[%s175 + $0x6] sm:$0x3] %vm388, %v387
      %p393 = scmp.lt.s32.totalorder %s14, 3
      %s394 = scalar_select %p393, %s14, 3
      %s395 = smul.addr %s394, 4
      %s396 = smul.addr %s395, 2
      %s397 = scalar_lea.vmem %s3, %s396
      // Predicated region
      $region33: #{mobilenet_perceptual_loss.28} parent=31 // pred_check
        %p398 = pneg %p100
      $region34: #{mobilenet_perceptual_loss.28} parent=31 // pred_check_branch
        %400 = sbr.rel (%p398) target = $region36
      $region35: #{mobilenet_perceptual_loss.28} parent=31 // pred_region
        _
      $region36: #{mobilenet_perceptual_loss.28} parent=31 // pred_fallthru
        _
    $region32: #{mobilenet_perceptual_loss.28} parent=5 // pred_fallthru
      _
    %p401 = scmp.le.s32.totalorder 2, %s9
    // Predicated region
    $region37: #{mobilenet_perceptual_loss.28} parent=5 // pred_check
      %p402 = pneg %p401
    $region38: #{mobilenet_perceptual_loss.28} parent=5 // pred_check_branch
      %404 = sbr.rel (%p402) target = $region40
    $region39: #{mobilenet_perceptual_loss.28} parent=5 // pred_region
      %s405 = ssub.s32 %s9, 2
      // Predicated region
      $region41: #{mobilenet_perceptual_loss.28} parent=39 // pred_check
        %p406 = pneg %p106
      $region42: #{mobilenet_perceptual_loss.28} parent=39 // pred_check_branch
        %408 = sbr.rel (%p406) target = $region44
      $region43: #{mobilenet_perceptual_loss.28} parent=39 // pred_region
        %p409 = scmp.lt.s32.totalorder %s15, 3
        %s410 = scalar_select %p409, %s15, 3
        %s411 = smul.addr %s410, 4
        %s412 = smul.addr %s411, 2
        %s413 = scalar_lea.vmem %s3, %s412
      $region44: #{mobilenet_perceptual_loss.28} parent=39 // pred_fallthru
        _
    $region40: #{mobilenet_perceptual_loss.28} parent=5 // pred_fallthru
      _
  $region6: #{mobilenet_perceptual_loss.28} parent=0 // loop_footer
    %s13 = sadd.s32 1, %s9
  $region7: #{mobilenet_perceptual_loss.28} parent=0 // loop_footer_branch
    %8 = sbr.rel target = $region3
  $region8: #{mobilenet_perceptual_loss.28} parent=0 // loop_exit
    _

// kernel: mobilenet_perceptual_loss.31
$region0: #{mobilenet_perceptual_loss.31}
  #allocation0 [shape = 'u32[]', space=smem, size = 0x4, offset = 0x4, fixed_abs, tag = 'smem constant byte address 0x4 - core index']
  #allocation1 [shape = 'u32[144,128]{1,0:T(1,128)}', space=vmem, size = 0x12000, scoped, tag = 'internal scratch']
  %s0 = inlined_call_operand.vmem [shape: bf16[64,24], index: 0, kind: input, shape index: {}]
  %s1 = inlined_call_operand.vmem [shape: bf16[24,144], index: 1, kind: input, shape index: {}]
  %s2 = inlined_call_operand.vmem [shape: f32[1,144], index: 2, kind: input, shape index: {}]
  %s3 = inlined_call_operand.vmem [shape: bf16[64,144], index: 3, kind: output, shape index: {}]
  %s4 = sld [smem:[#allocation0]]
  $region22: #{mobilenet_perceptual_loss.31} parent=0
    _
  %s6 = ssub.s32 1, %s4
  %s7 = scalar_select 0, %s6, %s4
  // Predicated region
  $region2: #{mobilenet_perceptual_loss.31} parent=0 // pred_check
    _
  $region3: #{mobilenet_perceptual_loss.31} parent=0 // pred_check_branch
    %9 = sbr.rel (0) target = $region5
  $region4: #{mobilenet_perceptual_loss.31} parent=0 // pred_region
    _
  $region5: #{mobilenet_perceptual_loss.31} parent=0 // pred_fallthru
    _
  // Predicated region
  $region6: #{mobilenet_perceptual_loss.31} parent=0 // pred_check
    _
  $region7: #{mobilenet_perceptual_loss.31} parent=0 // pred_check_branch
    %11 = sbr.rel (0) target = $region9
  $region8: #{mobilenet_perceptual_loss.31} parent=0 // pred_region
    _
  $region9: #{mobilenet_perceptual_loss.31} parent=0 // pred_fallthru
    _
  // Predicated region
  $region10: #{mobilenet_perceptual_loss.31} parent=0 // pred_check
    _
  $region11: #{mobilenet_perceptual_loss.31} parent=0 // pred_check_branch
    %13 = sbr.rel (0) target = $region13
  $region12: #{mobilenet_perceptual_loss.31} parent=0 // pred_region
    _
  $region13: #{mobilenet_perceptual_loss.31} parent=0 // pred_fallthru
    _
  %v15 = vld [vmem:[%s0] sm:$0xf]
  %v16 = vld [vmem:[%s0 + $0x4] sm:$0xf]
  %v17 = vld [vmem:[%s0 + $0x8] sm:$0xf]
  %v18 = vld [vmem:[%s0 + $0xc] sm:$0xf]
  %v19 = vld [vmem:[%s0 + $0x10] sm:$0xf]
  %v20 = vld [vmem:[%s0 + $0x14] sm:$0xf]
  %v21 = vld [vmem:[%s0 + $0x18] sm:$0xf]
  %v22 = vld [vmem:[%s0 + $0x1c] sm:$0xf]
  %v23 = vld [vmem:[%s1] sm:$0xff]
  %v24 = vld [vmem:[%s1 + $0x8] sm:$0xff]
  %v25 = vld [vmem:[%s1 + $0x10] sm:$0xff]
  %v26 = vld [vmem:[%s2] sm:$0x3]
  %v28 = vlaneseq
  %v29 = vshrl.u32 %v28, 7
  %v30 = vsub.s32 0, %v29
  %v31 = vrot.slane %v26, %v30
  %v32 = vlaneseq
  %v33 = vshrl.u32 %v32, 7
  %v34 = vsub.s32 1, %v33
  %v35 = vrot.slane %v26, %v34
  %v46 = vunpack.c.l.b16 %v15
  %v47 = vunpack.c.l.b16 %v16
  %v48 = vunpack.c.l.b16 %v17
  %v49 = vunpack.c.l.b16 %v18
  %v50 = vunpack.c.l.b16 %v19
  %v51 = vunpack.c.l.b16 %v20
  %v52 = vunpack.c.l.b16 %v21
  %v53 = vunpack.c.l.b16 %v22
  %v54 = vpack.c.b16 %v47, %v46
  %v55 = vpack.c.b16 %v49, %v48
  %v56 = vpack.c.b16 %v51, %v50
  %v57 = vpack.c.b16 %v53, %v52
  %v61 = vunpack.c.l.b16 %v23
  %v62 = vunpack.c.h.b16 %v23
  %v63 = vunpack.c.l.b16 %v24
  %v64 = vunpack.c.h.b16 %v24
  %v65 = vunpack.c.l.b16 %v25
  %v66 = vunpack.c.h.b16 %v25
  %v67 = vpack.c.b16 %v63, %v61
  %v68 = vpack.c.b16 %v64, %v62
  %v69 = vpack.c.b16 %v65, %v65
  %v70 = vpack.c.b16 %v66, %v66
  %vm73 = vcmask 195584
  %v75 = vsel %vm73, %v54, 0
  %v78 = vsel %vm73, %v55, 0
  %v81 = vsel %vm73, %v56, 0
  %v84 = vsel %vm73, %v57, 0
  %vm86 = vcmask 1043456
  %v88 = vsel %vm86, %v69, 0
  %v91 = vsel %vm86, %v70, 0
  %93 = vmatprep.subr.bf16.mxu0 0
  %94 = vmatpush1.bf16.msra.mxu0 0
  %95 = vmatprep.subr.bf16.mxu0 0
  %96 = vmatpush1.bf16.msra.mxu0 0
  %97 = vmatprep.subr.bf16.mxu0 0
  %98 = vmatpush1.bf16.msra.mxu0 0
  %99 = vmatprep.subr.bf16.mxu0 0
  %100 = vmatpush1.bf16.msra.mxu0 0
  %101 = vmatprep.subr.bf16.mxu0 0
  %102 = vmatpush1.bf16.msra.mxu0 0
  %103 = vmatprep.subr.bf16.mxu0 0
  %104 = vmatpush1.bf16.msra.mxu0 0
  %105 = vmatprep.subr.bf16.mxu0 %v91
  %106 = vmatpush1.bf16.msra.mxu0 %v88
  %107 = vmatprep.subr.bf16.mxu0 %v68
  %108 = vmatpush1.bf16.msra.mxu0 %v67
  %109 = vmatprep.subr.bf16.mxu0 0
  %110 = vmatpush2.bf16.msra.mxu0 0
  %111 = vmatprep.subr.bf16.mxu0 0
  %112 = vmatpush2.bf16.msra.mxu0 0
  %113 = vmatprep.subr.bf16.mxu0 0
  %114 = vmatpush2.bf16.msra.mxu0 0
  %115 = vmatprep.subr.bf16.mxu0 0
  %116 = vmatpush2.bf16.msra.mxu0 0
  %117 = vmatprep.subr.bf16.mxu0 0
  %118 = vmatpush2.bf16.msra.mxu0 0
  %119 = vmatprep.subr.bf16.mxu0 0
  %120 = vmatpush2.bf16.msra.mxu0 0
  %121 = vmatprep.subr.bf16.mxu0 0
  %122 = vmatpush2.bf16.msra.mxu0 0
  %123 = vmatprep.subr.bf16.mxu0 0
  %124 = vmatpush2.bf16.msra.mxu0 0
  %125 = vmatprep.mubr.bf16.mxu0 0
  %126 = vmatmul.mubr.bf16.gmra.mxu0 %v75
  %v127 = vpop.f32.mrf.mxu0
  %v128 = vadd.f32 %v31, %v127
  %v129 = vpop.f32.mrf.mxu0
  %v130 = vadd.f32 %v35, %v129
  %v131 = vpop.f32.mrf.mxu0
  %v132 = vadd.f32 %v31, %v131
  %v133 = vpop.f32.mrf.mxu0
  %v134 = vadd.f32 %v35, %v133
  %135 = vmatprep.mubr.bf16.mxu0 0
  %136 = vmatmul.mubr.bf16.gmra.mxu0 %v78
  %v137 = vpop.f32.mrf.mxu0
  %v138 = vadd.f32 %v31, %v137
  %v139 = vpop.f32.mrf.mxu0
  %v140 = vadd.f32 %v35, %v139
  %v141 = vpop.f32.mrf.mxu0
  %v142 = vadd.f32 %v31, %v141
  %v143 = vpop.f32.mrf.mxu0
  %v144 = vadd.f32 %v35, %v143
  %145 = vmatprep.mubr.bf16.mxu0 0
  %146 = vmatmul.mubr.bf16.gmra.mxu0 %v81
  %v147 = vpop.f32.mrf.mxu0
  %v148 = vadd.f32 %v31, %v147
  %v149 = vpop.f32.mrf.mxu0
  %v150 = vadd.f32 %v35, %v149
  %v151 = vpop.f32.mrf.mxu0
  %v152 = vadd.f32 %v31, %v151
  %v153 = vpop.f32.mrf.mxu0
  %v154 = vadd.f32 %v35, %v153
  %155 = vmatprep.mubr.bf16.mxu0 0
  %156 = vmatmul.mubr.bf16.gmra.mxu0 %v84
  %v157 = vpop.f32.mrf.mxu0
  %v158 = vadd.f32 %v31, %v157
  %v159 = vpop.f32.mrf.mxu0
  %v160 = vadd.f32 %v35, %v159
  %v161 = vpop.f32.mrf.mxu0
  %v162 = vadd.f32 %v31, %v161
  %v163 = vpop.f32.mrf.mxu0
  %v164 = vadd.f32 %v35, %v163
  %165 = vdwg.mxu0
  %v166 = vmax.f32 %v128, 0.0
  %v167 = vmax.f32 %v130, 0.0
  %v168 = vmax.f32 %v132, 0.0
  %v169 = vmax.f32 %v134, 0.0
  %v170 = vmax.f32 %v138, 0.0
  %v171 = vmax.f32 %v140, 0.0
  %v172 = vmax.f32 %v142, 0.0
  %v173 = vmax.f32 %v144, 0.0
  %v174 = vmax.f32 %v148, 0.0
  %v175 = vmax.f32 %v150, 0.0
  %v176 = vmax.f32 %v152, 0.0
  %v177 = vmax.f32 %v154, 0.0
  %v178 = vmax.f32 %v158, 0.0
  %v179 = vmax.f32 %v160, 0.0
  %v180 = vmax.f32 %v162, 0.0
  %v181 = vmax.f32 %v164, 0.0
  %v182 = vmin.f32 %v166, 6.0
  %v183 = vmin.f32 %v167, 6.0
  %v184 = vmin.f32 %v168, 6.0
  %v185 = vmin.f32 %v169, 6.0
  %v186 = vmin.f32 %v170, 6.0
  %v187 = vmin.f32 %v171, 6.0
  %v188 = vmin.f32 %v172, 6.0
  %v189 = vmin.f32 %v173, 6.0
  %v190 = vmin.f32 %v174, 6.0
  %v191 = vmin.f32 %v175, 6.0
  %v192 = vmin.f32 %v176, 6.0
  %v193 = vmin.f32 %v177, 6.0
  %v194 = vmin.f32 %v178, 6.0
  %v195 = vmin.f32 %v179, 6.0
  %v196 = vmin.f32 %v180, 6.0
  %v197 = vmin.f32 %v181, 6.0
  %v198 = vpack.c.bf16 %v184, %v182
  %v199 = vpack.c.bf16 %v185, %v183
  %v200 = vpack.c.bf16 %v188, %v186
  %v201 = vpack.c.bf16 %v189, %v187
  %v202 = vpack.c.bf16 %v192, %v190
  %v203 = vpack.c.bf16 %v193, %v191
  %v204 = vpack.c.bf16 %v196, %v194
  %v205 = vpack.c.bf16 %v197, %v195
  %v214 = vunpack.c.l.b16 %v198
  %v215 = vunpack.c.l.b16 %v199
  %v216 = vunpack.c.h.b16 %v198
  %v217 = vunpack.c.h.b16 %v199
  %v218 = vunpack.c.l.b16 %v200
  %v219 = vunpack.c.l.b16 %v201
  %v220 = vunpack.c.h.b16 %v200
  %v221 = vunpack.c.h.b16 %v201
  %v222 = vunpack.c.l.b16 %v202
  %v223 = vunpack.c.l.b16 %v203
  %v224 = vunpack.c.h.b16 %v202
  %v225 = vunpack.c.h.b16 %v203
  %v226 = vunpack.c.l.b16 %v204
  %v227 = vunpack.c.l.b16 %v205
  %v228 = vunpack.c.h.b16 %v204
  %v229 = vunpack.c.h.b16 %v205
  %v230 = vpack.c.b16 %v215, %v214
  %v231 = vpack.c.b16 %v217, %v216
  %v232 = vpack.c.b16 %v219, %v218
  %v233 = vpack.c.b16 %v221, %v220
  %v234 = vpack.c.b16 %v223, %v222
  %v235 = vpack.c.b16 %v225, %v224
  %v236 = vpack.c.b16 %v227, %v226
  %v237 = vpack.c.b16 %v229, %v228
  %vm246 = vcmask 130052
  %vm247 = vmor %vm246, %vm86
  %248 = vst.msk [vmem:[%s3] sm:$0xff] %vm247, %v230
  %249 = vst.msk [vmem:[%s3 + $0x8] sm:$0xff] %vm247, %v231
  %250 = vst.msk [vmem:[%s3 + $0x10] sm:$0xff] %vm247, %v232
  %251 = vst.msk [vmem:[%s3 + $0x18] sm:$0xff] %vm247, %v233
  %252 = vst.msk [vmem:[%s3 + $0x20] sm:$0xff] %vm247, %v234
  %253 = vst.msk [vmem:[%s3 + $0x28] sm:$0xff] %vm247, %v235
  %254 = vst.msk [vmem:[%s3 + $0x30] sm:$0xff] %vm247, %v236
  %255 = vst.msk [vmem:[%s3 + $0x38] sm:$0xff] %vm247, %v237
  // Predicated region
  $region14: #{mobilenet_perceptual_loss.31} parent=0 // pred_check
    _
  $region15: #{mobilenet_perceptual_loss.31} parent=0 // pred_check_branch
    %257 = sbr.rel (0) target = $region17
  $region16: #{mobilenet_perceptual_loss.31} parent=0 // pred_region
    _
  $region17: #{mobilenet_perceptual_loss.31} parent=0 // pred_fallthru
    _
  // Predicated region
  $region18: #{mobilenet_perceptual_loss.31} parent=0 // pred_check
    _
  $region19: #{mobilenet_perceptual_loss.31} parent=0 // pred_check_branch
    %259 = sbr.rel (0) target = $region21
  $region20: #{mobilenet_perceptual_loss.31} parent=0 // pred_region
    _
  $region21: #{mobilenet_perceptual_loss.31} parent=0 // pred_fallthru
    _

// kernel: mobilenet_perceptual_loss.32
$region0: #{mobilenet_perceptual_loss.32}
  #allocation0 [shape = 'u32[]', space=smem, size = 0x4, offset = 0x4, fixed_abs, tag = 'smem constant byte address 0x4 - core index']
  #allocation1 [shape = 'u32[144,128]{1,0:T(1,128)}', space=vmem, size = 0x12000, scoped, tag = 'internal scratch']
  %s0 = inlined_call_operand.vmem [shape: bf16[4,6,6,144], index: 0, kind: input, shape index: {}]
  %s1 = inlined_call_operand.vmem [shape: f32[9,144], index: 1, kind: input, shape index: {}]
  %s2 = inlined_call_operand.vmem [shape: f32[1,144], index: 2, kind: input, shape index: {}]
  %s3 = inlined_call_operand.vmem [shape: bf16[4,4,4,144], index: 3, kind: output, shape index: {}]
  %s4 = sld [smem:[#allocation0]]
  $region45: #{mobilenet_perceptual_loss.32} parent=0
    _
  %s6 = ssub.s32 1, %s4
  %s7 = scalar_select 0, %s6, %s4
  loop: start=0, step=1, limit=6
  $region2: #{mobilenet_perceptual_loss.32} parent=0 // loop_pre_header
    _
  $region3: #{mobilenet_perceptual_loss.32} parent=0 // loop_header
    %s9 = sphi 0, %s13
    %p10 = scmp.ge.s32.totalorder %s9, 6
    %s19 = sphi 0, %s21
    %s22 = sphi 0, %s19
    %s23 = sphi 0, %s22
    %s39 = sphi 0, %s23
    %s43 = sphi 0, %s43
    %s45 = sphi 0, %s43
    %s46 = sphi 0, %s45
    %s60 = sphi 0, %s46
    %s64 = sphi 0, %s64
    %s66 = sphi 0, %s64
    %s67 = sphi 0, %s66
    %s81 = sphi 0, %s67
    %s87 = sphi 0, %s89
    %s90 = sphi 0, %s87
    %s91 = sphi 0, %s90
    %s107 = sphi 0, %s91
  $region4: #{mobilenet_perceptual_loss.32} parent=0 // loop_header_branch
    %12 = sbr.rel (%p10) target = $region8
  $region5: #{mobilenet_perceptual_loss.32} parent=0 // loop_body
    %s14 = ssub.s32 %s9, 1
    %s15 = ssub.s32 %s9, 2
    %s16 = sadd.s32 %s9, 1
    %s17 = ssub.s32 %s9, %s16
    %p18 = scmp.eq.s32.totalorder %s17, 0
    %s20 = sadd.s32 %s19, 1
    %s21 = scalar_select %p18, %s19, %s20
    %p24 = pneg %p18
    %p25 = scmp.eq.s32.totalorder %s9, 3
    %p26 = por %p24, %p25
    %p27 = scmp.ne.s32.totalorder %s19, %s22
    %p28 = scmp.eq.s32.totalorder %s9, 0
    %p29 = por %p27, %p28
    %p30 = scmp.ne.s32.totalorder %s19, %s22
    %p31 = scmp.eq.s32.totalorder %s14, 3
    %p32 = por %p30, %p31
    %p33 = scmp.ne.s32.totalorder %s22, %s23
    %p34 = scmp.eq.s32.totalorder %s14, 0
    %p35 = por %p33, %p34
    %p36 = scmp.ne.s32.totalorder %s22, %s23
    %p37 = scmp.eq.s32.totalorder %s15, 3
    %p38 = por %p36, %p37
    %p40 = scmp.ne.s32.totalorder %s23, %s39
    %p41 = scmp.eq.s32.totalorder %s15, 0
    %p42 = por %p40, %p41
    %s44 = sadd.s32 %s43, 1
    %p47 = scmp.eq.s32.totalorder %s9, 3
    %p48 = scmp.ne.s32.totalorder %s43, %s45
    %p49 = scmp.eq.s32.totalorder %s9, 0
    %p50 = por %p48, %p49
    %p51 = scmp.ne.s32.totalorder %s43, %s45
    %p52 = scmp.eq.s32.totalorder %s14, 3
    %p53 = por %p51, %p52
    %p54 = scmp.ne.s32.totalorder %s45, %s46
    %p55 = scmp.eq.s32.totalorder %s14, 0
    %p56 = por %p54, %p55
    %p57 = scmp.ne.s32.totalorder %s45, %s46
    %p58 = scmp.eq.s32.totalorder %s15, 3
    %p59 = por %p57, %p58
    %p61 = scmp.ne.s32.totalorder %s46, %s60
    %p62 = scmp.eq.s32.totalorder %s15, 0
    %p63 = por %p61, %p62
    %s65 = sadd.s32 %s64, 1
    %p68 = scmp.eq.s32.totalorder %s9, 3
    %p69 = scmp.ne.s32.totalorder %s64, %s66
    %p70 = scmp.eq.s32.totalorder %s9, 0
    %p71 = por %p69, %p70
    %p72 = scmp.ne.s32.totalorder %s64, %s66
    %p73 = scmp.eq.s32.totalorder %s14, 3
    %p74 = por %p72, %p73
    %p75 = scmp.ne.s32.totalorder %s66, %s67
    %p76 = scmp.eq.s32.totalorder %s14, 0
    %p77 = por %p75, %p76
    %p78 = scmp.ne.s32.totalorder %s66, %s67
    %p79 = scmp.eq.s32.totalorder %s15, 3
    %p80 = por %p78, %p79
    %p82 = scmp.ne.s32.totalorder %s67, %s81
    %p83 = scmp.eq.s32.totalorder %s15, 0
    %p84 = por %p82, %p83
    %s85 = ssub.s32 %s9, %s16
    %p86 = scmp.eq.s32.totalorder %s85, 0
    %s88 = sadd.s32 %s87, 1
    %s89 = scalar_select %p86, %s87, %s88
    %p92 = pneg %p86
    %p93 = scmp.eq.s32.totalorder %s9, 3
    %p94 = por %p92, %p93
    %p95 = scmp.ne.s32.totalorder %s87, %s90
    %p96 = scmp.eq.s32.totalorder %s9, 0
    %p97 = por %p95, %p96
    %p98 = scmp.ne.s32.totalorder %s87, %s90
    %p99 = scmp.eq.s32.totalorder %s14, 3
    %p100 = por %p98, %p99
    %p101 = scmp.ne.s32.totalorder %s90, %s91
    %p102 = scmp.eq.s32.totalorder %s14, 0
    %p103 = por %p101, %p102
    %p104 = scmp.ne.s32.totalorder %s90, %s91
    %p105 = scmp.eq.s32.totalorder %s15, 3
    %p106 = por %p104, %p105
    %p108 = scmp.ne.s32.totalorder %s91, %s107
    %p109 = scmp.eq.s32.totalorder %s15, 0
    %p110 = por %p108, %p109
    %p111 = scmp.le.s32.totalorder 1, %s9
    %p112 = scmp.lt.s32.totalorder %s9, 5
    %p113 = pnand %p111, %p112
    %p114 = pneg %p113
    // Predicated region
    $region9: #{mobilenet_perceptual_loss.32} parent=5 // pred_check
      _
    $region10: #{mobilenet_perceptual_loss.32} parent=5 // pred_check_branch
      %116 = sbr.rel (%p113) target = $region12
    $region11: #{mobilenet_perceptual_loss.32} parent=5 // pred_region
      %s117 = ssub.s32 %s9, 1
      // Predicated region
      $region13: #{mobilenet_perceptual_loss.32} parent=11 // pred_check
        %p118 = pneg %p56
      $region14: #{mobilenet_perceptual_loss.32} parent=11 // pred_check_branch
        %120 = sbr.rel (%p118) target = $region16
      $region15: #{mobilenet_perceptual_loss.32} parent=11 // pred_region
        _
      $region16: #{mobilenet_perceptual_loss.32} parent=11 // pred_fallthru
        _
      // Predicated region
      $region17: #{mobilenet_perceptual_loss.32} parent=11 // pred_check
        %p121 = pneg %p77
      $region18: #{mobilenet_perceptual_loss.32} parent=11 // pred_check_branch
        %123 = sbr.rel (%p121) target = $region20
      $region19: #{mobilenet_perceptual_loss.32} parent=11 // pred_region
        _
      $region20: #{mobilenet_perceptual_loss.32} parent=11 // pred_fallthru
        _
    $region12: #{mobilenet_perceptual_loss.32} parent=5 // pred_fallthru
      _
    %p124 = scmp.lt.s32.totalorder %s9, 4
    // Predicated region
    $region21: #{mobilenet_perceptual_loss.32} parent=5 // pred_check
      %p125 = pneg %p124
    $region22: #{mobilenet_perceptual_loss.32} parent=5 // pred_check_branch
      %127 = sbr.rel (%p125) target = $region24
    $region23: #{mobilenet_perceptual_loss.32} parent=5 // pred_region
      // Predicated region
      $region25: #{mobilenet_perceptual_loss.32} parent=23 // pred_check
        %p128 = pneg %p29
      $region26: #{mobilenet_perceptual_loss.32} parent=23 // pred_check_branch
        %130 = sbr.rel (%p128) target = $region28
      $region27: #{mobilenet_perceptual_loss.32} parent=23 // pred_region
        %p131 = scmp.lt.s32.totalorder %s9, 3
        %s132 = scalar_select %p131, %s9, 3
        %s133 = smul.addr %s132, 12
        %s134 = smul.addr %s133, 4
        %s135 = scalar_lea.vmem %s0, %s134
      $region28: #{mobilenet_perceptual_loss.32} parent=23 // pred_fallthru
        _
    $region24: #{mobilenet_perceptual_loss.32} parent=5 // pred_fallthru
      _
    %p136 = scmp.le.s32.totalorder 1, %s9
    %p137 = scmp.lt.s32.totalorder %s9, 5
    %p138 = pnand %p136, %p137
    %p139 = pneg %p138
    // Predicated region
    $region29: #{mobilenet_perceptual_loss.32} parent=5 // pred_check
      _
    $region30: #{mobilenet_perceptual_loss.32} parent=5 // pred_check_branch
      %141 = sbr.rel (%p138) target = $region32
    $region31: #{mobilenet_perceptual_loss.32} parent=5 // pred_region
      %s142 = ssub.s32 %s9, 1
      %p143 = scmp.lt.s32.totalorder %s14, 3
      %s144 = scalar_select %p143, %s14, 3
      %s145 = smul.addr %s144, 12
      %s146 = smul.addr %s145, 4
      %s147 = scalar_lea.vmem %s0, %s146
      %p148 = pneg %p35
      %p149 = pneg %p32
      %p150 = pneg %p56
      %p151 = pneg %p53
      %p152 = pneg %p77
      %p153 = pneg %p74
      %p154 = pneg %p103
      %p155 = pneg %p100
      %p156 = scmp.lt.s32.totalorder %s14, 3
      %s157 = scalar_select %p156, %s14, 3
      %s158 = smul.addr %s157, 8
      %s159 = smul.addr %s158, 2
      %s160 = scalar_lea.vmem %s3, %s159
      %p161 = scmp.lt.s32.totalorder %s14, 3
      %s162 = scalar_select %p161, %s14, 3
      %s163 = smul.addr %s162, 12
      %s164 = smul.addr %s163, 4
      %s165 = scalar_lea.vmem %s0, %s164
      %p166 = scmp.lt.s32.totalorder %s14, 3
      %s167 = scalar_select %p166, %s14, 3
      %s168 = smul.addr %s167, 8
      %s169 = smul.addr %s168, 2
      %s170 = scalar_lea.vmem %s3, %s169
      %v171 = vld [vmem:[%s165] sm:$0x77]
      %v172 = vld [vmem:[%s165 + $0x8] sm:$0x77]
      %v173 = vld [vmem:[%s165 + $0x10] sm:$0x77]
      %v174 = vld [vmem:[%s165 + $0x18] sm:$0x77]
      %v175 = vld [vmem:[%s165 + $0x20] sm:$0x77]
      %v176 = vld [vmem:[%s165 + $0x28] sm:$0x77]
      %v177 = vunpack.c.l.bf16 %v171
      %v178 = vunpack.c.h.bf16 %v171
      %v179 = vunpack.c.l.bf16 %v172
      %v180 = vunpack.c.h.bf16 %v172
      %v181 = vunpack.c.l.bf16 %v173
      %v182 = vunpack.c.h.bf16 %v173
      %v183 = vunpack.c.l.bf16 %v174
      %v184 = vunpack.c.h.bf16 %v174
      %v185 = vunpack.c.l.bf16 %v175
      %v186 = vunpack.c.h.bf16 %v175
      %v187 = vunpack.c.l.bf16 %v176
      %v188 = vunpack.c.h.bf16 %v176
      %v189 = vld [vmem:[%s1] ss:$8 sm:$0x3]
      %v191 = vlaneseq
      %v192 = vshrl.u32 %v191, 7
      %v193 = vsub.s32 0, %v192
      %v194 = vrot.slane %v189, %v193
      %v195 = vlaneseq
      %v196 = vshrl.u32 %v195, 7
      %v197 = vsub.s32 1, %v196
      %v198 = vrot.slane %v189, %v197
      %v201 = vmul.f32 %v177, %v194
      %v202 = vmul.f32 %v178, %v198
      %v203 = vmul.f32 %v179, %v194
      %v204 = vmul.f32 %v180, %v198
      %v205 = vmul.f32 %v181, %v194
      %v206 = vmul.f32 %v182, %v198
      %v207 = vmul.f32 %v183, %v194
      %v208 = vmul.f32 %v184, %v198
      %v209 = vadd.f32 %v201, 0.0
      %v210 = vadd.f32 %v202, 0.0
      %v211 = vadd.f32 %v203, 0.0
      %v212 = vadd.f32 %v204, 0.0
      %v213 = vadd.f32 %v205, 0.0
      %v214 = vadd.f32 %v206, 0.0
      %v215 = vadd.f32 %v207, 0.0
      %v216 = vadd.f32 %v208, 0.0
      %s217 = scalar_lea.vmem %s1, 1
      %v218 = vld [vmem:[%s217] ss:$8 sm:$0x3]
      %v220 = vlaneseq
      %v221 = vshrl.u32 %v220, 7
      %v222 = vsub.s32 0, %v221
      %v223 = vrot.slane %v218, %v222
      %v224 = vlaneseq
      %v225 = vshrl.u32 %v224, 7
      %v226 = vsub.s32 1, %v225
      %v227 = vrot.slane %v218, %v226
      %v230 = vmul.f32 %v177, %v223
      %v231 = vmul.f32 %v178, %v227
      %v232 = vmul.f32 %v179, %v223
      %v233 = vmul.f32 %v180, %v227
      %v234 = vmul.f32 %v181, %v223
      %v235 = vmul.f32 %v182, %v227
      %v236 = vmul.f32 %v183, %v223
      %v237 = vmul.f32 %v184, %v227
      %v246 = vrot.slane %v230, 1
      %v247 = vrot.slane %v231, 1
      %v248 = vrot.slane %v232, 1
      %v249 = vrot.slane %v233, 1
      %v250 = vrot.slane %v234, 1
      %v251 = vrot.slane %v235, 1
      %v252 = vrot.slane %v236, 1
      %v253 = vrot.slane %v237, 1
      %v262 = vadd.f32 %v209, %v246
      %v263 = vadd.f32 %v210, %v247
      %v264 = vadd.f32 %v211, %v248
      %v265 = vadd.f32 %v212, %v249
      %v266 = vadd.f32 %v213, %v250
      %v267 = vadd.f32 %v214, %v251
      %v268 = vadd.f32 %v215, %v252
      %v269 = vadd.f32 %v216, %v253
      %s270 = scalar_lea.vmem %s1, 2
      %v271 = vld [vmem:[%s270] ss:$8 sm:$0x3]
      %v273 = vlaneseq
      %v274 = vshrl.u32 %v273, 7
      %v275 = vsub.s32 0, %v274
      %v276 = vrot.slane %v271, %v275
      %v277 = vlaneseq
      %v278 = vshrl.u32 %v277, 7
      %v279 = vsub.s32 1, %v278
      %v280 = vrot.slane %v271, %v279
      %v283 = vmul.f32 %v177, %v276
      %v284 = vmul.f32 %v178, %v280
      %v285 = vmul.f32 %v179, %v276
      %v286 = vmul.f32 %v180, %v280
      %v287 = vmul.f32 %v181, %v276
      %v288 = vmul.f32 %v182, %v280
      %v289 = vmul.f32 %v183, %v276
      %v290 = vmul.f32 %v184, %v280
      %v299 = vrot.slane %v283, 2
      %v300 = vrot.slane %v284, 2
      %v301 = vrot.slane %v285, 2
      %v302 = vrot.slane %v286, 2
      %v303 = vrot.slane %v287, 2
      %v304 = vrot.slane %v288, 2
      %v305 = vrot.slane %v289, 2
      %v306 = vrot.slane %v290, 2
      %v315 = vadd.f32 %v262, %v299
      %v316 = vadd.f32 %v263, %v300
      %v317 = vadd.f32 %v264, %v301
      %v318 = vadd.f32 %v265, %v302
      %v319 = vadd.f32 %v266, %v303
      %v320 = vadd.f32 %v267, %v304
      %v321 = vadd.f32 %v268, %v305
      %v322 = vadd.f32 %v269, %v306
      %s323 = scalar_lea.vmem %s1, 3
      %v324 = vld [vmem:[%s323] ss:$8 sm:$0x3]
      %v326 = vlaneseq
      %v327 = vshrl.u32 %v326, 7
      %v328 = vsub.s32 0, %v327
      %v329 = vrot.slane %v324, %v328
      %v330 = vlaneseq
      %v331 = vshrl.u32 %v330, 7
      %v332 = vsub.s32 1, %v331
      %v333 = vrot.slane %v324, %v332
      %v336 = vmul.f32 %v179, %v329
      %v337 = vmul.f32 %v180, %v333
      %v338 = vmul.f32 %v181, %v329
      %v339 = vmul.f32 %v182, %v333
      %v340 = vmul.f32 %v183, %v329
      %v341 = vmul.f32 %v184, %v333
      %v342 = vmul.f32 %v185, %v329
      %v343 = vmul.f32 %v186, %v333
      %v344 = vadd.f32 %v315, %v336
      %v345 = vadd.f32 %v316, %v337
      %v346 = vadd.f32 %v317, %v338
      %v347 = vadd.f32 %v318, %v339
      %v348 = vadd.f32 %v319, %v340
      %v349 = vadd.f32 %v320, %v341
      %v350 = vadd.f32 %v321, %v342
      %v351 = vadd.f32 %v322, %v343
      %s352 = scalar_lea.vmem %s1, 4
      %v353 = vld [vmem:[%s352] ss:$8 sm:$0x3]
      %v355 = vlaneseq
      %v356 = vshrl.u32 %v355, 7
      %v357 = vsub.s32 0, %v356
      %v358 = vrot.slane %v353, %v357
      %v359 = vlaneseq
      %v360 = vshrl.u32 %v359, 7
      %v361 = vsub.s32 1, %v360
      %v362 = vrot.slane %v353, %v361
      %v365 = vmul.f32 %v179, %v358
      %v366 = vmul.f32 %v180, %v362
      %v367 = vmul.f32 %v181, %v358
      %v368 = vmul.f32 %v182, %v362
      %v369 = vmul.f32 %v183, %v358
      %v370 = vmul.f32 %v184, %v362
      %v371 = vmul.f32 %v185, %v358
      %v372 = vmul.f32 %v186, %v362
      %v381 = vrot.slane %v365, 1
      %v382 = vrot.slane %v366, 1
      %v383 = vrot.slane %v367, 1
      %v384 = vrot.slane %v368, 1
      %v385 = vrot.slane %v369, 1
      %v386 = vrot.slane %v370, 1
      %v387 = vrot.slane %v371, 1
      %v388 = vrot.slane %v372, 1
      %v397 = vadd.f32 %v344, %v381
      %v398 = vadd.f32 %v345, %v382
      %v399 = vadd.f32 %v346, %v383
      %v400 = vadd.f32 %v347, %v384
      %v401 = vadd.f32 %v348, %v385
      %v402 = vadd.f32 %v349, %v386
      %v403 = vadd.f32 %v350, %v387
      %v404 = vadd.f32 %v351, %v388
      %s405 = scalar_lea.vmem %s1, 5
      %v406 = vld [vmem:[%s405] ss:$8 sm:$0x3]
      %v408 = vlaneseq
      %v409 = vshrl.u32 %v408, 7
      %v410 = vsub.s32 0, %v409
      %v411 = vrot.slane %v406, %v410
      %v412 = vlaneseq
      %v413 = vshrl.u32 %v412, 7
      %v414 = vsub.s32 1, %v413
      %v415 = vrot.slane %v406, %v414
      %v418 = vmul.f32 %v179, %v411
      %v419 = vmul.f32 %v180, %v415
      %v420 = vmul.f32 %v181, %v411
      %v421 = vmul.f32 %v182, %v415
      %v422 = vmul.f32 %v183, %v411
      %v423 = vmul.f32 %v184, %v415
      %v424 = vmul.f32 %v185, %v411
      %v425 = vmul.f32 %v186, %v415
      %v434 = vrot.slane %v418, 2
      %v435 = vrot.slane %v419, 2
      %v436 = vrot.slane %v420, 2
      %v437 = vrot.slane %v421, 2
      %v438 = vrot.slane %v422, 2
      %v439 = vrot.slane %v423, 2
      %v440 = vrot.slane %v424, 2
      %v441 = vrot.slane %v425, 2
      %v450 = vadd.f32 %v397, %v434
      %v451 = vadd.f32 %v398, %v435
      %v452 = vadd.f32 %v399, %v436
      %v453 = vadd.f32 %v400, %v437
      %v454 = vadd.f32 %v401, %v438
      %v455 = vadd.f32 %v402, %v439
      %v456 = vadd.f32 %v403, %v440
      %v457 = vadd.f32 %v404, %v441
      %s458 = scalar_lea.vmem %s1, 6
      %v459 = vld [vmem:[%s458] ss:$8 sm:$0x3]
      %v461 = vlaneseq
      %v462 = vshrl.u32 %v461, 7
      %v463 = vsub.s32 0, %v462
      %v464 = vrot.slane %v459, %v463
      %v465 = vlaneseq
      %v466 = vshrl.u32 %v465, 7
      %v467 = vsub.s32 1, %v466
      %v468 = vrot.slane %v459, %v467
      %v471 = vmul.f32 %v181, %v464
      %v472 = vmul.f32 %v182, %v468
      %v473 = vmul.f32 %v183, %v464
      %v474 = vmul.f32 %v184, %v468
      %v475 = vmul.f32 %v185, %v464
      %v476 = vmul.f32 %v186, %v468
      %v477 = vmul.f32 %v187, %v464
      %v478 = vmul.f32 %v188, %v468
      %v479 = vadd.f32 %v450, %v471
      %v480 = vadd.f32 %v451, %v472
      %v481 = vadd.f32 %v452, %v473
      %v482 = vadd.f32 %v453, %v474
      %v483 = vadd.f32 %v454, %v475
      %v484 = vadd.f32 %v455, %v476
      %v485 = vadd.f32 %v456, %v477
      %v486 = vadd.f32 %v457, %v478
      %s487 = scalar_lea.vmem %s1, 7
      %v488 = vld [vmem:[%s487] ss:$8 sm:$0x3]
      %v490 = vlaneseq
      %v491 = vshrl.u32 %v490, 7
      %v492 = vsub.s32 0, %v491
      %v493 = vrot.slane %v488, %v492
      %v494 = vlaneseq
      %v495 = vshrl.u32 %v494, 7
      %v496 = vsub.s32 1, %v495
      %v497 = vrot.slane %v488, %v496
      %v500 = vmul.f32 %v181, %v493
      %v501 = vmul.f32 %v182, %v497
      %v502 = vmul.f32 %v183, %v493
      %v503 = vmul.f32 %v184, %v497
      %v504 = vmul.f32 %v185, %v493
      %v505 = vmul.f32 %v186, %v497
      %v506 = vmul.f32 %v187, %v493
      %v507 = vmul.f32 %v188, %v497
      %v516 = vrot.slane %v500, 1
      %v517 = vrot.slane %v501, 1
      %v518 = vrot.slane %v502, 1
      %v519 = vrot.slane %v503, 1
      %v520 = vrot.slane %v504, 1
      %v521 = vrot.slane %v505, 1
      %v522 = vrot.slane %v506, 1
      %v523 = vrot.slane %v507, 1
      %v532 = vadd.f32 %v479, %v516
      %v533 = vadd.f32 %v480, %v517
      %v534 = vadd.f32 %v481, %v518
      %v535 = vadd.f32 %v482, %v519
      %v536 = vadd.f32 %v483, %v520
      %v537 = vadd.f32 %v484, %v521
      %v538 = vadd.f32 %v485, %v522
      %v539 = vadd.f32 %v486, %v523
      %s540 = scalar_lea.vmem %s1, 16
      %v541 = vld [vmem:[%s540] ss:$8 sm:$0x3]
      %v543 = vlaneseq
      %v544 = vshrl.u32 %v543, 7
      %v545 = vsub.s32 0, %v544
      %v546 = vrot.slane %v541, %v545
      %v547 = vlaneseq
      %v548 = vshrl.u32 %v547, 7
      %v549 = vsub.s32 1, %v548
      %v550 = vrot.slane %v541, %v549
      %v553 = vmul.f32 %v181, %v546
      %v554 = vmul.f32 %v182, %v550
      %v555 = vmul.f32 %v183, %v546
      %v556 = vmul.f32 %v184, %v550
      %v557 = vmul.f32 %v185, %v546
      %v558 = vmul.f32 %v186, %v550
      %v559 = vmul.f32 %v187, %v546
      %v560 = vmul.f32 %v188, %v550
      %v569 = vrot.slane %v553, 2
      %v570 = vrot.slane %v554, 2
      %v571 = vrot.slane %v555, 2
      %v572 = vrot.slane %v556, 2
      %v573 = vrot.slane %v557, 2
      %v574 = vrot.slane %v558, 2
      %v575 = vrot.slane %v559, 2
      %v576 = vrot.slane %v560, 2
      %v585 = vadd.f32 %v532, %v569
      %v586 = vadd.f32 %v533, %v570
      %v587 = vadd.f32 %v534, %v571
      %v588 = vadd.f32 %v535, %v572
      %v589 = vadd.f32 %v536, %v573
      %v590 = vadd.f32 %v537, %v574
      %v591 = vadd.f32 %v538, %v575
      %v592 = vadd.f32 %v539, %v576
      %v593 = vld [vmem:[%s2] sm:$0x3]
      %v595 = vlaneseq
      %v596 = vshrl.u32 %v595, 7
      %v597 = vsub.s32 0, %v596
      %v598 = vrot.slane %v593, %v597
      %v599 = vlaneseq
      %v600 = vshrl.u32 %v599, 7
      %v601 = vsub.s32 1, %v600
      %v602 = vrot.slane %v593, %v601
      %v605 = vadd.f32 %v585, %v598
      %v606 = vadd.f32 %v586, %v602
      %v607 = vadd.f32 %v587, %v598
      %v608 = vadd.f32 %v588, %v602
      %v609 = vadd.f32 %v589, %v598
      %v610 = vadd.f32 %v590, %v602
      %v611 = vadd.f32 %v591, %v598
      %v612 = vadd.f32 %v592, %v602
      %v613 = vmax.f32 %v605, 0.0
      %v614 = vmax.f32 %v606, 0.0
      %v615 = vmax.f32 %v607, 0.0
      %v616 = vmax.f32 %v608, 0.0
      %v617 = vmax.f32 %v609, 0.0
      %v618 = vmax.f32 %v610, 0.0
      %v619 = vmax.f32 %v611, 0.0
      %v620 = vmax.f32 %v612, 0.0
      %v621 = vmin.f32 %v613, 6.0
      %v622 = vmin.f32 %v614, 6.0
      %v623 = vmin.f32 %v615, 6.0
      %v624 = vmin.f32 %v616, 6.0
      %v625 = vmin.f32 %v617, 6.0
      %v626 = vmin.f32 %v618, 6.0
      %v627 = vmin.f32 %v619, 6.0
      %v628 = vmin.f32 %v620, 6.0
      %v629 = vpack.c.bf16 %v621, %v621
      %v630 = vpack.c.bf16 %v622, %v622
      %v631 = vpack.c.bf16 %v623, %v623
      %v632 = vpack.c.bf16 %v624, %v624
      %v633 = vpack.c.bf16 %v625, %v625
      %v634 = vpack.c.bf16 %v626, %v626
      %v635 = vpack.c.bf16 %v627, %v627
      %v636 = vpack.c.bf16 %v628, %v628
      %v645 = vcombine.low %v629, %v630
      %v647 = vunpack.c.l.s4 1983009808
      %v648 = vunpack.c.0.s8 %v647
      %v649 = vlaneseq
      %v650 = vshrl.u32 %v649, 7
      %v651 = vsub.s32 %v648, %v650
      %v652 = vrot.slane %v645, %v651
      %v653 = vcombine.low %v631, %v632
      %v655 = vunpack.c.l.s4 1983009808
      %v656 = vunpack.c.0.s8 %v655
      %v657 = vlaneseq
      %v658 = vshrl.u32 %v657, 7
      %v659 = vsub.s32 %v656, %v658
      %v660 = vrot.slane %v653, %v659
      %v661 = vcombine.low %v633, %v634
      %v663 = vunpack.c.l.s4 1983009808
      %v664 = vunpack.c.0.s8 %v663
      %v665 = vlaneseq
      %v666 = vshrl.u32 %v665, 7
      %v667 = vsub.s32 %v664, %v666
      %v668 = vrot.slane %v661, %v667
      %v669 = vcombine.low %v635, %v636
      %v671 = vunpack.c.l.s4 1983009808
      %v672 = vunpack.c.0.s8 %v671
      %v673 = vlaneseq
      %v674 = vshrl.u32 %v673, 7
      %v675 = vsub.s32 %v672, %v674
      %v676 = vrot.slane %v669, %v675
      %vm681 = vcmask 1041408
      %vm682 = vcmask 125954
      %vm683 = vmor %vm682, %vm681
      %684 = vst.msk [vmem:[%s170] sm:$0xf] %vm683, %v652
      %685 = vst.msk [vmem:[%s170 + $0x4] sm:$0xf] %vm683, %v660
      %686 = vst.msk [vmem:[%s170 + $0x8] sm:$0xf] %vm683, %v668
      %687 = vst.msk [vmem:[%s170 + $0xc] sm:$0xf] %vm683, %v676
      %p688 = scmp.lt.s32.totalorder %s14, 3
      %s689 = scalar_select %p688, %s14, 3
      %s690 = smul.addr %s689, 8
      %s691 = smul.addr %s690, 2
      %s692 = scalar_lea.vmem %s3, %s691
      // Predicated region
      $region33: #{mobilenet_perceptual_loss.32} parent=31 // pred_check
        %p693 = pneg %p100
      $region34: #{mobilenet_perceptual_loss.32} parent=31 // pred_check_branch
        %695 = sbr.rel (%p693) target = $region36
      $region35: #{mobilenet_perceptual_loss.32} parent=31 // pred_region
        _
      $region36: #{mobilenet_perceptual_loss.32} parent=31 // pred_fallthru
        _
    $region32: #{mobilenet_perceptual_loss.32} parent=5 // pred_fallthru
      _
    %p696 = scmp.le.s32.totalorder 2, %s9
    // Predicated region
    $region37: #{mobilenet_perceptual_loss.32} parent=5 // pred_check
      %p697 = pneg %p696
    $region38: #{mobilenet_perceptual_loss.32} parent=5 // pred_check_branch
      %699 = sbr.rel (%p697) target = $region40
    $region39: #{mobilenet_perceptual_loss.32} parent=5 // pred_region
      %s700 = ssub.s32 %s9, 2
      // Predicated region
      $region41: #{mobilenet_perceptual_loss.32} parent=39 // pred_check
        %p701 = pneg %p106
      $region42: #{mobilenet_perceptual_loss.32} parent=39 // pred_check_branch
        %703 = sbr.rel (%p701) target = $region44
      $region43: #{mobilenet_perceptual_loss.32} parent=39 // pred_region
        %p704 = scmp.lt.s32.totalorder %s15, 3
        %s705 = scalar_select %p704, %s15, 3
        %s706 = smul.addr %s705, 8
        %s707 = smul.addr %s706, 2
        %s708 = scalar_lea.vmem %s3, %s707
      $region44: #{mobilenet_perceptual_loss.32} parent=39 // pred_fallthru
        _
    $region40: #{mobilenet_perceptual_loss.32} parent=5 // pred_fallthru
      _
  $region6: #{mobilenet_perceptual_loss.32} parent=0 // loop_footer
    %s13 = sadd.s32 1, %s9
  $region7: #{mobilenet_perceptual_loss.32} parent=0 // loop_footer_branch
    %8 = sbr.rel target = $region3
  $region8: #{mobilenet_perceptual_loss.32} parent=0 // loop_exit
    _

// kernel: mobilenet_perceptual_loss.33
$region0: #{mobilenet_perceptual_loss.33}
  #allocation0 [shape = 'u32[]', space=smem, size = 0x4, offset = 0x4, fixed_abs, tag = 'smem constant byte address 0x4 - core index']
  #allocation1 [shape = 'u32[144,128]{1,0:T(1,128)}', space=vmem, size = 0x12000, scoped, tag = 'internal scratch']
  %s0 = inlined_call_operand.vmem [shape: bf16[64,144], index: 0, kind: input, shape index: {}]
  %s1 = inlined_call_operand.vmem [shape: bf16[144,24], index: 1, kind: input, shape index: {}]
  %s2 = inlined_call_operand.vmem [shape: f32[1,24], index: 2, kind: input, shape index: {}]
  %s3 = inlined_call_operand.vmem [shape: bf16[64,24], index: 3, kind: input, shape index: {}]
  %s4 = inlined_call_operand.vmem [shape: bf16[64,24], index: 4, kind: output, shape index: {}]
  %s5 = sld [smem:[#allocation0]]
  $region26: #{mobilenet_perceptual_loss.33} parent=0
    _
  %s7 = ssub.s32 1, %s5
  %s8 = scalar_select 0, %s7, %s5
  // Predicated region
  $region2: #{mobilenet_perceptual_loss.33} parent=0 // pred_check
    _
  $region3: #{mobilenet_perceptual_loss.33} parent=0 // pred_check_branch
    %10 = sbr.rel (0) target = $region5
  $region4: #{mobilenet_perceptual_loss.33} parent=0 // pred_region
    _
  $region5: #{mobilenet_perceptual_loss.33} parent=0 // pred_fallthru
    _
  // Predicated region
  $region6: #{mobilenet_perceptual_loss.33} parent=0 // pred_check
    _
  $region7: #{mobilenet_perceptual_loss.33} parent=0 // pred_check_branch
    %12 = sbr.rel (0) target = $region9
  $region8: #{mobilenet_perceptual_loss.33} parent=0 // pred_region
    _
  $region9: #{mobilenet_perceptual_loss.33} parent=0 // pred_fallthru
    _
  // Predicated region
  $region10: #{mobilenet_perceptual_loss.33} parent=0 // pred_check
    _
  $region11: #{mobilenet_perceptual_loss.33} parent=0 // pred_check_branch
    %14 = sbr.rel (0) target = $region13
  $region12: #{mobilenet_perceptual_loss.33} parent=0 // pred_region
    _
  $region13: #{mobilenet_perceptual_loss.33} parent=0 // pred_fallthru
    _
  // Predicated region
  $region14: #{mobilenet_perceptual_loss.33} parent=0 // pred_check
    _
  $region15: #{mobilenet_perceptual_loss.33} parent=0 // pred_check_branch
    %16 = sbr.rel (0) target = $region17
  $region16: #{mobilenet_perceptual_loss.33} parent=0 // pred_region
    _
  $region17: #{mobilenet_perceptual_loss.33} parent=0 // pred_fallthru
    _
  %v18 = vld [vmem:[%s0] sm:$0xff]
  %v19 = vld [vmem:[%s0 + $0x8] sm:$0xff]
  %v20 = vld [vmem:[%s0 + $0x10] sm:$0xff]
  %v21 = vld [vmem:[%s0 + $0x18] sm:$0xff]
  %v22 = vld [vmem:[%s0 + $0x20] sm:$0xff]
  %v23 = vld [vmem:[%s0 + $0x28] sm:$0xff]
  %v24 = vld [vmem:[%s0 + $0x30] sm:$0xff]
  %v25 = vld [vmem:[%s0 + $0x38] sm:$0xff]
  %v26 = vld [vmem:[%s1] sm:$0xf]
  %v27 = vld [vmem:[%s1 + $0x4] sm:$0xf]
  %v28 = vld [vmem:[%s1 + $0x8] sm:$0xf]
  %v29 = vld [vmem:[%s1 + $0xc] sm:$0xf]
  %v30 = vld [vmem:[%s1 + $0x10] sm:$0xf]
  %v31 = vld [vmem:[%s1 + $0x14] sm:$0xf]
  %v32 = vld [vmem:[%s1 + $0x18] sm:$0xf]
  %v33 = vld [vmem:[%s1 + $0x1c] sm:$0xf]
  %v34 = vld [vmem:[%s1 + $0x20] sm:$0xf]
  %v35 = vld [vmem:[%s1 + $0x24] sm:$0xf]
  %v36 = vld [vmem:[%s1 + $0x28] sm:$0xf]
  %v37 = vld [vmem:[%s1 + $0x2c] sm:$0xf]
  %v38 = vld [vmem:[%s1 + $0x30] sm:$0xf]
  %v39 = vld [vmem:[%s1 + $0x34] sm:$0xf]
  %v40 = vld [vmem:[%s1 + $0x38] sm:$0xf]
  %v41 = vld [vmem:[%s1 + $0x3c] sm:$0xf]
  %v42 = vld [vmem:[%s1 + $0x40] sm:$0xf]
  %v43 = vld [vmem:[%s1 + $0x44] sm:$0xf]
  %v44 = vld [vmem:[%s2] sm:$0x1]
  %v46 = vlaneseq
  %v47 = vshrl.u32 %v46, 7
  %v48 = vsub.s32 0, %v47
  %v49 = vrot.slane %v44, %v48
  %v59 = vunpack.c.l.b16 %v18
  %v60 = vunpack.c.h.b16 %v18
  %v61 = vunpack.c.l.b16 %v19
  %v62 = vunpack.c.h.b16 %v19
  %v63 = vunpack.c.l.b16 %v20
  %v64 = vunpack.c.h.b16 %v20
  %v65 = vunpack.c.l.b16 %v21
  %v66 = vunpack.c.h.b16 %v21
  %v67 = vunpack.c.l.b16 %v22
  %v68 = vunpack.c.h.b16 %v22
  %v69 = vunpack.c.l.b16 %v23
  %v70 = vunpack.c.h.b16 %v23
  %v71 = vunpack.c.l.b16 %v24
  %v72 = vunpack.c.h.b16 %v24
  %v73 = vunpack.c.l.b16 %v25
  %v74 = vunpack.c.h.b16 %v25
  %v75 = vpack.c.b16 %v61, %v59
  %v76 = vpack.c.b16 %v62, %v60
  %v77 = vpack.c.b16 %v65, %v63
  %v78 = vpack.c.b16 %v66, %v64
  %v79 = vpack.c.b16 %v69, %v67
  %v80 = vpack.c.b16 %v70, %v68
  %v81 = vpack.c.b16 %v73, %v71
  %v82 = vpack.c.b16 %v74, %v72
  %v105 = vunpack.c.l.b16 %v26
  %v106 = vunpack.c.l.b16 %v27
  %v107 = vunpack.c.l.b16 %v28
  %v108 = vunpack.c.l.b16 %v29
  %v109 = vunpack.c.l.b16 %v30
  %v110 = vunpack.c.l.b16 %v31
  %v111 = vunpack.c.l.b16 %v32
  %v112 = vunpack.c.l.b16 %v33
  %v113 = vunpack.c.l.b16 %v34
  %v114 = vunpack.c.l.b16 %v35
  %v115 = vunpack.c.l.b16 %v36
  %v116 = vunpack.c.l.b16 %v37
  %v117 = vunpack.c.l.b16 %v38
  %v118 = vunpack.c.l.b16 %v39
  %v119 = vunpack.c.l.b16 %v40
  %v120 = vunpack.c.l.b16 %v41
  %v121 = vunpack.c.l.b16 %v42
  %v122 = vunpack.c.l.b16 %v43
  %v123 = vpack.c.b16 %v106, %v105
  %v124 = vpack.c.b16 %v108, %v107
  %v125 = vpack.c.b16 %v110, %v109
  %v126 = vpack.c.b16 %v112, %v111
  %v127 = vpack.c.b16 %v114, %v113
  %v128 = vpack.c.b16 %v116, %v115
  %v129 = vpack.c.b16 %v118, %v117
  %v130 = vpack.c.b16 %v120, %v119
  %v131 = vpack.c.b16 %v122, %v121
  %vm141 = vcmask 130048
  %v143 = vsel %vm141, %v76, 0
  %v146 = vsel %vm141, %v78, 0
  %v149 = vsel %vm141, %v80, 0
  %v152 = vsel %vm141, %v82, 0
  %154 = vmatprep.subr.bf16.mxu0 0
  %155 = vmatpush1.bf16.msra.mxu0 %v130
  %156 = vmatprep.subr.bf16.mxu0 0
  %157 = vmatpush1.bf16.msra.mxu0 %v129
  %158 = vmatprep.subr.bf16.mxu0 0
  %159 = vmatpush1.bf16.msra.mxu0 %v128
  %160 = vmatprep.subr.bf16.mxu0 0
  %161 = vmatpush1.bf16.msra.mxu0 %v127
  %162 = vmatprep.subr.bf16.mxu0 0
  %163 = vmatpush1.bf16.msra.mxu0 %v126
  %164 = vmatprep.subr.bf16.mxu0 0
  %165 = vmatpush1.bf16.msra.mxu0 %v125
  %166 = vmatprep.subr.bf16.mxu0 0
  %167 = vmatpush1.bf16.msra.mxu0 %v124
  %168 = vmatprep.subr.bf16.mxu0 0
  %169 = vmatpush1.bf16.msra.mxu0 %v123
  %170 = vmatprep.subr.bf16.mxu0 0
  %171 = vmatpush2.bf16.msra.mxu0 0
  %172 = vmatprep.subr.bf16.mxu0 0
  %173 = vmatpush2.bf16.msra.mxu0 0
  %174 = vmatprep.subr.bf16.mxu0 0
  %175 = vmatpush2.bf16.msra.mxu0 0
  %176 = vmatprep.subr.bf16.mxu0 0
  %177 = vmatpush2.bf16.msra.mxu0 0
  %178 = vmatprep.subr.bf16.mxu0 0
  %179 = vmatpush2.bf16.msra.mxu0 0
  %180 = vmatprep.subr.bf16.mxu0 0
  %181 = vmatpush2.bf16.msra.mxu0 0
  %182 = vmatprep.subr.bf16.mxu0 0
  %183 = vmatpush2.bf16.msra.mxu0 0
  %184 = vmatprep.subr.bf16.mxu0 0
  %185 = vmatpush2.bf16.msra.mxu0 %v131
  %186 = vmatprep.mubr.bf16.mxu0 %v143
  %187 = vmatmul.mubr.bf16.gmra.mxu0 %v75
  %v188 = vpop.f32.mrf.mxu0
  %v189 = vadd.f32 %v49, %v188
  %v190 = vpop.f32.mrf.mxu0
  %v191 = vpop.f32.mrf.mxu0
  %v192 = vadd.f32 %v49, %v191
  %v193 = vpop.f32.mrf.mxu0
  %194 = vmatprep.mubr.bf16.mxu0 %v146
  %195 = vmatmul.mubr.bf16.gmra.mxu0 %v77
  %v196 = vpop.f32.mrf.mxu0
  %v197 = vadd.f32 %v49, %v196
  %v198 = vpop.f32.mrf.mxu0
  %v199 = vpop.f32.mrf.mxu0
  %v200 = vadd.f32 %v49, %v199
  %v201 = vpop.f32.mrf.mxu0
  %202 = vmatprep.mubr.bf16.mxu0 %v149
  %203 = vmatmul.mubr.bf16.gmra.mxu0 %v79
  %v204 = vpop.f32.mrf.mxu0
  %v205 = vadd.f32 %v49, %v204
  %v206 = vpop.f32.mrf.mxu0
  %v207 = vpop.f32.mrf.mxu0
  %v208 = vadd.f32 %v49, %v207
  %v209 = vpop.f32.mrf.mxu0
  %210 = vmatprep.mubr.bf16.mxu0 %v152
  %211 = vmatmul.mubr.bf16.gmra.mxu0 %v81
  %v212 = vpop.f32.mrf.mxu0
  %v213 = vadd.f32 %v49, %v212
  %v214 = vpop.f32.mrf.mxu0
  %v215 = vpop.f32.mrf.mxu0
  %v216 = vadd.f32 %v49, %v215
  %v217 = vpop.f32.mrf.mxu0
  %218 = vdwg.mxu0
  %v219 = vld [vmem:[%s3] sm:$0xf]
  %v220 = vld [vmem:[%s3 + $0x4] sm:$0xf]
  %v221 = vld [vmem:[%s3 + $0x8] sm:$0xf]
  %v222 = vld [vmem:[%s3 + $0xc] sm:$0xf]
  %v223 = vld [vmem:[%s3 + $0x10] sm:$0xf]
  %v224 = vld [vmem:[%s3 + $0x14] sm:$0xf]
  %v225 = vld [vmem:[%s3 + $0x18] sm:$0xf]
  %v226 = vld [vmem:[%s3 + $0x1c] sm:$0xf]
  %v227 = vunpack.c.l.bf16 %v219
  %v228 = vunpack.c.l.bf16 %v220
  %v229 = vunpack.c.l.bf16 %v221
  %v230 = vunpack.c.l.bf16 %v222
  %v231 = vunpack.c.l.bf16 %v223
  %v232 = vunpack.c.l.bf16 %v224
  %v233 = vunpack.c.l.bf16 %v225
  %v234 = vunpack.c.l.bf16 %v226
  %v235 = vadd.f32 %v189, %v227
  %v236 = vadd.f32 %v192, %v228
  %v237 = vadd.f32 %v197, %v229
  %v238 = vadd.f32 %v200, %v230
  %v239 = vadd.f32 %v205, %v231
  %v240 = vadd.f32 %v208, %v232
  %v241 = vadd.f32 %v213, %v233
  %v242 = vadd.f32 %v216, %v234
  %v243 = vpack.c.bf16 %v236, %v235
  %v244 = vpack.c.bf16 %v238, %v237
  %v245 = vpack.c.bf16 %v240, %v239
  %v246 = vpack.c.bf16 %v242, %v241
  %v251 = vunpack.c.l.b16 %v243
  %v252 = vunpack.c.h.b16 %v243
  %v253 = vunpack.c.l.b16 %v244
  %v254 = vunpack.c.h.b16 %v244
  %v255 = vunpack.c.l.b16 %v245
  %v256 = vunpack.c.h.b16 %v245
  %v257 = vunpack.c.l.b16 %v246
  %v258 = vunpack.c.h.b16 %v246
  %v259 = vpack.c.b16 %v251, %v251
  %v260 = vpack.c.b16 %v252, %v252
  %v261 = vpack.c.b16 %v253, %v253
  %v262 = vpack.c.b16 %v254, %v254
  %v263 = vpack.c.b16 %v255, %v255
  %v264 = vpack.c.b16 %v256, %v256
  %v265 = vpack.c.b16 %v257, %v257
  %v266 = vpack.c.b16 %v258, %v258
  %vm275 = vcmask 191488
  %276 = vst.msk [vmem:[%s4] sm:$0xf] %vm275, %v259
  %277 = vst.msk [vmem:[%s4 + $0x4] sm:$0xf] %vm275, %v260
  %278 = vst.msk [vmem:[%s4 + $0x8] sm:$0xf] %vm275, %v261
  %279 = vst.msk [vmem:[%s4 + $0xc] sm:$0xf] %vm275, %v262
  %280 = vst.msk [vmem:[%s4 + $0x10] sm:$0xf] %vm275, %v263
  %281 = vst.msk [vmem:[%s4 + $0x14] sm:$0xf] %vm275, %v264
  %282 = vst.msk [vmem:[%s4 + $0x18] sm:$0xf] %vm275, %v265
  %283 = vst.msk [vmem:[%s4 + $0x1c] sm:$0xf] %vm275, %v266
  // Predicated region
  $region18: #{mobilenet_perceptual_loss.33} parent=0 // pred_check
    _
  $region19: #{mobilenet_perceptual_loss.33} parent=0 // pred_check_branch
    %285 = sbr.rel (0) target = $region21
  $region20: #{mobilenet_perceptual_loss.33} parent=0 // pred_region
    _
  $region21: #{mobilenet_perceptual_loss.33} parent=0 // pred_fallthru
    _
  // Predicated region
  $region22: #{mobilenet_perceptual_loss.33} parent=0 // pred_check
    _
  $region23: #{mobilenet_perceptual_loss.33} parent=0 // pred_check_branch
    %287 = sbr.rel (0) target = $region25
  $region24: #{mobilenet_perceptual_loss.33} parent=0 // pred_region
    _
  $region25: #{mobilenet_perceptual_loss.33} parent=0 // pred_fallthru
    _

// kernel: mobilenet_perceptual_loss.35
$region0: #{mobilenet_perceptual_loss.35}
  #allocation0 [shape = 'u32[]', space=smem, size = 0x4, offset = 0x4, fixed_abs, tag = 'smem constant byte address 0x4 - core index']
  #allocation1 [shape = 'u32[144,128]{1,0:T(1,128)}', space=vmem, size = 0x12000, scoped, tag = 'internal scratch']
  %s0 = inlined_call_operand.vmem [shape: bf16[16,3,3,144], index: 0, kind: input, shape index: {}]
  %s1 = inlined_call_operand.vmem [shape: f32[9,144], index: 1, kind: input, shape index: {}]
  %s2 = inlined_call_operand.vmem [shape: f32[1,144], index: 2, kind: input, shape index: {}]
  %s3 = inlined_call_operand.vmem [shape: bf16[4,2,2,144], index: 3, kind: output, shape index: {}]
  %s4 = sld [smem:[#allocation0]]
  $region45: #{mobilenet_perceptual_loss.35} parent=0
    _
  %s6 = ssub.s32 1, %s4
  %s7 = scalar_select 0, %s6, %s4
  loop: start=0, step=1, limit=6
  $region2: #{mobilenet_perceptual_loss.35} parent=0 // loop_pre_header
    _
  $region3: #{mobilenet_perceptual_loss.35} parent=0 // loop_header
    %s9 = sphi 0, %s13
    %p10 = scmp.ge.s32.totalorder %s9, 6
    %s19 = sphi 0, %s21
    %s22 = sphi 0, %s19
    %s23 = sphi 0, %s22
    %s39 = sphi 0, %s23
    %s43 = sphi 0, %s43
    %s45 = sphi 0, %s43
    %s46 = sphi 0, %s45
    %s60 = sphi 0, %s46
    %s64 = sphi 0, %s64
    %s66 = sphi 0, %s64
    %s67 = sphi 0, %s66
    %s81 = sphi 0, %s67
    %s87 = sphi 0, %s89
    %s90 = sphi 0, %s87
    %s91 = sphi 0, %s90
    %s107 = sphi 0, %s91
  $region4: #{mobilenet_perceptual_loss.35} parent=0 // loop_header_branch
    %12 = sbr.rel (%p10) target = $region8
  $region5: #{mobilenet_perceptual_loss.35} parent=0 // loop_body
    %s14 = ssub.s32 %s9, 1
    %s15 = ssub.s32 %s9, 2
    %s16 = sadd.s32 %s9, 1
    %s17 = ssub.s32 %s9, %s16
    %p18 = scmp.eq.s32.totalorder %s17, 0
    %s20 = sadd.s32 %s19, 1
    %s21 = scalar_select %p18, %s19, %s20
    %p24 = pneg %p18
    %p25 = scmp.eq.s32.totalorder %s9, 3
    %p26 = por %p24, %p25
    %p27 = scmp.ne.s32.totalorder %s19, %s22
    %p28 = scmp.eq.s32.totalorder %s9, 0
    %p29 = por %p27, %p28
    %p30 = scmp.ne.s32.totalorder %s19, %s22
    %p31 = scmp.eq.s32.totalorder %s14, 3
    %p32 = por %p30, %p31
    %p33 = scmp.ne.s32.totalorder %s22, %s23
    %p34 = scmp.eq.s32.totalorder %s14, 0
    %p35 = por %p33, %p34
    %p36 = scmp.ne.s32.totalorder %s22, %s23
    %p37 = scmp.eq.s32.totalorder %s15, 3
    %p38 = por %p36, %p37
    %p40 = scmp.ne.s32.totalorder %s23, %s39
    %p41 = scmp.eq.s32.totalorder %s15, 0
    %p42 = por %p40, %p41
    %s44 = sadd.s32 %s43, 1
    %p47 = scmp.eq.s32.totalorder %s9, 3
    %p48 = scmp.ne.s32.totalorder %s43, %s45
    %p49 = scmp.eq.s32.totalorder %s9, 0
    %p50 = por %p48, %p49
    %p51 = scmp.ne.s32.totalorder %s43, %s45
    %p52 = scmp.eq.s32.totalorder %s14, 3
    %p53 = por %p51, %p52
    %p54 = scmp.ne.s32.totalorder %s45, %s46
    %p55 = scmp.eq.s32.totalorder %s14, 0
    %p56 = por %p54, %p55
    %p57 = scmp.ne.s32.totalorder %s45, %s46
    %p58 = scmp.eq.s32.totalorder %s15, 3
    %p59 = por %p57, %p58
    %p61 = scmp.ne.s32.totalorder %s46, %s60
    %p62 = scmp.eq.s32.totalorder %s15, 0
    %p63 = por %p61, %p62
    %s65 = sadd.s32 %s64, 1
    %p68 = scmp.eq.s32.totalorder %s9, 3
    %p69 = scmp.ne.s32.totalorder %s64, %s66
    %p70 = scmp.eq.s32.totalorder %s9, 0
    %p71 = por %p69, %p70
    %p72 = scmp.ne.s32.totalorder %s64, %s66
    %p73 = scmp.eq.s32.totalorder %s14, 3
    %p74 = por %p72, %p73
    %p75 = scmp.ne.s32.totalorder %s66, %s67
    %p76 = scmp.eq.s32.totalorder %s14, 0
    %p77 = por %p75, %p76
    %p78 = scmp.ne.s32.totalorder %s66, %s67
    %p79 = scmp.eq.s32.totalorder %s15, 3
    %p80 = por %p78, %p79
    %p82 = scmp.ne.s32.totalorder %s67, %s81
    %p83 = scmp.eq.s32.totalorder %s15, 0
    %p84 = por %p82, %p83
    %s85 = ssub.s32 %s9, %s16
    %p86 = scmp.eq.s32.totalorder %s85, 0
    %s88 = sadd.s32 %s87, 1
    %s89 = scalar_select %p86, %s87, %s88
    %p92 = pneg %p86
    %p93 = scmp.eq.s32.totalorder %s9, 3
    %p94 = por %p92, %p93
    %p95 = scmp.ne.s32.totalorder %s87, %s90
    %p96 = scmp.eq.s32.totalorder %s9, 0
    %p97 = por %p95, %p96
    %p98 = scmp.ne.s32.totalorder %s87, %s90
    %p99 = scmp.eq.s32.totalorder %s14, 3
    %p100 = por %p98, %p99
    %p101 = scmp.ne.s32.totalorder %s90, %s91
    %p102 = scmp.eq.s32.totalorder %s14, 0
    %p103 = por %p101, %p102
    %p104 = scmp.ne.s32.totalorder %s90, %s91
    %p105 = scmp.eq.s32.totalorder %s15, 3
    %p106 = por %p104, %p105
    %p108 = scmp.ne.s32.totalorder %s91, %s107
    %p109 = scmp.eq.s32.totalorder %s15, 0
    %p110 = por %p108, %p109
    %p111 = scmp.le.s32.totalorder 1, %s9
    %p112 = scmp.lt.s32.totalorder %s9, 5
    %p113 = pnand %p111, %p112
    %p114 = pneg %p113
    // Predicated region
    $region9: #{mobilenet_perceptual_loss.35} parent=5 // pred_check
      _
    $region10: #{mobilenet_perceptual_loss.35} parent=5 // pred_check_branch
      %116 = sbr.rel (%p113) target = $region12
    $region11: #{mobilenet_perceptual_loss.35} parent=5 // pred_region
      %s117 = ssub.s32 %s9, 1
      // Predicated region
      $region13: #{mobilenet_perceptual_loss.35} parent=11 // pred_check
        %p118 = pneg %p56
      $region14: #{mobilenet_perceptual_loss.35} parent=11 // pred_check_branch
        %120 = sbr.rel (%p118) target = $region16
      $region15: #{mobilenet_perceptual_loss.35} parent=11 // pred_region
        _
      $region16: #{mobilenet_perceptual_loss.35} parent=11 // pred_fallthru
        _
      // Predicated region
      $region17: #{mobilenet_perceptual_loss.35} parent=11 // pred_check
        %p121 = pneg %p77
      $region18: #{mobilenet_perceptual_loss.35} parent=11 // pred_check_branch
        %123 = sbr.rel (%p121) target = $region20
      $region19: #{mobilenet_perceptual_loss.35} parent=11 // pred_region
        _
      $region20: #{mobilenet_perceptual_loss.35} parent=11 // pred_fallthru
        _
    $region12: #{mobilenet_perceptual_loss.35} parent=5 // pred_fallthru
      _
    %p124 = scmp.lt.s32.totalorder %s9, 4
    // Predicated region
    $region21: #{mobilenet_perceptual_loss.35} parent=5 // pred_check
      %p125 = pneg %p124
    $region22: #{mobilenet_perceptual_loss.35} parent=5 // pred_check_branch
      %127 = sbr.rel (%p125) target = $region24
    $region23: #{mobilenet_perceptual_loss.35} parent=5 // pred_region
      // Predicated region
      $region25: #{mobilenet_perceptual_loss.35} parent=23 // pred_check
        %p128 = pneg %p29
      $region26: #{mobilenet_perceptual_loss.35} parent=23 // pred_check_branch
        %130 = sbr.rel (%p128) target = $region28
      $region27: #{mobilenet_perceptual_loss.35} parent=23 // pred_region
        %s131 = smul.u32 4, %s9
        %p132 = scmp.lt.s32.totalorder %s131, 15
        %s133 = scalar_select %p132, %s131, 15
        %s134 = smul.addr %s133, 6
        %s135 = smul.addr %s134, 2
        %s136 = scalar_lea.vmem %s0, %s135
        %s137 = smul.u32 4, %s9
      $region28: #{mobilenet_perceptual_loss.35} parent=23 // pred_fallthru
        _
    $region24: #{mobilenet_perceptual_loss.35} parent=5 // pred_fallthru
      _
    %p138 = scmp.le.s32.totalorder 1, %s9
    %p139 = scmp.lt.s32.totalorder %s9, 5
    %p140 = pnand %p138, %p139
    %p141 = pneg %p140
    // Predicated region
    $region29: #{mobilenet_perceptual_loss.35} parent=5 // pred_check
      _
    $region30: #{mobilenet_perceptual_loss.35} parent=5 // pred_check_branch
      %143 = sbr.rel (%p140) target = $region32
    $region31: #{mobilenet_perceptual_loss.35} parent=5 // pred_region
      %s144 = ssub.s32 %s9, 1
      %s145 = smul.u32 4, %s14
      %p146 = scmp.lt.s32.totalorder %s145, 15
      %s147 = scalar_select %p146, %s145, 15
      %s148 = smul.addr %s147, 6
      %s149 = smul.addr %s148, 2
      %s150 = scalar_lea.vmem %s0, %s149
      %p151 = pneg %p35
      %p152 = pneg %p32
      %p153 = pneg %p56
      %p154 = pneg %p53
      %p155 = pneg %p77
      %p156 = pneg %p74
      %p157 = pneg %p103
      %p158 = pneg %p100
      %p159 = scmp.lt.s32.totalorder %s14, 3
      %s160 = scalar_select %p159, %s14, 3
      %s161 = smul.addr %s160, 4
      %s162 = scalar_lea.vmem %s3, %s161
      %s163 = smul.u32 4, %s14
      %p164 = scmp.lt.s32.totalorder %s163, 15
      %s165 = scalar_select %p164, %s163, 15
      %s166 = smul.addr %s165, 6
      %s167 = smul.addr %s166, 2
      %s168 = scalar_lea.vmem %s0, %s167
      %s169 = smul.u32 4, %s14
      %p170 = scmp.lt.s32.totalorder %s14, 3
      %s171 = scalar_select %p170, %s14, 3
      %s172 = smul.addr %s171, 4
      %s173 = scalar_lea.vmem %s3, %s172
      %v174 = vld [vmem:[%s168] sm:$0xf]
      %v175 = vld [vmem:[%s168 + $0x4] sm:$0xf]
      %v176 = vld [vmem:[%s168 + $0x8] sm:$0xf]
      %v177 = vld [vmem:[%s168 + $0xc] sm:$0xf]
      %v178 = vld [vmem:[%s168 + $0x10] sm:$0xf]
      %v179 = vld [vmem:[%s168 + $0x14] sm:$0xf]
      %v180 = vld [vmem:[%s168 + $0x18] sm:$0xf]
      %v181 = vld [vmem:[%s168 + $0x1c] sm:$0xf]
      %v182 = vld [vmem:[%s168 + $0x24] sm:$0xf]
      %v183 = vld [vmem:[%s168 + $0x28] sm:$0xf]
      %v184 = vunpack.c.l.bf16 %v174
      %v185 = vunpack.c.l.bf16 %v175
      %v186 = vunpack.c.l.bf16 %v176
      %v187 = vunpack.c.l.bf16 %v177
      %v188 = vunpack.c.l.bf16 %v178
      %v189 = vunpack.c.l.bf16 %v179
      %v190 = vunpack.c.l.bf16 %v180
      %v191 = vunpack.c.l.bf16 %v181
      %v192 = vunpack.c.l.bf16 %v182
      %v193 = vunpack.c.l.bf16 %v183
      %v194 = vld [vmem:[%s1] ss:$8 sm:$0x3]
      %v196 = vlaneseq
      %v197 = vshrl.u32 %v196, 7
      %v198 = vsub.s32 0, %v197
      %v199 = vrot.slane %v194, %v198
      %v200 = vlaneseq
      %v201 = vshrl.u32 %v200, 7
      %v202 = vsub.s32 1, %v201
      %v203 = vrot.slane %v194, %v202
      %v204 = vcombine.low %v199, %v203
      %v206 = vmul.f32 %v184, %v204
      %v207 = vmul.f32 %v185, %v204
      %v208 = vadd.f32 %v206, 0.0
      %v209 = vadd.f32 %v207, 0.0
      %s210 = scalar_lea.vmem %s1, 1
      %v211 = vld [vmem:[%s210] ss:$8 sm:$0x3]
      %v213 = vlaneseq
      %v214 = vshrl.u32 %v213, 7
      %v215 = vsub.s32 0, %v214
      %v216 = vrot.slane %v211, %v215
      %v217 = vlaneseq
      %v218 = vshrl.u32 %v217, 7
      %v219 = vsub.s32 1, %v218
      %v220 = vrot.slane %v211, %v219
      %v221 = vcombine.low %v216, %v220
      %v223 = vmul.f32 %v187, %v221
      %v224 = vmul.f32 %v188, %v221
      %v225 = vadd.f32 %v208, %v223
      %v226 = vadd.f32 %v209, %v224
      %s227 = scalar_lea.vmem %s1, 2
      %v228 = vld [vmem:[%s227] ss:$8 sm:$0x3]
      %v230 = vlaneseq
      %v231 = vshrl.u32 %v230, 7
      %v232 = vsub.s32 0, %v231
      %v233 = vrot.slane %v228, %v232
      %v234 = vlaneseq
      %v235 = vshrl.u32 %v234, 7
      %v236 = vsub.s32 1, %v235
      %v237 = vrot.slane %v228, %v236
      %v238 = vcombine.low %v233, %v237
      %v239 = vrot.slane %v238, 7
      %v241 = vmul.f32 %v184, %v239
      %v242 = vmul.f32 %v185, %v239
      %v245 = vrot.slane %v241, 5
      %v246 = vrot.slane %v245, 4
      %v247 = vrot.slane %v242, 5
      %v248 = vrot.slane %v247, 4
      %v251 = vadd.f32 %v225, %v246
      %v252 = vadd.f32 %v226, %v248
      %s253 = scalar_lea.vmem %s1, 3
      %v254 = vld [vmem:[%s253] ss:$8 sm:$0x3]
      %v256 = vlaneseq
      %v257 = vshrl.u32 %v256, 7
      %v258 = vsub.s32 0, %v257
      %v259 = vrot.slane %v254, %v258
      %v260 = vlaneseq
      %v261 = vshrl.u32 %v260, 7
      %v262 = vsub.s32 1, %v261
      %v263 = vrot.slane %v254, %v262
      %v264 = vcombine.low %v259, %v263
      %v266 = vmul.f32 %v190, %v264
      %v267 = vmul.f32 %v191, %v264
      %v268 = vadd.f32 %v251, %v266
      %v269 = vadd.f32 %v252, %v267
      %s270 = scalar_lea.vmem %s1, 4
      %v271 = vld [vmem:[%s270] ss:$8 sm:$0x3]
      %v273 = vlaneseq
      %v274 = vshrl.u32 %v273, 7
      %v275 = vsub.s32 0, %v274
      %v276 = vrot.slane %v271, %v275
      %v277 = vlaneseq
      %v278 = vshrl.u32 %v277, 7
      %v279 = vsub.s32 1, %v278
      %v280 = vrot.slane %v271, %v279
      %v281 = vcombine.low %v276, %v280
      %v283 = vmul.f32 %v192, %v281
      %v284 = vmul.f32 %v193, %v281
      %v285 = vadd.f32 %v268, %v283
      %v286 = vadd.f32 %v269, %v284
      %s287 = scalar_lea.vmem %s1, 5
      %v288 = vld [vmem:[%s287] ss:$8 sm:$0x3]
      %v290 = vlaneseq
      %v291 = vshrl.u32 %v290, 7
      %v292 = vsub.s32 0, %v291
      %v293 = vrot.slane %v288, %v292
      %v294 = vlaneseq
      %v295 = vshrl.u32 %v294, 7
      %v296 = vsub.s32 1, %v295
      %v297 = vrot.slane %v288, %v296
      %v298 = vcombine.low %v293, %v297
      %v299 = vrot.slane %v298, 7
      %v301 = vmul.f32 %v190, %v299
      %v302 = vmul.f32 %v191, %v299
      %v305 = vrot.slane %v301, 5
      %v306 = vrot.slane %v305, 4
      %v307 = vrot.slane %v302, 5
      %v308 = vrot.slane %v307, 4
      %v311 = vadd.f32 %v285, %v306
      %v312 = vadd.f32 %v286, %v308
      %s313 = scalar_lea.vmem %s1, 6
      %v314 = vld [vmem:[%s313] ss:$8 sm:$0x3]
      %v316 = vlaneseq
      %v317 = vshrl.u32 %v316, 7
      %v318 = vsub.s32 0, %v317
      %v319 = vrot.slane %v314, %v318
      %v320 = vlaneseq
      %v321 = vshrl.u32 %v320, 7
      %v322 = vsub.s32 1, %v321
      %v323 = vrot.slane %v314, %v322
      %v324 = vcombine.low %v319, %v323
      %v326 = vmul.f32 %v185, %v324
      %v327 = vmul.f32 %v186, %v324
      %v328 = vadd.f32 %v311, %v326
      %v329 = vadd.f32 %v312, %v327
      %s330 = scalar_lea.vmem %s1, 7
      %v331 = vld [vmem:[%s330] ss:$8 sm:$0x3]
      %v333 = vlaneseq
      %v334 = vshrl.u32 %v333, 7
      %v335 = vsub.s32 0, %v334
      %v336 = vrot.slane %v331, %v335
      %v337 = vlaneseq
      %v338 = vshrl.u32 %v337, 7
      %v339 = vsub.s32 1, %v338
      %v340 = vrot.slane %v331, %v339
      %v341 = vcombine.low %v336, %v340
      %v343 = vmul.f32 %v188, %v341
      %v344 = vmul.f32 %v189, %v341
      %v345 = vadd.f32 %v328, %v343
      %v346 = vadd.f32 %v329, %v344
      %s347 = scalar_lea.vmem %s1, 16
      %v348 = vld [vmem:[%s347] ss:$8 sm:$0x3]
      %v350 = vlaneseq
      %v351 = vshrl.u32 %v350, 7
      %v352 = vsub.s32 0, %v351
      %v353 = vrot.slane %v348, %v352
      %v354 = vlaneseq
      %v355 = vshrl.u32 %v354, 7
      %v356 = vsub.s32 1, %v355
      %v357 = vrot.slane %v348, %v356
      %v358 = vcombine.low %v353, %v357
      %v359 = vrot.slane %v358, 7
      %v361 = vmul.f32 %v185, %v359
      %v362 = vmul.f32 %v186, %v359
      %v365 = vrot.slane %v361, 5
      %v366 = vrot.slane %v365, 4
      %v367 = vrot.slane %v362, 5
      %v368 = vrot.slane %v367, 4
      %v371 = vadd.f32 %v345, %v366
      %v372 = vadd.f32 %v346, %v368
      %v373 = vld [vmem:[%s2] sm:$0x3]
      %v375 = vlaneseq
      %v376 = vshrl.u32 %v375, 7
      %v377 = vsub.s32 0, %v376
      %v378 = vrot.slane %v373, %v377
      %v379 = vlaneseq
      %v380 = vshrl.u32 %v379, 7
      %v381 = vsub.s32 1, %v380
      %v382 = vrot.slane %v373, %v381
      %v383 = vcombine.low %v378, %v382
      %v385 = vadd.f32 %v371, %v383
      %v386 = vadd.f32 %v372, %v383
      %v387 = vmax.f32 %v385, 0.0
      %v388 = vmax.f32 %v386, 0.0
      %v389 = vmin.f32 %v387, 6.0
      %v390 = vmin.f32 %v388, 6.0
      %v393 = vcombine.high %v389, %v389
      %v394 = vcombine.high %v390, %v390
      %v397 = vpack.c.bf16 %v389, %v389
      %v398 = vpack.c.bf16 %v393, %v393
      %v399 = vpack.c.bf16 %v390, %v390
      %v400 = vpack.c.bf16 %v394, %v394
      %v405 = vcombine.low %v397, %v398
      %v407 = vunpack.c.l.s4 1966171168
      %v408 = vunpack.c.0.s8 %v407
      %v409 = vlaneseq
      %v410 = vshrl.u32 %v409, 7
      %v411 = vsub.s32 %v408, %v410
      %v412 = vrot.slane %v405, %v411
      %v414 = vunpack.c.l.s4 1966171168
      %v415 = vunpack.c.0.s8 %v414
      %v416 = vlaneseq
      %v417 = vshrl.u32 %v416, 7
      %v418 = vsub.s32 %v415, %v417
      %v419 = vrot.slane %v412, %v418
      %v420 = vcombine.low %v399, %v400
      %v422 = vunpack.c.l.s4 1966171168
      %v423 = vunpack.c.0.s8 %v422
      %v424 = vlaneseq
      %v425 = vshrl.u32 %v424, 7
      %v426 = vsub.s32 %v423, %v425
      %v427 = vrot.slane %v420, %v426
      %v429 = vunpack.c.l.s4 1966171168
      %v430 = vunpack.c.0.s8 %v429
      %v431 = vlaneseq
      %v432 = vshrl.u32 %v431, 7
      %v433 = vsub.s32 %v430, %v432
      %v434 = vrot.slane %v427, %v433
      %vm437 = vcmask 1040384
      %vm438 = vcmask 123905
      %vm439 = vmor %vm438, %vm437
      %440 = vst.msk [vmem:[%s173] sm:$0x3] %vm439, %v419
      %441 = vst.msk [vmem:[%s173 + $0x2] sm:$0x3] %vm439, %v434
      %p442 = scmp.lt.s32.totalorder %s14, 3
      %s443 = scalar_select %p442, %s14, 3
      %s444 = smul.addr %s443, 4
      %s445 = scalar_lea.vmem %s3, %s444
      // Predicated region
      $region33: #{mobilenet_perceptual_loss.35} parent=31 // pred_check
        %p446 = pneg %p100
      $region34: #{mobilenet_perceptual_loss.35} parent=31 // pred_check_branch
        %448 = sbr.rel (%p446) target = $region36
      $region35: #{mobilenet_perceptual_loss.35} parent=31 // pred_region
        _
      $region36: #{mobilenet_perceptual_loss.35} parent=31 // pred_fallthru
        _
    $region32: #{mobilenet_perceptual_loss.35} parent=5 // pred_fallthru
      _
    %p449 = scmp.le.s32.totalorder 2, %s9
    // Predicated region
    $region37: #{mobilenet_perceptual_loss.35} parent=5 // pred_check
      %p450 = pneg %p449
    $region38: #{mobilenet_perceptual_loss.35} parent=5 // pred_check_branch
      %452 = sbr.rel (%p450) target = $region40
    $region39: #{mobilenet_perceptual_loss.35} parent=5 // pred_region
      %s453 = ssub.s32 %s9, 2
      // Predicated region
      $region41: #{mobilenet_perceptual_loss.35} parent=39 // pred_check
        %p454 = pneg %p106
      $region42: #{mobilenet_perceptual_loss.35} parent=39 // pred_check_branch
        %456 = sbr.rel (%p454) target = $region44
      $region43: #{mobilenet_perceptual_loss.35} parent=39 // pred_region
        %p457 = scmp.lt.s32.totalorder %s15, 3
        %s458 = scalar_select %p457, %s15, 3
        %s459 = smul.addr %s458, 4
        %s460 = scalar_lea.vmem %s3, %s459
      $region44: #{mobilenet_perceptual_loss.35} parent=39 // pred_fallthru
        _
    $region40: #{mobilenet_perceptual_loss.35} parent=5 // pred_fallthru
      _
  $region6: #{mobilenet_perceptual_loss.35} parent=0 // loop_footer
    %s13 = sadd.s32 1, %s9
  $region7: #{mobilenet_perceptual_loss.35} parent=0 // loop_footer_branch
    %8 = sbr.rel target = $region3
  $region8: #{mobilenet_perceptual_loss.35} parent=0 // loop_exit
    _

// kernel: mobilenet_perceptual_loss.36
$region0: #{mobilenet_perceptual_loss.36}
  #allocation0 [shape = 'u32[]', space=smem, size = 0x4, offset = 0x4, fixed_abs, tag = 'smem constant byte address 0x4 - core index']
  #allocation1 [shape = 'u32[144,128]{1,0:T(1,128)}', space=vmem, size = 0x12000, scoped, tag = 'internal scratch']
  %s0 = inlined_call_operand.vmem [shape: bf16[16,144], index: 0, kind: input, shape index: {}]
  %s1 = inlined_call_operand.vmem [shape: bf16[144,32], index: 1, kind: input, shape index: {}]
  %s2 = inlined_call_operand.vmem [shape: f32[1,32], index: 2, kind: input, shape index: {}]
  %s3 = inlined_call_operand.vmem [shape: bf16[16,32], index: 3, kind: output, shape index: {}]
  %s4 = sld [smem:[#allocation0]]
  $region22: #{mobilenet_perceptual_loss.36} parent=0
    _
  %s6 = ssub.s32 1, %s4
  %s7 = scalar_select 0, %s6, %s4
  // Predicated region
  $region2: #{mobilenet_perceptual_loss.36} parent=0 // pred_check
    _
  $region3: #{mobilenet_perceptual_loss.36} parent=0 // pred_check_branch
    %9 = sbr.rel (0) target = $region5
  $region4: #{mobilenet_perceptual_loss.36} parent=0 // pred_region
    _
  $region5: #{mobilenet_perceptual_loss.36} parent=0 // pred_fallthru
    _
  // Predicated region
  $region6: #{mobilenet_perceptual_loss.36} parent=0 // pred_check
    _
  $region7: #{mobilenet_perceptual_loss.36} parent=0 // pred_check_branch
    %11 = sbr.rel (0) target = $region9
  $region8: #{mobilenet_perceptual_loss.36} parent=0 // pred_region
    _
  $region9: #{mobilenet_perceptual_loss.36} parent=0 // pred_fallthru
    _
  // Predicated region
  $region10: #{mobilenet_perceptual_loss.36} parent=0 // pred_check
    _
  $region11: #{mobilenet_perceptual_loss.36} parent=0 // pred_check_branch
    %13 = sbr.rel (0) target = $region13
  $region12: #{mobilenet_perceptual_loss.36} parent=0 // pred_region
    _
  $region13: #{mobilenet_perceptual_loss.36} parent=0 // pred_fallthru
    _
  %v15 = vld [vmem:[%s0] sm:$0xff]
  %v16 = vld [vmem:[%s0 + $0x8] sm:$0xff]
  %v17 = vld [vmem:[%s1] sm:$0xf]
  %v18 = vld [vmem:[%s1 + $0x4] sm:$0xf]
  %v19 = vld [vmem:[%s1 + $0x8] sm:$0xf]
  %v20 = vld [vmem:[%s1 + $0xc] sm:$0xf]
  %v21 = vld [vmem:[%s1 + $0x10] sm:$0xf]
  %v22 = vld [vmem:[%s1 + $0x14] sm:$0xf]
  %v23 = vld [vmem:[%s1 + $0x18] sm:$0xf]
  %v24 = vld [vmem:[%s1 + $0x1c] sm:$0xf]
  %v25 = vld [vmem:[%s1 + $0x20] sm:$0xf]
  %v26 = vld [vmem:[%s1 + $0x24] sm:$0xf]
  %v27 = vld [vmem:[%s1 + $0x28] sm:$0xf]
  %v28 = vld [vmem:[%s1 + $0x2c] sm:$0xf]
  %v29 = vld [vmem:[%s1 + $0x30] sm:$0xf]
  %v30 = vld [vmem:[%s1 + $0x34] sm:$0xf]
  %v31 = vld [vmem:[%s1 + $0x38] sm:$0xf]
  %v32 = vld [vmem:[%s1 + $0x3c] sm:$0xf]
  %v33 = vld [vmem:[%s1 + $0x40] sm:$0xf]
  %v34 = vld [vmem:[%s1 + $0x44] sm:$0xf]
  %v35 = vld [vmem:[%s2] sm:$0x1]
  %v37 = vlaneseq
  %v38 = vshrl.u32 %v37, 7
  %v39 = vsub.s32 0, %v38
  %v40 = vrot.slane %v35, %v39
  %v44 = vunpack.c.l.b16 %v15
  %v45 = vunpack.c.h.b16 %v15
  %v46 = vunpack.c.l.b16 %v16
  %v47 = vunpack.c.h.b16 %v16
  %v48 = vpack.c.b16 %v46, %v44
  %v49 = vpack.c.b16 %v47, %v45
  %v69 = vunpack.c.l.b16 %v17
  %v70 = vunpack.c.l.b16 %v18
  %v71 = vunpack.c.l.b16 %v19
  %v72 = vunpack.c.l.b16 %v20
  %v73 = vunpack.c.l.b16 %v21
  %v74 = vunpack.c.l.b16 %v22
  %v75 = vunpack.c.l.b16 %v23
  %v76 = vunpack.c.l.b16 %v24
  %v77 = vunpack.c.l.b16 %v25
  %v78 = vunpack.c.l.b16 %v26
  %v79 = vunpack.c.l.b16 %v27
  %v80 = vunpack.c.l.b16 %v28
  %v81 = vunpack.c.l.b16 %v29
  %v82 = vunpack.c.l.b16 %v30
  %v83 = vunpack.c.l.b16 %v31
  %v84 = vunpack.c.l.b16 %v32
  %v85 = vunpack.c.l.b16 %v33
  %v86 = vunpack.c.l.b16 %v34
  %v87 = vpack.c.b16 %v70, %v69
  %v88 = vpack.c.b16 %v72, %v71
  %v89 = vpack.c.b16 %v74, %v73
  %v90 = vpack.c.b16 %v76, %v75
  %v91 = vpack.c.b16 %v78, %v77
  %v92 = vpack.c.b16 %v80, %v79
  %v93 = vpack.c.b16 %v82, %v81
  %v94 = vpack.c.b16 %v84, %v83
  %v95 = vpack.c.b16 %v86, %v85
  %vm105 = vcmask 130048
  %v107 = vsel %vm105, %v49, 0
  %109 = vmatprep.subr.bf16.mxu0 0
  %110 = vmatpush1.bf16.msra.mxu0 %v94
  %111 = vmatprep.subr.bf16.mxu0 0
  %112 = vmatpush1.bf16.msra.mxu0 %v93
  %113 = vmatprep.subr.bf16.mxu0 0
  %114 = vmatpush1.bf16.msra.mxu0 %v92
  %115 = vmatprep.subr.bf16.mxu0 0
  %116 = vmatpush1.bf16.msra.mxu0 %v91
  %117 = vmatprep.subr.bf16.mxu0 0
  %118 = vmatpush1.bf16.msra.mxu0 %v90
  %119 = vmatprep.subr.bf16.mxu0 0
  %120 = vmatpush1.bf16.msra.mxu0 %v89
  %121 = vmatprep.subr.bf16.mxu0 0
  %122 = vmatpush1.bf16.msra.mxu0 %v88
  %123 = vmatprep.subr.bf16.mxu0 0
  %124 = vmatpush1.bf16.msra.mxu0 %v87
  %125 = vmatprep.subr.bf16.mxu0 0
  %126 = vmatpush2.bf16.msra.mxu0 0
  %127 = vmatprep.subr.bf16.mxu0 0
  %128 = vmatpush2.bf16.msra.mxu0 0
  %129 = vmatprep.subr.bf16.mxu0 0
  %130 = vmatpush2.bf16.msra.mxu0 0
  %131 = vmatprep.subr.bf16.mxu0 0
  %132 = vmatpush2.bf16.msra.mxu0 0
  %133 = vmatprep.subr.bf16.mxu0 0
  %134 = vmatpush2.bf16.msra.mxu0 0
  %135 = vmatprep.subr.bf16.mxu0 0
  %136 = vmatpush2.bf16.msra.mxu0 0
  %137 = vmatprep.subr.bf16.mxu0 0
  %138 = vmatpush2.bf16.msra.mxu0 0
  %139 = vmatprep.subr.bf16.mxu0 0
  %140 = vmatpush2.bf16.msra.mxu0 %v95
  %141 = vmatprep.mubr.bf16.mxu0 %v107
  %142 = vmatmul.mubr.bf16.gmra.mxu0 %v48
  %v143 = vpop.f32.mrf.mxu0
  %v144 = vadd.f32 %v40, %v143
  %v145 = vpop.f32.mrf.mxu0
  %v146 = vpop.f32.mrf.mxu0
  %v147 = vadd.f32 %v40, %v146
  %v148 = vpop.f32.mrf.mxu0
  %149 = vdwg.mxu0
  %v150 = vpack.c.bf16 %v147, %v144
  %v152 = vunpack.c.l.b16 %v150
  %v153 = vunpack.c.h.b16 %v150
  %v154 = vpack.c.b16 %v152, %v152
  %v155 = vpack.c.b16 %v153, %v153
  %vm158 = vcmask 257024
  %159 = vst.msk [vmem:[%s3] sm:$0xf] %vm158, %v154
  %160 = vst.msk [vmem:[%s3 + $0x4] sm:$0xf] %vm158, %v155
  // Predicated region
  $region14: #{mobilenet_perceptual_loss.36} parent=0 // pred_check
    _
  $region15: #{mobilenet_perceptual_loss.36} parent=0 // pred_check_branch
    %162 = sbr.rel (0) target = $region17
  $region16: #{mobilenet_perceptual_loss.36} parent=0 // pred_region
    _
  $region17: #{mobilenet_perceptual_loss.36} parent=0 // pred_fallthru
    _
  // Predicated region
  $region18: #{mobilenet_perceptual_loss.36} parent=0 // pred_check
    _
  $region19: #{mobilenet_perceptual_loss.36} parent=0 // pred_check_branch
    %164 = sbr.rel (0) target = $region21
  $region20: #{mobilenet_perceptual_loss.36} parent=0 // pred_region
    _
  $region21: #{mobilenet_perceptual_loss.36} parent=0 // pred_fallthru
    _

// kernel: mobilenet_perceptual_loss.38
$region0: #{mobilenet_perceptual_loss.38}
  #allocation0 [shape = 'u32[]', space=smem, size = 0x4, offset = 0x4, fixed_abs, tag = 'smem constant byte address 0x4 - core index']
  #allocation1 [shape = 'u32[144,128]{1,0:T(1,128)}', space=vmem, size = 0x12000, scoped, tag = 'internal scratch']
  %s0 = inlined_call_operand.vmem [shape: bf16[16,32], index: 0, kind: input, shape index: {}]
  %s1 = inlined_call_operand.vmem [shape: bf16[32,192], index: 1, kind: input, shape index: {}]
  %s2 = inlined_call_operand.vmem [shape: f32[1,192], index: 2, kind: input, shape index: {}]
  %s3 = inlined_call_operand.vmem [shape: bf16[16,192], index: 3, kind: output, shape index: {}]
  %s4 = sld [smem:[#allocation0]]
  $region22: #{mobilenet_perceptual_loss.38} parent=0
    _
  %s6 = ssub.s32 1, %s4
  %s7 = scalar_select 0, %s6, %s4
  // Predicated region
  $region2: #{mobilenet_perceptual_loss.38} parent=0 // pred_check
    _
  $region3: #{mobilenet_perceptual_loss.38} parent=0 // pred_check_branch
    %9 = sbr.rel (0) target = $region5
  $region4: #{mobilenet_perceptual_loss.38} parent=0 // pred_region
    _
  $region5: #{mobilenet_perceptual_loss.38} parent=0 // pred_fallthru
    _
  // Predicated region
  $region6: #{mobilenet_perceptual_loss.38} parent=0 // pred_check
    _
  $region7: #{mobilenet_perceptual_loss.38} parent=0 // pred_check_branch
    %11 = sbr.rel (0) target = $region9
  $region8: #{mobilenet_perceptual_loss.38} parent=0 // pred_region
    _
  $region9: #{mobilenet_perceptual_loss.38} parent=0 // pred_fallthru
    _
  // Predicated region
  $region10: #{mobilenet_perceptual_loss.38} parent=0 // pred_check
    _
  $region11: #{mobilenet_perceptual_loss.38} parent=0 // pred_check_branch
    %13 = sbr.rel (0) target = $region13
  $region12: #{mobilenet_perceptual_loss.38} parent=0 // pred_region
    _
  $region13: #{mobilenet_perceptual_loss.38} parent=0 // pred_fallthru
    _
  %v15 = vld [vmem:[%s0] sm:$0xf]
  %v16 = vld [vmem:[%s0 + $0x4] sm:$0xf]
  %v17 = vld [vmem:[%s1] sm:$0xff]
  %v18 = vld [vmem:[%s1 + $0x8] sm:$0xff]
  %v19 = vld [vmem:[%s1 + $0x10] sm:$0xff]
  %v20 = vld [vmem:[%s1 + $0x18] sm:$0xff]
  %v21 = vld [vmem:[%s2] sm:$0x3]
  %v23 = vlaneseq
  %v24 = vshrl.u32 %v23, 7
  %v25 = vsub.s32 0, %v24
  %v26 = vrot.slane %v21, %v25
  %v27 = vlaneseq
  %v28 = vshrl.u32 %v27, 7
  %v29 = vsub.s32 1, %v28
  %v30 = vrot.slane %v21, %v29
  %v35 = vunpack.c.l.b16 %v15
  %v36 = vunpack.c.l.b16 %v16
  %v37 = vpack.c.b16 %v36, %v35
  %v42 = vunpack.c.l.b16 %v17
  %v43 = vunpack.c.h.b16 %v17
  %v44 = vunpack.c.l.b16 %v18
  %v45 = vunpack.c.h.b16 %v18
  %v46 = vunpack.c.l.b16 %v19
  %v47 = vunpack.c.h.b16 %v19
  %v48 = vunpack.c.l.b16 %v20
  %v49 = vunpack.c.h.b16 %v20
  %v50 = vpack.c.b16 %v44, %v42
  %v51 = vpack.c.b16 %v45, %v43
  %v52 = vpack.c.b16 %v48, %v46
  %v53 = vpack.c.b16 %v49, %v47
  %vm58 = vcmask 261120
  %v60 = vsel %vm58, %v37, 0
  %62 = vmatprep.subr.bf16.mxu0 0
  %63 = vmatpush1.bf16.msra.mxu0 0
  %64 = vmatprep.subr.bf16.mxu0 0
  %65 = vmatpush1.bf16.msra.mxu0 0
  %66 = vmatprep.subr.bf16.mxu0 0
  %67 = vmatpush1.bf16.msra.mxu0 0
  %68 = vmatprep.subr.bf16.mxu0 0
  %69 = vmatpush1.bf16.msra.mxu0 0
  %70 = vmatprep.subr.bf16.mxu0 0
  %71 = vmatpush1.bf16.msra.mxu0 0
  %72 = vmatprep.subr.bf16.mxu0 0
  %73 = vmatpush1.bf16.msra.mxu0 0
  %74 = vmatprep.subr.bf16.mxu0 %v53
  %75 = vmatpush1.bf16.msra.mxu0 %v52
  %76 = vmatprep.subr.bf16.mxu0 %v51
  %77 = vmatpush1.bf16.msra.mxu0 %v50
  %78 = vmatprep.subr.bf16.mxu0 0
  %79 = vmatpush2.bf16.msra.mxu0 0
  %80 = vmatprep.subr.bf16.mxu0 0
  %81 = vmatpush2.bf16.msra.mxu0 0
  %82 = vmatprep.subr.bf16.mxu0 0
  %83 = vmatpush2.bf16.msra.mxu0 0
  %84 = vmatprep.subr.bf16.mxu0 0
  %85 = vmatpush2.bf16.msra.mxu0 0
  %86 = vmatprep.subr.bf16.mxu0 0
  %87 = vmatpush2.bf16.msra.mxu0 0
  %88 = vmatprep.subr.bf16.mxu0 0
  %89 = vmatpush2.bf16.msra.mxu0 0
  %90 = vmatprep.subr.bf16.mxu0 0
  %91 = vmatpush2.bf16.msra.mxu0 0
  %92 = vmatprep.subr.bf16.mxu0 0
  %93 = vmatpush2.bf16.msra.mxu0 0
  %94 = vmatprep.mubr.bf16.mxu0 0
  %95 = vmatmul.mubr.bf16.gmra.mxu0 %v60
  %v96 = vpop.f32.mrf.mxu0
  %v97 = vadd.f32 %v26, %v96
  %v98 = vpop.f32.mrf.mxu0
  %v99 = vadd.f32 %v30, %v98
  %v100 = vpop.f32.mrf.mxu0
  %v101 = vadd.f32 %v26, %v100
  %v102 = vpop.f32.mrf.mxu0
  %v103 = vadd.f32 %v30, %v102
  %104 = vdwg.mxu0
  %v105 = vmax.f32 %v97, 0.0
  %v106 = vmax.f32 %v99, 0.0
  %v107 = vmax.f32 %v101, 0.0
  %v108 = vmax.f32 %v103, 0.0
  %v109 = vmin.f32 %v105, 6.0
  %v110 = vmin.f32 %v106, 6.0
  %v111 = vmin.f32 %v107, 6.0
  %v112 = vmin.f32 %v108, 6.0
  %v113 = vpack.c.bf16 %v111, %v109
  %v114 = vpack.c.bf16 %v112, %v110
  %v117 = vunpack.c.l.b16 %v113
  %v118 = vunpack.c.l.b16 %v114
  %v119 = vunpack.c.h.b16 %v113
  %v120 = vunpack.c.h.b16 %v114
  %v121 = vpack.c.b16 %v118, %v117
  %v122 = vpack.c.b16 %v120, %v119
  %vm125 = vcmask 1043456
  %vm126 = vcmask 523268
  %vm127 = vmor %vm126, %vm125
  %128 = vst.msk [vmem:[%s3] sm:$0xff] %vm127, %v121
  %129 = vst.msk [vmem:[%s3 + $0x8] sm:$0xff] %vm127, %v122
  // Predicated region
  $region14: #{mobilenet_perceptual_loss.38} parent=0 // pred_check
    _
  $region15: #{mobilenet_perceptual_loss.38} parent=0 // pred_check_branch
    %131 = sbr.rel (0) target = $region17
  $region16: #{mobilenet_perceptual_loss.38} parent=0 // pred_region
    _
  $region17: #{mobilenet_perceptual_loss.38} parent=0 // pred_fallthru
    _
  // Predicated region
  $region18: #{mobilenet_perceptual_loss.38} parent=0 // pred_check
    _
  $region19: #{mobilenet_perceptual_loss.38} parent=0 // pred_check_branch
    %133 = sbr.rel (0) target = $region21
  $region20: #{mobilenet_perceptual_loss.38} parent=0 // pred_region
    _
  $region21: #{mobilenet_perceptual_loss.38} parent=0 // pred_fallthru
    _

// kernel: mobilenet_perceptual_loss.39
$region0: #{mobilenet_perceptual_loss.39}
  #allocation0 [shape = 'u32[]', space=smem, size = 0x4, offset = 0x4, fixed_abs, tag = 'smem constant byte address 0x4 - core index']
  #allocation1 [shape = 'u32[144,128]{1,0:T(1,128)}', space=vmem, size = 0x12000, scoped, tag = 'internal scratch']
  %s0 = inlined_call_operand.vmem [shape: bf16[4,4,4,192], index: 0, kind: input, shape index: {}]
  %s1 = inlined_call_operand.vmem [shape: f32[9,192], index: 1, kind: input, shape index: {}]
  %s2 = inlined_call_operand.vmem [shape: f32[1,192], index: 2, kind: input, shape index: {}]
  %s3 = inlined_call_operand.vmem [shape: bf16[4,2,2,192], index: 3, kind: output, shape index: {}]
  %s4 = sld [smem:[#allocation0]]
  $region45: #{mobilenet_perceptual_loss.39} parent=0
    _
  %s6 = ssub.s32 1, %s4
  %s7 = scalar_select 0, %s6, %s4
  loop: start=0, step=1, limit=6
  $region2: #{mobilenet_perceptual_loss.39} parent=0 // loop_pre_header
    _
  $region3: #{mobilenet_perceptual_loss.39} parent=0 // loop_header
    %s9 = sphi 0, %s13
    %p10 = scmp.ge.s32.totalorder %s9, 6
    %s19 = sphi 0, %s21
    %s22 = sphi 0, %s19
    %s23 = sphi 0, %s22
    %s39 = sphi 0, %s23
    %s43 = sphi 0, %s43
    %s45 = sphi 0, %s43
    %s46 = sphi 0, %s45
    %s60 = sphi 0, %s46
    %s64 = sphi 0, %s64
    %s66 = sphi 0, %s64
    %s67 = sphi 0, %s66
    %s81 = sphi 0, %s67
    %s87 = sphi 0, %s89
    %s90 = sphi 0, %s87
    %s91 = sphi 0, %s90
    %s107 = sphi 0, %s91
  $region4: #{mobilenet_perceptual_loss.39} parent=0 // loop_header_branch
    %12 = sbr.rel (%p10) target = $region8
  $region5: #{mobilenet_perceptual_loss.39} parent=0 // loop_body
    %s14 = ssub.s32 %s9, 1
    %s15 = ssub.s32 %s9, 2
    %s16 = sadd.s32 %s9, 1
    %s17 = ssub.s32 %s9, %s16
    %p18 = scmp.eq.s32.totalorder %s17, 0
    %s20 = sadd.s32 %s19, 1
    %s21 = scalar_select %p18, %s19, %s20
    %p24 = pneg %p18
    %p25 = scmp.eq.s32.totalorder %s9, 3
    %p26 = por %p24, %p25
    %p27 = scmp.ne.s32.totalorder %s19, %s22
    %p28 = scmp.eq.s32.totalorder %s9, 0
    %p29 = por %p27, %p28
    %p30 = scmp.ne.s32.totalorder %s19, %s22
    %p31 = scmp.eq.s32.totalorder %s14, 3
    %p32 = por %p30, %p31
    %p33 = scmp.ne.s32.totalorder %s22, %s23
    %p34 = scmp.eq.s32.totalorder %s14, 0
    %p35 = por %p33, %p34
    %p36 = scmp.ne.s32.totalorder %s22, %s23
    %p37 = scmp.eq.s32.totalorder %s15, 3
    %p38 = por %p36, %p37
    %p40 = scmp.ne.s32.totalorder %s23, %s39
    %p41 = scmp.eq.s32.totalorder %s15, 0
    %p42 = por %p40, %p41
    %s44 = sadd.s32 %s43, 1
    %p47 = scmp.eq.s32.totalorder %s9, 3
    %p48 = scmp.ne.s32.totalorder %s43, %s45
    %p49 = scmp.eq.s32.totalorder %s9, 0
    %p50 = por %p48, %p49
    %p51 = scmp.ne.s32.totalorder %s43, %s45
    %p52 = scmp.eq.s32.totalorder %s14, 3
    %p53 = por %p51, %p52
    %p54 = scmp.ne.s32.totalorder %s45, %s46
    %p55 = scmp.eq.s32.totalorder %s14, 0
    %p56 = por %p54, %p55
    %p57 = scmp.ne.s32.totalorder %s45, %s46
    %p58 = scmp.eq.s32.totalorder %s15, 3
    %p59 = por %p57, %p58
    %p61 = scmp.ne.s32.totalorder %s46, %s60
    %p62 = scmp.eq.s32.totalorder %s15, 0
    %p63 = por %p61, %p62
    %s65 = sadd.s32 %s64, 1
    %p68 = scmp.eq.s32.totalorder %s9, 3
    %p69 = scmp.ne.s32.totalorder %s64, %s66
    %p70 = scmp.eq.s32.totalorder %s9, 0
    %p71 = por %p69, %p70
    %p72 = scmp.ne.s32.totalorder %s64, %s66
    %p73 = scmp.eq.s32.totalorder %s14, 3
    %p74 = por %p72, %p73
    %p75 = scmp.ne.s32.totalorder %s66, %s67
    %p76 = scmp.eq.s32.totalorder %s14, 0
    %p77 = por %p75, %p76
    %p78 = scmp.ne.s32.totalorder %s66, %s67
    %p79 = scmp.eq.s32.totalorder %s15, 3
    %p80 = por %p78, %p79
    %p82 = scmp.ne.s32.totalorder %s67, %s81
    %p83 = scmp.eq.s32.totalorder %s15, 0
    %p84 = por %p82, %p83
    %s85 = ssub.s32 %s9, %s16
    %p86 = scmp.eq.s32.totalorder %s85, 0
    %s88 = sadd.s32 %s87, 1
    %s89 = scalar_select %p86, %s87, %s88
    %p92 = pneg %p86
    %p93 = scmp.eq.s32.totalorder %s9, 3
    %p94 = por %p92, %p93
    %p95 = scmp.ne.s32.totalorder %s87, %s90
    %p96 = scmp.eq.s32.totalorder %s9, 0
    %p97 = por %p95, %p96
    %p98 = scmp.ne.s32.totalorder %s87, %s90
    %p99 = scmp.eq.s32.totalorder %s14, 3
    %p100 = por %p98, %p99
    %p101 = scmp.ne.s32.totalorder %s90, %s91
    %p102 = scmp.eq.s32.totalorder %s14, 0
    %p103 = por %p101, %p102
    %p104 = scmp.ne.s32.totalorder %s90, %s91
    %p105 = scmp.eq.s32.totalorder %s15, 3
    %p106 = por %p104, %p105
    %p108 = scmp.ne.s32.totalorder %s91, %s107
    %p109 = scmp.eq.s32.totalorder %s15, 0
    %p110 = por %p108, %p109
    %p111 = scmp.le.s32.totalorder 1, %s9
    %p112 = scmp.lt.s32.totalorder %s9, 5
    %p113 = pnand %p111, %p112
    %p114 = pneg %p113
    // Predicated region
    $region9: #{mobilenet_perceptual_loss.39} parent=5 // pred_check
      _
    $region10: #{mobilenet_perceptual_loss.39} parent=5 // pred_check_branch
      %116 = sbr.rel (%p113) target = $region12
    $region11: #{mobilenet_perceptual_loss.39} parent=5 // pred_region
      %s117 = ssub.s32 %s9, 1
      // Predicated region
      $region13: #{mobilenet_perceptual_loss.39} parent=11 // pred_check
        %p118 = pneg %p56
      $region14: #{mobilenet_perceptual_loss.39} parent=11 // pred_check_branch
        %120 = sbr.rel (%p118) target = $region16
      $region15: #{mobilenet_perceptual_loss.39} parent=11 // pred_region
        _
      $region16: #{mobilenet_perceptual_loss.39} parent=11 // pred_fallthru
        _
      // Predicated region
      $region17: #{mobilenet_perceptual_loss.39} parent=11 // pred_check
        %p121 = pneg %p77
      $region18: #{mobilenet_perceptual_loss.39} parent=11 // pred_check_branch
        %123 = sbr.rel (%p121) target = $region20
      $region19: #{mobilenet_perceptual_loss.39} parent=11 // pred_region
        _
      $region20: #{mobilenet_perceptual_loss.39} parent=11 // pred_fallthru
        _
    $region12: #{mobilenet_perceptual_loss.39} parent=5 // pred_fallthru
      _
    %p124 = scmp.lt.s32.totalorder %s9, 4
    // Predicated region
    $region21: #{mobilenet_perceptual_loss.39} parent=5 // pred_check
      %p125 = pneg %p124
    $region22: #{mobilenet_perceptual_loss.39} parent=5 // pred_check_branch
      %127 = sbr.rel (%p125) target = $region24
    $region23: #{mobilenet_perceptual_loss.39} parent=5 // pred_region
      // Predicated region
      $region25: #{mobilenet_perceptual_loss.39} parent=23 // pred_check
        %p128 = pneg %p29
      $region26: #{mobilenet_perceptual_loss.39} parent=23 // pred_check_branch
        %130 = sbr.rel (%p128) target = $region28
      $region27: #{mobilenet_perceptual_loss.39} parent=23 // pred_region
        %p131 = scmp.lt.s32.totalorder %s9, 3
        %s132 = scalar_select %p131, %s9, 3
        %s133 = smul.addr %s132, 8
        %s134 = smul.addr %s133, 2
        %s135 = scalar_lea.vmem %s0, %s134
      $region28: #{mobilenet_perceptual_loss.39} parent=23 // pred_fallthru
        _
    $region24: #{mobilenet_perceptual_loss.39} parent=5 // pred_fallthru
      _
    %p136 = scmp.le.s32.totalorder 1, %s9
    %p137 = scmp.lt.s32.totalorder %s9, 5
    %p138 = pnand %p136, %p137
    %p139 = pneg %p138
    // Predicated region
    $region29: #{mobilenet_perceptual_loss.39} parent=5 // pred_check
      _
    $region30: #{mobilenet_perceptual_loss.39} parent=5 // pred_check_branch
      %141 = sbr.rel (%p138) target = $region32
    $region31: #{mobilenet_perceptual_loss.39} parent=5 // pred_region
      %s142 = ssub.s32 %s9, 1
      %p143 = scmp.lt.s32.totalorder %s14, 3
      %s144 = scalar_select %p143, %s14, 3
      %s145 = smul.addr %s144, 8
      %s146 = smul.addr %s145, 2
      %s147 = scalar_lea.vmem %s0, %s146
      %p148 = pneg %p35
      %p149 = pneg %p32
      %p150 = pneg %p56
      %p151 = pneg %p53
      %p152 = pneg %p77
      %p153 = pneg %p74
      %p154 = pneg %p103
      %p155 = pneg %p100
      %p156 = scmp.lt.s32.totalorder %s14, 3
      %s157 = scalar_select %p156, %s14, 3
      %s158 = smul.addr %s157, 4
      %s159 = scalar_lea.vmem %s3, %s158
      %p160 = scmp.lt.s32.totalorder %s14, 3
      %s161 = scalar_select %p160, %s14, 3
      %s162 = smul.addr %s161, 8
      %s163 = smul.addr %s162, 2
      %s164 = scalar_lea.vmem %s0, %s163
      %p165 = scmp.lt.s32.totalorder %s14, 3
      %s166 = scalar_select %p165, %s14, 3
      %s167 = smul.addr %s166, 4
      %s168 = scalar_lea.vmem %s3, %s167
      %v169 = vld [vmem:[%s164] sm:$0xf]
      %v170 = vld [vmem:[%s164 + $0x4] sm:$0xf]
      %v171 = vld [vmem:[%s164 + $0x8] sm:$0xf]
      %v172 = vld [vmem:[%s164 + $0xc] sm:$0xf]
      %v173 = vunpack.c.l.bf16 %v169
      %v174 = vunpack.c.l.bf16 %v170
      %v175 = vunpack.c.l.bf16 %v171
      %v176 = vunpack.c.l.bf16 %v172
      %v177 = vld [vmem:[%s1] ss:$8 sm:$0x3]
      %v179 = vlaneseq
      %v180 = vshrl.u32 %v179, 7
      %v181 = vsub.s32 0, %v180
      %v182 = vrot.slane %v177, %v181
      %v183 = vlaneseq
      %v184 = vshrl.u32 %v183, 7
      %v185 = vsub.s32 1, %v184
      %v186 = vrot.slane %v177, %v185
      %v187 = vcombine.low %v182, %v186
      %v189 = vmul.f32 %v173, %v187
      %v190 = vmul.f32 %v174, %v187
      %v191 = vadd.f32 %v189, 0.0
      %v192 = vadd.f32 %v190, 0.0
      %s193 = scalar_lea.vmem %s1, 1
      %v194 = vld [vmem:[%s193] ss:$8 sm:$0x3]
      %v196 = vlaneseq
      %v197 = vshrl.u32 %v196, 7
      %v198 = vsub.s32 0, %v197
      %v199 = vrot.slane %v194, %v198
      %v200 = vlaneseq
      %v201 = vshrl.u32 %v200, 7
      %v202 = vsub.s32 1, %v201
      %v203 = vrot.slane %v194, %v202
      %v204 = vcombine.low %v199, %v203
      %v205 = vrot.slane %v204, 7
      %v207 = vmul.f32 %v173, %v205
      %v208 = vmul.f32 %v174, %v205
      %v211 = vrot.slane %v207, 5
      %v212 = vrot.slane %v211, 4
      %v213 = vrot.slane %v208, 5
      %v214 = vrot.slane %v213, 4
      %v217 = vadd.f32 %v191, %v212
      %v218 = vadd.f32 %v192, %v214
      %s219 = scalar_lea.vmem %s1, 2
      %v220 = vld [vmem:[%s219] ss:$8 sm:$0x3]
      %v222 = vlaneseq
      %v223 = vshrl.u32 %v222, 7
      %v224 = vsub.s32 0, %v223
      %v225 = vrot.slane %v220, %v224
      %v226 = vlaneseq
      %v227 = vshrl.u32 %v226, 7
      %v228 = vsub.s32 1, %v227
      %v229 = vrot.slane %v220, %v228
      %v230 = vcombine.low %v225, %v229
      %v231 = vrot.slane %v230, 6
      %v233 = vmul.f32 %v173, %v231
      %v234 = vmul.f32 %v174, %v231
      %v237 = vrot.slane %v233, 6
      %v238 = vrot.slane %v237, 4
      %v239 = vrot.slane %v234, 6
      %v240 = vrot.slane %v239, 4
      %v243 = vadd.f32 %v217, %v238
      %v244 = vadd.f32 %v218, %v240
      %s245 = scalar_lea.vmem %s1, 3
      %v246 = vld [vmem:[%s245] ss:$8 sm:$0x3]
      %v248 = vlaneseq
      %v249 = vshrl.u32 %v248, 7
      %v250 = vsub.s32 0, %v249
      %v251 = vrot.slane %v246, %v250
      %v252 = vlaneseq
      %v253 = vshrl.u32 %v252, 7
      %v254 = vsub.s32 1, %v253
      %v255 = vrot.slane %v246, %v254
      %v256 = vcombine.low %v251, %v255
      %v258 = vmul.f32 %v174, %v256
      %v259 = vmul.f32 %v175, %v256
      %v260 = vadd.f32 %v243, %v258
      %v261 = vadd.f32 %v244, %v259
      %s262 = scalar_lea.vmem %s1, 4
      %v263 = vld [vmem:[%s262] ss:$8 sm:$0x3]
      %v265 = vlaneseq
      %v266 = vshrl.u32 %v265, 7
      %v267 = vsub.s32 0, %v266
      %v268 = vrot.slane %v263, %v267
      %v269 = vlaneseq
      %v270 = vshrl.u32 %v269, 7
      %v271 = vsub.s32 1, %v270
      %v272 = vrot.slane %v263, %v271
      %v273 = vcombine.low %v268, %v272
      %v274 = vrot.slane %v273, 7
      %v276 = vmul.f32 %v174, %v274
      %v277 = vmul.f32 %v175, %v274
      %v280 = vrot.slane %v276, 5
      %v281 = vrot.slane %v280, 4
      %v282 = vrot.slane %v277, 5
      %v283 = vrot.slane %v282, 4
      %v286 = vadd.f32 %v260, %v281
      %v287 = vadd.f32 %v261, %v283
      %s288 = scalar_lea.vmem %s1, 5
      %v289 = vld [vmem:[%s288] ss:$8 sm:$0x3]
      %v291 = vlaneseq
      %v292 = vshrl.u32 %v291, 7
      %v293 = vsub.s32 0, %v292
      %v294 = vrot.slane %v289, %v293
      %v295 = vlaneseq
      %v296 = vshrl.u32 %v295, 7
      %v297 = vsub.s32 1, %v296
      %v298 = vrot.slane %v289, %v297
      %v299 = vcombine.low %v294, %v298
      %v300 = vrot.slane %v299, 6
      %v302 = vmul.f32 %v174, %v300
      %v303 = vmul.f32 %v175, %v300
      %v306 = vrot.slane %v302, 6
      %v307 = vrot.slane %v306, 4
      %v308 = vrot.slane %v303, 6
      %v309 = vrot.slane %v308, 4
      %v312 = vadd.f32 %v286, %v307
      %v313 = vadd.f32 %v287, %v309
      %s314 = scalar_lea.vmem %s1, 6
      %v315 = vld [vmem:[%s314] ss:$8 sm:$0x3]
      %v317 = vlaneseq
      %v318 = vshrl.u32 %v317, 7
      %v319 = vsub.s32 0, %v318
      %v320 = vrot.slane %v315, %v319
      %v321 = vlaneseq
      %v322 = vshrl.u32 %v321, 7
      %v323 = vsub.s32 1, %v322
      %v324 = vrot.slane %v315, %v323
      %v325 = vcombine.low %v320, %v324
      %v327 = vmul.f32 %v175, %v325
      %v328 = vmul.f32 %v176, %v325
      %v329 = vadd.f32 %v312, %v327
      %v330 = vadd.f32 %v313, %v328
      %s331 = scalar_lea.vmem %s1, 7
      %v332 = vld [vmem:[%s331] ss:$8 sm:$0x3]
      %v334 = vlaneseq
      %v335 = vshrl.u32 %v334, 7
      %v336 = vsub.s32 0, %v335
      %v337 = vrot.slane %v332, %v336
      %v338 = vlaneseq
      %v339 = vshrl.u32 %v338, 7
      %v340 = vsub.s32 1, %v339
      %v341 = vrot.slane %v332, %v340
      %v342 = vcombine.low %v337, %v341
      %v343 = vrot.slane %v342, 7
      %v345 = vmul.f32 %v175, %v343
      %v346 = vmul.f32 %v176, %v343
      %v349 = vrot.slane %v345, 5
      %v350 = vrot.slane %v349, 4
      %v351 = vrot.slane %v346, 5
      %v352 = vrot.slane %v351, 4
      %v355 = vadd.f32 %v329, %v350
      %v356 = vadd.f32 %v330, %v352
      %s357 = scalar_lea.vmem %s1, 16
      %v358 = vld [vmem:[%s357] ss:$8 sm:$0x3]
      %v360 = vlaneseq
      %v361 = vshrl.u32 %v360, 7
      %v362 = vsub.s32 0, %v361
      %v363 = vrot.slane %v358, %v362
      %v364 = vlaneseq
      %v365 = vshrl.u32 %v364, 7
      %v366 = vsub.s32 1, %v365
      %v367 = vrot.slane %v358, %v366
      %v368 = vcombine.low %v363, %v367
      %v369 = vrot.slane %v368, 6
      %v371 = vmul.f32 %v175, %v369
      %v372 = vmul.f32 %v176, %v369
      %v375 = vrot.slane %v371, 6
      %v376 = vrot.slane %v375, 4
      %v377 = vrot.slane %v372, 6
      %v378 = vrot.slane %v377, 4
      %v381 = vadd.f32 %v355, %v376
      %v382 = vadd.f32 %v356, %v378
      %v383 = vld [vmem:[%s2] sm:$0x3]
      %v385 = vlaneseq
      %v386 = vshrl.u32 %v385, 7
      %v387 = vsub.s32 0, %v386
      %v388 = vrot.slane %v383, %v387
      %v389 = vlaneseq
      %v390 = vshrl.u32 %v389, 7
      %v391 = vsub.s32 1, %v390
      %v392 = vrot.slane %v383, %v391
      %v393 = vcombine.low %v388, %v392
      %v395 = vadd.f32 %v381, %v393
      %v396 = vadd.f32 %v382, %v393
      %v397 = vmax.f32 %v395, 0.0
      %v398 = vmax.f32 %v396, 0.0
      %v399 = vmin.f32 %v397, 6.0
      %v400 = vmin.f32 %v398, 6.0
      %v403 = vcombine.high %v399, %v399
      %v404 = vcombine.high %v400, %v400
      %v407 = vpack.c.bf16 %v399, %v399
      %v408 = vpack.c.bf16 %v403, %v403
      %v409 = vpack.c.bf16 %v400, %v400
      %v410 = vpack.c.bf16 %v404, %v404
      %v415 = vcombine.low %v407, %v408
      %v417 = vunpack.c.l.s4 1966171168
      %v418 = vunpack.c.0.s8 %v417
      %v419 = vlaneseq
      %v420 = vshrl.u32 %v419, 7
      %v421 = vsub.s32 %v418, %v420
      %v422 = vrot.slane %v415, %v421
      %v424 = vunpack.c.l.s4 1966171168
      %v425 = vunpack.c.0.s8 %v424
      %v426 = vlaneseq
      %v427 = vshrl.u32 %v426, 7
      %v428 = vsub.s32 %v425, %v427
      %v429 = vrot.slane %v422, %v428
      %v430 = vcombine.low %v409, %v410
      %v432 = vunpack.c.l.s4 1966171168
      %v433 = vunpack.c.0.s8 %v432
      %v434 = vlaneseq
      %v435 = vshrl.u32 %v434, 7
      %v436 = vsub.s32 %v433, %v435
      %v437 = vrot.slane %v430, %v436
      %v439 = vunpack.c.l.s4 1966171168
      %v440 = vunpack.c.0.s8 %v439
      %v441 = vlaneseq
      %v442 = vshrl.u32 %v441, 7
      %v443 = vsub.s32 %v440, %v442
      %v444 = vrot.slane %v437, %v443
      %vm447 = vcmask 1040384
      %vm448 = vcmask 517121
      %vm449 = vmor %vm448, %vm447
      %450 = vst.msk [vmem:[%s168] sm:$0x3] %vm449, %v429
      %451 = vst.msk [vmem:[%s168 + $0x2] sm:$0x3] %vm449, %v444
      %p452 = scmp.lt.s32.totalorder %s14, 3
      %s453 = scalar_select %p452, %s14, 3
      %s454 = smul.addr %s453, 4
      %s455 = scalar_lea.vmem %s3, %s454
      // Predicated region
      $region33: #{mobilenet_perceptual_loss.39} parent=31 // pred_check
        %p456 = pneg %p100
      $region34: #{mobilenet_perceptual_loss.39} parent=31 // pred_check_branch
        %458 = sbr.rel (%p456) target = $region36
      $region35: #{mobilenet_perceptual_loss.39} parent=31 // pred_region
        _
      $region36: #{mobilenet_perceptual_loss.39} parent=31 // pred_fallthru
        _
    $region32: #{mobilenet_perceptual_loss.39} parent=5 // pred_fallthru
      _
    %p459 = scmp.le.s32.totalorder 2, %s9
    // Predicated region
    $region37: #{mobilenet_perceptual_loss.39} parent=5 // pred_check
      %p460 = pneg %p459
    $region38: #{mobilenet_perceptual_loss.39} parent=5 // pred_check_branch
      %462 = sbr.rel (%p460) target = $region40
    $region39: #{mobilenet_perceptual_loss.39} parent=5 // pred_region
      %s463 = ssub.s32 %s9, 2
      // Predicated region
      $region41: #{mobilenet_perceptual_loss.39} parent=39 // pred_check
        %p464 = pneg %p106
      $region42: #{mobilenet_perceptual_loss.39} parent=39 // pred_check_branch
        %466 = sbr.rel (%p464) target = $region44
      $region43: #{mobilenet_perceptual_loss.39} parent=39 // pred_region
        %p467 = scmp.lt.s32.totalorder %s15, 3
        %s468 = scalar_select %p467, %s15, 3
        %s469 = smul.addr %s468, 4
        %s470 = scalar_lea.vmem %s3, %s469
      $region44: #{mobilenet_perceptual_loss.39} parent=39 // pred_fallthru
        _
    $region40: #{mobilenet_perceptual_loss.39} parent=5 // pred_fallthru
      _
  $region6: #{mobilenet_perceptual_loss.39} parent=0 // loop_footer
    %s13 = sadd.s32 1, %s9
  $region7: #{mobilenet_perceptual_loss.39} parent=0 // loop_footer_branch
    %8 = sbr.rel target = $region3
  $region8: #{mobilenet_perceptual_loss.39} parent=0 // loop_exit
    _

// kernel: mobilenet_perceptual_loss.40
$region0: #{mobilenet_perceptual_loss.40}
  #allocation0 [shape = 'u32[]', space=smem, size = 0x4, offset = 0x4, fixed_abs, tag = 'smem constant byte address 0x4 - core index']
  #allocation1 [shape = 'u32[144,128]{1,0:T(1,128)}', space=vmem, size = 0x12000, scoped, tag = 'internal scratch']
  %s0 = inlined_call_operand.vmem [shape: bf16[16,192], index: 0, kind: input, shape index: {}]
  %s1 = inlined_call_operand.vmem [shape: bf16[192,32], index: 1, kind: input, shape index: {}]
  %s2 = inlined_call_operand.vmem [shape: f32[1,32], index: 2, kind: input, shape index: {}]
  %s3 = inlined_call_operand.vmem [shape: bf16[16,32], index: 3, kind: input, shape index: {}]
  %s4 = inlined_call_operand.vmem [shape: bf16[16,32], index: 4, kind: output, shape index: {}]
  %s5 = sld [smem:[#allocation0]]
  $region26: #{mobilenet_perceptual_loss.40} parent=0
    _
  %s7 = ssub.s32 1, %s5
  %s8 = scalar_select 0, %s7, %s5
  // Predicated region
  $region2: #{mobilenet_perceptual_loss.40} parent=0 // pred_check
    _
  $region3: #{mobilenet_perceptual_loss.40} parent=0 // pred_check_branch
    %10 = sbr.rel (0) target = $region5
  $region4: #{mobilenet_perceptual_loss.40} parent=0 // pred_region
    _
  $region5: #{mobilenet_perceptual_loss.40} parent=0 // pred_fallthru
    _
  // Predicated region
  $region6: #{mobilenet_perceptual_loss.40} parent=0 // pred_check
    _
  $region7: #{mobilenet_perceptual_loss.40} parent=0 // pred_check_branch
    %12 = sbr.rel (0) target = $region9
  $region8: #{mobilenet_perceptual_loss.40} parent=0 // pred_region
    _
  $region9: #{mobilenet_perceptual_loss.40} parent=0 // pred_fallthru
    _
  // Predicated region
  $region10: #{mobilenet_perceptual_loss.40} parent=0 // pred_check
    _
  $region11: #{mobilenet_perceptual_loss.40} parent=0 // pred_check_branch
    %14 = sbr.rel (0) target = $region13
  $region12: #{mobilenet_perceptual_loss.40} parent=0 // pred_region
    _
  $region13: #{mobilenet_perceptual_loss.40} parent=0 // pred_fallthru
    _
  // Predicated region
  $region14: #{mobilenet_perceptual_loss.40} parent=0 // pred_check
    _
  $region15: #{mobilenet_perceptual_loss.40} parent=0 // pred_check_branch
    %16 = sbr.rel (0) target = $region17
  $region16: #{mobilenet_perceptual_loss.40} parent=0 // pred_region
    _
  $region17: #{mobilenet_perceptual_loss.40} parent=0 // pred_fallthru
    _
  %v18 = vld [vmem:[%s0] sm:$0xff]
  %v19 = vld [vmem:[%s0 + $0x8] sm:$0xff]
  %v20 = vld [vmem:[%s1] sm:$0xf]
  %v21 = vld [vmem:[%s1 + $0x4] sm:$0xf]
  %v22 = vld [vmem:[%s1 + $0x8] sm:$0xf]
  %v23 = vld [vmem:[%s1 + $0xc] sm:$0xf]
  %v24 = vld [vmem:[%s1 + $0x10] sm:$0xf]
  %v25 = vld [vmem:[%s1 + $0x14] sm:$0xf]
  %v26 = vld [vmem:[%s1 + $0x18] sm:$0xf]
  %v27 = vld [vmem:[%s1 + $0x1c] sm:$0xf]
  %v28 = vld [vmem:[%s1 + $0x20] sm:$0xf]
  %v29 = vld [vmem:[%s1 + $0x24] sm:$0xf]
  %v30 = vld [vmem:[%s1 + $0x28] sm:$0xf]
  %v31 = vld [vmem:[%s1 + $0x2c] sm:$0xf]
  %v32 = vld [vmem:[%s1 + $0x30] sm:$0xf]
  %v33 = vld [vmem:[%s1 + $0x34] sm:$0xf]
  %v34 = vld [vmem:[%s1 + $0x38] sm:$0xf]
  %v35 = vld [vmem:[%s1 + $0x3c] sm:$0xf]
  %v36 = vld [vmem:[%s1 + $0x40] sm:$0xf]
  %v37 = vld [vmem:[%s1 + $0x44] sm:$0xf]
  %v38 = vld [vmem:[%s1 + $0x48] sm:$0xf]
  %v39 = vld [vmem:[%s1 + $0x4c] sm:$0xf]
  %v40 = vld [vmem:[%s1 + $0x50] sm:$0xf]
  %v41 = vld [vmem:[%s1 + $0x54] sm:$0xf]
  %v42 = vld [vmem:[%s1 + $0x58] sm:$0xf]
  %v43 = vld [vmem:[%s1 + $0x5c] sm:$0xf]
  %v44 = vld [vmem:[%s2] sm:$0x1]
  %v46 = vlaneseq
  %v47 = vshrl.u32 %v46, 7
  %v48 = vsub.s32 0, %v47
  %v49 = vrot.slane %v44, %v48
  %v53 = vunpack.c.l.b16 %v18
  %v54 = vunpack.c.h.b16 %v18
  %v55 = vunpack.c.l.b16 %v19
  %v56 = vunpack.c.h.b16 %v19
  %v57 = vpack.c.b16 %v55, %v53
  %v58 = vpack.c.b16 %v56, %v54
  %v84 = vunpack.c.l.b16 %v20
  %v85 = vunpack.c.l.b16 %v21
  %v86 = vunpack.c.l.b16 %v22
  %v87 = vunpack.c.l.b16 %v23
  %v88 = vunpack.c.l.b16 %v24
  %v89 = vunpack.c.l.b16 %v25
  %v90 = vunpack.c.l.b16 %v26
  %v91 = vunpack.c.l.b16 %v27
  %v92 = vunpack.c.l.b16 %v28
  %v93 = vunpack.c.l.b16 %v29
  %v94 = vunpack.c.l.b16 %v30
  %v95 = vunpack.c.l.b16 %v31
  %v96 = vunpack.c.l.b16 %v32
  %v97 = vunpack.c.l.b16 %v33
  %v98 = vunpack.c.l.b16 %v34
  %v99 = vunpack.c.l.b16 %v35
  %v100 = vunpack.c.l.b16 %v36
  %v101 = vunpack.c.l.b16 %v37
  %v102 = vunpack.c.l.b16 %v38
  %v103 = vunpack.c.l.b16 %v39
  %v104 = vunpack.c.l.b16 %v40
  %v105 = vunpack.c.l.b16 %v41
  %v106 = vunpack.c.l.b16 %v42
  %v107 = vunpack.c.l.b16 %v43
  %v108 = vpack.c.b16 %v85, %v84
  %v109 = vpack.c.b16 %v87, %v86
  %v110 = vpack.c.b16 %v89, %v88
  %v111 = vpack.c.b16 %v91, %v90
  %v112 = vpack.c.b16 %v93, %v92
  %v113 = vpack.c.b16 %v95, %v94
  %v114 = vpack.c.b16 %v97, %v96
  %v115 = vpack.c.b16 %v99, %v98
  %v116 = vpack.c.b16 %v101, %v100
  %v117 = vpack.c.b16 %v103, %v102
  %v118 = vpack.c.b16 %v105, %v104
  %v119 = vpack.c.b16 %v107, %v106
  %vm132 = vcmask 523264
  %v134 = vsel %vm132, %v58, 0
  %136 = vmatprep.subr.bf16.mxu0 0
  %137 = vmatpush1.bf16.msra.mxu0 %v115
  %138 = vmatprep.subr.bf16.mxu0 0
  %139 = vmatpush1.bf16.msra.mxu0 %v114
  %140 = vmatprep.subr.bf16.mxu0 0
  %141 = vmatpush1.bf16.msra.mxu0 %v113
  %142 = vmatprep.subr.bf16.mxu0 0
  %143 = vmatpush1.bf16.msra.mxu0 %v112
  %144 = vmatprep.subr.bf16.mxu0 0
  %145 = vmatpush1.bf16.msra.mxu0 %v111
  %146 = vmatprep.subr.bf16.mxu0 0
  %147 = vmatpush1.bf16.msra.mxu0 %v110
  %148 = vmatprep.subr.bf16.mxu0 0
  %149 = vmatpush1.bf16.msra.mxu0 %v109
  %150 = vmatprep.subr.bf16.mxu0 0
  %151 = vmatpush1.bf16.msra.mxu0 %v108
  %152 = vmatprep.subr.bf16.mxu0 0
  %153 = vmatpush2.bf16.msra.mxu0 0
  %154 = vmatprep.subr.bf16.mxu0 0
  %155 = vmatpush2.bf16.msra.mxu0 0
  %156 = vmatprep.subr.bf16.mxu0 0
  %157 = vmatpush2.bf16.msra.mxu0 0
  %158 = vmatprep.subr.bf16.mxu0 0
  %159 = vmatpush2.bf16.msra.mxu0 0
  %160 = vmatprep.subr.bf16.mxu0 0
  %161 = vmatpush2.bf16.msra.mxu0 %v119
  %162 = vmatprep.subr.bf16.mxu0 0
  %163 = vmatpush2.bf16.msra.mxu0 %v118
  %164 = vmatprep.subr.bf16.mxu0 0
  %165 = vmatpush2.bf16.msra.mxu0 %v117
  %166 = vmatprep.subr.bf16.mxu0 0
  %167 = vmatpush2.bf16.msra.mxu0 %v116
  %168 = vmatprep.mubr.bf16.mxu0 %v134
  %169 = vmatmul.mubr.bf16.gmra.mxu0 %v57
  %v170 = vpop.f32.mrf.mxu0
  %v171 = vadd.f32 %v49, %v170
  %v172 = vpop.f32.mrf.mxu0
  %v173 = vpop.f32.mrf.mxu0
  %v174 = vadd.f32 %v49, %v173
  %v175 = vpop.f32.mrf.mxu0
  %176 = vdwg.mxu0
  %v177 = vld [vmem:[%s3] sm:$0xf]
  %v178 = vld [vmem:[%s3 + $0x4] sm:$0xf]
  %v179 = vunpack.c.l.bf16 %v177
  %v180 = vunpack.c.l.bf16 %v178
  %v181 = vadd.f32 %v171, %v179
  %v182 = vadd.f32 %v174, %v180
  %v183 = vpack.c.bf16 %v182, %v181
  %v185 = vunpack.c.l.b16 %v183
  %v186 = vunpack.c.h.b16 %v183
  %v187 = vpack.c.b16 %v185, %v185
  %v188 = vpack.c.b16 %v186, %v186
  %vm191 = vcmask 257024
  %192 = vst.msk [vmem:[%s4] sm:$0xf] %vm191, %v187
  %193 = vst.msk [vmem:[%s4 + $0x4] sm:$0xf] %vm191, %v188
  // Predicated region
  $region18: #{mobilenet_perceptual_loss.40} parent=0 // pred_check
    _
  $region19: #{mobilenet_perceptual_loss.40} parent=0 // pred_check_branch
    %195 = sbr.rel (0) target = $region21
  $region20: #{mobilenet_perceptual_loss.40} parent=0 // pred_region
    _
  $region21: #{mobilenet_perceptual_loss.40} parent=0 // pred_fallthru
    _
  // Predicated region
  $region22: #{mobilenet_perceptual_loss.40} parent=0 // pred_check
    _
  $region23: #{mobilenet_perceptual_loss.40} parent=0 // pred_check_branch
    %197 = sbr.rel (0) target = $region25
  $region24: #{mobilenet_perceptual_loss.40} parent=0 // pred_region
    _
  $region25: #{mobilenet_perceptual_loss.40} parent=0 // pred_fallthru
    _

// kernel: mobilenet_perceptual_loss.45
$region0: #{mobilenet_perceptual_loss.45}
  #allocation0 [shape = 'u32[]', space=smem, size = 0x4, offset = 0x4, fixed_abs, tag = 'smem constant byte address 0x4 - core index']
  #allocation1 [shape = 'u32[144,128]{1,0:T(1,128)}', space=vmem, size = 0x12000, scoped, tag = 'internal scratch']
  %s0 = inlined_call_operand.vmem [shape: bf16[16,2,2,192], index: 0, kind: input, shape index: {}]
  %s1 = inlined_call_operand.vmem [shape: f32[9,192], index: 1, kind: input, shape index: {}]
  %s2 = inlined_call_operand.vmem [shape: f32[1,192], index: 2, kind: input, shape index: {}]
  %s3 = inlined_call_operand.vmem [shape: bf16[4,1,1,192], index: 3, kind: output, shape index: {}]
  %s4 = sld [smem:[#allocation0]]
  $region45: #{mobilenet_perceptual_loss.45} parent=0
    _
  %s6 = ssub.s32 1, %s4
  %s7 = scalar_select 0, %s6, %s4
  loop: start=0, step=1, limit=6
  $region2: #{mobilenet_perceptual_loss.45} parent=0 // loop_pre_header
    _
  $region3: #{mobilenet_perceptual_loss.45} parent=0 // loop_header
    %s9 = sphi 0, %s13
    %p10 = scmp.ge.s32.totalorder %s9, 6
    %s19 = sphi 0, %s21
    %s22 = sphi 0, %s19
    %s23 = sphi 0, %s22
    %s39 = sphi 0, %s23
    %s43 = sphi 0, %s43
    %s45 = sphi 0, %s43
    %s46 = sphi 0, %s45
    %s60 = sphi 0, %s46
    %s64 = sphi 0, %s64
    %s66 = sphi 0, %s64
    %s67 = sphi 0, %s66
    %s81 = sphi 0, %s67
    %s87 = sphi 0, %s89
    %s90 = sphi 0, %s87
    %s91 = sphi 0, %s90
    %s107 = sphi 0, %s91
  $region4: #{mobilenet_perceptual_loss.45} parent=0 // loop_header_branch
    %12 = sbr.rel (%p10) target = $region8
  $region5: #{mobilenet_perceptual_loss.45} parent=0 // loop_body
    %s14 = ssub.s32 %s9, 1
    %s15 = ssub.s32 %s9, 2
    %s16 = sadd.s32 %s9, 1
    %s17 = ssub.s32 %s9, %s16
    %p18 = scmp.eq.s32.totalorder %s17, 0
    %s20 = sadd.s32 %s19, 1
    %s21 = scalar_select %p18, %s19, %s20
    %p24 = pneg %p18
    %p25 = scmp.eq.s32.totalorder %s9, 3
    %p26 = por %p24, %p25
    %p27 = scmp.ne.s32.totalorder %s19, %s22
    %p28 = scmp.eq.s32.totalorder %s9, 0
    %p29 = por %p27, %p28
    %p30 = scmp.ne.s32.totalorder %s19, %s22
    %p31 = scmp.eq.s32.totalorder %s14, 3
    %p32 = por %p30, %p31
    %p33 = scmp.ne.s32.totalorder %s22, %s23
    %p34 = scmp.eq.s32.totalorder %s14, 0
    %p35 = por %p33, %p34
    %p36 = scmp.ne.s32.totalorder %s22, %s23
    %p37 = scmp.eq.s32.totalorder %s15, 3
    %p38 = por %p36, %p37
    %p40 = scmp.ne.s32.totalorder %s23, %s39
    %p41 = scmp.eq.s32.totalorder %s15, 0
    %p42 = por %p40, %p41
    %s44 = sadd.s32 %s43, 1
    %p47 = scmp.eq.s32.totalorder %s9, 3
    %p48 = scmp.ne.s32.totalorder %s43, %s45
    %p49 = scmp.eq.s32.totalorder %s9, 0
    %p50 = por %p48, %p49
    %p51 = scmp.ne.s32.totalorder %s43, %s45
    %p52 = scmp.eq.s32.totalorder %s14, 3
    %p53 = por %p51, %p52
    %p54 = scmp.ne.s32.totalorder %s45, %s46
    %p55 = scmp.eq.s32.totalorder %s14, 0
    %p56 = por %p54, %p55
    %p57 = scmp.ne.s32.totalorder %s45, %s46
    %p58 = scmp.eq.s32.totalorder %s15, 3
    %p59 = por %p57, %p58
    %p61 = scmp.ne.s32.totalorder %s46, %s60
    %p62 = scmp.eq.s32.totalorder %s15, 0
    %p63 = por %p61, %p62
    %s65 = sadd.s32 %s64, 1
    %p68 = scmp.eq.s32.totalorder %s9, 3
    %p69 = scmp.ne.s32.totalorder %s64, %s66
    %p70 = scmp.eq.s32.totalorder %s9, 0
    %p71 = por %p69, %p70
    %p72 = scmp.ne.s32.totalorder %s64, %s66
    %p73 = scmp.eq.s32.totalorder %s14, 3
    %p74 = por %p72, %p73
    %p75 = scmp.ne.s32.totalorder %s66, %s67
    %p76 = scmp.eq.s32.totalorder %s14, 0
    %p77 = por %p75, %p76
    %p78 = scmp.ne.s32.totalorder %s66, %s67
    %p79 = scmp.eq.s32.totalorder %s15, 3
    %p80 = por %p78, %p79
    %p82 = scmp.ne.s32.totalorder %s67, %s81
    %p83 = scmp.eq.s32.totalorder %s15, 0
    %p84 = por %p82, %p83
    %s85 = ssub.s32 %s9, %s16
    %p86 = scmp.eq.s32.totalorder %s85, 0
    %s88 = sadd.s32 %s87, 1
    %s89 = scalar_select %p86, %s87, %s88
    %p92 = pneg %p86
    %p93 = scmp.eq.s32.totalorder %s9, 3
    %p94 = por %p92, %p93
    %p95 = scmp.ne.s32.totalorder %s87, %s90
    %p96 = scmp.eq.s32.totalorder %s9, 0
    %p97 = por %p95, %p96
    %p98 = scmp.ne.s32.totalorder %s87, %s90
    %p99 = scmp.eq.s32.totalorder %s14, 3
    %p100 = por %p98, %p99
    %p101 = scmp.ne.s32.totalorder %s90, %s91
    %p102 = scmp.eq.s32.totalorder %s14, 0
    %p103 = por %p101, %p102
    %p104 = scmp.ne.s32.totalorder %s90, %s91
    %p105 = scmp.eq.s32.totalorder %s15, 3
    %p106 = por %p104, %p105
    %p108 = scmp.ne.s32.totalorder %s91, %s107
    %p109 = scmp.eq.s32.totalorder %s15, 0
    %p110 = por %p108, %p109
    %p111 = scmp.le.s32.totalorder 1, %s9
    %p112 = scmp.lt.s32.totalorder %s9, 5
    %p113 = pnand %p111, %p112
    %p114 = pneg %p113
    // Predicated region
    $region9: #{mobilenet_perceptual_loss.45} parent=5 // pred_check
      _
    $region10: #{mobilenet_perceptual_loss.45} parent=5 // pred_check_branch
      %116 = sbr.rel (%p113) target = $region12
    $region11: #{mobilenet_perceptual_loss.45} parent=5 // pred_region
      %s117 = ssub.s32 %s9, 1
      // Predicated region
      $region13: #{mobilenet_perceptual_loss.45} parent=11 // pred_check
        %p118 = pneg %p56
      $region14: #{mobilenet_perceptual_loss.45} parent=11 // pred_check_branch
        %120 = sbr.rel (%p118) target = $region16
      $region15: #{mobilenet_perceptual_loss.45} parent=11 // pred_region
        _
      $region16: #{mobilenet_perceptual_loss.45} parent=11 // pred_fallthru
        _
      // Predicated region
      $region17: #{mobilenet_perceptual_loss.45} parent=11 // pred_check
        %p121 = pneg %p77
      $region18: #{mobilenet_perceptual_loss.45} parent=11 // pred_check_branch
        %123 = sbr.rel (%p121) target = $region20
      $region19: #{mobilenet_perceptual_loss.45} parent=11 // pred_region
        _
      $region20: #{mobilenet_perceptual_loss.45} parent=11 // pred_fallthru
        _
    $region12: #{mobilenet_perceptual_loss.45} parent=5 // pred_fallthru
      _
    %p124 = scmp.lt.s32.totalorder %s9, 4
    // Predicated region
    $region21: #{mobilenet_perceptual_loss.45} parent=5 // pred_check
      %p125 = pneg %p124
    $region22: #{mobilenet_perceptual_loss.45} parent=5 // pred_check_branch
      %127 = sbr.rel (%p125) target = $region24
    $region23: #{mobilenet_perceptual_loss.45} parent=5 // pred_region
      // Predicated region
      $region25: #{mobilenet_perceptual_loss.45} parent=23 // pred_check
        %p128 = pneg %p29
      $region26: #{mobilenet_perceptual_loss.45} parent=23 // pred_check_branch
        %130 = sbr.rel (%p128) target = $region28
      $region27: #{mobilenet_perceptual_loss.45} parent=23 // pred_region
        %s131 = smul.u32 4, %s9
        %p132 = scmp.lt.s32.totalorder %s131, 15
        %s133 = scalar_select %p132, %s131, 15
        %s134 = smul.addr %s133, 4
        %s135 = scalar_lea.vmem %s0, %s134
        %s136 = smul.u32 4, %s9
      $region28: #{mobilenet_perceptual_loss.45} parent=23 // pred_fallthru
        _
    $region24: #{mobilenet_perceptual_loss.45} parent=5 // pred_fallthru
      _
    %p137 = scmp.le.s32.totalorder 1, %s9
    %p138 = scmp.lt.s32.totalorder %s9, 5
    %p139 = pnand %p137, %p138
    %p140 = pneg %p139
    // Predicated region
    $region29: #{mobilenet_perceptual_loss.45} parent=5 // pred_check
      _
    $region30: #{mobilenet_perceptual_loss.45} parent=5 // pred_check_branch
      %142 = sbr.rel (%p139) target = $region32
    $region31: #{mobilenet_perceptual_loss.45} parent=5 // pred_region
      %s143 = ssub.s32 %s9, 1
      %s144 = smul.u32 4, %s14
      %p145 = scmp.lt.s32.totalorder %s144, 15
      %s146 = scalar_select %p145, %s144, 15
      %s147 = smul.addr %s146, 4
      %s148 = scalar_lea.vmem %s0, %s147
      %p149 = pneg %p35
      %p150 = pneg %p32
      %p151 = pneg %p56
      %p152 = pneg %p53
      %p153 = pneg %p77
      %p154 = pneg %p74
      %p155 = pneg %p103
      %p156 = pneg %p100
      %p157 = scmp.lt.s32.totalorder %s14, 3
      %s158 = scalar_select %p157, %s14, 3
      %s159 = smul.addr %s158, 2
      %s160 = scalar_lea.vmem %s3, %s159
      %s161 = smul.u32 4, %s14
      %p162 = scmp.lt.s32.totalorder %s161, 15
      %s163 = scalar_select %p162, %s161, 15
      %s164 = smul.addr %s163, 4
      %s165 = scalar_lea.vmem %s0, %s164
      %s166 = smul.u32 4, %s14
      %p167 = scmp.lt.s32.totalorder %s14, 3
      %s168 = scalar_select %p167, %s14, 3
      %s169 = smul.addr %s168, 2
      %s170 = scalar_lea.vmem %s3, %s169
      %v171 = vld [vmem:[%s165] sm:$0x3]
      %v172 = vld [vmem:[%s165 + $0x2] sm:$0x3]
      %v173 = vld [vmem:[%s165 + $0x4] sm:$0x3]
      %v174 = vld [vmem:[%s165 + $0x6] sm:$0x3]
      %v175 = vld [vmem:[%s165 + $0x8] sm:$0x3]
      %v176 = vld [vmem:[%s165 + $0xc] sm:$0x3]
      %v177 = vunpack.c.l.bf16 %v171
      %v178 = vunpack.c.l.bf16 %v172
      %v179 = vunpack.c.l.bf16 %v173
      %v180 = vunpack.c.l.bf16 %v174
      %v181 = vunpack.c.l.bf16 %v175
      %v182 = vunpack.c.l.bf16 %v176
      %v183 = vld [vmem:[%s1] ss:$8 sm:$0x3]
      %v186 = vunpack.c.l.s4 857870592
      %v187 = vunpack.c.0.s8 %v186
      %v188 = vlaneseq
      %v189 = vshrl.u32 %v188, 7
      %v190 = vsub.s32 %v187, %v189
      %v191 = vrot.slane %v183, %v190
      %v193 = vmul.f32 %v177, %v191
      %v194 = vadd.f32 %v193, 0.0
      %s195 = scalar_lea.vmem %s1, 1
      %v196 = vld [vmem:[%s195] ss:$8 sm:$0x3]
      %v199 = vunpack.c.l.s4 857870592
      %v200 = vunpack.c.0.s8 %v199
      %v201 = vlaneseq
      %v202 = vshrl.u32 %v201, 7
      %v203 = vsub.s32 %v200, %v202
      %v204 = vrot.slane %v196, %v203
      %v206 = vmul.f32 %v179, %v204
      %v207 = vadd.f32 %v194, %v206
      %s208 = scalar_lea.vmem %s1, 2
      %v209 = vld [vmem:[%s208] ss:$8 sm:$0x3]
      %v212 = vunpack.c.l.s4 857870592
      %v213 = vunpack.c.0.s8 %v212
      %v214 = vlaneseq
      %v215 = vshrl.u32 %v214, 7
      %v216 = vsub.s32 %v213, %v215
      %v217 = vrot.slane %v209, %v216
      %v219 = vmul.f32 %v177, %v217
      %v221 = vrot.slane %v219, 7
      %v222 = vrot.slane %v221, 2
      %v224 = vadd.f32 %v207, %v222
      %s225 = scalar_lea.vmem %s1, 3
      %v226 = vld [vmem:[%s225] ss:$8 sm:$0x3]
      %v229 = vunpack.c.l.s4 857870592
      %v230 = vunpack.c.0.s8 %v229
      %v231 = vlaneseq
      %v232 = vshrl.u32 %v231, 7
      %v233 = vsub.s32 %v230, %v232
      %v234 = vrot.slane %v226, %v233
      %v236 = vmul.f32 %v181, %v234
      %v237 = vadd.f32 %v224, %v236
      %s238 = scalar_lea.vmem %s1, 4
      %v239 = vld [vmem:[%s238] ss:$8 sm:$0x3]
      %v242 = vunpack.c.l.s4 857870592
      %v243 = vunpack.c.0.s8 %v242
      %v244 = vlaneseq
      %v245 = vshrl.u32 %v244, 7
      %v246 = vsub.s32 %v243, %v245
      %v247 = vrot.slane %v239, %v246
      %v249 = vmul.f32 %v182, %v247
      %v250 = vadd.f32 %v237, %v249
      %s251 = scalar_lea.vmem %s1, 5
      %v252 = vld [vmem:[%s251] ss:$8 sm:$0x3]
      %v255 = vunpack.c.l.s4 857870592
      %v256 = vunpack.c.0.s8 %v255
      %v257 = vlaneseq
      %v258 = vshrl.u32 %v257, 7
      %v259 = vsub.s32 %v256, %v258
      %v260 = vrot.slane %v252, %v259
      %v262 = vmul.f32 %v181, %v260
      %v264 = vrot.slane %v262, 7
      %v265 = vrot.slane %v264, 2
      %v267 = vadd.f32 %v250, %v265
      %s268 = scalar_lea.vmem %s1, 6
      %v269 = vld [vmem:[%s268] ss:$8 sm:$0x3]
      %v272 = vunpack.c.l.s4 857870592
      %v273 = vunpack.c.0.s8 %v272
      %v274 = vlaneseq
      %v275 = vshrl.u32 %v274, 7
      %v276 = vsub.s32 %v273, %v275
      %v277 = vrot.slane %v269, %v276
      %v279 = vmul.f32 %v178, %v277
      %v280 = vadd.f32 %v267, %v279
      %s281 = scalar_lea.vmem %s1, 7
      %v282 = vld [vmem:[%s281] ss:$8 sm:$0x3]
      %v285 = vunpack.c.l.s4 857870592
      %v286 = vunpack.c.0.s8 %v285
      %v287 = vlaneseq
      %v288 = vshrl.u32 %v287, 7
      %v289 = vsub.s32 %v286, %v288
      %v290 = vrot.slane %v282, %v289
      %v292 = vmul.f32 %v180, %v290
      %v293 = vadd.f32 %v280, %v292
      %s294 = scalar_lea.vmem %s1, 16
      %v295 = vld [vmem:[%s294] ss:$8 sm:$0x3]
      %v298 = vunpack.c.l.s4 857870592
      %v299 = vunpack.c.0.s8 %v298
      %v300 = vlaneseq
      %v301 = vshrl.u32 %v300, 7
      %v302 = vsub.s32 %v299, %v301
      %v303 = vrot.slane %v295, %v302
      %v305 = vmul.f32 %v178, %v303
      %v307 = vrot.slane %v305, 7
      %v308 = vrot.slane %v307, 2
      %v310 = vadd.f32 %v293, %v308
      %v311 = vld [vmem:[%s2] sm:$0x3]
      %v314 = vunpack.c.l.s4 857870592
      %v315 = vunpack.c.0.s8 %v314
      %v316 = vlaneseq
      %v317 = vshrl.u32 %v316, 7
      %v318 = vsub.s32 %v315, %v317
      %v319 = vrot.slane %v311, %v318
      %v321 = vadd.f32 %v310, %v319
      %v322 = vmax.f32 %v321, 0.0
      %v323 = vmin.f32 %v322, 6.0
      %v325 = vlaneseq
      %v326 = vshrl.u32 %v325, 7
      %v327 = vsub.s32 0, %v326
      %v328 = vrot.slane %v323, %v327
      %v329 = vlaneseq
      %v330 = vshrl.u32 %v329, 7
      %v331 = vsub.s32 2, %v330
      %v332 = vrot.slane %v323, %v331
      %v335 = vpack.c.bf16 %v328, %v328
      %v336 = vpack.c.bf16 %v332, %v332
      %v339 = vcombine.low %v335, %v336
      %v341 = vunpack.c.l.s4 1966171168
      %v342 = vunpack.c.0.s8 %v341
      %v343 = vlaneseq
      %v344 = vshrl.u32 %v343, 7
      %v345 = vsub.s32 %v342, %v344
      %v346 = vrot.slane %v339, %v345
      %v348 = vunpack.c.l.s4 1966171168
      %v349 = vunpack.c.0.s8 %v348
      %v350 = vlaneseq
      %v351 = vshrl.u32 %v350, 7
      %v352 = vsub.s32 %v349, %v351
      %v353 = vrot.slane %v346, %v352
      %vm355 = vcmask 1040384
      %vm356 = vsmask.f32 256
      %vm357 = vmand %vm355, %vm356
      %vm358 = vcmask 517121
      %vm359 = vsmask.f32 1280
      %vm360 = vmand %vm358, %vm359
      %vm361 = vmor %vm360, %vm357
      %v362 = vld [vmem:[%s170] sm:$0x3]
      %v363 = vsel %vm361, %v353, %v362
      %364 = vst [vmem:[%s170] sm:$0x3] %v363
      %p365 = scmp.lt.s32.totalorder %s14, 3
      %s366 = scalar_select %p365, %s14, 3
      %s367 = smul.addr %s366, 2
      %s368 = scalar_lea.vmem %s3, %s367
      // Predicated region
      $region33: #{mobilenet_perceptual_loss.45} parent=31 // pred_check
        %p369 = pneg %p100
      $region34: #{mobilenet_perceptual_loss.45} parent=31 // pred_check_branch
        %371 = sbr.rel (%p369) target = $region36
      $region35: #{mobilenet_perceptual_loss.45} parent=31 // pred_region
        _
      $region36: #{mobilenet_perceptual_loss.45} parent=31 // pred_fallthru
        _
    $region32: #{mobilenet_perceptual_loss.45} parent=5 // pred_fallthru
      _
    %p372 = scmp.le.s32.totalorder 2, %s9
    // Predicated region
    $region37: #{mobilenet_perceptual_loss.45} parent=5 // pred_check
      %p373 = pneg %p372
    $region38: #{mobilenet_perceptual_loss.45} parent=5 // pred_check_branch
      %375 = sbr.rel (%p373) target = $region40
    $region39: #{mobilenet_perceptual_loss.45} parent=5 // pred_region
      %s376 = ssub.s32 %s9, 2
      // Predicated region
      $region41: #{mobilenet_perceptual_loss.45} parent=39 // pred_check
        %p377 = pneg %p106
      $region42: #{mobilenet_perceptual_loss.45} parent=39 // pred_check_branch
        %379 = sbr.rel (%p377) target = $region44
      $region43: #{mobilenet_perceptual_loss.45} parent=39 // pred_region
        %p380 = scmp.lt.s32.totalorder %s15, 3
        %s381 = scalar_select %p380, %s15, 3
        %s382 = smul.addr %s381, 2
        %s383 = scalar_lea.vmem %s3, %s382
      $region44: #{mobilenet_perceptual_loss.45} parent=39 // pred_fallthru
        _
    $region40: #{mobilenet_perceptual_loss.45} parent=5 // pred_fallthru
      _
  $region6: #{mobilenet_perceptual_loss.45} parent=0 // loop_footer
    %s13 = sadd.s32 1, %s9
  $region7: #{mobilenet_perceptual_loss.45} parent=0 // loop_footer_branch
    %8 = sbr.rel target = $region3
  $region8: #{mobilenet_perceptual_loss.45} parent=0 // loop_exit
    _

// kernel: mobilenet_perceptual_loss.47
$region0: #{mobilenet_perceptual_loss.47}
  #allocation0 [shape = 'u32[]', space=smem, size = 0x4, offset = 0x4, fixed_abs, tag = 'smem constant byte address 0x4 - core index']
  #allocation1 [shape = 'u32[144,128]{1,0:T(1,128)}', space=vmem, size = 0x12000, scoped, tag = 'internal scratch']
  #allocation2 [shape = 'f32[1,1]{1,0:T(1,128)}', space=vmem, size = 0x200, scoped, tag = 'scratch operand']
  %s0 = inlined_call_operand.vmem [shape: bf16[2,64], index: 0, kind: input, shape index: {}]
  %s1 = inlined_call_operand.vmem [shape: bf16[2,64], index: 1, kind: input, shape index: {}]
  %s2 = inlined_call_operand.hbm [shape: f32[1,1], index: 2, kind: output, shape index: {}]
  %s3 = sld [smem:[#allocation0]]
  $region26: #{mobilenet_perceptual_loss.47} parent=0
    _
  %s5 = ssub.s32 1, %s3
  %s6 = scalar_select 0, %s5, %s3
  $region1: #{mobilenet_perceptual_loss.47} parent=0
    #allocation3 [shape = 'u8[512]{0}', space=vmem, size = 0x400, scoped, tag = 'output window, operand 0, single buffered']
    #allocation4 [shape = 's32[1]{0}', space=sflag, size = 0x4, scoped, tag = 'scoped memory for mobilenet_perceptual_loss.47']
    %7 = vsyncpa [#allocation4], 0
    // Predicated region
    $region2: #{mobilenet_perceptual_loss.47} parent=1 // pred_check
      _
    $region3: #{mobilenet_perceptual_loss.47} parent=1 // pred_check_branch
      %9 = sbr.rel (0) target = $region5
    $region4: #{mobilenet_perceptual_loss.47} parent=1 // pred_region
      _
    $region5: #{mobilenet_perceptual_loss.47} parent=1 // pred_fallthru
      _
    // Predicated region
    $region6: #{mobilenet_perceptual_loss.47} parent=1 // pred_check
      _
    $region7: #{mobilenet_perceptual_loss.47} parent=1 // pred_check_branch
      %11 = sbr.rel (0) target = $region9
    $region8: #{mobilenet_perceptual_loss.47} parent=1 // pred_region
      _
    $region9: #{mobilenet_perceptual_loss.47} parent=1 // pred_fallthru
      _
    %p12 = scmp.eq.s32.totalorder 0, 0
    // Predicated region
    $region10: #{mobilenet_perceptual_loss.47} parent=1 // pred_check
      %p13 = pneg %p12
    $region11: #{mobilenet_perceptual_loss.47} parent=1 // pred_check_branch
      %15 = sbr.rel (%p13) target = $region13
    $region12: #{mobilenet_perceptual_loss.47} parent=1 // pred_region
      %vm16 = vcmask 0
      %17 = vst.msk [vmem:[#allocation2] sm:$0x1] %vm16, 0.0
    $region13: #{mobilenet_perceptual_loss.47} parent=1 // pred_fallthru
      _
    %v18 = vld [vmem:[%s0] sm:$0x1]
    %v19 = vunpack.c.l.bf16 %v18
    %v20 = vld [vmem:[%s1] sm:$0x1]
    %v21 = vunpack.c.l.bf16 %v20
    %v22 = vsub.f32 %v19, %v21
    %v23 = vld [vmem:[#allocation2] sm:$0x1]
    %v24 = vand.u32 2147483647, %v22
    %vm25 = vcmask 517120
    %v26 = vsel %vm25, %v24, 0.0
    %27 = vadd.xlane.f32.xlu0 %v26
    %v28 = vpop.xlane.xlu0 %27
    %v29 = vrot.slane %v28, 4
    %v30 = vadd.f32 %v28, %v29
    %v31 = vrot.slane %v30, 2
    %v32 = vadd.f32 %v30, %v31
    %v33 = vrot.slane %v32, 1
    %v34 = vadd.f32 %v32, %v33
    %s35 = vtos %v34
    %v36 = vstv %s35
    %v37 = vadd.f32 %v23, %v36
    %vm38 = vcmask 0
    %39 = vst.msk [vmem:[#allocation2] sm:$0x1] %vm38, %v37
    // Predicated region
    $region14: #{mobilenet_perceptual_loss.47} parent=1 // pred_check
      %p40 = pneg %p12
    $region15: #{mobilenet_perceptual_loss.47} parent=1 // pred_check_branch
      %42 = sbr.rel (%p40) target = $region17
    $region16: #{mobilenet_perceptual_loss.47} parent=1 // pred_region
      %v43 = vld [vmem:[#allocation2] sm:$0x1]
      %v44 = vmul.f32 %v43, 0.0078125
      %45 = vst.msk [vmem:[#allocation3] sm:$0x1] %vm38, %v44
    $region17: #{mobilenet_perceptual_loss.47} parent=1 // pred_fallthru
      _
    // Predicated region
    $region18: #{mobilenet_perceptual_loss.47} parent=1 // pred_check
      _
    $region19: #{mobilenet_perceptual_loss.47} parent=1 // pred_check_branch
      %47 = sbr.rel (0) target = $region21
    $region20: #{mobilenet_perceptual_loss.47} parent=1 // pred_region
      %s49 = ssub.s32 16, 16
      %50 = vsyncadd [#allocation4], %s49
      %s52 = sshll.u32 [#allocation3], 4
      %s53 = int_to_ptr.vmem [resolvable:$true] %s52
      %55 = dma.vmem_to_hbm [thread:$0]  %s53, 16, %s2, [#allocation4]
    $region21: #{mobilenet_perceptual_loss.47} parent=1 // pred_fallthru
      _
    // Predicated region
    $region22: #{mobilenet_perceptual_loss.47} parent=1 // pred_check
      _
    $region23: #{mobilenet_perceptual_loss.47} parent=1 // pred_check_branch
      %57 = sbr.rel (0) target = $region25
    $region24: #{mobilenet_perceptual_loss.47} parent=1 // pred_region
      %58 = dma.done [#allocation4], 16
    $region25: #{mobilenet_perceptual_loss.47} parent=1 // pred_fallthru
      _
    %59 = vsyncpa [#allocation4], 1

// kernel: mobilenet_perceptual_loss.46
$region0: #{mobilenet_perceptual_loss.46}
  #allocation0 [shape = 'u32[]', space=smem, size = 0x4, offset = 0x4, fixed_abs, tag = 'smem constant byte address 0x4 - core index']
  #allocation1 [shape = 'u32[144,128]{1,0:T(1,128)}', space=vmem, size = 0x12000, scoped, tag = 'internal scratch']
  %s0 = inlined_call_operand.vmem [shape: bf16[4,192], index: 0, kind: input, shape index: {}]
  %s1 = inlined_call_operand.vmem [shape: bf16[192,64], index: 1, kind: input, shape index: {}]
  %s2 = inlined_call_operand.vmem [shape: f32[1,64], index: 2, kind: input, shape index: {}]
  %s3 = inlined_call_operand.vmem [shape: bf16[4,64], index: 3, kind: output, shape index: {}]
  %s4 = sld [smem:[#allocation0]]
  $region22: #{mobilenet_perceptual_loss.46} parent=0
    _
  %s6 = ssub.s32 1, %s4
  %s7 = scalar_select 0, %s6, %s4
  // Predicated region
  $region2: #{mobilenet_perceptual_loss.46} parent=0 // pred_check
    _
  $region3: #{mobilenet_perceptual_loss.46} parent=0 // pred_check_branch
    %9 = sbr.rel (0) target = $region5
  $region4: #{mobilenet_perceptual_loss.46} parent=0 // pred_region
    _
  $region5: #{mobilenet_perceptual_loss.46} parent=0 // pred_fallthru
    _
  // Predicated region
  $region6: #{mobilenet_perceptual_loss.46} parent=0 // pred_check
    _
  $region7: #{mobilenet_perceptual_loss.46} parent=0 // pred_check_branch
    %11 = sbr.rel (0) target = $region9
  $region8: #{mobilenet_perceptual_loss.46} parent=0 // pred_region
    _
  $region9: #{mobilenet_perceptual_loss.46} parent=0 // pred_fallthru
    _
  // Predicated region
  $region10: #{mobilenet_perceptual_loss.46} parent=0 // pred_check
    _
  $region11: #{mobilenet_perceptual_loss.46} parent=0 // pred_check_branch
    %13 = sbr.rel (0) target = $region13
  $region12: #{mobilenet_perceptual_loss.46} parent=0 // pred_region
    _
  $region13: #{mobilenet_perceptual_loss.46} parent=0 // pred_fallthru
    _
  %v15 = vld [vmem:[%s0] sm:$0xf]
  %v16 = vld [vmem:[%s1] sm:$0xf]
  %v17 = vld [vmem:[%s1 + $0x4] sm:$0xf]
  %v18 = vld [vmem:[%s1 + $0x8] sm:$0xf]
  %v19 = vld [vmem:[%s1 + $0xc] sm:$0xf]
  %v20 = vld [vmem:[%s1 + $0x10] sm:$0xf]
  %v21 = vld [vmem:[%s1 + $0x14] sm:$0xf]
  %v22 = vld [vmem:[%s1 + $0x18] sm:$0xf]
  %v23 = vld [vmem:[%s1 + $0x1c] sm:$0xf]
  %v24 = vld [vmem:[%s1 + $0x20] sm:$0xf]
  %v25 = vld [vmem:[%s1 + $0x24] sm:$0xf]
  %v26 = vld [vmem:[%s1 + $0x28] sm:$0xf]
  %v27 = vld [vmem:[%s1 + $0x2c] sm:$0xf]
  %v28 = vld [vmem:[%s1 + $0x30] sm:$0xf]
  %v29 = vld [vmem:[%s1 + $0x34] sm:$0xf]
  %v30 = vld [vmem:[%s1 + $0x38] sm:$0xf]
  %v31 = vld [vmem:[%s1 + $0x3c] sm:$0xf]
  %v32 = vld [vmem:[%s1 + $0x40] sm:$0xf]
  %v33 = vld [vmem:[%s1 + $0x44] sm:$0xf]
  %v34 = vld [vmem:[%s1 + $0x48] sm:$0xf]
  %v35 = vld [vmem:[%s1 + $0x4c] sm:$0xf]
  %v36 = vld [vmem:[%s1 + $0x50] sm:$0xf]
  %v37 = vld [vmem:[%s1 + $0x54] sm:$0xf]
  %v38 = vld [vmem:[%s1 + $0x58] sm:$0xf]
  %v39 = vld [vmem:[%s1 + $0x5c] sm:$0xf]
  %v40 = vld [vmem:[%s2] sm:$0x1]
  %v42 = vlaneseq
  %v43 = vshrl.u32 %v42, 7
  %v44 = vsub.s32 0, %v43
  %v45 = vrot.slane %v40, %v44
  %v49 = vunpack.c.l.s4 1983009808
  %v50 = vunpack.c.0.s8 %v49
  %v51 = vlaneseq
  %v52 = vshrl.u32 %v51, 7
  %v53 = vsub.s32 %v50, %v52
  %v54 = vrot.slane %v15, %v53
  %v55 = vcombine.high %v54, %v54
  %v81 = vunpack.c.l.b16 %v16
  %v82 = vunpack.c.l.b16 %v17
  %v83 = vunpack.c.l.b16 %v18
  %v84 = vunpack.c.l.b16 %v19
  %v85 = vunpack.c.l.b16 %v20
  %v86 = vunpack.c.l.b16 %v21
  %v87 = vunpack.c.l.b16 %v22
  %v88 = vunpack.c.l.b16 %v23
  %v89 = vunpack.c.l.b16 %v24
  %v90 = vunpack.c.l.b16 %v25
  %v91 = vunpack.c.l.b16 %v26
  %v92 = vunpack.c.l.b16 %v27
  %v93 = vunpack.c.l.b16 %v28
  %v94 = vunpack.c.l.b16 %v29
  %v95 = vunpack.c.l.b16 %v30
  %v96 = vunpack.c.l.b16 %v31
  %v97 = vunpack.c.l.b16 %v32
  %v98 = vunpack.c.l.b16 %v33
  %v99 = vunpack.c.l.b16 %v34
  %v100 = vunpack.c.l.b16 %v35
  %v101 = vunpack.c.l.b16 %v36
  %v102 = vunpack.c.l.b16 %v37
  %v103 = vunpack.c.l.b16 %v38
  %v104 = vunpack.c.l.b16 %v39
  %v105 = vpack.c.b16 %v82, %v81
  %v106 = vpack.c.b16 %v84, %v83
  %v107 = vpack.c.b16 %v86, %v85
  %v108 = vpack.c.b16 %v88, %v87
  %v109 = vpack.c.b16 %v90, %v89
  %v110 = vpack.c.b16 %v92, %v91
  %v111 = vpack.c.b16 %v94, %v93
  %v112 = vpack.c.b16 %v96, %v95
  %v113 = vpack.c.b16 %v98, %v97
  %v114 = vpack.c.b16 %v100, %v99
  %v115 = vpack.c.b16 %v102, %v101
  %v116 = vpack.c.b16 %v104, %v103
  %vm129 = vcmask 523264
  %v131 = vsel %vm129, %v55, 0
  %133 = vmatprep.subr.bf16.mxu0 0
  %134 = vmatpush1.bf16.msra.mxu0 %v112
  %135 = vmatprep.subr.bf16.mxu0 0
  %136 = vmatpush1.bf16.msra.mxu0 %v111
  %137 = vmatprep.subr.bf16.mxu0 0
  %138 = vmatpush1.bf16.msra.mxu0 %v110
  %139 = vmatprep.subr.bf16.mxu0 0
  %140 = vmatpush1.bf16.msra.mxu0 %v109
  %141 = vmatprep.subr.bf16.mxu0 0
  %142 = vmatpush1.bf16.msra.mxu0 %v108
  %143 = vmatprep.subr.bf16.mxu0 0
  %144 = vmatpush1.bf16.msra.mxu0 %v107
  %145 = vmatprep.subr.bf16.mxu0 0
  %146 = vmatpush1.bf16.msra.mxu0 %v106
  %147 = vmatprep.subr.bf16.mxu0 0
  %148 = vmatpush1.bf16.msra.mxu0 %v105
  %149 = vmatprep.subr.bf16.mxu0 0
  %150 = vmatpush2.bf16.msra.mxu0 0
  %151 = vmatprep.subr.bf16.mxu0 0
  %152 = vmatpush2.bf16.msra.mxu0 0
  %153 = vmatprep.subr.bf16.mxu0 0
  %154 = vmatpush2.bf16.msra.mxu0 0
  %155 = vmatprep.subr.bf16.mxu0 0
  %156 = vmatpush2.bf16.msra.mxu0 0
  %157 = vmatprep.subr.bf16.mxu0 0
  %158 = vmatpush2.bf16.msra.mxu0 %v116
  %159 = vmatprep.subr.bf16.mxu0 0
  %160 = vmatpush2.bf16.msra.mxu0 %v115
  %161 = vmatprep.subr.bf16.mxu0 0
  %162 = vmatpush2.bf16.msra.mxu0 %v114
  %163 = vmatprep.subr.bf16.mxu0 0
  %164 = vmatpush2.bf16.msra.mxu0 %v113
  %165 = vmatprep.mubr.bf16.mxu0 %v131
  %166 = vmatmul.mubr.bf16.gmra.mxu0 %v54
  %v167 = vpop.f32.mrf.mxu0
  %v168 = vadd.f32 %v45, %v167
  %v169 = vpop.f32.mrf.mxu0
  %v170 = vpop.f32.mrf.mxu0
  %v171 = vpop.f32.mrf.mxu0
  %172 = vdwg.mxu0
  %v173 = vpack.c.bf16 %v168, %v168
  %vm174 = vcmask 517120
  %175 = vst.msk [vmem:[%s3] sm:$0x3] %vm174, %v173
  // Predicated region
  $region14: #{mobilenet_perceptual_loss.46} parent=0 // pred_check
    _
  $region15: #{mobilenet_perceptual_loss.46} parent=0 // pred_check_branch
    %177 = sbr.rel (0) target = $region17
  $region16: #{mobilenet_perceptual_loss.46} parent=0 // pred_region
    _
  $region17: #{mobilenet_perceptual_loss.46} parent=0 // pred_fallthru
    _
  // Predicated region
  $region18: #{mobilenet_perceptual_loss.46} parent=0 // pred_check
    _
  $region19: #{mobilenet_perceptual_loss.46} parent=0 // pred_check_branch
    %179 = sbr.rel (0) target = $region21
  $region20: #{mobilenet_perceptual_loss.46} parent=0 // pred_region
    _
  $region21: #{mobilenet_perceptual_loss.46} parent=0 // pred_fallthru
    _

// kernel: mobilenet_perceptual_loss.37
$region0: #{mobilenet_perceptual_loss.37}
  #allocation0 [shape = 'u32[]', space=smem, size = 0x4, offset = 0x4, fixed_abs, tag = 'smem constant byte address 0x4 - core index']
  #allocation1 [shape = 'u32[144,128]{1,0:T(1,128)}', space=vmem, size = 0x12000, scoped, tag = 'internal scratch']
  #allocation2 [shape = 'f32[1,1]{1,0:T(1,128)}', space=vmem, size = 0x200, scoped, tag = 'scratch operand']
  %s0 = inlined_call_operand.vmem [shape: bf16[8,32], index: 0, kind: input, shape index: {}]
  %s1 = inlined_call_operand.vmem [shape: bf16[8,32], index: 1, kind: input, shape index: {}]
  %s2 = inlined_call_operand.hbm [shape: f32[1,1], index: 2, kind: output, shape index: {}]
  %s3 = sld [smem:[#allocation0]]
  $region26: #{mobilenet_perceptual_loss.37} parent=0
    _
  %s5 = ssub.s32 1, %s3
  %s6 = scalar_select 0, %s5, %s3
  $region1: #{mobilenet_perceptual_loss.37} parent=0
    #allocation3 [shape = 'u8[512]{0}', space=vmem, size = 0x400, scoped, tag = 'output window, operand 0, single buffered']
    #allocation4 [shape = 's32[1]{0}', space=sflag, size = 0x4, scoped, tag = 'scoped memory for mobilenet_perceptual_loss.37']
    %7 = vsyncpa [#allocation4], 0
    // Predicated region
    $region2: #{mobilenet_perceptual_loss.37} parent=1 // pred_check
      _
    $region3: #{mobilenet_perceptual_loss.37} parent=1 // pred_check_branch
      %9 = sbr.rel (0) target = $region5
    $region4: #{mobilenet_perceptual_loss.37} parent=1 // pred_region
      _
    $region5: #{mobilenet_perceptual_loss.37} parent=1 // pred_fallthru
      _
    // Predicated region
    $region6: #{mobilenet_perceptual_loss.37} parent=1 // pred_check
      _
    $region7: #{mobilenet_perceptual_loss.37} parent=1 // pred_check_branch
      %11 = sbr.rel (0) target = $region9
    $region8: #{mobilenet_perceptual_loss.37} parent=1 // pred_region
      _
    $region9: #{mobilenet_perceptual_loss.37} parent=1 // pred_fallthru
      _
    %p12 = scmp.eq.s32.totalorder 0, 0
    // Predicated region
    $region10: #{mobilenet_perceptual_loss.37} parent=1 // pred_check
      %p13 = pneg %p12
    $region11: #{mobilenet_perceptual_loss.37} parent=1 // pred_check_branch
      %15 = sbr.rel (%p13) target = $region13
    $region12: #{mobilenet_perceptual_loss.37} parent=1 // pred_region
      %vm16 = vcmask 0
      %17 = vst.msk [vmem:[#allocation2] sm:$0x1] %vm16, 0.0
    $region13: #{mobilenet_perceptual_loss.37} parent=1 // pred_fallthru
      _
    %v18 = vld [vmem:[%s0] sm:$0xf]
    %v19 = vunpack.c.l.bf16 %v18
    %v20 = vld [vmem:[%s1] sm:$0xf]
    %v21 = vunpack.c.l.bf16 %v20
    %v22 = vsub.f32 %v19, %v21
    %v23 = vld [vmem:[#allocation2] sm:$0x1]
    %v24 = vand.u32 2147483647, %v22
    %vm25 = vcmask 261120
    %v26 = vsel %vm25, %v24, 0.0
    %27 = vadd.xlane.f32.xlu0 %v26
    %v28 = vpop.xlane.xlu0 %27
    %v29 = vrot.slane %v28, 4
    %v30 = vadd.f32 %v28, %v29
    %v31 = vrot.slane %v30, 2
    %v32 = vadd.f32 %v30, %v31
    %v33 = vrot.slane %v32, 1
    %v34 = vadd.f32 %v32, %v33
    %s35 = vtos %v34
    %v36 = vstv %s35
    %v37 = vadd.f32 %v23, %v36
    %vm38 = vcmask 0
    %39 = vst.msk [vmem:[#allocation2] sm:$0x1] %vm38, %v37
    // Predicated region
    $region14: #{mobilenet_perceptual_loss.37} parent=1 // pred_check
      %p40 = pneg %p12
    $region15: #{mobilenet_perceptual_loss.37} parent=1 // pred_check_branch
      %42 = sbr.rel (%p40) target = $region17
    $region16: #{mobilenet_perceptual_loss.37} parent=1 // pred_region
      %v43 = vld [vmem:[#allocation2] sm:$0x1]
      %v44 = vmul.f32 %v43, 0.00390625
      %45 = vst.msk [vmem:[#allocation3] sm:$0x1] %vm38, %v44
    $region17: #{mobilenet_perceptual_loss.37} parent=1 // pred_fallthru
      _
    // Predicated region
    $region18: #{mobilenet_perceptual_loss.37} parent=1 // pred_check
      _
    $region19: #{mobilenet_perceptual_loss.37} parent=1 // pred_check_branch
      %47 = sbr.rel (0) target = $region21
    $region20: #{mobilenet_perceptual_loss.37} parent=1 // pred_region
      %s49 = ssub.s32 16, 16
      %50 = vsyncadd [#allocation4], %s49
      %s52 = sshll.u32 [#allocation3], 4
      %s53 = int_to_ptr.vmem [resolvable:$true] %s52
      %55 = dma.vmem_to_hbm [thread:$0]  %s53, 16, %s2, [#allocation4]
    $region21: #{mobilenet_perceptual_loss.37} parent=1 // pred_fallthru
      _
    // Predicated region
    $region22: #{mobilenet_perceptual_loss.37} parent=1 // pred_check
      _
    $region23: #{mobilenet_perceptual_loss.37} parent=1 // pred_check_branch
      %57 = sbr.rel (0) target = $region25
    $region24: #{mobilenet_perceptual_loss.37} parent=1 // pred_region
      %58 = dma.done [#allocation4], 16
    $region25: #{mobilenet_perceptual_loss.37} parent=1 // pred_fallthru
      _
    %59 = vsyncpa [#allocation4], 1

// kernel: mobilenet_perceptual_loss.30
$region0: #{mobilenet_perceptual_loss.30}
  #allocation0 [shape = 'u32[]', space=smem, size = 0x4, offset = 0x4, fixed_abs, tag = 'smem constant byte address 0x4 - core index']
  #allocation1 [shape = 'u32[144,128]{1,0:T(1,128)}', space=vmem, size = 0x12000, scoped, tag = 'internal scratch']
  #allocation2 [shape = 'f32[1,1]{1,0:T(1,128)}', space=vmem, size = 0x200, scoped, tag = 'scratch operand']
  %s0 = inlined_call_operand.vmem [shape: bf16[32,24], index: 0, kind: input, shape index: {}]
  %s1 = inlined_call_operand.vmem [shape: bf16[32,24], index: 1, kind: input, shape index: {}]
  %s2 = inlined_call_operand.hbm [shape: f32[1,1], index: 2, kind: output, shape index: {}]
  %s3 = sld [smem:[#allocation0]]
  $region26: #{mobilenet_perceptual_loss.30} parent=0
    _
  %s5 = ssub.s32 1, %s3
  %s6 = scalar_select 0, %s5, %s3
  $region1: #{mobilenet_perceptual_loss.30} parent=0
    #allocation3 [shape = 'u8[512]{0}', space=vmem, size = 0x400, scoped, tag = 'output window, operand 0, single buffered']
    #allocation4 [shape = 's32[1]{0}', space=sflag, size = 0x4, scoped, tag = 'scoped memory for mobilenet_perceptual_loss.30']
    %7 = vsyncpa [#allocation4], 0
    // Predicated region
    $region2: #{mobilenet_perceptual_loss.30} parent=1 // pred_check
      _
    $region3: #{mobilenet_perceptual_loss.30} parent=1 // pred_check_branch
      %9 = sbr.rel (0) target = $region5
    $region4: #{mobilenet_perceptual_loss.30} parent=1 // pred_region
      _
    $region5: #{mobilenet_perceptual_loss.30} parent=1 // pred_fallthru
      _
    // Predicated region
    $region6: #{mobilenet_perceptual_loss.30} parent=1 // pred_check
      _
    $region7: #{mobilenet_perceptual_loss.30} parent=1 // pred_check_branch
      %11 = sbr.rel (0) target = $region9
    $region8: #{mobilenet_perceptual_loss.30} parent=1 // pred_region
      _
    $region9: #{mobilenet_perceptual_loss.30} parent=1 // pred_fallthru
      _
    %p12 = scmp.eq.s32.totalorder 0, 0
    // Predicated region
    $region10: #{mobilenet_perceptual_loss.30} parent=1 // pred_check
      %p13 = pneg %p12
    $region11: #{mobilenet_perceptual_loss.30} parent=1 // pred_check_branch
      %15 = sbr.rel (%p13) target = $region13
    $region12: #{mobilenet_perceptual_loss.30} parent=1 // pred_region
      %vm16 = vcmask 0
      %17 = vst.msk [vmem:[#allocation2] sm:$0x1] %vm16, 0.0
    $region13: #{mobilenet_perceptual_loss.30} parent=1 // pred_fallthru
      _
    %v18 = vld [vmem:[%s0] sm:$0xf]
    %v19 = vld [vmem:[%s0 + $0x4] sm:$0xf]
    %v20 = vld [vmem:[%s0 + $0x8] sm:$0xf]
    %v21 = vld [vmem:[%s0 + $0xc] sm:$0xf]
    %v22 = vunpack.c.l.bf16 %v18
    %v23 = vunpack.c.l.bf16 %v19
    %v24 = vunpack.c.l.bf16 %v20
    %v25 = vunpack.c.l.bf16 %v21
    %v26 = vld [vmem:[%s1] sm:$0xf]
    %v27 = vld [vmem:[%s1 + $0x4] sm:$0xf]
    %v28 = vld [vmem:[%s1 + $0x8] sm:$0xf]
    %v29 = vld [vmem:[%s1 + $0xc] sm:$0xf]
    %v30 = vunpack.c.l.bf16 %v26
    %v31 = vunpack.c.l.bf16 %v27
    %v32 = vunpack.c.l.bf16 %v28
    %v33 = vunpack.c.l.bf16 %v29
    %v34 = vsub.f32 %v22, %v30
    %v35 = vsub.f32 %v23, %v31
    %v36 = vsub.f32 %v24, %v32
    %v37 = vsub.f32 %v25, %v33
    %v38 = vld [vmem:[#allocation2] sm:$0x1]
    %v39 = vand.u32 2147483647, %v34
    %v40 = vand.u32 2147483647, %v35
    %v41 = vand.u32 2147483647, %v36
    %v42 = vand.u32 2147483647, %v37
    %vm43 = vcmask 195584
    %v44 = vsel %vm43, %v39, 0.0
    %v45 = vsel %vm43, %v40, 0.0
    %v46 = vadd.f32 %v44, %v45
    %v47 = vsel %vm43, %v41, 0.0
    %v48 = vadd.f32 %v46, %v47
    %v49 = vsel %vm43, %v42, 0.0
    %v50 = vadd.f32 %v48, %v49
    %51 = vadd.xlane.f32.xlu0 %v50
    %v52 = vpop.xlane.xlu0 %51
    %v53 = vrot.slane %v52, 4
    %v54 = vadd.f32 %v52, %v53
    %v55 = vrot.slane %v54, 2
    %v56 = vadd.f32 %v54, %v55
    %v57 = vrot.slane %v56, 1
    %v58 = vadd.f32 %v56, %v57
    %s59 = vtos %v58
    %v60 = vstv %s59
    %v61 = vadd.f32 %v38, %v60
    %vm62 = vcmask 0
    %63 = vst.msk [vmem:[#allocation2] sm:$0x1] %vm62, %v61
    // Predicated region
    $region14: #{mobilenet_perceptual_loss.30} parent=1 // pred_check
      %p64 = pneg %p12
    $region15: #{mobilenet_perceptual_loss.30} parent=1 // pred_check_branch
      %66 = sbr.rel (%p64) target = $region17
    $region16: #{mobilenet_perceptual_loss.30} parent=1 // pred_region
      %v67 = vld [vmem:[#allocation2] sm:$0x1]
      %v68 = vmul.f32 %v67, 0.0013020834
      %69 = vst.msk [vmem:[#allocation3] sm:$0x1] %vm62, %v68
    $region17: #{mobilenet_perceptual_loss.30} parent=1 // pred_fallthru
      _
    // Predicated region
    $region18: #{mobilenet_perceptual_loss.30} parent=1 // pred_check
      _
    $region19: #{mobilenet_perceptual_loss.30} parent=1 // pred_check_branch
      %71 = sbr.rel (0) target = $region21
    $region20: #{mobilenet_perceptual_loss.30} parent=1 // pred_region
      %s73 = ssub.s32 16, 16
      %74 = vsyncadd [#allocation4], %s73
      %s76 = sshll.u32 [#allocation3], 4
      %s77 = int_to_ptr.vmem [resolvable:$true] %s76
      %79 = dma.vmem_to_hbm [thread:$0]  %s77, 16, %s2, [#allocation4]
    $region21: #{mobilenet_perceptual_loss.30} parent=1 // pred_fallthru
      _
    // Predicated region
    $region22: #{mobilenet_perceptual_loss.30} parent=1 // pred_check
      _
    $region23: #{mobilenet_perceptual_loss.30} parent=1 // pred_check_branch
      %81 = sbr.rel (0) target = $region25
    $region24: #{mobilenet_perceptual_loss.30} parent=1 // pred_region
      %82 = dma.done [#allocation4], 16
    $region25: #{mobilenet_perceptual_loss.30} parent=1 // pred_fallthru
      _
    %83 = vsyncpa [#allocation4], 1

</llo_original>
